<compile_context>
chip_gen: v6e
topology: v6e:2x2x1
jax: 0.10.0
libtpu: 0.0.40
codegen_flags: <defaults>
</compile_context>

<pallas_src>
import math
import functools

import numpy as np
import jax
import jax.numpy as jnp
from jax.experimental import pallas as pl
from jax.experimental.pallas import tpu as pltpu


# -----------------------------------------------------------------------------
# Parameter / embedding construction (plain JAX glue)
# -----------------------------------------------------------------------------
def _gen_embedding(length, channels, min_timescale=1.0, max_timescale=1.0e4):
    """Standard sinusoidal timing signal, shape (1, length, channels)."""
    position = np.arange(length, dtype=np.float32)
    num_timescales = channels // 2
    log_inc = math.log(float(max_timescale) / float(min_timescale)) / max(
        num_timescales - 1, 1
    )
    inv_timescales = min_timescale * np.exp(
        np.arange(num_timescales, dtype=np.float32) * -log_inc
    )
    scaled_time = position[:, None] * inv_timescales[None, :]
    signal = np.concatenate([np.sin(scaled_time), np.cos(scaled_time)], axis=1)
    signal = np.pad(signal, [[0, 0], [0, channels % 2]])
    return jnp.asarray(signal.reshape(1, length, channels), dtype=jnp.float32)


def init_params(key, hidden_size, max_step, seq_length):
    D = hidden_size
    Dff = 4 * D
    ks = jax.random.split(key, 12)

    def lin(k, fan_in, shape):
        bound = 1.0 / math.sqrt(fan_in)
        return jax.random.uniform(k, shape, jnp.float32, -bound, bound)

    return {
        "pos_emb": _gen_embedding(seq_length, D),            # (1, seq_length, D)
        "rec_emb": _gen_embedding(max_step, D),               # (1, max_step, D)
        # DHM halting linear p: Linear(D, 1), bias filled with 1.0
        "p_w": lin(ks[0], D, (1, D)),
        "p_b": jnp.ones((1, 1), jnp.float32),
        # attention block weights
        "wq": lin(ks[1], D, (D, D)), "bq": lin(ks[2], D, (1, D)),
        "wk": lin(ks[3], D, (D, D)), "bk": lin(ks[4], D, (1, D)),
        "wv": lin(ks[5], D, (D, D)), "bv": lin(ks[6], D, (1, D)),
        "wo": lin(ks[7], D, (D, D)), "bo": lin(ks[8], D, (1, D)),
        "w1": lin(ks[9], D, (D, Dff)), "b1": lin(ks[10], D, (1, Dff)),
        "w2": lin(ks[11], Dff, (Dff, D)), "b2": jnp.zeros((1, D), jnp.float32),
        "ln1_g": jnp.ones((1, D), jnp.float32),
        "ln1_b": jnp.zeros((1, D), jnp.float32),
        "ln2_g": jnp.ones((1, D), jnp.float32),
        "ln2_b": jnp.zeros((1, D), jnp.float32),
    }


_WEIGHT_NAMES = ["p_w", "p_b", "wq", "bq", "wk", "bk", "wv", "bv", "wo", "bo",
                 "w1", "b1", "w2", "b2", "ln1_g", "ln1_b", "ln2_g", "ln2_b"]


# -----------------------------------------------------------------------------
# Pallas kernel: full DHM adaptive-halting loop for one block of TB elements
# -----------------------------------------------------------------------------
def _dhm_kernel(x_ref, ste_ref, posrec_ref,
                pw_ref, pb_ref,
                wq_ref, bq_ref, wk_ref, bk_ref, wv_ref, bv_ref, wo_ref, bo_ref,
                w1_ref, b1_ref, w2_ref, b2_ref,
                g1_ref, be1_ref, g2_ref, be2_ref,
                out_ref, rem_ref, nup_ref,
                *, threshold, max_step, num_heads):
    TB, N, D = x_ref.shape
    H = num_heads
    dh = D // H
    R = TB * N                              # flattened row count for matmuls

    # ---- hoisted loads: once per program, shared by every halting step ------
    x0 = x_ref[...]                         # (TB, N, D) f32
    ste2 = ste_ref[...].reshape(R, D)       # (R, D)  (free relayout: N == 8)
    pw = pw_ref[...]                        # (1, D)  halting head stays f32
    pb = pb_ref[...]                        # (1, 1)
    # matmul weights pre-cast to bf16 at the MXU boundary (accumulate in f32)
    wq = wq_ref[...].astype(jnp.bfloat16); bq = bq_ref[...]
    wk = wk_ref[...].astype(jnp.bfloat16); bk = bk_ref[...]
    wv = wv_ref[...].astype(jnp.bfloat16); bv = bv_ref[...]
    wo = wo_ref[...].astype(jnp.bfloat16); bo = bo_ref[...]
    w1 = w1_ref[...].astype(jnp.bfloat16); b1 = b1_ref[...]
    w2 = w2_ref[...].astype(jnp.bfloat16); b2 = b2_ref[...]
    g1 = g1_ref[...]; be1 = be1_ref[...]
    g2 = g2_ref[...]; be2 = be2_ref[...]
    scale = 1.0 / math.sqrt(dh)

    def layer_norm(v, g, b, eps=1e-6):
        mu = jnp.mean(v, axis=-1, keepdims=True)
        var = jnp.mean((v - mu) ** 2, axis=-1, keepdims=True)
        return (v - mu) * jax.lax.rsqrt(var + eps) * g + b

    def attention_block(state2):
        # TODO(synk): AttentionLayer / LayerNorm sources were not provided in
        # the reference; implemented as a standard spatial multi-head
        # self-attention (STE added to the attention input) + residual/LN +
        # position-wise FFN, with all dropouts = 0.
        xin = (state2 + ste2).astype(jnp.bfloat16)          # (R, D)
        q = jnp.dot(xin, wq, preferred_element_type=jnp.float32) + bq
        k = jnp.dot(xin, wk, preferred_element_type=jnp.float32) + bk
        v = jnp.dot(xin, wv, preferred_element_type=jnp.float32) + bv

        attn = jnp.zeros((R, D), jnp.float32)
        # Static head loop; each head is one batched contraction over TB rows.
        # The concat over heads is replaced by accumulating per-head slices of
        # W_o (attn @ Wo == sum_h ctx_h @ Wo[h*dh:(h+1)*dh, :]).
        for h in range(H):
            sl = slice(h * dh, (h + 1) * dh)
            qh = q[:, sl].reshape(TB, N, dh).astype(jnp.bfloat16)
            kh = k[:, sl].reshape(TB, N, dh).astype(jnp.bfloat16)
            vh = v[:, sl].reshape(TB, N, dh).astype(jnp.bfloat16)
            s = jnp.einsum("bqd,bkd->bqk", qh, kh,
                           preferred_element_type=jnp.float32) * scale  # (TB,N,N)
            s = s - jnp.max(s, axis=-1, keepdims=True)
            e = jnp.exp(s)
            a = e * pl.reciprocal(jnp.sum(e, axis=-1, keepdims=True), approx=True)
            ctx = jnp.einsum("bqk,bkd->bqd", a.astype(jnp.bfloat16), vh,
                             preferred_element_type=jnp.float32)        # (TB,N,dh)
            attn = attn + jnp.dot(ctx.reshape(R, dh).astype(jnp.bfloat16),
                                  wo[sl, :],
                                  preferred_element_type=jnp.float32)
        attn = attn + bo

        y = layer_norm(state2 + attn, g1, be1)
        hdn = jax.nn.relu(
            jnp.dot(y.astype(jnp.bfloat16), w1,
                    preferred_element_type=jnp.float32) + b1)
        ffn = jnp.dot(hdn.astype(jnp.bfloat16), w2,
                      preferred_element_type=jnp.float32) + b2
        return layer_norm(y + ffn, g2, be2)

    def step_fn(step, carry):
        state, hp, rem, nup, prev = carry
        # positional + recurrent embedding for this halting step
        state = state + posrec_ref[step]                    # (N, D) bcast over TB

        # p = sigmoid(Linear(D->1)(state)), kept in f32
        logit = jnp.sum(state * pw, axis=-1, keepdims=True) + pb   # (TB, N, 1)
        p = jax.nn.sigmoid(logit)

        sr0 = (hp < 1.0).astype(jnp.float32)
        cond = hp + p * sr0
        new_halted = (cond > threshold).astype(jnp.float32) * sr0
        sr = (cond <= threshold).astype(jnp.float32) * sr0
        hp = hp + p * sr
        rem = rem + new_halted * (1.0 - hp)
        hp = hp + new_halted * rem
        # Sticky halting: clamp newly-halted elements to exactly 1.0 so every
        # later iteration is an exact no-op for them (matches the PyTorch
        # data-dependent while loop, robust to f32 rounding).
        hp = jnp.where(new_halted > 0.0, jnp.float32(1.0), hp)
        nup = nup + sr + new_halted
        uw = p * sr + new_halted * rem                       # update_weights

        new_state = attention_block(state.reshape(R, D)).reshape(TB, N, D)
        prev = new_state * uw + prev * (1.0 - uw)
        return new_state, hp, rem, nup, prev

    col0 = jnp.zeros((TB, N, 1), jnp.float32)
    init = (x0, col0, col0, col0, jnp.zeros_like(x0))
    _, _, rem, nup, prev = jax.lax.fori_loop(0, max_step, step_fn, init)

    out_ref[...] = prev
    rem_ref[...] = rem
    nup_ref[...] = nup


# -----------------------------------------------------------------------------
# Wrapper: AdaptiveTransformer.forward(inputs, STE) with dhm=True
# -----------------------------------------------------------------------------
def adaptive_transformer_forward(params, inputs, ste, *, epsilon, max_step,
                                 num_heads, block_bt=None):
    B, T, N, D = inputs.shape
    BT = B * T

    # TB = rows of B*T processed per program.  Keep >= 2 grid steps when
    # possible (v7x has 2 TensorCores) and the tiles well under VMEM limits.
    if block_bt is None:
        block_bt = min(256, BT)
    TB = max(1, block_bt)
    nblk = pl.cdiv(BT, TB)
    BT_pad = nblk * TB

    # input_dropout with p=0.0 -> identity
    x_f = inputs.reshape(BT, N, D).astype(jnp.float32)
    ste_f = ste.reshape(BT, N, D).astype(jnp.float32)
    if BT_pad != BT:
        pad = BT_pad - BT
        x_f = jnp.pad(x_f, ((0, pad), (0, 0), (0, 0)))
        ste_f = jnp.pad(ste_f, ((0, pad), (0, 0), (0, 0)))

    # precombined positional + recurrent embeddings: (max_step, N, D)
    pos = params["pos_emb"][0, :N, :]
    rec = params["rec_emb"][0]
    posrec = pos[None, :, :] + rec[:, None, :]
    threshold = 1.0 - epsilon

    weights = [params[n] for n in _WEIGHT_NAMES]

    def const_spec(shape):
        return pl.BlockSpec(shape, lambda b, _nd=len(shape): (0,) * _nd)

    in_specs = [
        pl.BlockSpec((TB, N, D), lambda b: (b, 0, 0)),       # x block
        pl.BlockSpec((TB, N, D), lambda b: (b, 0, 0)),       # STE block
        const_spec(posrec.shape),                            # pos+rec embeddings
    ] + [const_spec(w.shape) for w in weights]

    out_shapes = (
        jax.ShapeDtypeStruct((BT_pad, N, D), jnp.float32),   # previous_state
        jax.ShapeDtypeStruct((BT_pad, N, 1), jnp.float32),   # remainders
        jax.ShapeDtypeStruct((BT_pad, N, 1), jnp.float32),   # n_updates
    )
    out_specs = [
        pl.BlockSpec((TB, N, D), lambda b: (b, 0, 0)),
        pl.BlockSpec((TB, N, 1), lambda b: (b, 0, 0)),
        pl.BlockSpec((TB, N, 1), lambda b: (b, 0, 0)),
    ]

    kernel = functools.partial(_dhm_kernel, threshold=threshold,
                               max_step=max_step, num_heads=num_heads)

    prev, rem, nup = pl.pallas_call(
        kernel,
        out_shape=out_shapes,
        grid_spec=pltpu.PrefetchScalarGridSpec(
            num_scalar_prefetch=0,
            grid=(nblk,),
            in_specs=in_specs,
            out_specs=out_specs,
        ),
        compiler_params=pltpu.CompilerParams(
            dimension_semantics=("parallel",),
            # explicit scoped-VMEM limit: above the v5e/v6e defaults, with
            # headroom under the 64 MiB physical VMEM of v7x.
            vmem_limit_bytes=48 * 1024 * 1024,
        ),
    )(x_f, ste_f, posrec, *weights)

    out = prev[:BT].reshape(B, T, N, D)
    # remainders / n_updates returned as (B*T, N), matching the PyTorch module
    return out, (rem[:BT, :, 0], nup[:BT, :, 0])


# -----------------------------------------------------------------------------
if __name__ == "__main__":
    key = jax.random.PRNGKey(0)
    B, T, N, D = 2, 8, 8, 32          # batch, time, spatial nodes, hidden
    num_heads = 4
    max_step = 4
    seq_length = 8                    # >= N (position embedding length)
    epsilon = 0.1

    k_par, k_in, k_ste = jax.random.split(key, 3)
    params = init_params(k_par, D, max_step, seq_length)
    inputs = jax.random.normal(k_in, (B, T, N, D), jnp.float32)
    STE = 0.1 * jax.random.normal(k_ste, (B, T, N, D), jnp.float32)

    out, (remainders, n_updates) = adaptive_transformer_forward(
        params, inputs, STE, epsilon=epsilon, max_step=max_step,
        num_heads=num_heads, block_bt=8)   # 2 grid steps at this demo size

    jax.block_until_ready(out)
    jax.block_until_ready(remainders)
    jax.block_until_ready(n_updates)

    assert out.shape == (B, T, N, D)
    assert remainders.shape == (B * T, N)
    assert n_updates.shape == (B * T, N)
    assert bool(jnp.all(jnp.isfinite(out)))
    assert bool(jnp.all(jnp.isfinite(remainders)))
    assert bool(jnp.all(jnp.isfinite(n_updates)))

    print("KERNEL_OK")
</pallas_src>

<mosaic_0001>
module attributes {stable_mosaic.version = 11 : i64} {
  func.func @_dhm_kernel(%arg0: i32, %arg1: memref<8x8x32xf32, #tpu.memory_space<vmem>>, %arg2: memref<8x8x32xf32, #tpu.memory_space<vmem>>, %arg3: memref<4x8x32xf32, #tpu.memory_space<vmem>>, %arg4: memref<1x32xf32, #tpu.memory_space<vmem>>, %arg5: memref<1x1xf32, #tpu.memory_space<vmem>>, %arg6: memref<32x32xf32, #tpu.memory_space<vmem>>, %arg7: memref<1x32xf32, #tpu.memory_space<vmem>>, %arg8: memref<32x32xf32, #tpu.memory_space<vmem>>, %arg9: memref<1x32xf32, #tpu.memory_space<vmem>>, %arg10: memref<32x32xf32, #tpu.memory_space<vmem>>, %arg11: memref<1x32xf32, #tpu.memory_space<vmem>>, %arg12: memref<32x32xf32, #tpu.memory_space<vmem>>, %arg13: memref<1x32xf32, #tpu.memory_space<vmem>>, %arg14: memref<32x128xf32, #tpu.memory_space<vmem>>, %arg15: memref<1x128xf32, #tpu.memory_space<vmem>>, %arg16: memref<128x32xf32, #tpu.memory_space<vmem>>, %arg17: memref<1x32xf32, #tpu.memory_space<vmem>>, %arg18: memref<1x32xf32, #tpu.memory_space<vmem>>, %arg19: memref<1x32xf32, #tpu.memory_space<vmem>>, %arg20: memref<1x32xf32, #tpu.memory_space<vmem>>, %arg21: memref<1x32xf32, #tpu.memory_space<vmem>>, %arg22: memref<8x8x32xf32, #tpu.memory_space<vmem>>, %arg23: memref<8x8x1xf32, #tpu.memory_space<vmem>>, %arg24: memref<8x8x1xf32, #tpu.memory_space<vmem>>) attributes {dimension_semantics = [#tpu.dimension_semantics<parallel>], iteration_bounds = array<i64: 2>, scalar_prefetch = 0 : i64, scratch_operands = 0 : i64, tpu.core_type = #tpu.core_type<tc>, window_params = [{transform_indices = @transform_0, window_bounds = array<i64: 8, 8, 32>}, {transform_indices = @transform_1, window_bounds = array<i64: 8, 8, 32>}, {pipeline_mode = #tpu.pipeline_mode<synchronous>, transform_indices = @transform_2, window_bounds = array<i64: 4, 8, 32>}, {pipeline_mode = #tpu.pipeline_mode<synchronous>, transform_indices = @transform_3, window_bounds = array<i64: 1, 32>}, {pipeline_mode = #tpu.pipeline_mode<synchronous>, transform_indices = @transform_4, window_bounds = array<i64: 1, 1>}, {pipeline_mode = #tpu.pipeline_mode<synchronous>, transform_indices = @transform_5, window_bounds = array<i64: 32, 32>}, {pipeline_mode = #tpu.pipeline_mode<synchronous>, transform_indices = @transform_6, window_bounds = array<i64: 1, 32>}, {pipeline_mode = #tpu.pipeline_mode<synchronous>, transform_indices = @transform_7, window_bounds = array<i64: 32, 32>}, {pipeline_mode = #tpu.pipeline_mode<synchronous>, transform_indices = @transform_8, window_bounds = array<i64: 1, 32>}, {pipeline_mode = #tpu.pipeline_mode<synchronous>, transform_indices = @transform_9, window_bounds = array<i64: 32, 32>}, {pipeline_mode = #tpu.pipeline_mode<synchronous>, transform_indices = @transform_10, window_bounds = array<i64: 1, 32>}, {pipeline_mode = #tpu.pipeline_mode<synchronous>, transform_indices = @transform_11, window_bounds = array<i64: 32, 32>}, {pipeline_mode = #tpu.pipeline_mode<synchronous>, transform_indices = @transform_12, window_bounds = array<i64: 1, 32>}, {pipeline_mode = #tpu.pipeline_mode<synchronous>, transform_indices = @transform_13, window_bounds = array<i64: 32, 128>}, {pipeline_mode = #tpu.pipeline_mode<synchronous>, transform_indices = @transform_14, window_bounds = array<i64: 1, 128>}, {pipeline_mode = #tpu.pipeline_mode<synchronous>, transform_indices = @transform_15, window_bounds = array<i64: 128, 32>}, {pipeline_mode = #tpu.pipeline_mode<synchronous>, transform_indices = @transform_16, window_bounds = array<i64: 1, 32>}, {pipeline_mode = #tpu.pipeline_mode<synchronous>, transform_indices = @transform_17, window_bounds = array<i64: 1, 32>}, {pipeline_mode = #tpu.pipeline_mode<synchronous>, transform_indices = @transform_18, window_bounds = array<i64: 1, 32>}, {pipeline_mode = #tpu.pipeline_mode<synchronous>, transform_indices = @transform_19, window_bounds = array<i64: 1, 32>}, {pipeline_mode = #tpu.pipeline_mode<synchronous>, transform_indices = @transform_20, window_bounds = array<i64: 1, 32>}, {transform_indices = @transform_21, window_bounds = array<i64: 8, 8, 32>}, {transform_indices = @transform_22, window_bounds = array<i64: 8, 8, 1>}, {transform_indices = @transform_23, window_bounds = array<i64: 8, 8, 1>}]} {
    %c0 = arith.constant 0 : index
    %c0_0 = arith.constant 0 : index
    %c0_1 = arith.constant 0 : index
    %0 = vector.load %arg1[%c0, %c0_0, %c0_1] : memref<8x8x32xf32, #tpu.memory_space<vmem>>, vector<8x8x32xf32>
    %c0_2 = arith.constant 0 : index
    %c0_3 = arith.constant 0 : index
    %c0_4 = arith.constant 0 : index
    %1 = vector.load %arg2[%c0_2, %c0_3, %c0_4] : memref<8x8x32xf32, #tpu.memory_space<vmem>>, vector<8x8x32xf32>
    %2 = vector.shape_cast %1 : vector<8x8x32xf32> to vector<64x32xf32>
    %c0_5 = arith.constant 0 : index
    %c0_6 = arith.constant 0 : index
    %3 = vector.load %arg4[%c0_5, %c0_6] : memref<1x32xf32, #tpu.memory_space<vmem>>, vector<1x32xf32>
    %c0_7 = arith.constant 0 : index
    %c0_8 = arith.constant 0 : index
    %4 = vector.load %arg5[%c0_7, %c0_8] : memref<1x1xf32, #tpu.memory_space<vmem>>, vector<1x1xf32>
    %c0_9 = arith.constant 0 : index
    %c0_10 = arith.constant 0 : index
    %5 = vector.load %arg6[%c0_9, %c0_10] : memref<32x32xf32, #tpu.memory_space<vmem>>, vector<32x32xf32>
    %6 = arith.truncf %5 : vector<32x32xf32> to vector<32x32xbf16>
    %c0_11 = arith.constant 0 : index
    %c0_12 = arith.constant 0 : index
    %7 = vector.load %arg7[%c0_11, %c0_12] : memref<1x32xf32, #tpu.memory_space<vmem>>, vector<1x32xf32>
    %c0_13 = arith.constant 0 : index
    %c0_14 = arith.constant 0 : index
    %8 = vector.load %arg8[%c0_13, %c0_14] : memref<32x32xf32, #tpu.memory_space<vmem>>, vector<32x32xf32>
    %9 = arith.truncf %8 : vector<32x32xf32> to vector<32x32xbf16>
    %c0_15 = arith.constant 0 : index
    %c0_16 = arith.constant 0 : index
    %10 = vector.load %arg9[%c0_15, %c0_16] : memref<1x32xf32, #tpu.memory_space<vmem>>, vector<1x32xf32>
    %c0_17 = arith.constant 0 : index
    %c0_18 = arith.constant 0 : index
    %11 = vector.load %arg10[%c0_17, %c0_18] : memref<32x32xf32, #tpu.memory_space<vmem>>, vector<32x32xf32>
    %12 = arith.truncf %11 : vector<32x32xf32> to vector<32x32xbf16>
    %c0_19 = arith.constant 0 : index
    %c0_20 = arith.constant 0 : index
    %13 = vector.load %arg11[%c0_19, %c0_20] : memref<1x32xf32, #tpu.memory_space<vmem>>, vector<1x32xf32>
    %c0_21 = arith.constant 0 : index
    %c0_22 = arith.constant 0 : index
    %14 = vector.load %arg12[%c0_21, %c0_22] : memref<32x32xf32, #tpu.memory_space<vmem>>, vector<32x32xf32>
    %15 = arith.truncf %14 : vector<32x32xf32> to vector<32x32xbf16>
    %c0_23 = arith.constant 0 : index
    %c0_24 = arith.constant 0 : index
    %16 = vector.load %arg13[%c0_23, %c0_24] : memref<1x32xf32, #tpu.memory_space<vmem>>, vector<1x32xf32>
    %c0_25 = arith.constant 0 : index
    %c0_26 = arith.constant 0 : index
    %17 = vector.load %arg14[%c0_25, %c0_26] : memref<32x128xf32, #tpu.memory_space<vmem>>, vector<32x128xf32>
    %18 = arith.truncf %17 : vector<32x128xf32> to vector<32x128xbf16>
    %c0_27 = arith.constant 0 : index
    %c0_28 = arith.constant 0 : index
    %19 = vector.load %arg15[%c0_27, %c0_28] : memref<1x128xf32, #tpu.memory_space<vmem>>, vector<1x128xf32>
    %c0_29 = arith.constant 0 : index
    %c0_30 = arith.constant 0 : index
    %20 = vector.load %arg16[%c0_29, %c0_30] : memref<128x32xf32, #tpu.memory_space<vmem>>, vector<128x32xf32>
    %21 = arith.truncf %20 : vector<128x32xf32> to vector<128x32xbf16>
    %c0_31 = arith.constant 0 : index
    %c0_32 = arith.constant 0 : index
    %22 = vector.load %arg17[%c0_31, %c0_32] : memref<1x32xf32, #tpu.memory_space<vmem>>, vector<1x32xf32>
    %c0_33 = arith.constant 0 : index
    %c0_34 = arith.constant 0 : index
    %23 = vector.load %arg18[%c0_33, %c0_34] : memref<1x32xf32, #tpu.memory_space<vmem>>, vector<1x32xf32>
    %c0_35 = arith.constant 0 : index
    %c0_36 = arith.constant 0 : index
    %24 = vector.load %arg19[%c0_35, %c0_36] : memref<1x32xf32, #tpu.memory_space<vmem>>, vector<1x32xf32>
    %c0_37 = arith.constant 0 : index
    %c0_38 = arith.constant 0 : index
    %25 = vector.load %arg20[%c0_37, %c0_38] : memref<1x32xf32, #tpu.memory_space<vmem>>, vector<1x32xf32>
    %c0_39 = arith.constant 0 : index
    %c0_40 = arith.constant 0 : index
    %26 = vector.load %arg21[%c0_39, %c0_40] : memref<1x32xf32, #tpu.memory_space<vmem>>, vector<1x32xf32>
    %cst = arith.constant 0.000000e+00 : f32
    %27 = vector.broadcast %cst : f32 to vector<8x8x1xf32>
    %cst_41 = arith.constant 0.000000e+00 : f32
    %28 = vector.broadcast %cst_41 : f32 to vector<8x8x32xf32>
    %c0_i32 = arith.constant 0 : i32
    %c4_i32 = arith.constant 4 : i32
    %29 = arith.addi %c0_i32, %c4_i32 : i32
    %c1_i32 = arith.constant 1 : i32
    %30:5 = scf.for %arg25 = %c0_i32 to %29 step %c1_i32 iter_args(%arg26 = %0, %arg27 = %27, %arg28 = %27, %arg29 = %27, %arg30 = %28) -> (vector<8x8x32xf32>, vector<8x8x1xf32>, vector<8x8x1xf32>, vector<8x8x1xf32>, vector<8x8x32xf32>)  : i32 {
      %34 = arith.index_cast %arg25 : i32 to index
      %c0_52 = arith.constant 0 : index
      %c0_53 = arith.constant 0 : index
      %35 = vector.load %arg3[%34, %c0_52, %c0_53] : memref<4x8x32xf32, #tpu.memory_space<vmem>>, vector<1x8x32xf32>
      %36 = vector.shape_cast %35 : vector<1x8x32xf32> to vector<8x32xf32>
      %37 = vector.shape_cast %36 : vector<8x32xf32> to vector<1x8x32xf32>
      %38 = vector.broadcast %37 : vector<1x8x32xf32> to vector<8x8x32xf32>
      %39 = arith.addf %arg26, %38 : vector<8x8x32xf32>
      %40 = vector.shape_cast %3 : vector<1x32xf32> to vector<1x1x32xf32>
      %41 = vector.broadcast %40 : vector<1x1x32xf32> to vector<8x8x32xf32>
      %42 = arith.mulf %39, %41 : vector<8x8x32xf32>
      %cst_54 = arith.constant dense<0.000000e+00> : vector<8x8xf32>
      %43 = vector.multi_reduction <add>, %42, %cst_54 [2] : vector<8x8x32xf32> to vector<8x8xf32>
      %44 = vector.shape_cast %43 : vector<8x8xf32> to vector<8x8x1xf32>
      %45 = vector.shape_cast %4 : vector<1x1xf32> to vector<1x1x1xf32>
      %46 = vector.broadcast %45 : vector<1x1x1xf32> to vector<8x8x1xf32>
      %47 = arith.addf %44, %46 : vector<8x8x1xf32>
      %48 = arith.negf %47 : vector<8x8x1xf32>
      %49 = math.exp %48 : vector<8x8x1xf32>
      %cst_55 = arith.constant 1.000000e+00 : f32
      %50 = vector.broadcast %cst_55 : f32 to vector<8x8x1xf32>
      %51 = arith.addf %50, %49 : vector<8x8x1xf32>
      %52 = arith.divf %50, %51 : vector<8x8x1xf32>
      %cst_56 = arith.constant 1.000000e+00 : f32
      %53 = vector.broadcast %cst_56 : f32 to vector<8x8x1xf32>
      %54 = arith.cmpf olt, %arg27, %53 : vector<8x8x1xf32>
      %55 = arith.extui %54 : vector<8x8x1xi1> to vector<8x8x1xi32>
      %56 = arith.sitofp %55 : vector<8x8x1xi32> to vector<8x8x1xf32>
      %57 = arith.mulf %52, %56 : vector<8x8x1xf32>
      %58 = arith.addf %arg27, %57 : vector<8x8x1xf32>
      %cst_57 = arith.constant 0.899999976 : f32
      %59 = vector.broadcast %cst_57 : f32 to vector<8x8x1xf32>
      %60 = arith.cmpf ogt, %58, %59 : vector<8x8x1xf32>
      %61 = arith.extui %60 : vector<8x8x1xi1> to vector<8x8x1xi32>
      %62 = arith.sitofp %61 : vector<8x8x1xi32> to vector<8x8x1xf32>
      %63 = arith.mulf %62, %56 : vector<8x8x1xf32>
      %cst_58 = arith.constant 0.899999976 : f32
      %64 = vector.broadcast %cst_58 : f32 to vector<8x8x1xf32>
      %65 = arith.cmpf ole, %58, %64 : vector<8x8x1xf32>
      %66 = arith.extui %65 : vector<8x8x1xi1> to vector<8x8x1xi32>
      %67 = arith.sitofp %66 : vector<8x8x1xi32> to vector<8x8x1xf32>
      %68 = arith.mulf %67, %56 : vector<8x8x1xf32>
      %69 = arith.mulf %52, %68 : vector<8x8x1xf32>
      %70 = arith.addf %arg27, %69 : vector<8x8x1xf32>
      %cst_59 = arith.constant 1.000000e+00 : f32
      %71 = vector.broadcast %cst_59 : f32 to vector<8x8x1xf32>
      %72 = arith.subf %71, %70 : vector<8x8x1xf32>
      %73 = arith.mulf %63, %72 : vector<8x8x1xf32>
      %74 = arith.addf %arg28, %73 : vector<8x8x1xf32>
      %75 = arith.mulf %63, %74 : vector<8x8x1xf32>
      %76 = arith.addf %70, %75 : vector<8x8x1xf32>
      %cst_60 = arith.constant 0.000000e+00 : f32
      %77 = vector.broadcast %cst_60 : f32 to vector<8x8x1xf32>
      %78 = arith.cmpf ogt, %63, %77 : vector<8x8x1xf32>
      %cst_61 = arith.constant 1.000000e+00 : f32
      %79 = vector.broadcast %cst_61 : f32 to vector<8x8x1xf32>
      %80 = arith.select %78, %79, %76 : vector<8x8x1xi1>, vector<8x8x1xf32>
      %81 = arith.addf %arg29, %68 : vector<8x8x1xf32>
      %82 = arith.addf %81, %63 : vector<8x8x1xf32>
      %83 = arith.mulf %52, %68 : vector<8x8x1xf32>
      %84 = arith.mulf %63, %74 : vector<8x8x1xf32>
      %85 = arith.addf %83, %84 : vector<8x8x1xf32>
      %86 = vector.shape_cast %39 : vector<8x8x32xf32> to vector<64x32xf32>
      %87 = arith.addf %86, %2 : vector<64x32xf32>
      %88 = arith.truncf %87 : vector<64x32xf32> to vector<64x32xbf16>
      %cst_62 = arith.constant dense<0.000000e+00> : vector<64x32xf32>
      %89 = tpu.matmul %88, %6, %cst_62 {dimension_numbers = #tpu.dot_dimension_numbers<[1], [0], [0], [1], [0, 0, 1, 1], [], []>} : vector<64x32xbf16>, vector<32x32xbf16>, vector<64x32xf32> -> vector<64x32xf32>
      %90 = vector.broadcast %7 : vector<1x32xf32> to vector<64x32xf32>
      %91 = arith.addf %89, %90 : vector<64x32xf32>
      %cst_63 = arith.constant dense<0.000000e+00> : vector<64x32xf32>
      %92 = tpu.matmul %88, %9, %cst_63 {dimension_numbers = #tpu.dot_dimension_numbers<[1], [0], [0], [1], [0, 0, 1, 1], [], []>} : vector<64x32xbf16>, vector<32x32xbf16>, vector<64x32xf32> -> vector<64x32xf32>
      %93 = vector.broadcast %10 : vector<1x32xf32> to vector<64x32xf32>
      %94 = arith.addf %92, %93 : vector<64x32xf32>
      %cst_64 = arith.constant dense<0.000000e+00> : vector<64x32xf32>
      %95 = tpu.matmul %88, %12, %cst_64 {dimension_numbers = #tpu.dot_dimension_numbers<[1], [0], [0], [1], [0, 0, 1, 1], [], []>} : vector<64x32xbf16>, vector<32x32xbf16>, vector<64x32xf32> -> vector<64x32xf32>
      %96 = vector.broadcast %13 : vector<1x32xf32> to vector<64x32xf32>
      %97 = arith.addf %95, %96 : vector<64x32xf32>
      %cst_65 = arith.constant 0.000000e+00 : f32
      %98 = vector.broadcast %cst_65 : f32 to vector<64x32xf32>
      %99 = vector.extract_strided_slice %91 {offsets = [0, 0], sizes = [64, 8], strides = [1, 1]} : vector<64x32xf32> to vector<64x8xf32>
      %100 = vector.shape_cast %99 : vector<64x8xf32> to vector<8x8x8xf32>
      %101 = arith.truncf %100 : vector<8x8x8xf32> to vector<8x8x8xbf16>
      %102 = vector.extract_strided_slice %94 {offsets = [0, 0], sizes = [64, 8], strides = [1, 1]} : vector<64x32xf32> to vector<64x8xf32>
      %103 = vector.shape_cast %102 : vector<64x8xf32> to vector<8x8x8xf32>
      %104 = arith.truncf %103 : vector<8x8x8xf32> to vector<8x8x8xbf16>
      %105 = vector.extract_strided_slice %97 {offsets = [0, 0], sizes = [64, 8], strides = [1, 1]} : vector<64x32xf32> to vector<64x8xf32>
      %106 = vector.shape_cast %105 : vector<64x8xf32> to vector<8x8x8xf32>
      %107 = arith.truncf %106 : vector<8x8x8xf32> to vector<8x8x8xbf16>
      "tpu.trace_start"() <{level = 10 : i32, message = "bqd,bkd->bqk"}> : () -> ()
      %cst_66 = arith.constant dense<0.000000e+00> : vector<8x8x8xf32>
      %108 = tpu.matmul %101, %104, %cst_66 {dimension_numbers = #tpu.dot_dimension_numbers<[2], [2], [1], [1], [0, 0, 0, 1, 1, 1], [0], [0]>} : vector<8x8x8xbf16>, vector<8x8x8xbf16>, vector<8x8x8xf32> -> vector<8x8x8xf32>
      "tpu.trace_stop"() : () -> ()
      %cst_67 = arith.constant 0.353553385 : f32
      %109 = vector.broadcast %cst_67 : f32 to vector<8x8x8xf32>
      %110 = arith.mulf %108, %109 : vector<8x8x8xf32>
      %cst_68 = arith.constant dense<0xFF800000> : vector<8x8xf32>
      %111 = vector.multi_reduction <maximumf>, %110, %cst_68 [2] : vector<8x8x8xf32> to vector<8x8xf32>
      %112 = vector.shape_cast %111 : vector<8x8xf32> to vector<8x8x1xf32>
      %113 = vector.broadcast %112 : vector<8x8x1xf32> to vector<8x8x8xf32>
      %114 = arith.subf %110, %113 : vector<8x8x8xf32>
      %115 = math.exp %114 : vector<8x8x8xf32>
      %cst_69 = arith.constant dense<0.000000e+00> : vector<8x8xf32>
      %116 = vector.multi_reduction <add>, %115, %cst_69 [2] : vector<8x8x8xf32> to vector<8x8xf32>
      %117 = vector.shape_cast %116 : vector<8x8xf32> to vector<8x8x1xf32>
      %118 = tpu.reciprocal %117 {approx = true} : vector<8x8x1xf32> -> vector<8x8x1xf32>
      %119 = vector.broadcast %118 : vector<8x8x1xf32> to vector<8x8x8xf32>
      %120 = arith.mulf %115, %119 : vector<8x8x8xf32>
      %121 = arith.truncf %120 : vector<8x8x8xf32> to vector<8x8x8xbf16>
      "tpu.trace_start"() <{level = 10 : i32, message = "bqk,bkd->bqd"}> : () -> ()
      %cst_70 = arith.constant dense<0.000000e+00> : vector<8x8x8xf32>
      %122 = tpu.matmul %121, %107, %cst_70 {dimension_numbers = #tpu.dot_dimension_numbers<[2], [1], [1], [2], [0, 0, 0, 1, 1, 2], [0], [0]>} : vector<8x8x8xbf16>, vector<8x8x8xbf16>, vector<8x8x8xf32> -> vector<8x8x8xf32>
      "tpu.trace_stop"() : () -> ()
      %123 = vector.shape_cast %122 : vector<8x8x8xf32> to vector<64x8xf32>
      %124 = arith.truncf %123 : vector<64x8xf32> to vector<64x8xbf16>
      %125 = vector.extract_strided_slice %15 {offsets = [0, 0], sizes = [8, 32], strides = [1, 1]} : vector<32x32xbf16> to vector<8x32xbf16>
      %cst_71 = arith.constant dense<0.000000e+00> : vector<64x32xf32>
      %126 = tpu.matmul %124, %125, %cst_71 {dimension_numbers = #tpu.dot_dimension_numbers<[1], [0], [0], [1], [0, 0, 1, 1], [], []>} : vector<64x8xbf16>, vector<8x32xbf16>, vector<64x32xf32> -> vector<64x32xf32>
      %127 = arith.addf %98, %126 : vector<64x32xf32>
      %128 = vector.extract_strided_slice %91 {offsets = [0, 8], sizes = [64, 8], strides = [1, 1]} : vector<64x32xf32> to vector<64x8xf32>
      %129 = vector.shape_cast %128 : vector<64x8xf32> to vector<8x8x8xf32>
      %130 = arith.truncf %129 : vector<8x8x8xf32> to vector<8x8x8xbf16>
      %131 = vector.extract_strided_slice %94 {offsets = [0, 8], sizes = [64, 8], strides = [1, 1]} : vector<64x32xf32> to vector<64x8xf32>
      %132 = vector.shape_cast %131 : vector<64x8xf32> to vector<8x8x8xf32>
      %133 = arith.truncf %132 : vector<8x8x8xf32> to vector<8x8x8xbf16>
      %134 = vector.extract_strided_slice %97 {offsets = [0, 8], sizes = [64, 8], strides = [1, 1]} : vector<64x32xf32> to vector<64x8xf32>
      %135 = vector.shape_cast %134 : vector<64x8xf32> to vector<8x8x8xf32>
      %136 = arith.truncf %135 : vector<8x8x8xf32> to vector<8x8x8xbf16>
      "tpu.trace_start"() <{level = 10 : i32, message = "bqd,bkd->bqk"}> : () -> ()
      %cst_72 = arith.constant dense<0.000000e+00> : vector<8x8x8xf32>
      %137 = tpu.matmul %130, %133, %cst_72 {dimension_numbers = #tpu.dot_dimension_numbers<[2], [2], [1], [1], [0, 0, 0, 1, 1, 1], [0], [0]>} : vector<8x8x8xbf16>, vector<8x8x8xbf16>, vector<8x8x8xf32> -> vector<8x8x8xf32>
      "tpu.trace_stop"() : () -> ()
      %cst_73 = arith.constant 0.353553385 : f32
      %138 = vector.broadcast %cst_73 : f32 to vector<8x8x8xf32>
      %139 = arith.mulf %137, %138 : vector<8x8x8xf32>
      %cst_74 = arith.constant dense<0xFF800000> : vector<8x8xf32>
      %140 = vector.multi_reduction <maximumf>, %139, %cst_74 [2] : vector<8x8x8xf32> to vector<8x8xf32>
      %141 = vector.shape_cast %140 : vector<8x8xf32> to vector<8x8x1xf32>
      %142 = vector.broadcast %141 : vector<8x8x1xf32> to vector<8x8x8xf32>
      %143 = arith.subf %139, %142 : vector<8x8x8xf32>
      %144 = math.exp %143 : vector<8x8x8xf32>
      %cst_75 = arith.constant dense<0.000000e+00> : vector<8x8xf32>
      %145 = vector.multi_reduction <add>, %144, %cst_75 [2] : vector<8x8x8xf32> to vector<8x8xf32>
      %146 = vector.shape_cast %145 : vector<8x8xf32> to vector<8x8x1xf32>
      %147 = tpu.reciprocal %146 {approx = true} : vector<8x8x1xf32> -> vector<8x8x1xf32>
      %148 = vector.broadcast %147 : vector<8x8x1xf32> to vector<8x8x8xf32>
      %149 = arith.mulf %144, %148 : vector<8x8x8xf32>
      %150 = arith.truncf %149 : vector<8x8x8xf32> to vector<8x8x8xbf16>
      "tpu.trace_start"() <{level = 10 : i32, message = "bqk,bkd->bqd"}> : () -> ()
      %cst_76 = arith.constant dense<0.000000e+00> : vector<8x8x8xf32>
      %151 = tpu.matmul %150, %136, %cst_76 {dimension_numbers = #tpu.dot_dimension_numbers<[2], [1], [1], [2], [0, 0, 0, 1, 1, 2], [0], [0]>} : vector<8x8x8xbf16>, vector<8x8x8xbf16>, vector<8x8x8xf32> -> vector<8x8x8xf32>
      "tpu.trace_stop"() : () -> ()
      %152 = vector.shape_cast %151 : vector<8x8x8xf32> to vector<64x8xf32>
      %153 = arith.truncf %152 : vector<64x8xf32> to vector<64x8xbf16>
      %154 = vector.extract_strided_slice %15 {offsets = [8, 0], sizes = [8, 32], strides = [1, 1]} : vector<32x32xbf16> to vector<8x32xbf16>
      %cst_77 = arith.constant dense<0.000000e+00> : vector<64x32xf32>
      %155 = tpu.matmul %153, %154, %cst_77 {dimension_numbers = #tpu.dot_dimension_numbers<[1], [0], [0], [1], [0, 0, 1, 1], [], []>} : vector<64x8xbf16>, vector<8x32xbf16>, vector<64x32xf32> -> vector<64x32xf32>
      %156 = arith.addf %127, %155 : vector<64x32xf32>
      %157 = vector.extract_strided_slice %91 {offsets = [0, 16], sizes = [64, 8], strides = [1, 1]} : vector<64x32xf32> to vector<64x8xf32>
      %158 = vector.shape_cast %157 : vector<64x8xf32> to vector<8x8x8xf32>
      %159 = arith.truncf %158 : vector<8x8x8xf32> to vector<8x8x8xbf16>
      %160 = vector.extract_strided_slice %94 {offsets = [0, 16], sizes = [64, 8], strides = [1, 1]} : vector<64x32xf32> to vector<64x8xf32>
      %161 = vector.shape_cast %160 : vector<64x8xf32> to vector<8x8x8xf32>
      %162 = arith.truncf %161 : vector<8x8x8xf32> to vector<8x8x8xbf16>
      %163 = vector.extract_strided_slice %97 {offsets = [0, 16], sizes = [64, 8], strides = [1, 1]} : vector<64x32xf32> to vector<64x8xf32>
      %164 = vector.shape_cast %163 : vector<64x8xf32> to vector<8x8x8xf32>
      %165 = arith.truncf %164 : vector<8x8x8xf32> to vector<8x8x8xbf16>
      "tpu.trace_start"() <{level = 10 : i32, message = "bqd,bkd->bqk"}> : () -> ()
      %cst_78 = arith.constant dense<0.000000e+00> : vector<8x8x8xf32>
      %166 = tpu.matmul %159, %162, %cst_78 {dimension_numbers = #tpu.dot_dimension_numbers<[2], [2], [1], [1], [0, 0, 0, 1, 1, 1], [0], [0]>} : vector<8x8x8xbf16>, vector<8x8x8xbf16>, vector<8x8x8xf32> -> vector<8x8x8xf32>
      "tpu.trace_stop"() : () -> ()
      %cst_79 = arith.constant 0.353553385 : f32
      %167 = vector.broadcast %cst_79 : f32 to vector<8x8x8xf32>
      %168 = arith.mulf %166, %167 : vector<8x8x8xf32>
      %cst_80 = arith.constant dense<0xFF800000> : vector<8x8xf32>
      %169 = vector.multi_reduction <maximumf>, %168, %cst_80 [2] : vector<8x8x8xf32> to vector<8x8xf32>
      %170 = vector.shape_cast %169 : vector<8x8xf32> to vector<8x8x1xf32>
      %171 = vector.broadcast %170 : vector<8x8x1xf32> to vector<8x8x8xf32>
      %172 = arith.subf %168, %171 : vector<8x8x8xf32>
      %173 = math.exp %172 : vector<8x8x8xf32>
      %cst_81 = arith.constant dense<0.000000e+00> : vector<8x8xf32>
      %174 = vector.multi_reduction <add>, %173, %cst_81 [2] : vector<8x8x8xf32> to vector<8x8xf32>
      %175 = vector.shape_cast %174 : vector<8x8xf32> to vector<8x8x1xf32>
      %176 = tpu.reciprocal %175 {approx = true} : vector<8x8x1xf32> -> vector<8x8x1xf32>
      %177 = vector.broadcast %176 : vector<8x8x1xf32> to vector<8x8x8xf32>
      %178 = arith.mulf %173, %177 : vector<8x8x8xf32>
      %179 = arith.truncf %178 : vector<8x8x8xf32> to vector<8x8x8xbf16>
      "tpu.trace_start"() <{level = 10 : i32, message = "bqk,bkd->bqd"}> : () -> ()
      %cst_82 = arith.constant dense<0.000000e+00> : vector<8x8x8xf32>
      %180 = tpu.matmul %179, %165, %cst_82 {dimension_numbers = #tpu.dot_dimension_numbers<[2], [1], [1], [2], [0, 0, 0, 1, 1, 2], [0], [0]>} : vector<8x8x8xbf16>, vector<8x8x8xbf16>, vector<8x8x8xf32> -> vector<8x8x8xf32>
      "tpu.trace_stop"() : () -> ()
      %181 = vector.shape_cast %180 : vector<8x8x8xf32> to vector<64x8xf32>
      %182 = arith.truncf %181 : vector<64x8xf32> to vector<64x8xbf16>
      %183 = vector.extract_strided_slice %15 {offsets = [16, 0], sizes = [8, 32], strides = [1, 1]} : vector<32x32xbf16> to vector<8x32xbf16>
      %cst_83 = arith.constant dense<0.000000e+00> : vector<64x32xf32>
      %184 = tpu.matmul %182, %183, %cst_83 {dimension_numbers = #tpu.dot_dimension_numbers<[1], [0], [0], [1], [0, 0, 1, 1], [], []>} : vector<64x8xbf16>, vector<8x32xbf16>, vector<64x32xf32> -> vector<64x32xf32>
      %185 = arith.addf %156, %184 : vector<64x32xf32>
      %186 = vector.extract_strided_slice %91 {offsets = [0, 24], sizes = [64, 8], strides = [1, 1]} : vector<64x32xf32> to vector<64x8xf32>
      %187 = vector.shape_cast %186 : vector<64x8xf32> to vector<8x8x8xf32>
      %188 = arith.truncf %187 : vector<8x8x8xf32> to vector<8x8x8xbf16>
      %189 = vector.extract_strided_slice %94 {offsets = [0, 24], sizes = [64, 8], strides = [1, 1]} : vector<64x32xf32> to vector<64x8xf32>
      %190 = vector.shape_cast %189 : vector<64x8xf32> to vector<8x8x8xf32>
      %191 = arith.truncf %190 : vector<8x8x8xf32> to vector<8x8x8xbf16>
      %192 = vector.extract_strided_slice %97 {offsets = [0, 24], sizes = [64, 8], strides = [1, 1]} : vector<64x32xf32> to vector<64x8xf32>
      %193 = vector.shape_cast %192 : vector<64x8xf32> to vector<8x8x8xf32>
      %194 = arith.truncf %193 : vector<8x8x8xf32> to vector<8x8x8xbf16>
      "tpu.trace_start"() <{level = 10 : i32, message = "bqd,bkd->bqk"}> : () -> ()
      %cst_84 = arith.constant dense<0.000000e+00> : vector<8x8x8xf32>
      %195 = tpu.matmul %188, %191, %cst_84 {dimension_numbers = #tpu.dot_dimension_numbers<[2], [2], [1], [1], [0, 0, 0, 1, 1, 1], [0], [0]>} : vector<8x8x8xbf16>, vector<8x8x8xbf16>, vector<8x8x8xf32> -> vector<8x8x8xf32>
      "tpu.trace_stop"() : () -> ()
      %cst_85 = arith.constant 0.353553385 : f32
      %196 = vector.broadcast %cst_85 : f32 to vector<8x8x8xf32>
      %197 = arith.mulf %195, %196 : vector<8x8x8xf32>
      %cst_86 = arith.constant dense<0xFF800000> : vector<8x8xf32>
      %198 = vector.multi_reduction <maximumf>, %197, %cst_86 [2] : vector<8x8x8xf32> to vector<8x8xf32>
      %199 = vector.shape_cast %198 : vector<8x8xf32> to vector<8x8x1xf32>
      %200 = vector.broadcast %199 : vector<8x8x1xf32> to vector<8x8x8xf32>
      %201 = arith.subf %197, %200 : vector<8x8x8xf32>
      %202 = math.exp %201 : vector<8x8x8xf32>
      %cst_87 = arith.constant dense<0.000000e+00> : vector<8x8xf32>
      %203 = vector.multi_reduction <add>, %202, %cst_87 [2] : vector<8x8x8xf32> to vector<8x8xf32>
      %204 = vector.shape_cast %203 : vector<8x8xf32> to vector<8x8x1xf32>
      %205 = tpu.reciprocal %204 {approx = true} : vector<8x8x1xf32> -> vector<8x8x1xf32>
      %206 = vector.broadcast %205 : vector<8x8x1xf32> to vector<8x8x8xf32>
      %207 = arith.mulf %202, %206 : vector<8x8x8xf32>
      %208 = arith.truncf %207 : vector<8x8x8xf32> to vector<8x8x8xbf16>
      "tpu.trace_start"() <{level = 10 : i32, message = "bqk,bkd->bqd"}> : () -> ()
      %cst_88 = arith.constant dense<0.000000e+00> : vector<8x8x8xf32>
      %209 = tpu.matmul %208, %194, %cst_88 {dimension_numbers = #tpu.dot_dimension_numbers<[2], [1], [1], [2], [0, 0, 0, 1, 1, 2], [0], [0]>} : vector<8x8x8xbf16>, vector<8x8x8xbf16>, vector<8x8x8xf32> -> vector<8x8x8xf32>
      "tpu.trace_stop"() : () -> ()
      %210 = vector.shape_cast %209 : vector<8x8x8xf32> to vector<64x8xf32>
      %211 = arith.truncf %210 : vector<64x8xf32> to vector<64x8xbf16>
      %212 = vector.extract_strided_slice %15 {offsets = [24, 0], sizes = [8, 32], strides = [1, 1]} : vector<32x32xbf16> to vector<8x32xbf16>
      %cst_89 = arith.constant dense<0.000000e+00> : vector<64x32xf32>
      %213 = tpu.matmul %211, %212, %cst_89 {dimension_numbers = #tpu.dot_dimension_numbers<[1], [0], [0], [1], [0, 0, 1, 1], [], []>} : vector<64x8xbf16>, vector<8x32xbf16>, vector<64x32xf32> -> vector<64x32xf32>
      %214 = arith.addf %185, %213 : vector<64x32xf32>
      %215 = vector.broadcast %16 : vector<1x32xf32> to vector<64x32xf32>
      %216 = arith.addf %214, %215 : vector<64x32xf32>
      %217 = arith.addf %86, %216 : vector<64x32xf32>
      %cst_90 = arith.constant dense<0.000000e+00> : vector<64xf32>
      %218 = vector.multi_reduction <add>, %217, %cst_90 [1] : vector<64x32xf32> to vector<64xf32>
      %219 = vector.shape_cast %218 : vector<64xf32> to vector<64x1xf32>
      %cst_91 = arith.constant 3.200000e+01 : f32
      %220 = vector.broadcast %cst_91 : f32 to vector<64x1xf32>
      %221 = arith.divf %219, %220 : vector<64x1xf32>
      %222 = vector.broadcast %221 : vector<64x1xf32> to vector<64x32xf32>
      %223 = arith.subf %217, %222 : vector<64x32xf32>
      %224 = arith.mulf %223, %223 : vector<64x32xf32>
      %cst_92 = arith.constant dense<0.000000e+00> : vector<64xf32>
      %225 = vector.multi_reduction <add>, %224, %cst_92 [1] : vector<64x32xf32> to vector<64xf32>
      %226 = vector.shape_cast %225 : vector<64xf32> to vector<64x1xf32>
      %cst_93 = arith.constant 3.200000e+01 : f32
      %227 = vector.broadcast %cst_93 : f32 to vector<64x1xf32>
      %228 = arith.divf %226, %227 : vector<64x1xf32>
      %229 = vector.broadcast %221 : vector<64x1xf32> to vector<64x32xf32>
      %230 = arith.subf %217, %229 : vector<64x32xf32>
      %cst_94 = arith.constant 9.99999997E-7 : f32
      %231 = vector.broadcast %cst_94 : f32 to vector<64x1xf32>
      %232 = arith.addf %228, %231 : vector<64x1xf32>
      %233 = math.rsqrt %232 : vector<64x1xf32>
      %234 = vector.broadcast %233 : vector<64x1xf32> to vector<64x32xf32>
      %235 = arith.mulf %230, %234 : vector<64x32xf32>
      %236 = vector.broadcast %23 : vector<1x32xf32> to vector<64x32xf32>
      %237 = arith.mulf %235, %236 : vector<64x32xf32>
      %238 = vector.broadcast %24 : vector<1x32xf32> to vector<64x32xf32>
      %239 = arith.addf %237, %238 : vector<64x32xf32>
      %240 = arith.truncf %239 : vector<64x32xf32> to vector<64x32xbf16>
      %cst_95 = arith.constant dense<0.000000e+00> : vector<64x128xf32>
      %241 = tpu.matmul %240, %18, %cst_95 {dimension_numbers = #tpu.dot_dimension_numbers<[1], [0], [0], [1], [0, 0, 1, 1], [], []>} : vector<64x32xbf16>, vector<32x128xbf16>, vector<64x128xf32> -> vector<64x128xf32>
      %242 = vector.broadcast %19 : vector<1x128xf32> to vector<64x128xf32>
      %243 = arith.addf %241, %242 : vector<64x128xf32>
      %cst_96 = arith.constant 0.000000e+00 : f32
      %244 = vector.broadcast %cst_96 : f32 to vector<64x128xf32>
      %245 = arith.maximumf %243, %244 : vector<64x128xf32>
      %246 = arith.truncf %245 : vector<64x128xf32> to vector<64x128xbf16>
      %cst_97 = arith.constant dense<0.000000e+00> : vector<64x32xf32>
      %247 = tpu.matmul %246, %21, %cst_97 {dimension_numbers = #tpu.dot_dimension_numbers<[1], [0], [0], [1], [0, 0, 1, 1], [], []>} : vector<64x128xbf16>, vector<128x32xbf16>, vector<64x32xf32> -> vector<64x32xf32>
      %248 = vector.broadcast %22 : vector<1x32xf32> to vector<64x32xf32>
      %249 = arith.addf %247, %248 : vector<64x32xf32>
      %250 = arith.addf %239, %249 : vector<64x32xf32>
      %cst_98 = arith.constant dense<0.000000e+00> : vector<64xf32>
      %251 = vector.multi_reduction <add>, %250, %cst_98 [1] : vector<64x32xf32> to vector<64xf32>
      %252 = vector.shape_cast %251 : vector<64xf32> to vector<64x1xf32>
      %cst_99 = arith.constant 3.200000e+01 : f32
      %253 = vector.broadcast %cst_99 : f32 to vector<64x1xf32>
      %254 = arith.divf %252, %253 : vector<64x1xf32>
      %255 = vector.broadcast %254 : vector<64x1xf32> to vector<64x32xf32>
      %256 = arith.subf %250, %255 : vector<64x32xf32>
      %257 = arith.mulf %256, %256 : vector<64x32xf32>
      %cst_100 = arith.constant dense<0.000000e+00> : vector<64xf32>
      %258 = vector.multi_reduction <add>, %257, %cst_100 [1] : vector<64x32xf32> to vector<64xf32>
      %259 = vector.shape_cast %258 : vector<64xf32> to vector<64x1xf32>
      %cst_101 = arith.constant 3.200000e+01 : f32
      %260 = vector.broadcast %cst_101 : f32 to vector<64x1xf32>
      %261 = arith.divf %259, %260 : vector<64x1xf32>
      %262 = vector.broadcast %254 : vector<64x1xf32> to vector<64x32xf32>
      %263 = arith.subf %250, %262 : vector<64x32xf32>
      %cst_102 = arith.constant 9.99999997E-7 : f32
      %264 = vector.broadcast %cst_102 : f32 to vector<64x1xf32>
      %265 = arith.addf %261, %264 : vector<64x1xf32>
      %266 = math.rsqrt %265 : vector<64x1xf32>
      %267 = vector.broadcast %266 : vector<64x1xf32> to vector<64x32xf32>
      %268 = arith.mulf %263, %267 : vector<64x32xf32>
      %269 = vector.broadcast %25 : vector<1x32xf32> to vector<64x32xf32>
      %270 = arith.mulf %268, %269 : vector<64x32xf32>
      %271 = vector.broadcast %26 : vector<1x32xf32> to vector<64x32xf32>
      %272 = arith.addf %270, %271 : vector<64x32xf32>
      %273 = vector.shape_cast %272 : vector<64x32xf32> to vector<8x8x32xf32>
      %274 = vector.broadcast %85 : vector<8x8x1xf32> to vector<8x8x32xf32>
      %275 = arith.mulf %273, %274 : vector<8x8x32xf32>
      %cst_103 = arith.constant 1.000000e+00 : f32
      %276 = vector.broadcast %cst_103 : f32 to vector<8x8x1xf32>
      %277 = arith.subf %276, %85 : vector<8x8x1xf32>
      %278 = vector.broadcast %277 : vector<8x8x1xf32> to vector<8x8x32xf32>
      %279 = arith.mulf %arg30, %278 : vector<8x8x32xf32>
      %280 = arith.addf %275, %279 : vector<8x8x32xf32>
      scf.yield %273, %80, %74, %82, %280 : vector<8x8x32xf32>, vector<8x8x1xf32>, vector<8x8x1xf32>, vector<8x8x1xf32>, vector<8x8x32xf32>
    }
    %c4_i32_42 = arith.constant 4 : i32
    %c0_43 = arith.constant 0 : index
    %c0_44 = arith.constant 0 : index
    %c0_45 = arith.constant 0 : index
    %31 = vector.load %arg22[%c0_43, %c0_44, %c0_45] : memref<8x8x32xf32, #tpu.memory_space<vmem>>, vector<8x8x32xf32>
    tpu.vector_store %arg22[%c0_43, %c0_44, %c0_45], %30#4 {strides = array<i32>} : memref<8x8x32xf32, #tpu.memory_space<vmem>>, vector<8x8x32xf32>,
    %c0_46 = arith.constant 0 : index
    %c0_47 = arith.constant 0 : index
    %c0_48 = arith.constant 0 : index
    %32 = vector.load %arg23[%c0_46, %c0_47, %c0_48] : memref<8x8x1xf32, #tpu.memory_space<vmem>>, vector<8x8x1xf32>
    tpu.vector_store %arg23[%c0_46, %c0_47, %c0_48], %30#2 {strides = array<i32>} : memref<8x8x1xf32, #tpu.memory_space<vmem>>, vector<8x8x1xf32>,
    %c0_49 = arith.constant 0 : index
    %c0_50 = arith.constant 0 : index
    %c0_51 = arith.constant 0 : index
    %33 = vector.load %arg24[%c0_49, %c0_50, %c0_51] : memref<8x8x1xf32, #tpu.memory_space<vmem>>, vector<8x8x1xf32>
    tpu.vector_store %arg24[%c0_49, %c0_50, %c0_51], %30#3 {strides = array<i32>} : memref<8x8x1xf32, #tpu.memory_space<vmem>>, vector<8x8x1xf32>,
    return
  }
  func.func @transform_0(%arg0: i32) -> (i32, i32, i32) {
    %c0_i32 = arith.constant 0 : i32
    %c0_i32_0 = arith.constant 0 : i32
    %c0_i32_1 = arith.constant 0 : i32
    return %arg0, %c0_i32, %c0_i32_0 : i32, i32, i32
  }
  func.func @transform_1(%arg0: i32) -> (i32, i32, i32) {
    %c0_i32 = arith.constant 0 : i32
    %c0_i32_0 = arith.constant 0 : i32
    %c0_i32_1 = arith.constant 0 : i32
    return %arg0, %c0_i32, %c0_i32_0 : i32, i32, i32
  }
  func.func @transform_2(%arg0: i32) -> (i32, i32, i32) {
    %c0_i32 = arith.constant 0 : i32
    %c0_i32_0 = arith.constant 0 : i32
    %c0_i32_1 = arith.constant 0 : i32
    %c0_i32_2 = arith.constant 0 : i32
    return %c0_i32, %c0_i32_0, %c0_i32_1 : i32, i32, i32
  }
  func.func @transform_3(%arg0: i32) -> (i32, i32) {
    %c0_i32 = arith.constant 0 : i32
    %c0_i32_0 = arith.constant 0 : i32
    %c0_i32_1 = arith.constant 0 : i32
    return %c0_i32, %c0_i32_0 : i32, i32
  }
  func.func @transform_4(%arg0: i32) -> (i32, i32) {
    %c0_i32 = arith.constant 0 : i32
    %c0_i32_0 = arith.constant 0 : i32
    %c0_i32_1 = arith.constant 0 : i32
    return %c0_i32, %c0_i32_0 : i32, i32
  }
  func.func @transform_5(%arg0: i32) -> (i32, i32) {
    %c0_i32 = arith.constant 0 : i32
    %c0_i32_0 = arith.constant 0 : i32
    %c0_i32_1 = arith.constant 0 : i32
    return %c0_i32, %c0_i32_0 : i32, i32
  }
  func.func @transform_6(%arg0: i32) -> (i32, i32) {
    %c0_i32 = arith.constant 0 : i32
    %c0_i32_0 = arith.constant 0 : i32
    %c0_i32_1 = arith.constant 0 : i32
    return %c0_i32, %c0_i32_0 : i32, i32
  }
  func.func @transform_7(%arg0: i32) -> (i32, i32) {
    %c0_i32 = arith.constant 0 : i32
    %c0_i32_0 = arith.constant 0 : i32
    %c0_i32_1 = arith.constant 0 : i32
    return %c0_i32, %c0_i32_0 : i32, i32
  }
  func.func @transform_8(%arg0: i32) -> (i32, i32) {
    %c0_i32 = arith.constant 0 : i32
    %c0_i32_0 = arith.constant 0 : i32
    %c0_i32_1 = arith.constant 0 : i32
    return %c0_i32, %c0_i32_0 : i32, i32
  }
  func.func @transform_9(%arg0: i32) -> (i32, i32) {
    %c0_i32 = arith.constant 0 : i32
    %c0_i32_0 = arith.constant 0 : i32
    %c0_i32_1 = arith.constant 0 : i32
    return %c0_i32, %c0_i32_0 : i32, i32
  }
  func.func @transform_10(%arg0: i32) -> (i32, i32) {
    %c0_i32 = arith.constant 0 : i32
    %c0_i32_0 = arith.constant 0 : i32
    %c0_i32_1 = arith.constant 0 : i32
    return %c0_i32, %c0_i32_0 : i32, i32
  }
  func.func @transform_11(%arg0: i32) -> (i32, i32) {
    %c0_i32 = arith.constant 0 : i32
    %c0_i32_0 = arith.constant 0 : i32
    %c0_i32_1 = arith.constant 0 : i32
    return %c0_i32, %c0_i32_0 : i32, i32
  }
  func.func @transform_12(%arg0: i32) -> (i32, i32) {
    %c0_i32 = arith.constant 0 : i32
    %c0_i32_0 = arith.constant 0 : i32
    %c0_i32_1 = arith.constant 0 : i32
    return %c0_i32, %c0_i32_0 : i32, i32
  }
  func.func @transform_13(%arg0: i32) -> (i32, i32) {
    %c0_i32 = arith.constant 0 : i32
    %c0_i32_0 = arith.constant 0 : i32
    %c0_i32_1 = arith.constant 0 : i32
    return %c0_i32, %c0_i32_0 : i32, i32
  }
  func.func @transform_14(%arg0: i32) -> (i32, i32) {
    %c0_i32 = arith.constant 0 : i32
    %c0_i32_0 = arith.constant 0 : i32
    %c0_i32_1 = arith.constant 0 : i32
    return %c0_i32, %c0_i32_0 : i32, i32
  }
  func.func @transform_15(%arg0: i32) -> (i32, i32) {
    %c0_i32 = arith.constant 0 : i32
    %c0_i32_0 = arith.constant 0 : i32
    %c0_i32_1 = arith.constant 0 : i32
    return %c0_i32, %c0_i32_0 : i32, i32
  }
  func.func @transform_16(%arg0: i32) -> (i32, i32) {
    %c0_i32 = arith.constant 0 : i32
    %c0_i32_0 = arith.constant 0 : i32
    %c0_i32_1 = arith.constant 0 : i32
    return %c0_i32, %c0_i32_0 : i32, i32
  }
  func.func @transform_17(%arg0: i32) -> (i32, i32) {
    %c0_i32 = arith.constant 0 : i32
    %c0_i32_0 = arith.constant 0 : i32
    %c0_i32_1 = arith.constant 0 : i32
    return %c0_i32, %c0_i32_0 : i32, i32
  }
  func.func @transform_18(%arg0: i32) -> (i32, i32) {
    %c0_i32 = arith.constant 0 : i32
    %c0_i32_0 = arith.constant 0 : i32
    %c0_i32_1 = arith.constant 0 : i32
    return %c0_i32, %c0_i32_0 : i32, i32
  }
  func.func @transform_19(%arg0: i32) -> (i32, i32) {
    %c0_i32 = arith.constant 0 : i32
    %c0_i32_0 = arith.constant 0 : i32
    %c0_i32_1 = arith.constant 0 : i32
    return %c0_i32, %c0_i32_0 : i32, i32
  }
  func.func @transform_20(%arg0: i32) -> (i32, i32) {
    %c0_i32 = arith.constant 0 : i32
    %c0_i32_0 = arith.constant 0 : i32
    %c0_i32_1 = arith.constant 0 : i32
    return %c0_i32, %c0_i32_0 : i32, i32
  }
  func.func @transform_21(%arg0: i32) -> (i32, i32, i32) {
    %c0_i32 = arith.constant 0 : i32
    %c0_i32_0 = arith.constant 0 : i32
    %c0_i32_1 = arith.constant 0 : i32
    return %arg0, %c0_i32, %c0_i32_0 : i32, i32, i32
  }
  func.func @transform_22(%arg0: i32) -> (i32, i32, i32) {
    %c0_i32 = arith.constant 0 : i32
    %c0_i32_0 = arith.constant 0 : i32
    %c0_i32_1 = arith.constant 0 : i32
    return %arg0, %c0_i32, %c0_i32_0 : i32, i32, i32
  }
  func.func @transform_23(%arg0: i32) -> (i32, i32, i32) {
    %c0_i32 = arith.constant 0 : i32
    %c0_i32_0 = arith.constant 0 : i32
    %c0_i32_1 = arith.constant 0 : i32
    return %arg0, %c0_i32, %c0_i32_0 : i32, i32, i32
  }
}

</mosaic_0001>

<llo_original>
// kernel: tpu_custom_call.1
$region0: #{tpu_custom_call.1}
  #allocation0 [shape = 'u32[]', space=smem, size = 0x4, offset = 0x4, fixed_abs, tag = 'smem constant byte address 0x4 - core index']
  #allocation1 [shape = 'u32[144,128]{1,0:T(1,128)}', space=vmem, size = 0x12000, scoped, tag = 'internal scratch']
  #allocation2 [shape = 'f32[1,1]{1,0:T(1,128)S(1)}', space=vmem, size = 0x200, scoped, tag = 'scoped memory for tpu_custom_call.1']
  %s0 = inlined_call_operand.vmem [shape: f32[16,8,32], index: 0, kind: input, shape index: {}]
  %s1 = inlined_call_operand.hbm [shape: f32[16,8,32], index: 1, kind: input, shape index: {}]
  %s2 = inlined_call_operand.vmem [shape: f32[4,8,32], index: 2, kind: input, shape index: {}]
  %s3 = inlined_call_operand.vmem [shape: f32[1,32], index: 3, kind: input, shape index: {}]
  %s4 = inlined_call_operand.<no memory space> [shape: f32[1,1], index: 4, kind: input, shape index: {}]
  %s5 = inlined_call_operand.hbm [shape: f32[32,32], index: 5, kind: input, shape index: {}]
  %s6 = inlined_call_operand.vmem [shape: f32[1,32], index: 6, kind: input, shape index: {}]
  %s7 = inlined_call_operand.hbm [shape: f32[32,32], index: 7, kind: input, shape index: {}]
  %s8 = inlined_call_operand.vmem [shape: f32[1,32], index: 8, kind: input, shape index: {}]
  %s9 = inlined_call_operand.hbm [shape: f32[32,32], index: 9, kind: input, shape index: {}]
  %s10 = inlined_call_operand.vmem [shape: f32[1,32], index: 10, kind: input, shape index: {}]
  %s11 = inlined_call_operand.hbm [shape: f32[32,32], index: 11, kind: input, shape index: {}]
  %s12 = inlined_call_operand.vmem [shape: f32[1,32], index: 12, kind: input, shape index: {}]
  %s13 = inlined_call_operand.hbm [shape: f32[32,128], index: 13, kind: input, shape index: {}]
  %s14 = inlined_call_operand.vmem [shape: f32[1,128], index: 14, kind: input, shape index: {}]
  %s15 = inlined_call_operand.vmem [shape: f32[128,32], index: 15, kind: input, shape index: {}]
  %s16 = inlined_call_operand.vmem [shape: f32[1,32], index: 16, kind: input, shape index: {}]
  %s17 = inlined_call_operand.vmem [shape: f32[1,32], index: 17, kind: input, shape index: {}]
  %s18 = inlined_call_operand.vmem [shape: f32[1,32], index: 18, kind: input, shape index: {}]
  %s19 = inlined_call_operand.vmem [shape: f32[1,32], index: 19, kind: input, shape index: {}]
  %s20 = inlined_call_operand.vmem [shape: f32[1,32], index: 20, kind: input, shape index: {}]
  %s21 = inlined_call_operand.hbm [shape: f32[16,8,32], index: 21, kind: output, shape index: {0}]
  %s22 = inlined_call_operand.vmem [shape: f32[16,8,1], index: 22, kind: output, shape index: {1}]
  %s23 = inlined_call_operand.vmem [shape: f32[16,8,1], index: 23, kind: output, shape index: {2}]
  %24 = xla_tuple %s21, %s22, %s23
  %s25 = sld [smem:[#allocation0]]
  $region164: #{tpu_custom_call.1} parent=0
    _
  %s27 = ssub.s32 1, %s25
  %s28 = scalar_select 0, %s27, %s25
  %v29 = vstv %s4
  %30 = vst [vmem:[#allocation2] sm:$0x1] %v29
  $region1: #{tpu_custom_call.1} parent=0
    #allocation3 [shape = 'u8[65536]{0}', space=vmem, size = 0x10000, scoped, tag = 'input window, operand 1']
    #allocation4 [shape = 's32[2]{0}', space=sflag, size = 0x8, scoped, tag = 'scoped memory for tpu_custom_call.1']
    #allocation5 [shape = 's32[2]{0}', space=sflag, size = 0x8, scoped, tag = 'scoped memory for tpu_custom_call.1']
    #allocation6 [shape = 'u8[16384]{0}', space=vmem, size = 0x4000, scoped, tag = 'input window, operand 5, single buffered']
    #allocation7 [shape = 's32[1]{0}', space=sflag, size = 0x4, scoped, tag = 'scoped memory for tpu_custom_call.1']
    #allocation8 [shape = 'u8[16384]{0}', space=vmem, size = 0x4000, scoped, tag = 'input window, operand 7, single buffered']
    #allocation9 [shape = 'u8[16384]{0}', space=vmem, size = 0x4000, scoped, tag = 'input window, operand 9, single buffered']
    #allocation10 [shape = 's32[1]{0}', space=sflag, size = 0x4, scoped, tag = 'scoped memory for tpu_custom_call.1']
    #allocation11 [shape = 'u8[16384]{0}', space=vmem, size = 0x4000, scoped, tag = 'input window, operand 11, single buffered']
    #allocation12 [shape = 'u8[16384]{0}', space=vmem, size = 0x4000, scoped, tag = 'input window, operand 13, single buffered']
    #allocation13 [shape = 's32[1]{0}', space=sflag, size = 0x4, scoped, tag = 'scoped memory for tpu_custom_call.1']
    #allocation14 [shape = 'u8[65536]{0}', space=vmem, size = 0x10000, scoped, tag = 'output window, operand 0']
    %31 = vsyncpa [#allocation4], 0
    %s32 = scalar_lea.sflag [#allocation4], 1
    %33 = vsyncpa %s32, 0
    %34 = vsyncpa [#allocation7], 0
    %35 = vsyncpa [#allocation10], 0
    %36 = vsyncpa [#allocation13], 0
    %37 = vsyncpa [#allocation5], 0
    %s38 = scalar_lea.sflag [#allocation5], 1
    %39 = vsyncpa %s38, 0
    loop: start=0, step=1, limit=4
    $region2: #{tpu_custom_call.1} parent=1 // loop_pre_header
      _
    $region3: #{tpu_custom_call.1} parent=1 // loop_header
      %s41 = sphi 0, %s45
      %p42 = scmp.ge.s32.totalorder %s41, 4
      %s51 = sphi 0, %s53
      %s54 = sphi 0, %s51
      %s55 = sphi 0, %s54
      %s71 = sphi 0, %s55
      %s77 = sphi 0, %s79
      %s80 = sphi 0, %s77
      %s81 = sphi 0, %s80
      %s97 = sphi 0, %s81
      %s101 = sphi 0, %s101
      %s103 = sphi 0, %s101
      %s104 = sphi 0, %s103
      %s118 = sphi 0, %s104
      %s122 = sphi 0, %s122
      %s124 = sphi 0, %s122
      %s125 = sphi 0, %s124
      %s139 = sphi 0, %s125
      %s143 = sphi 0, %s143
      %s145 = sphi 0, %s143
      %s146 = sphi 0, %s145
      %s160 = sphi 0, %s146
      %s164 = sphi 0, %s164
      %s166 = sphi 0, %s164
      %s167 = sphi 0, %s166
      %s181 = sphi 0, %s167
      %s185 = sphi 0, %s185
      %s187 = sphi 0, %s185
      %s188 = sphi 0, %s187
      %s202 = sphi 0, %s188
      %s206 = sphi 0, %s206
      %s208 = sphi 0, %s206
      %s209 = sphi 0, %s208
      %s223 = sphi 0, %s209
      %s227 = sphi 0, %s227
      %s229 = sphi 0, %s227
      %s230 = sphi 0, %s229
      %s244 = sphi 0, %s230
      %s248 = sphi 0, %s248
      %s250 = sphi 0, %s248
      %s251 = sphi 0, %s250
      %s265 = sphi 0, %s251
      %s269 = sphi 0, %s269
      %s271 = sphi 0, %s269
      %s272 = sphi 0, %s271
      %s286 = sphi 0, %s272
      %s290 = sphi 0, %s290
      %s292 = sphi 0, %s290
      %s293 = sphi 0, %s292
      %s307 = sphi 0, %s293
      %s311 = sphi 0, %s311
      %s313 = sphi 0, %s311
      %s314 = sphi 0, %s313
      %s328 = sphi 0, %s314
      %s332 = sphi 0, %s332
      %s334 = sphi 0, %s332
      %s335 = sphi 0, %s334
      %s349 = sphi 0, %s335
      %s353 = sphi 0, %s353
      %s355 = sphi 0, %s353
      %s356 = sphi 0, %s355
      %s370 = sphi 0, %s356
      %s374 = sphi 0, %s374
      %s376 = sphi 0, %s374
      %s377 = sphi 0, %s376
      %s391 = sphi 0, %s377
      %s395 = sphi 0, %s395
      %s397 = sphi 0, %s395
      %s398 = sphi 0, %s397
      %s412 = sphi 0, %s398
      %s416 = sphi 0, %s416
      %s418 = sphi 0, %s416
      %s419 = sphi 0, %s418
      %s433 = sphi 0, %s419
      %s437 = sphi 0, %s437
      %s439 = sphi 0, %s437
      %s440 = sphi 0, %s439
      %s454 = sphi 0, %s440
      %s458 = sphi 0, %s458
      %s460 = sphi 0, %s458
      %s461 = sphi 0, %s460
      %s475 = sphi 0, %s461
      %s479 = sphi 0, %s479
      %s481 = sphi 0, %s479
      %s482 = sphi 0, %s481
      %s496 = sphi 0, %s482
      %s502 = sphi 0, %s504
      %s505 = sphi 0, %s502
      %s506 = sphi 0, %s505
      %s522 = sphi 0, %s506
      %s528 = sphi 0, %s530
      %s531 = sphi 0, %s528
      %s532 = sphi 0, %s531
      %s548 = sphi 0, %s532
      %s554 = sphi 0, %s556
      %s557 = sphi 0, %s554
      %s558 = sphi 0, %s557
      %s574 = sphi 0, %s558
    $region4: #{tpu_custom_call.1} parent=1 // loop_header_branch
      %44 = sbr.rel (%p42) target = $region8
    $region5: #{tpu_custom_call.1} parent=1 // loop_body
      %s46 = ssub.s32 %s41, 1
      %s47 = ssub.s32 %s41, 2
      %s48 = sadd.s32 %s41, 1
      %s49 = ssub.s32 %s41, %s48
      %p50 = scmp.eq.s32.totalorder %s49, 0
      %s52 = sadd.s32 %s51, 1
      %s53 = scalar_select %p50, %s51, %s52
      %p56 = pneg %p50
      %p57 = scmp.eq.s32.totalorder %s41, 1
      %p58 = por %p56, %p57
      %p59 = scmp.ne.s32.totalorder %s51, %s54
      %p60 = scmp.eq.s32.totalorder %s41, 0
      %p61 = por %p59, %p60
      %p62 = scmp.ne.s32.totalorder %s51, %s54
      %p63 = scmp.eq.s32.totalorder %s46, 1
      %p64 = por %p62, %p63
      %p65 = scmp.ne.s32.totalorder %s54, %s55
      %p66 = scmp.eq.s32.totalorder %s46, 0
      %p67 = por %p65, %p66
      %p68 = scmp.ne.s32.totalorder %s54, %s55
      %p69 = scmp.eq.s32.totalorder %s47, 1
      %p70 = por %p68, %p69
      %p72 = scmp.ne.s32.totalorder %s55, %s71
      %p73 = scmp.eq.s32.totalorder %s47, 0
      %p74 = por %p72, %p73
      %s75 = ssub.s32 %s41, %s48
      %p76 = scmp.eq.s32.totalorder %s75, 0
      %s78 = sadd.s32 %s77, 1
      %s79 = scalar_select %p76, %s77, %s78
      %p82 = pneg %p76
      %p83 = scmp.eq.s32.totalorder %s41, 1
      %p84 = por %p82, %p83
      %p85 = scmp.ne.s32.totalorder %s77, %s80
      %p86 = scmp.eq.s32.totalorder %s41, 0
      %p87 = por %p85, %p86
      %p88 = scmp.ne.s32.totalorder %s77, %s80
      %p89 = scmp.eq.s32.totalorder %s46, 1
      %p90 = por %p88, %p89
      %p91 = scmp.ne.s32.totalorder %s80, %s81
      %p92 = scmp.eq.s32.totalorder %s46, 0
      %p93 = por %p91, %p92
      %p94 = scmp.ne.s32.totalorder %s80, %s81
      %p95 = scmp.eq.s32.totalorder %s47, 1
      %p96 = por %p94, %p95
      %p98 = scmp.ne.s32.totalorder %s81, %s97
      %p99 = scmp.eq.s32.totalorder %s47, 0
      %p100 = por %p98, %p99
      %s102 = sadd.s32 %s101, 1
      %p105 = scmp.eq.s32.totalorder %s41, 1
      %p106 = scmp.ne.s32.totalorder %s101, %s103
      %p107 = scmp.eq.s32.totalorder %s41, 0
      %p108 = por %p106, %p107
      %p109 = scmp.ne.s32.totalorder %s101, %s103
      %p110 = scmp.eq.s32.totalorder %s46, 1
      %p111 = por %p109, %p110
      %p112 = scmp.ne.s32.totalorder %s103, %s104
      %p113 = scmp.eq.s32.totalorder %s46, 0
      %p114 = por %p112, %p113
      %p115 = scmp.ne.s32.totalorder %s103, %s104
      %p116 = scmp.eq.s32.totalorder %s47, 1
      %p117 = por %p115, %p116
      %p119 = scmp.ne.s32.totalorder %s104, %s118
      %p120 = scmp.eq.s32.totalorder %s47, 0
      %p121 = por %p119, %p120
      %s123 = sadd.s32 %s122, 1
      %p126 = scmp.eq.s32.totalorder %s41, 1
      %p127 = scmp.ne.s32.totalorder %s122, %s124
      %p128 = scmp.eq.s32.totalorder %s41, 0
      %p129 = por %p127, %p128
      %p130 = scmp.ne.s32.totalorder %s122, %s124
      %p131 = scmp.eq.s32.totalorder %s46, 1
      %p132 = por %p130, %p131
      %p133 = scmp.ne.s32.totalorder %s124, %s125
      %p134 = scmp.eq.s32.totalorder %s46, 0
      %p135 = por %p133, %p134
      %p136 = scmp.ne.s32.totalorder %s124, %s125
      %p137 = scmp.eq.s32.totalorder %s47, 1
      %p138 = por %p136, %p137
      %p140 = scmp.ne.s32.totalorder %s125, %s139
      %p141 = scmp.eq.s32.totalorder %s47, 0
      %p142 = por %p140, %p141
      %s144 = sadd.s32 %s143, 1
      %p147 = scmp.eq.s32.totalorder %s41, 1
      %p148 = scmp.ne.s32.totalorder %s143, %s145
      %p149 = scmp.eq.s32.totalorder %s41, 0
      %p150 = por %p148, %p149
      %p151 = scmp.ne.s32.totalorder %s143, %s145
      %p152 = scmp.eq.s32.totalorder %s46, 1
      %p153 = por %p151, %p152
      %p154 = scmp.ne.s32.totalorder %s145, %s146
      %p155 = scmp.eq.s32.totalorder %s46, 0
      %p156 = por %p154, %p155
      %p157 = scmp.ne.s32.totalorder %s145, %s146
      %p158 = scmp.eq.s32.totalorder %s47, 1
      %p159 = por %p157, %p158
      %p161 = scmp.ne.s32.totalorder %s146, %s160
      %p162 = scmp.eq.s32.totalorder %s47, 0
      %p163 = por %p161, %p162
      %s165 = sadd.s32 %s164, 1
      %p168 = scmp.eq.s32.totalorder %s41, 1
      %p169 = scmp.ne.s32.totalorder %s164, %s166
      %p170 = scmp.eq.s32.totalorder %s41, 0
      %p171 = por %p169, %p170
      %p172 = scmp.ne.s32.totalorder %s164, %s166
      %p173 = scmp.eq.s32.totalorder %s46, 1
      %p174 = por %p172, %p173
      %p175 = scmp.ne.s32.totalorder %s166, %s167
      %p176 = scmp.eq.s32.totalorder %s46, 0
      %p177 = por %p175, %p176
      %p178 = scmp.ne.s32.totalorder %s166, %s167
      %p179 = scmp.eq.s32.totalorder %s47, 1
      %p180 = por %p178, %p179
      %p182 = scmp.ne.s32.totalorder %s167, %s181
      %p183 = scmp.eq.s32.totalorder %s47, 0
      %p184 = por %p182, %p183
      %s186 = sadd.s32 %s185, 1
      %p189 = scmp.eq.s32.totalorder %s41, 1
      %p190 = scmp.ne.s32.totalorder %s185, %s187
      %p191 = scmp.eq.s32.totalorder %s41, 0
      %p192 = por %p190, %p191
      %p193 = scmp.ne.s32.totalorder %s185, %s187
      %p194 = scmp.eq.s32.totalorder %s46, 1
      %p195 = por %p193, %p194
      %p196 = scmp.ne.s32.totalorder %s187, %s188
      %p197 = scmp.eq.s32.totalorder %s46, 0
      %p198 = por %p196, %p197
      %p199 = scmp.ne.s32.totalorder %s187, %s188
      %p200 = scmp.eq.s32.totalorder %s47, 1
      %p201 = por %p199, %p200
      %p203 = scmp.ne.s32.totalorder %s188, %s202
      %p204 = scmp.eq.s32.totalorder %s47, 0
      %p205 = por %p203, %p204
      %s207 = sadd.s32 %s206, 1
      %p210 = scmp.eq.s32.totalorder %s41, 1
      %p211 = scmp.ne.s32.totalorder %s206, %s208
      %p212 = scmp.eq.s32.totalorder %s41, 0
      %p213 = por %p211, %p212
      %p214 = scmp.ne.s32.totalorder %s206, %s208
      %p215 = scmp.eq.s32.totalorder %s46, 1
      %p216 = por %p214, %p215
      %p217 = scmp.ne.s32.totalorder %s208, %s209
      %p218 = scmp.eq.s32.totalorder %s46, 0
      %p219 = por %p217, %p218
      %p220 = scmp.ne.s32.totalorder %s208, %s209
      %p221 = scmp.eq.s32.totalorder %s47, 1
      %p222 = por %p220, %p221
      %p224 = scmp.ne.s32.totalorder %s209, %s223
      %p225 = scmp.eq.s32.totalorder %s47, 0
      %p226 = por %p224, %p225
      %s228 = sadd.s32 %s227, 1
      %p231 = scmp.eq.s32.totalorder %s41, 1
      %p232 = scmp.ne.s32.totalorder %s227, %s229
      %p233 = scmp.eq.s32.totalorder %s41, 0
      %p234 = por %p232, %p233
      %p235 = scmp.ne.s32.totalorder %s227, %s229
      %p236 = scmp.eq.s32.totalorder %s46, 1
      %p237 = por %p235, %p236
      %p238 = scmp.ne.s32.totalorder %s229, %s230
      %p239 = scmp.eq.s32.totalorder %s46, 0
      %p240 = por %p238, %p239
      %p241 = scmp.ne.s32.totalorder %s229, %s230
      %p242 = scmp.eq.s32.totalorder %s47, 1
      %p243 = por %p241, %p242
      %p245 = scmp.ne.s32.totalorder %s230, %s244
      %p246 = scmp.eq.s32.totalorder %s47, 0
      %p247 = por %p245, %p246
      %s249 = sadd.s32 %s248, 1
      %p252 = scmp.eq.s32.totalorder %s41, 1
      %p253 = scmp.ne.s32.totalorder %s248, %s250
      %p254 = scmp.eq.s32.totalorder %s41, 0
      %p255 = por %p253, %p254
      %p256 = scmp.ne.s32.totalorder %s248, %s250
      %p257 = scmp.eq.s32.totalorder %s46, 1
      %p258 = por %p256, %p257
      %p259 = scmp.ne.s32.totalorder %s250, %s251
      %p260 = scmp.eq.s32.totalorder %s46, 0
      %p261 = por %p259, %p260
      %p262 = scmp.ne.s32.totalorder %s250, %s251
      %p263 = scmp.eq.s32.totalorder %s47, 1
      %p264 = por %p262, %p263
      %p266 = scmp.ne.s32.totalorder %s251, %s265
      %p267 = scmp.eq.s32.totalorder %s47, 0
      %p268 = por %p266, %p267
      %s270 = sadd.s32 %s269, 1
      %p273 = scmp.eq.s32.totalorder %s41, 1
      %p274 = scmp.ne.s32.totalorder %s269, %s271
      %p275 = scmp.eq.s32.totalorder %s41, 0
      %p276 = por %p274, %p275
      %p277 = scmp.ne.s32.totalorder %s269, %s271
      %p278 = scmp.eq.s32.totalorder %s46, 1
      %p279 = por %p277, %p278
      %p280 = scmp.ne.s32.totalorder %s271, %s272
      %p281 = scmp.eq.s32.totalorder %s46, 0
      %p282 = por %p280, %p281
      %p283 = scmp.ne.s32.totalorder %s271, %s272
      %p284 = scmp.eq.s32.totalorder %s47, 1
      %p285 = por %p283, %p284
      %p287 = scmp.ne.s32.totalorder %s272, %s286
      %p288 = scmp.eq.s32.totalorder %s47, 0
      %p289 = por %p287, %p288
      %s291 = sadd.s32 %s290, 1
      %p294 = scmp.eq.s32.totalorder %s41, 1
      %p295 = scmp.ne.s32.totalorder %s290, %s292
      %p296 = scmp.eq.s32.totalorder %s41, 0
      %p297 = por %p295, %p296
      %p298 = scmp.ne.s32.totalorder %s290, %s292
      %p299 = scmp.eq.s32.totalorder %s46, 1
      %p300 = por %p298, %p299
      %p301 = scmp.ne.s32.totalorder %s292, %s293
      %p302 = scmp.eq.s32.totalorder %s46, 0
      %p303 = por %p301, %p302
      %p304 = scmp.ne.s32.totalorder %s292, %s293
      %p305 = scmp.eq.s32.totalorder %s47, 1
      %p306 = por %p304, %p305
      %p308 = scmp.ne.s32.totalorder %s293, %s307
      %p309 = scmp.eq.s32.totalorder %s47, 0
      %p310 = por %p308, %p309
      %s312 = sadd.s32 %s311, 1
      %p315 = scmp.eq.s32.totalorder %s41, 1
      %p316 = scmp.ne.s32.totalorder %s311, %s313
      %p317 = scmp.eq.s32.totalorder %s41, 0
      %p318 = por %p316, %p317
      %p319 = scmp.ne.s32.totalorder %s311, %s313
      %p320 = scmp.eq.s32.totalorder %s46, 1
      %p321 = por %p319, %p320
      %p322 = scmp.ne.s32.totalorder %s313, %s314
      %p323 = scmp.eq.s32.totalorder %s46, 0
      %p324 = por %p322, %p323
      %p325 = scmp.ne.s32.totalorder %s313, %s314
      %p326 = scmp.eq.s32.totalorder %s47, 1
      %p327 = por %p325, %p326
      %p329 = scmp.ne.s32.totalorder %s314, %s328
      %p330 = scmp.eq.s32.totalorder %s47, 0
      %p331 = por %p329, %p330
      %s333 = sadd.s32 %s332, 1
      %p336 = scmp.eq.s32.totalorder %s41, 1
      %p337 = scmp.ne.s32.totalorder %s332, %s334
      %p338 = scmp.eq.s32.totalorder %s41, 0
      %p339 = por %p337, %p338
      %p340 = scmp.ne.s32.totalorder %s332, %s334
      %p341 = scmp.eq.s32.totalorder %s46, 1
      %p342 = por %p340, %p341
      %p343 = scmp.ne.s32.totalorder %s334, %s335
      %p344 = scmp.eq.s32.totalorder %s46, 0
      %p345 = por %p343, %p344
      %p346 = scmp.ne.s32.totalorder %s334, %s335
      %p347 = scmp.eq.s32.totalorder %s47, 1
      %p348 = por %p346, %p347
      %p350 = scmp.ne.s32.totalorder %s335, %s349
      %p351 = scmp.eq.s32.totalorder %s47, 0
      %p352 = por %p350, %p351
      %s354 = sadd.s32 %s353, 1
      %p357 = scmp.eq.s32.totalorder %s41, 1
      %p358 = scmp.ne.s32.totalorder %s353, %s355
      %p359 = scmp.eq.s32.totalorder %s41, 0
      %p360 = por %p358, %p359
      %p361 = scmp.ne.s32.totalorder %s353, %s355
      %p362 = scmp.eq.s32.totalorder %s46, 1
      %p363 = por %p361, %p362
      %p364 = scmp.ne.s32.totalorder %s355, %s356
      %p365 = scmp.eq.s32.totalorder %s46, 0
      %p366 = por %p364, %p365
      %p367 = scmp.ne.s32.totalorder %s355, %s356
      %p368 = scmp.eq.s32.totalorder %s47, 1
      %p369 = por %p367, %p368
      %p371 = scmp.ne.s32.totalorder %s356, %s370
      %p372 = scmp.eq.s32.totalorder %s47, 0
      %p373 = por %p371, %p372
      %s375 = sadd.s32 %s374, 1
      %p378 = scmp.eq.s32.totalorder %s41, 1
      %p379 = scmp.ne.s32.totalorder %s374, %s376
      %p380 = scmp.eq.s32.totalorder %s41, 0
      %p381 = por %p379, %p380
      %p382 = scmp.ne.s32.totalorder %s374, %s376
      %p383 = scmp.eq.s32.totalorder %s46, 1
      %p384 = por %p382, %p383
      %p385 = scmp.ne.s32.totalorder %s376, %s377
      %p386 = scmp.eq.s32.totalorder %s46, 0
      %p387 = por %p385, %p386
      %p388 = scmp.ne.s32.totalorder %s376, %s377
      %p389 = scmp.eq.s32.totalorder %s47, 1
      %p390 = por %p388, %p389
      %p392 = scmp.ne.s32.totalorder %s377, %s391
      %p393 = scmp.eq.s32.totalorder %s47, 0
      %p394 = por %p392, %p393
      %s396 = sadd.s32 %s395, 1
      %p399 = scmp.eq.s32.totalorder %s41, 1
      %p400 = scmp.ne.s32.totalorder %s395, %s397
      %p401 = scmp.eq.s32.totalorder %s41, 0
      %p402 = por %p400, %p401
      %p403 = scmp.ne.s32.totalorder %s395, %s397
      %p404 = scmp.eq.s32.totalorder %s46, 1
      %p405 = por %p403, %p404
      %p406 = scmp.ne.s32.totalorder %s397, %s398
      %p407 = scmp.eq.s32.totalorder %s46, 0
      %p408 = por %p406, %p407
      %p409 = scmp.ne.s32.totalorder %s397, %s398
      %p410 = scmp.eq.s32.totalorder %s47, 1
      %p411 = por %p409, %p410
      %p413 = scmp.ne.s32.totalorder %s398, %s412
      %p414 = scmp.eq.s32.totalorder %s47, 0
      %p415 = por %p413, %p414
      %s417 = sadd.s32 %s416, 1
      %p420 = scmp.eq.s32.totalorder %s41, 1
      %p421 = scmp.ne.s32.totalorder %s416, %s418
      %p422 = scmp.eq.s32.totalorder %s41, 0
      %p423 = por %p421, %p422
      %p424 = scmp.ne.s32.totalorder %s416, %s418
      %p425 = scmp.eq.s32.totalorder %s46, 1
      %p426 = por %p424, %p425
      %p427 = scmp.ne.s32.totalorder %s418, %s419
      %p428 = scmp.eq.s32.totalorder %s46, 0
      %p429 = por %p427, %p428
      %p430 = scmp.ne.s32.totalorder %s418, %s419
      %p431 = scmp.eq.s32.totalorder %s47, 1
      %p432 = por %p430, %p431
      %p434 = scmp.ne.s32.totalorder %s419, %s433
      %p435 = scmp.eq.s32.totalorder %s47, 0
      %p436 = por %p434, %p435
      %s438 = sadd.s32 %s437, 1
      %p441 = scmp.eq.s32.totalorder %s41, 1
      %p442 = scmp.ne.s32.totalorder %s437, %s439
      %p443 = scmp.eq.s32.totalorder %s41, 0
      %p444 = por %p442, %p443
      %p445 = scmp.ne.s32.totalorder %s437, %s439
      %p446 = scmp.eq.s32.totalorder %s46, 1
      %p447 = por %p445, %p446
      %p448 = scmp.ne.s32.totalorder %s439, %s440
      %p449 = scmp.eq.s32.totalorder %s46, 0
      %p450 = por %p448, %p449
      %p451 = scmp.ne.s32.totalorder %s439, %s440
      %p452 = scmp.eq.s32.totalorder %s47, 1
      %p453 = por %p451, %p452
      %p455 = scmp.ne.s32.totalorder %s440, %s454
      %p456 = scmp.eq.s32.totalorder %s47, 0
      %p457 = por %p455, %p456
      %s459 = sadd.s32 %s458, 1
      %p462 = scmp.eq.s32.totalorder %s41, 1
      %p463 = scmp.ne.s32.totalorder %s458, %s460
      %p464 = scmp.eq.s32.totalorder %s41, 0
      %p465 = por %p463, %p464
      %p466 = scmp.ne.s32.totalorder %s458, %s460
      %p467 = scmp.eq.s32.totalorder %s46, 1
      %p468 = por %p466, %p467
      %p469 = scmp.ne.s32.totalorder %s460, %s461
      %p470 = scmp.eq.s32.totalorder %s46, 0
      %p471 = por %p469, %p470
      %p472 = scmp.ne.s32.totalorder %s460, %s461
      %p473 = scmp.eq.s32.totalorder %s47, 1
      %p474 = por %p472, %p473
      %p476 = scmp.ne.s32.totalorder %s461, %s475
      %p477 = scmp.eq.s32.totalorder %s47, 0
      %p478 = por %p476, %p477
      %s480 = sadd.s32 %s479, 1
      %p483 = scmp.eq.s32.totalorder %s41, 1
      %p484 = scmp.ne.s32.totalorder %s479, %s481
      %p485 = scmp.eq.s32.totalorder %s41, 0
      %p486 = por %p484, %p485
      %p487 = scmp.ne.s32.totalorder %s479, %s481
      %p488 = scmp.eq.s32.totalorder %s46, 1
      %p489 = por %p487, %p488
      %p490 = scmp.ne.s32.totalorder %s481, %s482
      %p491 = scmp.eq.s32.totalorder %s46, 0
      %p492 = por %p490, %p491
      %p493 = scmp.ne.s32.totalorder %s481, %s482
      %p494 = scmp.eq.s32.totalorder %s47, 1
      %p495 = por %p493, %p494
      %p497 = scmp.ne.s32.totalorder %s482, %s496
      %p498 = scmp.eq.s32.totalorder %s47, 0
      %p499 = por %p497, %p498
      %s500 = ssub.s32 %s41, %s48
      %p501 = scmp.eq.s32.totalorder %s500, 0
      %s503 = sadd.s32 %s502, 1
      %s504 = scalar_select %p501, %s502, %s503
      %p507 = pneg %p501
      %p508 = scmp.eq.s32.totalorder %s41, 1
      %p509 = por %p507, %p508
      %p510 = scmp.ne.s32.totalorder %s502, %s505
      %p511 = scmp.eq.s32.totalorder %s41, 0
      %p512 = por %p510, %p511
      %p513 = scmp.ne.s32.totalorder %s502, %s505
      %p514 = scmp.eq.s32.totalorder %s46, 1
      %p515 = por %p513, %p514
      %p516 = scmp.ne.s32.totalorder %s505, %s506
      %p517 = scmp.eq.s32.totalorder %s46, 0
      %p518 = por %p516, %p517
      %p519 = scmp.ne.s32.totalorder %s505, %s506
      %p520 = scmp.eq.s32.totalorder %s47, 1
      %p521 = por %p519, %p520
      %p523 = scmp.ne.s32.totalorder %s506, %s522
      %p524 = scmp.eq.s32.totalorder %s47, 0
      %p525 = por %p523, %p524
      %s526 = ssub.s32 %s41, %s48
      %p527 = scmp.eq.s32.totalorder %s526, 0
      %s529 = sadd.s32 %s528, 1
      %s530 = scalar_select %p527, %s528, %s529
      %p533 = pneg %p527
      %p534 = scmp.eq.s32.totalorder %s41, 1
      %p535 = por %p533, %p534
      %p536 = scmp.ne.s32.totalorder %s528, %s531
      %p537 = scmp.eq.s32.totalorder %s41, 0
      %p538 = por %p536, %p537
      %p539 = scmp.ne.s32.totalorder %s528, %s531
      %p540 = scmp.eq.s32.totalorder %s46, 1
      %p541 = por %p539, %p540
      %p542 = scmp.ne.s32.totalorder %s531, %s532
      %p543 = scmp.eq.s32.totalorder %s46, 0
      %p544 = por %p542, %p543
      %p545 = scmp.ne.s32.totalorder %s531, %s532
      %p546 = scmp.eq.s32.totalorder %s47, 1
      %p547 = por %p545, %p546
      %p549 = scmp.ne.s32.totalorder %s532, %s548
      %p550 = scmp.eq.s32.totalorder %s47, 0
      %p551 = por %p549, %p550
      %s552 = ssub.s32 %s41, %s48
      %p553 = scmp.eq.s32.totalorder %s552, 0
      %s555 = sadd.s32 %s554, 1
      %s556 = scalar_select %p553, %s554, %s555
      %p559 = pneg %p553
      %p560 = scmp.eq.s32.totalorder %s41, 1
      %p561 = por %p559, %p560
      %p562 = scmp.ne.s32.totalorder %s554, %s557
      %p563 = scmp.eq.s32.totalorder %s41, 0
      %p564 = por %p562, %p563
      %p565 = scmp.ne.s32.totalorder %s554, %s557
      %p566 = scmp.eq.s32.totalorder %s46, 1
      %p567 = por %p565, %p566
      %p568 = scmp.ne.s32.totalorder %s557, %s558
      %p569 = scmp.eq.s32.totalorder %s46, 0
      %p570 = por %p568, %p569
      %p571 = scmp.ne.s32.totalorder %s557, %s558
      %p572 = scmp.eq.s32.totalorder %s47, 1
      %p573 = por %p571, %p572
      %p575 = scmp.ne.s32.totalorder %s558, %s574
      %p576 = scmp.eq.s32.totalorder %s47, 0
      %p577 = por %p575, %p576
      %p578 = scmp.le.s32.totalorder 1, %s41
      %p579 = scmp.lt.s32.totalorder %s41, 3
      %p580 = pnand %p578, %p579
      %p581 = pneg %p580
      // Predicated region
      $region9: #{tpu_custom_call.1} parent=5 // pred_check
        _
      $region10: #{tpu_custom_call.1} parent=5 // pred_check_branch
        %583 = sbr.rel (%p580) target = $region12
      $region11: #{tpu_custom_call.1} parent=5 // pred_region
        %s584 = ssub.s32 %s41, 1
        // Predicated region
        $region13: #{tpu_custom_call.1} parent=11 // pred_check
          %p585 = pneg %p114
        $region14: #{tpu_custom_call.1} parent=11 // pred_check_branch
          %587 = sbr.rel (%p585) target = $region16
        $region15: #{tpu_custom_call.1} parent=11 // pred_region
          _
        $region16: #{tpu_custom_call.1} parent=11 // pred_fallthru
          _
        // Predicated region
        $region17: #{tpu_custom_call.1} parent=11 // pred_check
          %p588 = pneg %p135
        $region18: #{tpu_custom_call.1} parent=11 // pred_check_branch
          %590 = sbr.rel (%p588) target = $region20
        $region19: #{tpu_custom_call.1} parent=11 // pred_region
          _
        $region20: #{tpu_custom_call.1} parent=11 // pred_fallthru
          _
        // Predicated region
        $region21: #{tpu_custom_call.1} parent=11 // pred_check
          %p591 = pneg %p156
        $region22: #{tpu_custom_call.1} parent=11 // pred_check_branch
          %593 = sbr.rel (%p591) target = $region24
        $region23: #{tpu_custom_call.1} parent=11 // pred_region
          _
        $region24: #{tpu_custom_call.1} parent=11 // pred_fallthru
          _
        // Predicated region
        $region25: #{tpu_custom_call.1} parent=11 // pred_check
          %p594 = pneg %p177
        $region26: #{tpu_custom_call.1} parent=11 // pred_check_branch
          %596 = sbr.rel (%p594) target = $region28
        $region27: #{tpu_custom_call.1} parent=11 // pred_region
          %s598 = ssub.s32 512, 512
          %599 = vsyncadd [#allocation7], %s598
          %s600 = sshll.u32 [#allocation6], 4
          %s601 = int_to_ptr.vmem [resolvable:$true] %s600
          %606 = dma.hbm_to_vmem [thread:$0]  %s5, 512, %s601, [#allocation7], 128, 128, 8
        $region28: #{tpu_custom_call.1} parent=11 // pred_fallthru
          _
        // Predicated region
        $region29: #{tpu_custom_call.1} parent=11 // pred_check
          %p607 = pneg %p198
        $region30: #{tpu_custom_call.1} parent=11 // pred_check_branch
          %609 = sbr.rel (%p607) target = $region32
        $region31: #{tpu_custom_call.1} parent=11 // pred_region
          _
        $region32: #{tpu_custom_call.1} parent=11 // pred_fallthru
          _
        // Predicated region
        $region33: #{tpu_custom_call.1} parent=11 // pred_check
          %p610 = pneg %p219
        $region34: #{tpu_custom_call.1} parent=11 // pred_check_branch
          %612 = sbr.rel (%p610) target = $region36
        $region35: #{tpu_custom_call.1} parent=11 // pred_region
          %s614 = ssub.s32 512, 512
          %615 = vsyncadd [#allocation7], %s614
          %s616 = sshll.u32 [#allocation8], 4
          %s617 = int_to_ptr.vmem [resolvable:$true] %s616
          %622 = dma.hbm_to_vmem [thread:$0]  %s7, 512, %s617, [#allocation7], 128, 128, 8
        $region36: #{tpu_custom_call.1} parent=11 // pred_fallthru
          _
        // Predicated region
        $region37: #{tpu_custom_call.1} parent=11 // pred_check
          %p623 = pneg %p240
        $region38: #{tpu_custom_call.1} parent=11 // pred_check_branch
          %625 = sbr.rel (%p623) target = $region40
        $region39: #{tpu_custom_call.1} parent=11 // pred_region
          _
        $region40: #{tpu_custom_call.1} parent=11 // pred_fallthru
          _
        // Predicated region
        $region41: #{tpu_custom_call.1} parent=11 // pred_check
          %p626 = pneg %p261
        $region42: #{tpu_custom_call.1} parent=11 // pred_check_branch
          %628 = sbr.rel (%p626) target = $region44
        $region43: #{tpu_custom_call.1} parent=11 // pred_region
          %s630 = ssub.s32 512, 512
          %631 = vsyncadd [#allocation10], %s630
          %s632 = sshll.u32 [#allocation9], 4
          %s633 = int_to_ptr.vmem [resolvable:$true] %s632
          %638 = dma.hbm_to_vmem [thread:$0]  %s9, 512, %s633, [#allocation10], 128, 128, 8
        $region44: #{tpu_custom_call.1} parent=11 // pred_fallthru
          _
        // Predicated region
        $region45: #{tpu_custom_call.1} parent=11 // pred_check
          %p639 = pneg %p282
        $region46: #{tpu_custom_call.1} parent=11 // pred_check_branch
          %641 = sbr.rel (%p639) target = $region48
        $region47: #{tpu_custom_call.1} parent=11 // pred_region
          _
        $region48: #{tpu_custom_call.1} parent=11 // pred_fallthru
          _
        // Predicated region
        $region49: #{tpu_custom_call.1} parent=11 // pred_check
          %p642 = pneg %p303
        $region50: #{tpu_custom_call.1} parent=11 // pred_check_branch
          %644 = sbr.rel (%p642) target = $region52
        $region51: #{tpu_custom_call.1} parent=11 // pred_region
          %s646 = ssub.s32 512, 512
          %647 = vsyncadd [#allocation10], %s646
          %s648 = sshll.u32 [#allocation11], 4
          %s649 = int_to_ptr.vmem [resolvable:$true] %s648
          %654 = dma.hbm_to_vmem [thread:$0]  %s11, 512, %s649, [#allocation10], 128, 128, 8
        $region52: #{tpu_custom_call.1} parent=11 // pred_fallthru
          _
        // Predicated region
        $region53: #{tpu_custom_call.1} parent=11 // pred_check
          %p655 = pneg %p324
        $region54: #{tpu_custom_call.1} parent=11 // pred_check_branch
          %657 = sbr.rel (%p655) target = $region56
        $region55: #{tpu_custom_call.1} parent=11 // pred_region
          _
        $region56: #{tpu_custom_call.1} parent=11 // pred_fallthru
          _
        // Predicated region
        $region57: #{tpu_custom_call.1} parent=11 // pred_check
          %p658 = pneg %p345
        $region58: #{tpu_custom_call.1} parent=11 // pred_check_branch
          %660 = sbr.rel (%p658) target = $region60
        $region59: #{tpu_custom_call.1} parent=11 // pred_region
          %s662 = ssub.s32 512, 512
          %663 = vsyncadd [#allocation13], %s662
          %s664 = sshll.u32 [#allocation12], 4
          %s665 = int_to_ptr.vmem [resolvable:$true] %s664
          %670 = dma.hbm_to_vmem [thread:$0]  %s13, 512, %s665, [#allocation13], 128, 128, 8
        $region60: #{tpu_custom_call.1} parent=11 // pred_fallthru
          _
        // Predicated region
        $region61: #{tpu_custom_call.1} parent=11 // pred_check
          %p671 = pneg %p366
        $region62: #{tpu_custom_call.1} parent=11 // pred_check_branch
          %673 = sbr.rel (%p671) target = $region64
        $region63: #{tpu_custom_call.1} parent=11 // pred_region
          _
        $region64: #{tpu_custom_call.1} parent=11 // pred_fallthru
          _
        // Predicated region
        $region65: #{tpu_custom_call.1} parent=11 // pred_check
          %p674 = pneg %p387
        $region66: #{tpu_custom_call.1} parent=11 // pred_check_branch
          %676 = sbr.rel (%p674) target = $region68
        $region67: #{tpu_custom_call.1} parent=11 // pred_region
          _
        $region68: #{tpu_custom_call.1} parent=11 // pred_fallthru
          _
        // Predicated region
        $region69: #{tpu_custom_call.1} parent=11 // pred_check
          %p677 = pneg %p408
        $region70: #{tpu_custom_call.1} parent=11 // pred_check_branch
          %679 = sbr.rel (%p677) target = $region72
        $region71: #{tpu_custom_call.1} parent=11 // pred_region
          _
        $region72: #{tpu_custom_call.1} parent=11 // pred_fallthru
          _
        // Predicated region
        $region73: #{tpu_custom_call.1} parent=11 // pred_check
          %p680 = pneg %p429
        $region74: #{tpu_custom_call.1} parent=11 // pred_check_branch
          %682 = sbr.rel (%p680) target = $region76
        $region75: #{tpu_custom_call.1} parent=11 // pred_region
          _
        $region76: #{tpu_custom_call.1} parent=11 // pred_fallthru
          _
        // Predicated region
        $region77: #{tpu_custom_call.1} parent=11 // pred_check
          %p683 = pneg %p450
        $region78: #{tpu_custom_call.1} parent=11 // pred_check_branch
          %685 = sbr.rel (%p683) target = $region80
        $region79: #{tpu_custom_call.1} parent=11 // pred_region
          _
        $region80: #{tpu_custom_call.1} parent=11 // pred_fallthru
          _
        // Predicated region
        $region81: #{tpu_custom_call.1} parent=11 // pred_check
          %p686 = pneg %p471
        $region82: #{tpu_custom_call.1} parent=11 // pred_check_branch
          %688 = sbr.rel (%p686) target = $region84
        $region83: #{tpu_custom_call.1} parent=11 // pred_region
          _
        $region84: #{tpu_custom_call.1} parent=11 // pred_fallthru
          _
        // Predicated region
        $region85: #{tpu_custom_call.1} parent=11 // pred_check
          %p689 = pneg %p492
        $region86: #{tpu_custom_call.1} parent=11 // pred_check_branch
          %691 = sbr.rel (%p689) target = $region88
        $region87: #{tpu_custom_call.1} parent=11 // pred_region
          _
        $region88: #{tpu_custom_call.1} parent=11 // pred_fallthru
          _
      $region12: #{tpu_custom_call.1} parent=5 // pred_fallthru
        _
      %p692 = scmp.lt.s32.totalorder %s41, 2
      // Predicated region
      $region89: #{tpu_custom_call.1} parent=5 // pred_check
        %p693 = pneg %p692
      $region90: #{tpu_custom_call.1} parent=5 // pred_check_branch
        %695 = sbr.rel (%p693) target = $region92
      $region91: #{tpu_custom_call.1} parent=5 // pred_region
        // Predicated region
        $region93: #{tpu_custom_call.1} parent=91 // pred_check
          %p696 = pneg %p61
        $region94: #{tpu_custom_call.1} parent=91 // pred_check_branch
          %698 = sbr.rel (%p696) target = $region96
        $region95: #{tpu_custom_call.1} parent=91 // pred_region
          %s699 = smul.u32 8, %s41
          %p700 = scmp.lt.s32.totalorder %s699, 15
          %s701 = scalar_select %p700, %s699, 15
          %s702 = smul.addr %s701, 8
          %s703 = scalar_lea.vmem %s0, %s702
          %s704 = smul.u32 8, %s41
        $region96: #{tpu_custom_call.1} parent=91 // pred_fallthru
          _
        // Predicated region
        $region97: #{tpu_custom_call.1} parent=91 // pred_check
          %p705 = pneg %p87
        $region98: #{tpu_custom_call.1} parent=91 // pred_check_branch
          %707 = sbr.rel (%p705) target = $region100
        $region99: #{tpu_custom_call.1} parent=91 // pred_region
          %s708 = sand.u32 %s77, 1
          %s709 = scalar_lea.sflag [#allocation4], %s708
          %s710 = sand.u32 %s77, 1
          %s711 = smul.addr %s710, 64
          %s712 = scalar_lea.vmem [#allocation3], %s711
          %s713 = smul.u32 8, %s41
          %s715 = ssub.s32 1024, 1024
          %716 = vsyncadd %s709, %s715
          %s717 = smul.addr %s713, 128
          %s718 = scalar_lea.hbm %s1, %s717
          %s719 = sshll.u32 %s712, 4
          %s720 = int_to_ptr.vmem [resolvable:$true] %s719
          %725 = dma.hbm_to_vmem [thread:$0]  %s718, 1024, %s720, %s709, 128, 128, 8
        $region100: #{tpu_custom_call.1} parent=91 // pred_fallthru
          _
      $region92: #{tpu_custom_call.1} parent=5 // pred_fallthru
        _
      %p726 = scmp.le.s32.totalorder 1, %s41
      %p727 = scmp.lt.s32.totalorder %s41, 3
      %p728 = pnand %p726, %p727
      %p729 = pneg %p728
      // Predicated region
      $region101: #{tpu_custom_call.1} parent=5 // pred_check
        _
      $region102: #{tpu_custom_call.1} parent=5 // pred_check_branch
        %731 = sbr.rel (%p728) target = $region104
      $region103: #{tpu_custom_call.1} parent=5 // pred_region
        %s732 = ssub.s32 %s41, 1
        %s733 = sand.u32 %s80, 1
        %s734 = scalar_lea.sflag [#allocation4], %s733
        %s735 = sand.u32 %s80, 1
        %s736 = smul.addr %s735, 64
        %s737 = scalar_lea.vmem [#allocation3], %s736
        // Predicated region
        $region105: #{tpu_custom_call.1} parent=103 // pred_check
          %p738 = pneg %p93
        $region106: #{tpu_custom_call.1} parent=103 // pred_check_branch
          %740 = sbr.rel (%p738) target = $region108
        $region107: #{tpu_custom_call.1} parent=103 // pred_region
          %741 = dma.done %s734, 1024
        $region108: #{tpu_custom_call.1} parent=103 // pred_fallthru
          _
        // Predicated region
        $region109: #{tpu_custom_call.1} parent=103 // pred_check
          %p742 = pneg %p177
        $region110: #{tpu_custom_call.1} parent=103 // pred_check_branch
          %744 = sbr.rel (%p742) target = $region112
        $region111: #{tpu_custom_call.1} parent=103 // pred_region
          %745 = dma.done [#allocation7], 512
        $region112: #{tpu_custom_call.1} parent=103 // pred_fallthru
          _
        // Predicated region
        $region113: #{tpu_custom_call.1} parent=103 // pred_check
          %p746 = pneg %p219
        $region114: #{tpu_custom_call.1} parent=103 // pred_check_branch
          %748 = sbr.rel (%p746) target = $region116
        $region115: #{tpu_custom_call.1} parent=103 // pred_region
          %749 = dma.done [#allocation7], 512
        $region116: #{tpu_custom_call.1} parent=103 // pred_fallthru
          _
        // Predicated region
        $region117: #{tpu_custom_call.1} parent=103 // pred_check
          %p750 = pneg %p261
        $region118: #{tpu_custom_call.1} parent=103 // pred_check_branch
          %752 = sbr.rel (%p750) target = $region120
        $region119: #{tpu_custom_call.1} parent=103 // pred_region
          %753 = dma.done [#allocation10], 512
        $region120: #{tpu_custom_call.1} parent=103 // pred_fallthru
          _
        // Predicated region
        $region121: #{tpu_custom_call.1} parent=103 // pred_check
          %p754 = pneg %p303
        $region122: #{tpu_custom_call.1} parent=103 // pred_check_branch
          %756 = sbr.rel (%p754) target = $region124
        $region123: #{tpu_custom_call.1} parent=103 // pred_region
          %757 = dma.done [#allocation10], 512
        $region124: #{tpu_custom_call.1} parent=103 // pred_fallthru
          _
        // Predicated region
        $region125: #{tpu_custom_call.1} parent=103 // pred_check
          %p758 = pneg %p345
        $region126: #{tpu_custom_call.1} parent=103 // pred_check_branch
          %760 = sbr.rel (%p758) target = $region128
        $region127: #{tpu_custom_call.1} parent=103 // pred_region
          %761 = dma.done [#allocation13], 512
        $region128: #{tpu_custom_call.1} parent=103 // pred_fallthru
          _
        %s762 = smul.u32 8, %s46
        %p763 = scmp.lt.s32.totalorder %s762, 15
        %s764 = scalar_select %p763, %s762, 15
        %s765 = smul.addr %s764, 8
        %s766 = scalar_lea.vmem %s0, %s765
        %p767 = pneg %p67
        %p768 = pneg %p64
        %s769 = sand.u32 %s80, 1
        %s770 = scalar_lea.sflag [#allocation4], %s769
        %s771 = sand.u32 %s80, 1
        %s772 = smul.addr %s771, 64
        %s773 = scalar_lea.vmem [#allocation3], %s772
        %p774 = pneg %p93
        %p775 = pneg %p90
        %p776 = pneg %p114
        %p777 = pneg %p111
        %p778 = pneg %p135
        %p779 = pneg %p132
        %p780 = pneg %p156
        %p781 = pneg %p153
        %p782 = pneg %p177
        %p783 = pneg %p174
        %p784 = pneg %p198
        %p785 = pneg %p195
        %p786 = pneg %p219
        %p787 = pneg %p216
        %p788 = pneg %p240
        %p789 = pneg %p237
        %p790 = pneg %p261
        %p791 = pneg %p258
        %p792 = pneg %p282
        %p793 = pneg %p279
        %p794 = pneg %p303
        %p795 = pneg %p300
        %p796 = pneg %p324
        %p797 = pneg %p321
        %p798 = pneg %p345
        %p799 = pneg %p342
        %p800 = pneg %p366
        %p801 = pneg %p363
        %p802 = pneg %p387
        %p803 = pneg %p384
        %p804 = pneg %p408
        %p805 = pneg %p405
        %p806 = pneg %p429
        %p807 = pneg %p426
        %p808 = pneg %p450
        %p809 = pneg %p447
        %p810 = pneg %p471
        %p811 = pneg %p468
        %p812 = pneg %p492
        %p813 = pneg %p489
        %p814 = pneg %p518
        %p815 = pneg %p515
        %s816 = sand.u32 %s505, 1
        %s817 = scalar_lea.sflag [#allocation5], %s816
        %s818 = sand.u32 %s505, 1
        %s819 = smul.addr %s818, 64
        %s820 = scalar_lea.vmem [#allocation14], %s819
        %p821 = pneg %p544
        %p822 = pneg %p541
        %s823 = smul.u32 8, %s46
        %p824 = scmp.lt.s32.totalorder %s823, 15
        %s825 = scalar_select %p824, %s823, 15
        %s826 = smul.addr %s825, 8
        %s827 = scalar_lea.vmem %s22, %s826
        %p828 = pneg %p570
        %p829 = pneg %p567
        %s830 = smul.u32 8, %s46
        %p831 = scmp.lt.s32.totalorder %s830, 15
        %s832 = scalar_select %p831, %s830, 15
        %s833 = smul.addr %s832, 8
        %s834 = scalar_lea.vmem %s23, %s833
        %s835 = smul.u32 8, %s46
        %p836 = scmp.lt.s32.totalorder %s835, 15
        %s837 = scalar_select %p836, %s835, 15
        %s838 = smul.addr %s837, 8
        %s839 = scalar_lea.vmem %s0, %s838
        %s840 = smul.u32 8, %s46
        %s841 = smul.u32 8, %s46
        %s842 = smul.u32 8, %s46
        %s843 = smul.u32 8, %s46
        %p844 = scmp.lt.s32.totalorder %s843, 15
        %s845 = scalar_select %p844, %s843, 15
        %s846 = smul.addr %s845, 8
        %s847 = scalar_lea.vmem %s22, %s846
        %s848 = smul.u32 8, %s46
        %s849 = smul.u32 8, %s46
        %p850 = scmp.lt.s32.totalorder %s849, 15
        %s851 = scalar_select %p850, %s849, 15
        %s852 = smul.addr %s851, 8
        %s853 = scalar_lea.vmem %s23, %s852
        %s854 = smul.u32 8, %s46
        %v856 = vld [vmem:[%s839] sm:$0xff]
        %v857 = vld [vmem:[%s839 + $0x8] sm:$0xff]
        %v858 = vld [vmem:[%s839 + $0x10] sm:$0xff]
        %v859 = vld [vmem:[%s839 + $0x18] sm:$0xff]
        %v860 = vld [vmem:[%s839 + $0x20] sm:$0xff]
        %v861 = vld [vmem:[%s839 + $0x28] sm:$0xff]
        %v862 = vld [vmem:[%s839 + $0x30] sm:$0xff]
        %v863 = vld [vmem:[%s839 + $0x38] sm:$0xff]
        %v864 = vld [vmem:[%s737] sm:$0xff]
        %v865 = vld [vmem:[%s737 + $0x8] sm:$0xff]
        %v866 = vld [vmem:[%s737 + $0x10] sm:$0xff]
        %v867 = vld [vmem:[%s737 + $0x18] sm:$0xff]
        %v868 = vld [vmem:[%s737 + $0x20] sm:$0xff]
        %v869 = vld [vmem:[%s737 + $0x28] sm:$0xff]
        %v870 = vld [vmem:[%s737 + $0x30] sm:$0xff]
        %v871 = vld [vmem:[%s737 + $0x38] sm:$0xff]
        %v872 = vld [vmem:[%s3] sm:$0x1]
        %v873 = vld [vmem:[#allocation2] sm:$0x1]
        %v874 = vld [vmem:[#allocation6] sm:$0xff]
        %v875 = vld [vmem:[#allocation6 + $0x8] sm:$0xff]
        %v876 = vld [vmem:[#allocation6 + $0x10] sm:$0xff]
        %v877 = vld [vmem:[#allocation6 + $0x18] sm:$0xff]
        %v878 = vpack.c.bf16 %v875, %v874
        %v879 = vpack.c.bf16 %v877, %v876
        %v880 = vld [vmem:[%s6] sm:$0x1]
        %v881 = vld [vmem:[#allocation8] sm:$0xff]
        %v882 = vld [vmem:[#allocation8 + $0x8] sm:$0xff]
        %v883 = vld [vmem:[#allocation8 + $0x10] sm:$0xff]
        %v884 = vld [vmem:[#allocation8 + $0x18] sm:$0xff]
        %v885 = vpack.c.bf16 %v882, %v881
        %v886 = vpack.c.bf16 %v884, %v883
        %v887 = vld [vmem:[%s8] sm:$0x1]
        %v888 = vld [vmem:[#allocation9] sm:$0xff]
        %v889 = vld [vmem:[#allocation9 + $0x8] sm:$0xff]
        %v890 = vld [vmem:[#allocation9 + $0x10] sm:$0xff]
        %v891 = vld [vmem:[#allocation9 + $0x18] sm:$0xff]
        %v892 = vpack.c.bf16 %v889, %v888
        %v893 = vpack.c.bf16 %v891, %v890
        %v894 = vld [vmem:[%s10] sm:$0x1]
        %v895 = vld [vmem:[#allocation11] sm:$0xff]
        %v896 = vld [vmem:[#allocation11 + $0x8] sm:$0xff]
        %v897 = vld [vmem:[#allocation11 + $0x10] sm:$0xff]
        %v898 = vld [vmem:[#allocation11 + $0x18] sm:$0xff]
        %v899 = vpack.c.bf16 %v896, %v895
        %v900 = vpack.c.bf16 %v898, %v897
        %v901 = vld [vmem:[%s12] sm:$0x1]
        %v902 = vld [vmem:[#allocation12] sm:$0xff]
        %v903 = vld [vmem:[#allocation12 + $0x8] sm:$0xff]
        %v904 = vld [vmem:[#allocation12 + $0x10] sm:$0xff]
        %v905 = vld [vmem:[#allocation12 + $0x18] sm:$0xff]
        %v906 = vpack.c.bf16 %v903, %v902
        %v907 = vpack.c.bf16 %v905, %v904
        %v908 = vld [vmem:[%s14] sm:$0x1]
        %v909 = vld [vmem:[%s15] sm:$0xff]
        %v910 = vld [vmem:[%s15 + $0x8] sm:$0xff]
        %v911 = vld [vmem:[%s15 + $0x10] sm:$0xff]
        %v912 = vld [vmem:[%s15 + $0x18] sm:$0xff]
        %v913 = vld [vmem:[%s15 + $0x20] sm:$0xff]
        %v914 = vld [vmem:[%s15 + $0x28] sm:$0xff]
        %v915 = vld [vmem:[%s15 + $0x30] sm:$0xff]
        %v916 = vld [vmem:[%s15 + $0x38] sm:$0xff]
        %v917 = vld [vmem:[%s15 + $0x40] sm:$0xff]
        %v918 = vld [vmem:[%s15 + $0x48] sm:$0xff]
        %v919 = vld [vmem:[%s15 + $0x50] sm:$0xff]
        %v920 = vld [vmem:[%s15 + $0x58] sm:$0xff]
        %v921 = vld [vmem:[%s15 + $0x60] sm:$0xff]
        %v922 = vld [vmem:[%s15 + $0x68] sm:$0xff]
        %v923 = vld [vmem:[%s15 + $0x70] sm:$0xff]
        %v924 = vld [vmem:[%s15 + $0x78] sm:$0xff]
        %v925 = vpack.c.bf16 %v910, %v909
        %v926 = vpack.c.bf16 %v912, %v911
        %v927 = vpack.c.bf16 %v914, %v913
        %v928 = vpack.c.bf16 %v916, %v915
        %v929 = vpack.c.bf16 %v918, %v917
        %v930 = vpack.c.bf16 %v920, %v919
        %v931 = vpack.c.bf16 %v922, %v921
        %v932 = vpack.c.bf16 %v924, %v923
        %v933 = vld [vmem:[%s16] sm:$0x1]
        %v934 = vld [vmem:[%s17] sm:$0x1]
        %v935 = vld [vmem:[%s18] sm:$0x1]
        %v936 = vld [vmem:[%s19] sm:$0x1]
        %v937 = vld [vmem:[%s20] sm:$0x1]
        loop: start=0, step=1, limit=4
        $region129: #{tpu_custom_call.1} parent=103 // loop_pre_header
          _
        $region130: #{tpu_custom_call.1} parent=103 // loop_header
          %s939 = sphi 0, %s943
          %p940 = scmp.ge.s32.totalorder %s939, 4
          %v944 = vphi %v856, %v5900
          %v945 = vphi %v857, %v5901
          %v946 = vphi %v858, %v5902
          %v947 = vphi %v859, %v5903
          %v948 = vphi %v860, %v5904
          %v949 = vphi %v861, %v5905
          %v950 = vphi %v862, %v5906
          %v951 = vphi %v863, %v5907
          %v952 = vphi 0.0, %v1264
          %v953 = vphi 0.0, %v1265
          %v954 = vphi 0.0, %v1266
          %v955 = vphi 0.0, %v1267
          %v956 = vphi 0.0, %v1268
          %v957 = vphi 0.0, %v1269
          %v958 = vphi 0.0, %v1270
          %v959 = vphi 0.0, %v1271
          %v960 = vphi 0.0, %v1232
          %v961 = vphi 0.0, %v1233
          %v962 = vphi 0.0, %v1234
          %v963 = vphi 0.0, %v1235
          %v964 = vphi 0.0, %v1236
          %v965 = vphi 0.0, %v1237
          %v966 = vphi 0.0, %v1238
          %v967 = vphi 0.0, %v1239
          %v968 = vphi 0.0, %v1280
          %v969 = vphi 0.0, %v1281
          %v970 = vphi 0.0, %v1282
          %v971 = vphi 0.0, %v1283
          %v972 = vphi 0.0, %v1284
          %v973 = vphi 0.0, %v1285
          %v974 = vphi 0.0, %v1286
          %v975 = vphi 0.0, %v1287
          %v976 = vphi 0.0, %v6012
          %v977 = vphi 0.0, %v6013
          %v978 = vphi 0.0, %v6014
          %v979 = vphi 0.0, %v6015
          %v980 = vphi 0.0, %v6016
          %v981 = vphi 0.0, %v6017
          %v982 = vphi 0.0, %v6018
          %v983 = vphi 0.0, %v6019
        $region131: #{tpu_custom_call.1} parent=103 // loop_header_branch
          %942 = sbr.rel (%p940) target = $region135
        $region132: #{tpu_custom_call.1} parent=103 // loop_body
          %s984 = smul.u32 %s939, 8
          %s985 = scalar_lea.vmem %s2, %s984
          %v986 = vld [vmem:[%s985] sm:$0xff]
          %v987 = vadd.f32 %v944, %v986
          %v988 = vadd.f32 %v945, %v986
          %v989 = vadd.f32 %v946, %v986
          %v990 = vadd.f32 %v947, %v986
          %v991 = vadd.f32 %v948, %v986
          %v992 = vadd.f32 %v949, %v986
          %v993 = vadd.f32 %v950, %v986
          %v994 = vadd.f32 %v951, %v986
          %v996 = vlaneseq
          %v997 = vshrl.u32 %v996, 7
          %v998 = vsub.s32 0, %v997
          %v999 = vrot.slane %v872, %v998
          %v1001 = vmul.f32 %v987, %v999
          %v1002 = vmul.f32 %v988, %v999
          %v1003 = vmul.f32 %v989, %v999
          %v1004 = vmul.f32 %v990, %v999
          %v1005 = vmul.f32 %v991, %v999
          %v1006 = vmul.f32 %v992, %v999
          %v1007 = vmul.f32 %v993, %v999
          %v1008 = vmul.f32 %v994, %v999
          %vm1009 = vcmask 261120
          %v1010 = vsel %vm1009, %v1001, 0.0
          %1011 = vadd.xlane.f32.xlu0 %v1010
          %v1012 = vpop.xlane.xlu0 %1011
          %v1013 = vsel %vm1009, %v1002, 0.0
          %1014 = vadd.xlane.f32.xlu0 %v1013
          %v1015 = vpop.xlane.xlu0 %1014
          %v1016 = vsel %vm1009, %v1003, 0.0
          %1017 = vadd.xlane.f32.xlu0 %v1016
          %v1018 = vpop.xlane.xlu0 %1017
          %v1019 = vsel %vm1009, %v1004, 0.0
          %1020 = vadd.xlane.f32.xlu0 %v1019
          %v1021 = vpop.xlane.xlu0 %1020
          %v1022 = vsel %vm1009, %v1005, 0.0
          %1023 = vadd.xlane.f32.xlu0 %v1022
          %v1024 = vpop.xlane.xlu0 %1023
          %v1025 = vsel %vm1009, %v1006, 0.0
          %1026 = vadd.xlane.f32.xlu0 %v1025
          %v1027 = vpop.xlane.xlu0 %1026
          %v1028 = vsel %vm1009, %v1007, 0.0
          %1029 = vadd.xlane.f32.xlu0 %v1028
          %v1030 = vpop.xlane.xlu0 %1029
          %v1031 = vsel %vm1009, %v1008, 0.0
          %1032 = vadd.xlane.f32.xlu0 %v1031
          %v1033 = vpop.xlane.xlu0 %1032
          %v1035 = vlaneseq
          %v1036 = vshrl.u32 %v1035, 7
          %v1037 = vsub.s32 0, %v1036
          %v1038 = vrot.slane %v873, %v1037
          %v1040 = vadd.f32 %v1012, %v1038
          %v1041 = vadd.f32 %v1015, %v1038
          %v1042 = vadd.f32 %v1018, %v1038
          %v1043 = vadd.f32 %v1021, %v1038
          %v1044 = vadd.f32 %v1024, %v1038
          %v1045 = vadd.f32 %v1027, %v1038
          %v1046 = vadd.f32 %v1030, %v1038
          %v1047 = vadd.f32 %v1033, %v1038
          %v1048 = vxor.u32 %v1040, 2147483648
          %v1049 = vxor.u32 %v1041, 2147483648
          %v1050 = vxor.u32 %v1042, 2147483648
          %v1051 = vxor.u32 %v1043, 2147483648
          %v1052 = vxor.u32 %v1044, 2147483648
          %v1053 = vxor.u32 %v1045, 2147483648
          %v1054 = vxor.u32 %v1046, 2147483648
          %v1055 = vxor.u32 %v1047, 2147483648
          %v1056 = vmul.f32 %v1048, 1.442695
          %v1057 = vpow.pop %v1056
          %v1058 = vmul.f32 %v1049, 1.442695
          %v1059 = vpow.pop %v1058
          %v1060 = vmul.f32 %v1050, 1.442695
          %v1061 = vpow.pop %v1060
          %v1062 = vmul.f32 %v1051, 1.442695
          %v1063 = vpow.pop %v1062
          %v1064 = vmul.f32 %v1052, 1.442695
          %v1065 = vpow.pop %v1064
          %v1066 = vmul.f32 %v1053, 1.442695
          %v1067 = vpow.pop %v1066
          %v1068 = vmul.f32 %v1054, 1.442695
          %v1069 = vpow.pop %v1068
          %v1070 = vmul.f32 %v1055, 1.442695
          %v1071 = vpow.pop %v1070
          %v1072 = vadd.f32 %v1057, 1.0
          %v1073 = vadd.f32 %v1059, 1.0
          %v1074 = vadd.f32 %v1061, 1.0
          %v1075 = vadd.f32 %v1063, 1.0
          %v1076 = vadd.f32 %v1065, 1.0
          %v1077 = vadd.f32 %v1067, 1.0
          %v1078 = vadd.f32 %v1069, 1.0
          %v1079 = vadd.f32 %v1071, 1.0
          %v1080 = vrcp.pop %v1072
          %v1081 = vmul.f32 1.0, %v1080
          %v1082 = vrcp.pop %v1073
          %v1083 = vmul.f32 1.0, %v1082
          %v1084 = vrcp.pop %v1074
          %v1085 = vmul.f32 1.0, %v1084
          %v1086 = vrcp.pop %v1075
          %v1087 = vmul.f32 1.0, %v1086
          %v1088 = vrcp.pop %v1076
          %v1089 = vmul.f32 1.0, %v1088
          %v1090 = vrcp.pop %v1077
          %v1091 = vmul.f32 1.0, %v1090
          %v1092 = vrcp.pop %v1078
          %v1093 = vmul.f32 1.0, %v1092
          %v1094 = vrcp.pop %v1079
          %v1095 = vmul.f32 1.0, %v1094
          %vm1096 = vcmp.lt.f32.partialorder %v952, 1.0
          %vm1097 = vcmp.lt.f32.partialorder %v953, 1.0
          %vm1098 = vcmp.lt.f32.partialorder %v954, 1.0
          %vm1099 = vcmp.lt.f32.partialorder %v955, 1.0
          %vm1100 = vcmp.lt.f32.partialorder %v956, 1.0
          %vm1101 = vcmp.lt.f32.partialorder %v957, 1.0
          %vm1102 = vcmp.lt.f32.partialorder %v958, 1.0
          %vm1103 = vcmp.lt.f32.partialorder %v959, 1.0
          %v1104 = vsel %vm1096, 1, 0
          %v1105 = vsel %vm1097, 1, 0
          %v1106 = vsel %vm1098, 1, 0
          %v1107 = vsel %vm1099, 1, 0
          %v1108 = vsel %vm1100, 1, 0
          %v1109 = vsel %vm1101, 1, 0
          %v1110 = vsel %vm1102, 1, 0
          %v1111 = vsel %vm1103, 1, 0
          %v1112 = vcvt.s32.f32 %v1104
          %v1113 = vcvt.s32.f32 %v1105
          %v1114 = vcvt.s32.f32 %v1106
          %v1115 = vcvt.s32.f32 %v1107
          %v1116 = vcvt.s32.f32 %v1108
          %v1117 = vcvt.s32.f32 %v1109
          %v1118 = vcvt.s32.f32 %v1110
          %v1119 = vcvt.s32.f32 %v1111
          %v1120 = vmul.f32 %v1081, %v1112
          %v1121 = vmul.f32 %v1083, %v1113
          %v1122 = vmul.f32 %v1085, %v1114
          %v1123 = vmul.f32 %v1087, %v1115
          %v1124 = vmul.f32 %v1089, %v1116
          %v1125 = vmul.f32 %v1091, %v1117
          %v1126 = vmul.f32 %v1093, %v1118
          %v1127 = vmul.f32 %v1095, %v1119
          %v1128 = vadd.f32 %v952, %v1120
          %v1129 = vadd.f32 %v953, %v1121
          %v1130 = vadd.f32 %v954, %v1122
          %v1131 = vadd.f32 %v955, %v1123
          %v1132 = vadd.f32 %v956, %v1124
          %v1133 = vadd.f32 %v957, %v1125
          %v1134 = vadd.f32 %v958, %v1126
          %v1135 = vadd.f32 %v959, %v1127
          %vm1136 = vcmp.gt.f32.partialorder %v1128, 0.9
          %vm1137 = vcmp.gt.f32.partialorder %v1129, 0.9
          %vm1138 = vcmp.gt.f32.partialorder %v1130, 0.9
          %vm1139 = vcmp.gt.f32.partialorder %v1131, 0.9
          %vm1140 = vcmp.gt.f32.partialorder %v1132, 0.9
          %vm1141 = vcmp.gt.f32.partialorder %v1133, 0.9
          %vm1142 = vcmp.gt.f32.partialorder %v1134, 0.9
          %vm1143 = vcmp.gt.f32.partialorder %v1135, 0.9
          %v1144 = vsel %vm1136, 1, 0
          %v1145 = vsel %vm1137, 1, 0
          %v1146 = vsel %vm1138, 1, 0
          %v1147 = vsel %vm1139, 1, 0
          %v1148 = vsel %vm1140, 1, 0
          %v1149 = vsel %vm1141, 1, 0
          %v1150 = vsel %vm1142, 1, 0
          %v1151 = vsel %vm1143, 1, 0
          %v1152 = vcvt.s32.f32 %v1144
          %v1153 = vcvt.s32.f32 %v1145
          %v1154 = vcvt.s32.f32 %v1146
          %v1155 = vcvt.s32.f32 %v1147
          %v1156 = vcvt.s32.f32 %v1148
          %v1157 = vcvt.s32.f32 %v1149
          %v1158 = vcvt.s32.f32 %v1150
          %v1159 = vcvt.s32.f32 %v1151
          %v1160 = vmul.f32 %v1152, %v1112
          %v1161 = vmul.f32 %v1153, %v1113
          %v1162 = vmul.f32 %v1154, %v1114
          %v1163 = vmul.f32 %v1155, %v1115
          %v1164 = vmul.f32 %v1156, %v1116
          %v1165 = vmul.f32 %v1157, %v1117
          %v1166 = vmul.f32 %v1158, %v1118
          %v1167 = vmul.f32 %v1159, %v1119
          %vm1168 = vcmp.le.f32.partialorder %v1128, 0.9
          %vm1169 = vcmp.le.f32.partialorder %v1129, 0.9
          %vm1170 = vcmp.le.f32.partialorder %v1130, 0.9
          %vm1171 = vcmp.le.f32.partialorder %v1131, 0.9
          %vm1172 = vcmp.le.f32.partialorder %v1132, 0.9
          %vm1173 = vcmp.le.f32.partialorder %v1133, 0.9
          %vm1174 = vcmp.le.f32.partialorder %v1134, 0.9
          %vm1175 = vcmp.le.f32.partialorder %v1135, 0.9
          %v1176 = vsel %vm1168, 1, 0
          %v1177 = vsel %vm1169, 1, 0
          %v1178 = vsel %vm1170, 1, 0
          %v1179 = vsel %vm1171, 1, 0
          %v1180 = vsel %vm1172, 1, 0
          %v1181 = vsel %vm1173, 1, 0
          %v1182 = vsel %vm1174, 1, 0
          %v1183 = vsel %vm1175, 1, 0
          %v1184 = vcvt.s32.f32 %v1176
          %v1185 = vcvt.s32.f32 %v1177
          %v1186 = vcvt.s32.f32 %v1178
          %v1187 = vcvt.s32.f32 %v1179
          %v1188 = vcvt.s32.f32 %v1180
          %v1189 = vcvt.s32.f32 %v1181
          %v1190 = vcvt.s32.f32 %v1182
          %v1191 = vcvt.s32.f32 %v1183
          %v1192 = vmul.f32 %v1184, %v1112
          %v1193 = vmul.f32 %v1185, %v1113
          %v1194 = vmul.f32 %v1186, %v1114
          %v1195 = vmul.f32 %v1187, %v1115
          %v1196 = vmul.f32 %v1188, %v1116
          %v1197 = vmul.f32 %v1189, %v1117
          %v1198 = vmul.f32 %v1190, %v1118
          %v1199 = vmul.f32 %v1191, %v1119
          %v1200 = vmul.f32 %v1081, %v1192
          %v1201 = vmul.f32 %v1083, %v1193
          %v1202 = vmul.f32 %v1085, %v1194
          %v1203 = vmul.f32 %v1087, %v1195
          %v1204 = vmul.f32 %v1089, %v1196
          %v1205 = vmul.f32 %v1091, %v1197
          %v1206 = vmul.f32 %v1093, %v1198
          %v1207 = vmul.f32 %v1095, %v1199
          %v1208 = vadd.f32 %v952, %v1200
          %v1209 = vadd.f32 %v953, %v1201
          %v1210 = vadd.f32 %v954, %v1202
          %v1211 = vadd.f32 %v955, %v1203
          %v1212 = vadd.f32 %v956, %v1204
          %v1213 = vadd.f32 %v957, %v1205
          %v1214 = vadd.f32 %v958, %v1206
          %v1215 = vadd.f32 %v959, %v1207
          %v1216 = vsub.f32 1.0, %v1208
          %v1217 = vsub.f32 1.0, %v1209
          %v1218 = vsub.f32 1.0, %v1210
          %v1219 = vsub.f32 1.0, %v1211
          %v1220 = vsub.f32 1.0, %v1212
          %v1221 = vsub.f32 1.0, %v1213
          %v1222 = vsub.f32 1.0, %v1214
          %v1223 = vsub.f32 1.0, %v1215
          %v1224 = vmul.f32 %v1160, %v1216
          %v1225 = vmul.f32 %v1161, %v1217
          %v1226 = vmul.f32 %v1162, %v1218
          %v1227 = vmul.f32 %v1163, %v1219
          %v1228 = vmul.f32 %v1164, %v1220
          %v1229 = vmul.f32 %v1165, %v1221
          %v1230 = vmul.f32 %v1166, %v1222
          %v1231 = vmul.f32 %v1167, %v1223
          %v1232 = vadd.f32 %v960, %v1224
          %v1233 = vadd.f32 %v961, %v1225
          %v1234 = vadd.f32 %v962, %v1226
          %v1235 = vadd.f32 %v963, %v1227
          %v1236 = vadd.f32 %v964, %v1228
          %v1237 = vadd.f32 %v965, %v1229
          %v1238 = vadd.f32 %v966, %v1230
          %v1239 = vadd.f32 %v967, %v1231
          %v1240 = vmul.f32 %v1160, %v1232
          %v1241 = vmul.f32 %v1161, %v1233
          %v1242 = vmul.f32 %v1162, %v1234
          %v1243 = vmul.f32 %v1163, %v1235
          %v1244 = vmul.f32 %v1164, %v1236
          %v1245 = vmul.f32 %v1165, %v1237
          %v1246 = vmul.f32 %v1166, %v1238
          %v1247 = vmul.f32 %v1167, %v1239
          %v1248 = vadd.f32 %v1208, %v1240
          %v1249 = vadd.f32 %v1209, %v1241
          %v1250 = vadd.f32 %v1210, %v1242
          %v1251 = vadd.f32 %v1211, %v1243
          %v1252 = vadd.f32 %v1212, %v1244
          %v1253 = vadd.f32 %v1213, %v1245
          %v1254 = vadd.f32 %v1214, %v1246
          %v1255 = vadd.f32 %v1215, %v1247
          %vm1256 = vcmp.gt.f32.partialorder %v1160, 0.0
          %vm1257 = vcmp.gt.f32.partialorder %v1161, 0.0
          %vm1258 = vcmp.gt.f32.partialorder %v1162, 0.0
          %vm1259 = vcmp.gt.f32.partialorder %v1163, 0.0
          %vm1260 = vcmp.gt.f32.partialorder %v1164, 0.0
          %vm1261 = vcmp.gt.f32.partialorder %v1165, 0.0
          %vm1262 = vcmp.gt.f32.partialorder %v1166, 0.0
          %vm1263 = vcmp.gt.f32.partialorder %v1167, 0.0
          %v1264 = vsel %vm1256, 1.0, %v1248
          %v1265 = vsel %vm1257, 1.0, %v1249
          %v1266 = vsel %vm1258, 1.0, %v1250
          %v1267 = vsel %vm1259, 1.0, %v1251
          %v1268 = vsel %vm1260, 1.0, %v1252
          %v1269 = vsel %vm1261, 1.0, %v1253
          %v1270 = vsel %vm1262, 1.0, %v1254
          %v1271 = vsel %vm1263, 1.0, %v1255
          %v1272 = vadd.f32 %v968, %v1192
          %v1273 = vadd.f32 %v969, %v1193
          %v1274 = vadd.f32 %v970, %v1194
          %v1275 = vadd.f32 %v971, %v1195
          %v1276 = vadd.f32 %v972, %v1196
          %v1277 = vadd.f32 %v973, %v1197
          %v1278 = vadd.f32 %v974, %v1198
          %v1279 = vadd.f32 %v975, %v1199
          %v1280 = vadd.f32 %v1272, %v1160
          %v1281 = vadd.f32 %v1273, %v1161
          %v1282 = vadd.f32 %v1274, %v1162
          %v1283 = vadd.f32 %v1275, %v1163
          %v1284 = vadd.f32 %v1276, %v1164
          %v1285 = vadd.f32 %v1277, %v1165
          %v1286 = vadd.f32 %v1278, %v1166
          %v1287 = vadd.f32 %v1279, %v1167
          %v1288 = vadd.f32 %v1200, %v1240
          %v1289 = vadd.f32 %v1201, %v1241
          %v1290 = vadd.f32 %v1202, %v1242
          %v1291 = vadd.f32 %v1203, %v1243
          %v1292 = vadd.f32 %v1204, %v1244
          %v1293 = vadd.f32 %v1205, %v1245
          %v1294 = vadd.f32 %v1206, %v1246
          %v1295 = vadd.f32 %v1207, %v1247
          %v1296 = vadd.f32 %v987, %v864
          %v1297 = vadd.f32 %v988, %v865
          %v1298 = vadd.f32 %v989, %v866
          %v1299 = vadd.f32 %v990, %v867
          %v1300 = vadd.f32 %v991, %v868
          %v1301 = vadd.f32 %v992, %v869
          %v1302 = vadd.f32 %v993, %v870
          %v1303 = vadd.f32 %v994, %v871
          %v1304 = vpack.c.bf16 %v1297, %v1296
          %v1305 = vpack.c.bf16 %v1299, %v1298
          %v1306 = vpack.c.bf16 %v1301, %v1300
          %v1307 = vpack.c.bf16 %v1303, %v1302
          %v1309 = vlaneseq
          %v1310 = vshrl.u32 %v1309, 7
          %v1311 = vsub.s32 0, %v1310
          %v1312 = vrot.slane %v880, %v1311
          %v1315 = vsel %vm1009, %v1304, 0
          %v1318 = vsel %vm1009, %v1305, 0
          %v1321 = vsel %vm1009, %v1306, 0
          %v1324 = vsel %vm1009, %v1307, 0
          %1326 = vmatprep.subr.bf16.mxu0 0
          %1327 = vmatpush1.bf16.msra.mxu0 0
          %1328 = vmatprep.subr.bf16.mxu0 0
          %1329 = vmatpush1.bf16.msra.mxu0 0
          %1330 = vmatprep.subr.bf16.mxu0 0
          %1331 = vmatpush1.bf16.msra.mxu0 0
          %1332 = vmatprep.subr.bf16.mxu0 0
          %1333 = vmatpush1.bf16.msra.mxu0 0
          %1334 = vmatprep.subr.bf16.mxu0 0
          %1335 = vmatpush1.bf16.msra.mxu0 0
          %1336 = vmatprep.subr.bf16.mxu0 0
          %1337 = vmatpush1.bf16.msra.mxu0 0
          %1338 = vmatprep.subr.bf16.mxu0 0
          %1339 = vmatpush1.bf16.msra.mxu0 %v879
          %1340 = vmatprep.subr.bf16.mxu0 0
          %1341 = vmatpush1.bf16.msra.mxu0 %v878
          %1342 = vmatprep.subr.bf16.mxu0 0
          %1343 = vmatpush2.bf16.msra.mxu0 0
          %1344 = vmatprep.subr.bf16.mxu0 0
          %1345 = vmatpush2.bf16.msra.mxu0 0
          %1346 = vmatprep.subr.bf16.mxu0 0
          %1347 = vmatpush2.bf16.msra.mxu0 0
          %1348 = vmatprep.subr.bf16.mxu0 0
          %1349 = vmatpush2.bf16.msra.mxu0 0
          %1350 = vmatprep.subr.bf16.mxu0 0
          %1351 = vmatpush2.bf16.msra.mxu0 0
          %1352 = vmatprep.subr.bf16.mxu0 0
          %1353 = vmatpush2.bf16.msra.mxu0 0
          %1354 = vmatprep.subr.bf16.mxu0 0
          %1355 = vmatpush2.bf16.msra.mxu0 0
          %1356 = vmatprep.subr.bf16.mxu0 0
          %1357 = vmatpush2.bf16.msra.mxu0 0
          %1358 = vmatprep.mubr.bf16.mxu0 0
          %1359 = vmatmul.mubr.bf16.gmra.mxu0 %v1315
          %v1360 = vpop.f32.mrf.mxu0
          %v1361 = vadd.f32 %v1312, %v1360
          %v1362 = vpop.f32.mrf.mxu0
          %v1363 = vpop.f32.mrf.mxu0
          %v1364 = vadd.f32 %v1312, %v1363
          %v1365 = vpop.f32.mrf.mxu0
          %1366 = vmatprep.mubr.bf16.mxu0 0
          %1367 = vmatmul.mubr.bf16.gmra.mxu0 %v1318
          %v1368 = vpop.f32.mrf.mxu0
          %v1369 = vadd.f32 %v1312, %v1368
          %v1370 = vpop.f32.mrf.mxu0
          %v1371 = vpop.f32.mrf.mxu0
          %v1372 = vadd.f32 %v1312, %v1371
          %v1373 = vpop.f32.mrf.mxu0
          %1374 = vmatprep.mubr.bf16.mxu0 0
          %1375 = vmatmul.mubr.bf16.gmra.mxu0 %v1321
          %v1376 = vpop.f32.mrf.mxu0
          %v1377 = vadd.f32 %v1312, %v1376
          %v1378 = vpop.f32.mrf.mxu0
          %v1379 = vpop.f32.mrf.mxu0
          %v1380 = vadd.f32 %v1312, %v1379
          %v1381 = vpop.f32.mrf.mxu0
          %1382 = vmatprep.mubr.bf16.mxu0 0
          %1383 = vmatmul.mubr.bf16.gmra.mxu0 %v1324
          %v1384 = vpop.f32.mrf.mxu0
          %v1385 = vadd.f32 %v1312, %v1384
          %v1386 = vpop.f32.mrf.mxu0
          %v1387 = vpop.f32.mrf.mxu0
          %v1388 = vadd.f32 %v1312, %v1387
          %v1389 = vpop.f32.mrf.mxu0
          %1390 = vdwg.mxu0
          %v1392 = vlaneseq
          %v1393 = vshrl.u32 %v1392, 7
          %v1394 = vsub.s32 0, %v1393
          %v1395 = vrot.slane %v887, %v1394
          %1397 = vmatprep.subr.bf16.mxu0 0
          %1398 = vmatpush1.bf16.msra.mxu0 0
          %1399 = vmatprep.subr.bf16.mxu0 0
          %1400 = vmatpush1.bf16.msra.mxu0 0
          %1401 = vmatprep.subr.bf16.mxu0 0
          %1402 = vmatpush1.bf16.msra.mxu0 0
          %1403 = vmatprep.subr.bf16.mxu0 0
          %1404 = vmatpush1.bf16.msra.mxu0 0
          %1405 = vmatprep.subr.bf16.mxu0 0
          %1406 = vmatpush1.bf16.msra.mxu0 0
          %1407 = vmatprep.subr.bf16.mxu0 0
          %1408 = vmatpush1.bf16.msra.mxu0 0
          %1409 = vmatprep.subr.bf16.mxu0 0
          %1410 = vmatpush1.bf16.msra.mxu0 %v886
          %1411 = vmatprep.subr.bf16.mxu0 0
          %1412 = vmatpush1.bf16.msra.mxu0 %v885
          %1413 = vmatprep.subr.bf16.mxu0 0
          %1414 = vmatpush2.bf16.msra.mxu0 0
          %1415 = vmatprep.subr.bf16.mxu0 0
          %1416 = vmatpush2.bf16.msra.mxu0 0
          %1417 = vmatprep.subr.bf16.mxu0 0
          %1418 = vmatpush2.bf16.msra.mxu0 0
          %1419 = vmatprep.subr.bf16.mxu0 0
          %1420 = vmatpush2.bf16.msra.mxu0 0
          %1421 = vmatprep.subr.bf16.mxu0 0
          %1422 = vmatpush2.bf16.msra.mxu0 0
          %1423 = vmatprep.subr.bf16.mxu0 0
          %1424 = vmatpush2.bf16.msra.mxu0 0
          %1425 = vmatprep.subr.bf16.mxu0 0
          %1426 = vmatpush2.bf16.msra.mxu0 0
          %1427 = vmatprep.subr.bf16.mxu0 0
          %1428 = vmatpush2.bf16.msra.mxu0 0
          %1429 = vmatprep.mubr.bf16.mxu0 0
          %1430 = vmatmul.mubr.bf16.gmra.mxu0 %v1315
          %v1431 = vpop.f32.mrf.mxu0
          %v1432 = vadd.f32 %v1395, %v1431
          %v1433 = vpop.f32.mrf.mxu0
          %v1434 = vpop.f32.mrf.mxu0
          %v1435 = vadd.f32 %v1395, %v1434
          %v1436 = vpop.f32.mrf.mxu0
          %1437 = vmatprep.mubr.bf16.mxu0 0
          %1438 = vmatmul.mubr.bf16.gmra.mxu0 %v1318
          %v1439 = vpop.f32.mrf.mxu0
          %v1440 = vadd.f32 %v1395, %v1439
          %v1441 = vpop.f32.mrf.mxu0
          %v1442 = vpop.f32.mrf.mxu0
          %v1443 = vadd.f32 %v1395, %v1442
          %v1444 = vpop.f32.mrf.mxu0
          %1445 = vmatprep.mubr.bf16.mxu0 0
          %1446 = vmatmul.mubr.bf16.gmra.mxu0 %v1321
          %v1447 = vpop.f32.mrf.mxu0
          %v1448 = vadd.f32 %v1395, %v1447
          %v1449 = vpop.f32.mrf.mxu0
          %v1450 = vpop.f32.mrf.mxu0
          %v1451 = vadd.f32 %v1395, %v1450
          %v1452 = vpop.f32.mrf.mxu0
          %1453 = vmatprep.mubr.bf16.mxu0 0
          %1454 = vmatmul.mubr.bf16.gmra.mxu0 %v1324
          %v1455 = vpop.f32.mrf.mxu0
          %v1456 = vadd.f32 %v1395, %v1455
          %v1457 = vpop.f32.mrf.mxu0
          %v1458 = vpop.f32.mrf.mxu0
          %v1459 = vadd.f32 %v1395, %v1458
          %v1460 = vpop.f32.mrf.mxu0
          %1461 = vdwg.mxu0
          %v1463 = vlaneseq
          %v1464 = vshrl.u32 %v1463, 7
          %v1465 = vsub.s32 0, %v1464
          %v1466 = vrot.slane %v894, %v1465
          %1468 = vmatprep.subr.bf16.mxu0 0
          %1469 = vmatpush1.bf16.msra.mxu0 0
          %1470 = vmatprep.subr.bf16.mxu0 0
          %1471 = vmatpush1.bf16.msra.mxu0 0
          %1472 = vmatprep.subr.bf16.mxu0 0
          %1473 = vmatpush1.bf16.msra.mxu0 0
          %1474 = vmatprep.subr.bf16.mxu0 0
          %1475 = vmatpush1.bf16.msra.mxu0 0
          %1476 = vmatprep.subr.bf16.mxu0 0
          %1477 = vmatpush1.bf16.msra.mxu0 0
          %1478 = vmatprep.subr.bf16.mxu0 0
          %1479 = vmatpush1.bf16.msra.mxu0 0
          %1480 = vmatprep.subr.bf16.mxu0 0
          %1481 = vmatpush1.bf16.msra.mxu0 %v893
          %1482 = vmatprep.subr.bf16.mxu0 0
          %1483 = vmatpush1.bf16.msra.mxu0 %v892
          %1484 = vmatprep.subr.bf16.mxu0 0
          %1485 = vmatpush2.bf16.msra.mxu0 0
          %1486 = vmatprep.subr.bf16.mxu0 0
          %1487 = vmatpush2.bf16.msra.mxu0 0
          %1488 = vmatprep.subr.bf16.mxu0 0
          %1489 = vmatpush2.bf16.msra.mxu0 0
          %1490 = vmatprep.subr.bf16.mxu0 0
          %1491 = vmatpush2.bf16.msra.mxu0 0
          %1492 = vmatprep.subr.bf16.mxu0 0
          %1493 = vmatpush2.bf16.msra.mxu0 0
          %1494 = vmatprep.subr.bf16.mxu0 0
          %1495 = vmatpush2.bf16.msra.mxu0 0
          %1496 = vmatprep.subr.bf16.mxu0 0
          %1497 = vmatpush2.bf16.msra.mxu0 0
          %1498 = vmatprep.subr.bf16.mxu0 0
          %1499 = vmatpush2.bf16.msra.mxu0 0
          %1500 = vmatprep.mubr.bf16.mxu0 0
          %1501 = vmatmul.mubr.bf16.gmra.mxu0 %v1315
          %v1502 = vpop.f32.mrf.mxu0
          %v1503 = vadd.f32 %v1466, %v1502
          %v1504 = vpop.f32.mrf.mxu0
          %v1505 = vpop.f32.mrf.mxu0
          %v1506 = vadd.f32 %v1466, %v1505
          %v1507 = vpop.f32.mrf.mxu0
          %1508 = vmatprep.mubr.bf16.mxu0 0
          %1509 = vmatmul.mubr.bf16.gmra.mxu0 %v1318
          %v1510 = vpop.f32.mrf.mxu0
          %v1511 = vadd.f32 %v1466, %v1510
          %v1512 = vpop.f32.mrf.mxu0
          %v1513 = vpop.f32.mrf.mxu0
          %v1514 = vadd.f32 %v1466, %v1513
          %v1515 = vpop.f32.mrf.mxu0
          %1516 = vmatprep.mubr.bf16.mxu0 0
          %1517 = vmatmul.mubr.bf16.gmra.mxu0 %v1321
          %v1518 = vpop.f32.mrf.mxu0
          %v1519 = vadd.f32 %v1466, %v1518
          %v1520 = vpop.f32.mrf.mxu0
          %v1521 = vpop.f32.mrf.mxu0
          %v1522 = vadd.f32 %v1466, %v1521
          %v1523 = vpop.f32.mrf.mxu0
          %1524 = vmatprep.mubr.bf16.mxu0 0
          %1525 = vmatmul.mubr.bf16.gmra.mxu0 %v1324
          %v1526 = vpop.f32.mrf.mxu0
          %v1527 = vadd.f32 %v1466, %v1526
          %v1528 = vpop.f32.mrf.mxu0
          %v1529 = vpop.f32.mrf.mxu0
          %v1530 = vadd.f32 %v1466, %v1529
          %v1531 = vpop.f32.mrf.mxu0
          %1532 = vdwg.mxu0
          %v1533 = vpack.c.bf16 %v1361, %v1361
          %v1534 = vpack.c.bf16 %v1364, %v1364
          %v1535 = vpack.c.bf16 %v1369, %v1369
          %v1536 = vpack.c.bf16 %v1372, %v1372
          %v1537 = vpack.c.bf16 %v1377, %v1377
          %v1538 = vpack.c.bf16 %v1380, %v1380
          %v1539 = vpack.c.bf16 %v1385, %v1385
          %v1540 = vpack.c.bf16 %v1388, %v1388
          %v1541 = vpack.c.bf16 %v1432, %v1432
          %v1542 = vpack.c.bf16 %v1435, %v1435
          %v1543 = vpack.c.bf16 %v1440, %v1440
          %v1544 = vpack.c.bf16 %v1443, %v1443
          %v1545 = vpack.c.bf16 %v1448, %v1448
          %v1546 = vpack.c.bf16 %v1451, %v1451
          %v1547 = vpack.c.bf16 %v1456, %v1456
          %v1548 = vpack.c.bf16 %v1459, %v1459
          %v1549 = vpack.c.bf16 %v1503, %v1503
          %v1550 = vpack.c.bf16 %v1506, %v1506
          %v1551 = vpack.c.bf16 %v1511, %v1511
          %v1552 = vpack.c.bf16 %v1514, %v1514
          %v1553 = vpack.c.bf16 %v1519, %v1519
          %v1554 = vpack.c.bf16 %v1522, %v1522
          %v1555 = vpack.c.bf16 %v1527, %v1527
          %v1556 = vpack.c.bf16 %v1530, %v1530
          %vm1557 = vcmask 64512
          %v1559 = vsel %vm1557, %v1533, 0
          %v1562 = vsel %vm1557, %v1541, 0
          %1564 = vmatprep.subr.bf16.mxu0 0
          %1565 = vmatpush1.bf16.xpose.msra.mxu0 0
          %1566 = vmatprep.subr.bf16.mxu0 0
          %1567 = vmatpush1.bf16.xpose.msra.mxu0 0
          %1568 = vmatprep.subr.bf16.mxu0 0
          %1569 = vmatpush1.bf16.xpose.msra.mxu0 0
          %1570 = vmatprep.subr.bf16.mxu0 0
          %1571 = vmatpush1.bf16.xpose.msra.mxu0 0
          %1572 = vmatprep.subr.bf16.mxu0 0
          %1573 = vmatpush1.bf16.xpose.msra.mxu0 0
          %1574 = vmatprep.subr.bf16.mxu0 0
          %1575 = vmatpush1.bf16.xpose.msra.mxu0 0
          %1576 = vmatprep.subr.bf16.mxu0 0
          %1577 = vmatpush1.bf16.xpose.msra.mxu0 0
          %1578 = vmatprep.subr.bf16.mxu0 0
          %1579 = vmatpush1.bf16.xpose.msra.mxu0 %v1562
          %1580 = vmatprep.subr.bf16.mxu0 0
          %1581 = vmatpush2.bf16.xpose.msra.mxu0 0
          %1582 = vmatprep.subr.bf16.mxu0 0
          %1583 = vmatpush2.bf16.xpose.msra.mxu0 0
          %1584 = vmatprep.subr.bf16.mxu0 0
          %1585 = vmatpush2.bf16.xpose.msra.mxu0 0
          %1586 = vmatprep.subr.bf16.mxu0 0
          %1587 = vmatpush2.bf16.xpose.msra.mxu0 0
          %1588 = vmatprep.subr.bf16.mxu0 0
          %1589 = vmatpush2.bf16.xpose.msra.mxu0 0
          %1590 = vmatprep.subr.bf16.mxu0 0
          %1591 = vmatpush2.bf16.xpose.msra.mxu0 0
          %1592 = vmatprep.subr.bf16.mxu0 0
          %1593 = vmatpush2.bf16.xpose.msra.mxu0 0
          %1594 = vmatprep.subr.bf16.mxu0 0
          %1595 = vmatpush2.bf16.xpose.msra.mxu0 0
          %1596 = vmatprep.mubr.bf16.mxu0 0
          %1597 = vmatmul.mubr.bf16.gmra.mxu0 %v1559
          %v1598 = vpop.f32.mrf.mxu0
          %v1599 = vadd.f32 0.0, %v1598
          %v1600 = vpop.f32.mrf.mxu0
          %v1601 = vpop.f32.mrf.mxu0
          %v1602 = vpop.f32.mrf.mxu0
          %1603 = vdwg.mxu0
          %v1605 = vsel %vm1557, %v1534, 0
          %v1608 = vsel %vm1557, %v1542, 0
          %1610 = vmatprep.subr.bf16.mxu0 0
          %1611 = vmatpush1.bf16.xpose.msra.mxu0 0
          %1612 = vmatprep.subr.bf16.mxu0 0
          %1613 = vmatpush1.bf16.xpose.msra.mxu0 0
          %1614 = vmatprep.subr.bf16.mxu0 0
          %1615 = vmatpush1.bf16.xpose.msra.mxu0 0
          %1616 = vmatprep.subr.bf16.mxu0 0
          %1617 = vmatpush1.bf16.xpose.msra.mxu0 0
          %1618 = vmatprep.subr.bf16.mxu0 0
          %1619 = vmatpush1.bf16.xpose.msra.mxu0 0
          %1620 = vmatprep.subr.bf16.mxu0 0
          %1621 = vmatpush1.bf16.xpose.msra.mxu0 0
          %1622 = vmatprep.subr.bf16.mxu0 0
          %1623 = vmatpush1.bf16.xpose.msra.mxu0 0
          %1624 = vmatprep.subr.bf16.mxu0 0
          %1625 = vmatpush1.bf16.xpose.msra.mxu0 %v1608
          %1626 = vmatprep.subr.bf16.mxu0 0
          %1627 = vmatpush2.bf16.xpose.msra.mxu0 0
          %1628 = vmatprep.subr.bf16.mxu0 0
          %1629 = vmatpush2.bf16.xpose.msra.mxu0 0
          %1630 = vmatprep.subr.bf16.mxu0 0
          %1631 = vmatpush2.bf16.xpose.msra.mxu0 0
          %1632 = vmatprep.subr.bf16.mxu0 0
          %1633 = vmatpush2.bf16.xpose.msra.mxu0 0
          %1634 = vmatprep.subr.bf16.mxu0 0
          %1635 = vmatpush2.bf16.xpose.msra.mxu0 0
          %1636 = vmatprep.subr.bf16.mxu0 0
          %1637 = vmatpush2.bf16.xpose.msra.mxu0 0
          %1638 = vmatprep.subr.bf16.mxu0 0
          %1639 = vmatpush2.bf16.xpose.msra.mxu0 0
          %1640 = vmatprep.subr.bf16.mxu0 0
          %1641 = vmatpush2.bf16.xpose.msra.mxu0 0
          %1642 = vmatprep.mubr.bf16.mxu0 0
          %1643 = vmatmul.mubr.bf16.gmra.mxu0 %v1605
          %v1644 = vpop.f32.mrf.mxu0
          %v1645 = vadd.f32 0.0, %v1644
          %v1646 = vpop.f32.mrf.mxu0
          %v1647 = vpop.f32.mrf.mxu0
          %v1648 = vpop.f32.mrf.mxu0
          %1649 = vdwg.mxu0
          %v1651 = vsel %vm1557, %v1535, 0
          %v1654 = vsel %vm1557, %v1543, 0
          %1656 = vmatprep.subr.bf16.mxu0 0
          %1657 = vmatpush1.bf16.xpose.msra.mxu0 0
          %1658 = vmatprep.subr.bf16.mxu0 0
          %1659 = vmatpush1.bf16.xpose.msra.mxu0 0
          %1660 = vmatprep.subr.bf16.mxu0 0
          %1661 = vmatpush1.bf16.xpose.msra.mxu0 0
          %1662 = vmatprep.subr.bf16.mxu0 0
          %1663 = vmatpush1.bf16.xpose.msra.mxu0 0
          %1664 = vmatprep.subr.bf16.mxu0 0
          %1665 = vmatpush1.bf16.xpose.msra.mxu0 0
          %1666 = vmatprep.subr.bf16.mxu0 0
          %1667 = vmatpush1.bf16.xpose.msra.mxu0 0
          %1668 = vmatprep.subr.bf16.mxu0 0
          %1669 = vmatpush1.bf16.xpose.msra.mxu0 0
          %1670 = vmatprep.subr.bf16.mxu0 0
          %1671 = vmatpush1.bf16.xpose.msra.mxu0 %v1654
          %1672 = vmatprep.subr.bf16.mxu0 0
          %1673 = vmatpush2.bf16.xpose.msra.mxu0 0
          %1674 = vmatprep.subr.bf16.mxu0 0
          %1675 = vmatpush2.bf16.xpose.msra.mxu0 0
          %1676 = vmatprep.subr.bf16.mxu0 0
          %1677 = vmatpush2.bf16.xpose.msra.mxu0 0
          %1678 = vmatprep.subr.bf16.mxu0 0
          %1679 = vmatpush2.bf16.xpose.msra.mxu0 0
          %1680 = vmatprep.subr.bf16.mxu0 0
          %1681 = vmatpush2.bf16.xpose.msra.mxu0 0
          %1682 = vmatprep.subr.bf16.mxu0 0
          %1683 = vmatpush2.bf16.xpose.msra.mxu0 0
          %1684 = vmatprep.subr.bf16.mxu0 0
          %1685 = vmatpush2.bf16.xpose.msra.mxu0 0
          %1686 = vmatprep.subr.bf16.mxu0 0
          %1687 = vmatpush2.bf16.xpose.msra.mxu0 0
          %1688 = vmatprep.mubr.bf16.mxu0 0
          %1689 = vmatmul.mubr.bf16.gmra.mxu0 %v1651
          %v1690 = vpop.f32.mrf.mxu0
          %v1691 = vadd.f32 0.0, %v1690
          %v1692 = vpop.f32.mrf.mxu0
          %v1693 = vpop.f32.mrf.mxu0
          %v1694 = vpop.f32.mrf.mxu0
          %1695 = vdwg.mxu0
          %v1697 = vsel %vm1557, %v1536, 0
          %v1700 = vsel %vm1557, %v1544, 0
          %1702 = vmatprep.subr.bf16.mxu0 0
          %1703 = vmatpush1.bf16.xpose.msra.mxu0 0
          %1704 = vmatprep.subr.bf16.mxu0 0
          %1705 = vmatpush1.bf16.xpose.msra.mxu0 0
          %1706 = vmatprep.subr.bf16.mxu0 0
          %1707 = vmatpush1.bf16.xpose.msra.mxu0 0
          %1708 = vmatprep.subr.bf16.mxu0 0
          %1709 = vmatpush1.bf16.xpose.msra.mxu0 0
          %1710 = vmatprep.subr.bf16.mxu0 0
          %1711 = vmatpush1.bf16.xpose.msra.mxu0 0
          %1712 = vmatprep.subr.bf16.mxu0 0
          %1713 = vmatpush1.bf16.xpose.msra.mxu0 0
          %1714 = vmatprep.subr.bf16.mxu0 0
          %1715 = vmatpush1.bf16.xpose.msra.mxu0 0
          %1716 = vmatprep.subr.bf16.mxu0 0
          %1717 = vmatpush1.bf16.xpose.msra.mxu0 %v1700
          %1718 = vmatprep.subr.bf16.mxu0 0
          %1719 = vmatpush2.bf16.xpose.msra.mxu0 0
          %1720 = vmatprep.subr.bf16.mxu0 0
          %1721 = vmatpush2.bf16.xpose.msra.mxu0 0
          %1722 = vmatprep.subr.bf16.mxu0 0
          %1723 = vmatpush2.bf16.xpose.msra.mxu0 0
          %1724 = vmatprep.subr.bf16.mxu0 0
          %1725 = vmatpush2.bf16.xpose.msra.mxu0 0
          %1726 = vmatprep.subr.bf16.mxu0 0
          %1727 = vmatpush2.bf16.xpose.msra.mxu0 0
          %1728 = vmatprep.subr.bf16.mxu0 0
          %1729 = vmatpush2.bf16.xpose.msra.mxu0 0
          %1730 = vmatprep.subr.bf16.mxu0 0
          %1731 = vmatpush2.bf16.xpose.msra.mxu0 0
          %1732 = vmatprep.subr.bf16.mxu0 0
          %1733 = vmatpush2.bf16.xpose.msra.mxu0 0
          %1734 = vmatprep.mubr.bf16.mxu0 0
          %1735 = vmatmul.mubr.bf16.gmra.mxu0 %v1697
          %v1736 = vpop.f32.mrf.mxu0
          %v1737 = vadd.f32 0.0, %v1736
          %v1738 = vpop.f32.mrf.mxu0
          %v1739 = vpop.f32.mrf.mxu0
          %v1740 = vpop.f32.mrf.mxu0
          %1741 = vdwg.mxu0
          %v1743 = vsel %vm1557, %v1537, 0
          %v1746 = vsel %vm1557, %v1545, 0
          %1748 = vmatprep.subr.bf16.mxu0 0
          %1749 = vmatpush1.bf16.xpose.msra.mxu0 0
          %1750 = vmatprep.subr.bf16.mxu0 0
          %1751 = vmatpush1.bf16.xpose.msra.mxu0 0
          %1752 = vmatprep.subr.bf16.mxu0 0
          %1753 = vmatpush1.bf16.xpose.msra.mxu0 0
          %1754 = vmatprep.subr.bf16.mxu0 0
          %1755 = vmatpush1.bf16.xpose.msra.mxu0 0
          %1756 = vmatprep.subr.bf16.mxu0 0
          %1757 = vmatpush1.bf16.xpose.msra.mxu0 0
          %1758 = vmatprep.subr.bf16.mxu0 0
          %1759 = vmatpush1.bf16.xpose.msra.mxu0 0
          %1760 = vmatprep.subr.bf16.mxu0 0
          %1761 = vmatpush1.bf16.xpose.msra.mxu0 0
          %1762 = vmatprep.subr.bf16.mxu0 0
          %1763 = vmatpush1.bf16.xpose.msra.mxu0 %v1746
          %1764 = vmatprep.subr.bf16.mxu0 0
          %1765 = vmatpush2.bf16.xpose.msra.mxu0 0
          %1766 = vmatprep.subr.bf16.mxu0 0
          %1767 = vmatpush2.bf16.xpose.msra.mxu0 0
          %1768 = vmatprep.subr.bf16.mxu0 0
          %1769 = vmatpush2.bf16.xpose.msra.mxu0 0
          %1770 = vmatprep.subr.bf16.mxu0 0
          %1771 = vmatpush2.bf16.xpose.msra.mxu0 0
          %1772 = vmatprep.subr.bf16.mxu0 0
          %1773 = vmatpush2.bf16.xpose.msra.mxu0 0
          %1774 = vmatprep.subr.bf16.mxu0 0
          %1775 = vmatpush2.bf16.xpose.msra.mxu0 0
          %1776 = vmatprep.subr.bf16.mxu0 0
          %1777 = vmatpush2.bf16.xpose.msra.mxu0 0
          %1778 = vmatprep.subr.bf16.mxu0 0
          %1779 = vmatpush2.bf16.xpose.msra.mxu0 0
          %1780 = vmatprep.mubr.bf16.mxu0 0
          %1781 = vmatmul.mubr.bf16.gmra.mxu0 %v1743
          %v1782 = vpop.f32.mrf.mxu0
          %v1783 = vadd.f32 0.0, %v1782
          %v1784 = vpop.f32.mrf.mxu0
          %v1785 = vpop.f32.mrf.mxu0
          %v1786 = vpop.f32.mrf.mxu0
          %1787 = vdwg.mxu0
          %v1789 = vsel %vm1557, %v1538, 0
          %v1792 = vsel %vm1557, %v1546, 0
          %1794 = vmatprep.subr.bf16.mxu0 0
          %1795 = vmatpush1.bf16.xpose.msra.mxu0 0
          %1796 = vmatprep.subr.bf16.mxu0 0
          %1797 = vmatpush1.bf16.xpose.msra.mxu0 0
          %1798 = vmatprep.subr.bf16.mxu0 0
          %1799 = vmatpush1.bf16.xpose.msra.mxu0 0
          %1800 = vmatprep.subr.bf16.mxu0 0
          %1801 = vmatpush1.bf16.xpose.msra.mxu0 0
          %1802 = vmatprep.subr.bf16.mxu0 0
          %1803 = vmatpush1.bf16.xpose.msra.mxu0 0
          %1804 = vmatprep.subr.bf16.mxu0 0
          %1805 = vmatpush1.bf16.xpose.msra.mxu0 0
          %1806 = vmatprep.subr.bf16.mxu0 0
          %1807 = vmatpush1.bf16.xpose.msra.mxu0 0
          %1808 = vmatprep.subr.bf16.mxu0 0
          %1809 = vmatpush1.bf16.xpose.msra.mxu0 %v1792
          %1810 = vmatprep.subr.bf16.mxu0 0
          %1811 = vmatpush2.bf16.xpose.msra.mxu0 0
          %1812 = vmatprep.subr.bf16.mxu0 0
          %1813 = vmatpush2.bf16.xpose.msra.mxu0 0
          %1814 = vmatprep.subr.bf16.mxu0 0
          %1815 = vmatpush2.bf16.xpose.msra.mxu0 0
          %1816 = vmatprep.subr.bf16.mxu0 0
          %1817 = vmatpush2.bf16.xpose.msra.mxu0 0
          %1818 = vmatprep.subr.bf16.mxu0 0
          %1819 = vmatpush2.bf16.xpose.msra.mxu0 0
          %1820 = vmatprep.subr.bf16.mxu0 0
          %1821 = vmatpush2.bf16.xpose.msra.mxu0 0
          %1822 = vmatprep.subr.bf16.mxu0 0
          %1823 = vmatpush2.bf16.xpose.msra.mxu0 0
          %1824 = vmatprep.subr.bf16.mxu0 0
          %1825 = vmatpush2.bf16.xpose.msra.mxu0 0
          %1826 = vmatprep.mubr.bf16.mxu0 0
          %1827 = vmatmul.mubr.bf16.gmra.mxu0 %v1789
          %v1828 = vpop.f32.mrf.mxu0
          %v1829 = vadd.f32 0.0, %v1828
          %v1830 = vpop.f32.mrf.mxu0
          %v1831 = vpop.f32.mrf.mxu0
          %v1832 = vpop.f32.mrf.mxu0
          %1833 = vdwg.mxu0
          %v1835 = vsel %vm1557, %v1539, 0
          %v1838 = vsel %vm1557, %v1547, 0
          %1840 = vmatprep.subr.bf16.mxu0 0
          %1841 = vmatpush1.bf16.xpose.msra.mxu0 0
          %1842 = vmatprep.subr.bf16.mxu0 0
          %1843 = vmatpush1.bf16.xpose.msra.mxu0 0
          %1844 = vmatprep.subr.bf16.mxu0 0
          %1845 = vmatpush1.bf16.xpose.msra.mxu0 0
          %1846 = vmatprep.subr.bf16.mxu0 0
          %1847 = vmatpush1.bf16.xpose.msra.mxu0 0
          %1848 = vmatprep.subr.bf16.mxu0 0
          %1849 = vmatpush1.bf16.xpose.msra.mxu0 0
          %1850 = vmatprep.subr.bf16.mxu0 0
          %1851 = vmatpush1.bf16.xpose.msra.mxu0 0
          %1852 = vmatprep.subr.bf16.mxu0 0
          %1853 = vmatpush1.bf16.xpose.msra.mxu0 0
          %1854 = vmatprep.subr.bf16.mxu0 0
          %1855 = vmatpush1.bf16.xpose.msra.mxu0 %v1838
          %1856 = vmatprep.subr.bf16.mxu0 0
          %1857 = vmatpush2.bf16.xpose.msra.mxu0 0
          %1858 = vmatprep.subr.bf16.mxu0 0
          %1859 = vmatpush2.bf16.xpose.msra.mxu0 0
          %1860 = vmatprep.subr.bf16.mxu0 0
          %1861 = vmatpush2.bf16.xpose.msra.mxu0 0
          %1862 = vmatprep.subr.bf16.mxu0 0
          %1863 = vmatpush2.bf16.xpose.msra.mxu0 0
          %1864 = vmatprep.subr.bf16.mxu0 0
          %1865 = vmatpush2.bf16.xpose.msra.mxu0 0
          %1866 = vmatprep.subr.bf16.mxu0 0
          %1867 = vmatpush2.bf16.xpose.msra.mxu0 0
          %1868 = vmatprep.subr.bf16.mxu0 0
          %1869 = vmatpush2.bf16.xpose.msra.mxu0 0
          %1870 = vmatprep.subr.bf16.mxu0 0
          %1871 = vmatpush2.bf16.xpose.msra.mxu0 0
          %1872 = vmatprep.mubr.bf16.mxu0 0
          %1873 = vmatmul.mubr.bf16.gmra.mxu0 %v1835
          %v1874 = vpop.f32.mrf.mxu0
          %v1875 = vadd.f32 0.0, %v1874
          %v1876 = vpop.f32.mrf.mxu0
          %v1877 = vpop.f32.mrf.mxu0
          %v1878 = vpop.f32.mrf.mxu0
          %1879 = vdwg.mxu0
          %v1881 = vsel %vm1557, %v1540, 0
          %v1884 = vsel %vm1557, %v1548, 0
          %1886 = vmatprep.subr.bf16.mxu0 0
          %1887 = vmatpush1.bf16.xpose.msra.mxu0 0
          %1888 = vmatprep.subr.bf16.mxu0 0
          %1889 = vmatpush1.bf16.xpose.msra.mxu0 0
          %1890 = vmatprep.subr.bf16.mxu0 0
          %1891 = vmatpush1.bf16.xpose.msra.mxu0 0
          %1892 = vmatprep.subr.bf16.mxu0 0
          %1893 = vmatpush1.bf16.xpose.msra.mxu0 0
          %1894 = vmatprep.subr.bf16.mxu0 0
          %1895 = vmatpush1.bf16.xpose.msra.mxu0 0
          %1896 = vmatprep.subr.bf16.mxu0 0
          %1897 = vmatpush1.bf16.xpose.msra.mxu0 0
          %1898 = vmatprep.subr.bf16.mxu0 0
          %1899 = vmatpush1.bf16.xpose.msra.mxu0 0
          %1900 = vmatprep.subr.bf16.mxu0 0
          %1901 = vmatpush1.bf16.xpose.msra.mxu0 %v1884
          %1902 = vmatprep.subr.bf16.mxu0 0
          %1903 = vmatpush2.bf16.xpose.msra.mxu0 0
          %1904 = vmatprep.subr.bf16.mxu0 0
          %1905 = vmatpush2.bf16.xpose.msra.mxu0 0
          %1906 = vmatprep.subr.bf16.mxu0 0
          %1907 = vmatpush2.bf16.xpose.msra.mxu0 0
          %1908 = vmatprep.subr.bf16.mxu0 0
          %1909 = vmatpush2.bf16.xpose.msra.mxu0 0
          %1910 = vmatprep.subr.bf16.mxu0 0
          %1911 = vmatpush2.bf16.xpose.msra.mxu0 0
          %1912 = vmatprep.subr.bf16.mxu0 0
          %1913 = vmatpush2.bf16.xpose.msra.mxu0 0
          %1914 = vmatprep.subr.bf16.mxu0 0
          %1915 = vmatpush2.bf16.xpose.msra.mxu0 0
          %1916 = vmatprep.subr.bf16.mxu0 0
          %1917 = vmatpush2.bf16.xpose.msra.mxu0 0
          %1918 = vmatprep.mubr.bf16.mxu0 0
          %1919 = vmatmul.mubr.bf16.gmra.mxu0 %v1881
          %v1920 = vpop.f32.mrf.mxu0
          %v1921 = vadd.f32 0.0, %v1920
          %v1922 = vpop.f32.mrf.mxu0
          %v1923 = vpop.f32.mrf.mxu0
          %v1924 = vpop.f32.mrf.mxu0
          %1925 = vdwg.mxu0
          %v1926 = vmul.f32 %v1599, 0.35355338
          %v1927 = vmul.f32 %v1645, 0.35355338
          %v1928 = vmul.f32 %v1691, 0.35355338
          %v1929 = vmul.f32 %v1737, 0.35355338
          %v1930 = vmul.f32 %v1783, 0.35355338
          %v1931 = vmul.f32 %v1829, 0.35355338
          %v1932 = vmul.f32 %v1875, 0.35355338
          %v1933 = vmul.f32 %v1921, 0.35355338
          %v1934 = vsel %vm1557, %v1926, -inf
          %1935 = vmax.xlane.f32.xlu0 %v1934
          %v1936 = vpop.xlane.xlu0 %1935
          %v1937 = vsel %vm1557, %v1927, -inf
          %1938 = vmax.xlane.f32.xlu0 %v1937
          %v1939 = vpop.xlane.xlu0 %1938
          %v1940 = vsel %vm1557, %v1928, -inf
          %1941 = vmax.xlane.f32.xlu0 %v1940
          %v1942 = vpop.xlane.xlu0 %1941
          %v1943 = vsel %vm1557, %v1929, -inf
          %1944 = vmax.xlane.f32.xlu0 %v1943
          %v1945 = vpop.xlane.xlu0 %1944
          %v1946 = vsel %vm1557, %v1930, -inf
          %1947 = vmax.xlane.f32.xlu0 %v1946
          %v1948 = vpop.xlane.xlu0 %1947
          %v1949 = vsel %vm1557, %v1931, -inf
          %1950 = vmax.xlane.f32.xlu0 %v1949
          %v1951 = vpop.xlane.xlu0 %1950
          %v1952 = vsel %vm1557, %v1932, -inf
          %1953 = vmax.xlane.f32.xlu0 %v1952
          %v1954 = vpop.xlane.xlu0 %1953
          %v1955 = vsel %vm1557, %v1933, -inf
          %1956 = vmax.xlane.f32.xlu0 %v1955
          %v1957 = vpop.xlane.xlu0 %1956
          %v1958 = vsub.f32 %v1926, %v1936
          %v1959 = vsub.f32 %v1927, %v1939
          %v1960 = vsub.f32 %v1928, %v1942
          %v1961 = vsub.f32 %v1929, %v1945
          %v1962 = vsub.f32 %v1930, %v1948
          %v1963 = vsub.f32 %v1931, %v1951
          %v1964 = vsub.f32 %v1932, %v1954
          %v1965 = vsub.f32 %v1933, %v1957
          %v1966 = vmul.f32 %v1958, 1.442695
          %v1967 = vpow.pop %v1966
          %v1968 = vmul.f32 %v1959, 1.442695
          %v1969 = vpow.pop %v1968
          %v1970 = vmul.f32 %v1960, 1.442695
          %v1971 = vpow.pop %v1970
          %v1972 = vmul.f32 %v1961, 1.442695
          %v1973 = vpow.pop %v1972
          %v1974 = vmul.f32 %v1962, 1.442695
          %v1975 = vpow.pop %v1974
          %v1976 = vmul.f32 %v1963, 1.442695
          %v1977 = vpow.pop %v1976
          %v1978 = vmul.f32 %v1964, 1.442695
          %v1979 = vpow.pop %v1978
          %v1980 = vmul.f32 %v1965, 1.442695
          %v1981 = vpow.pop %v1980
          %v1982 = vsel %vm1557, %v1967, 0.0
          %1983 = vadd.xlane.f32.xlu0 %v1982
          %v1984 = vpop.xlane.xlu0 %1983
          %v1985 = vsel %vm1557, %v1969, 0.0
          %1986 = vadd.xlane.f32.xlu0 %v1985
          %v1987 = vpop.xlane.xlu0 %1986
          %v1988 = vsel %vm1557, %v1971, 0.0
          %1989 = vadd.xlane.f32.xlu0 %v1988
          %v1990 = vpop.xlane.xlu0 %1989
          %v1991 = vsel %vm1557, %v1973, 0.0
          %1992 = vadd.xlane.f32.xlu0 %v1991
          %v1993 = vpop.xlane.xlu0 %1992
          %v1994 = vsel %vm1557, %v1975, 0.0
          %1995 = vadd.xlane.f32.xlu0 %v1994
          %v1996 = vpop.xlane.xlu0 %1995
          %v1997 = vsel %vm1557, %v1977, 0.0
          %1998 = vadd.xlane.f32.xlu0 %v1997
          %v1999 = vpop.xlane.xlu0 %1998
          %v2000 = vsel %vm1557, %v1979, 0.0
          %2001 = vadd.xlane.f32.xlu0 %v2000
          %v2002 = vpop.xlane.xlu0 %2001
          %v2003 = vsel %vm1557, %v1981, 0.0
          %2004 = vadd.xlane.f32.xlu0 %v2003
          %v2005 = vpop.xlane.xlu0 %2004
          %v2006 = vrcp.pop %v1984
          %v2007 = vrcp.pop %v1987
          %v2008 = vrcp.pop %v1990
          %v2009 = vrcp.pop %v1993
          %v2010 = vrcp.pop %v1996
          %v2011 = vrcp.pop %v1999
          %v2012 = vrcp.pop %v2002
          %v2013 = vrcp.pop %v2005
          %v2014 = vmul.f32 %v1967, %v2006
          %v2015 = vmul.f32 %v1969, %v2007
          %v2016 = vmul.f32 %v1971, %v2008
          %v2017 = vmul.f32 %v1973, %v2009
          %v2018 = vmul.f32 %v1975, %v2010
          %v2019 = vmul.f32 %v1977, %v2011
          %v2020 = vmul.f32 %v1979, %v2012
          %v2021 = vmul.f32 %v1981, %v2013
          %v2022 = vpack.c.bf16 %v2014, %v2014
          %v2023 = vpack.c.bf16 %v2015, %v2015
          %v2024 = vpack.c.bf16 %v2016, %v2016
          %v2025 = vpack.c.bf16 %v2017, %v2017
          %v2026 = vpack.c.bf16 %v2018, %v2018
          %v2027 = vpack.c.bf16 %v2019, %v2019
          %v2028 = vpack.c.bf16 %v2020, %v2020
          %v2029 = vpack.c.bf16 %v2021, %v2021
          %v2031 = vsel %vm1557, %v2022, 0
          %vm2033 = vcmask 1043456
          %v2035 = vsel %vm2033, %v1549, 0
          %2037 = vmatprep.subr.bf16.mxu0 0
          %2038 = vmatpush1.bf16.msra.mxu0 0
          %2039 = vmatprep.subr.bf16.mxu0 0
          %2040 = vmatpush1.bf16.msra.mxu0 0
          %2041 = vmatprep.subr.bf16.mxu0 0
          %2042 = vmatpush1.bf16.msra.mxu0 0
          %2043 = vmatprep.subr.bf16.mxu0 0
          %2044 = vmatpush1.bf16.msra.mxu0 0
          %2045 = vmatprep.subr.bf16.mxu0 0
          %2046 = vmatpush1.bf16.msra.mxu0 0
          %2047 = vmatprep.subr.bf16.mxu0 0
          %2048 = vmatpush1.bf16.msra.mxu0 0
          %2049 = vmatprep.subr.bf16.mxu0 0
          %2050 = vmatpush1.bf16.msra.mxu0 0
          %2051 = vmatprep.subr.bf16.mxu0 0
          %2052 = vmatpush1.bf16.msra.mxu0 %v2035
          %2053 = vmatprep.subr.bf16.mxu0 0
          %2054 = vmatpush2.bf16.msra.mxu0 0
          %2055 = vmatprep.subr.bf16.mxu0 0
          %2056 = vmatpush2.bf16.msra.mxu0 0
          %2057 = vmatprep.subr.bf16.mxu0 0
          %2058 = vmatpush2.bf16.msra.mxu0 0
          %2059 = vmatprep.subr.bf16.mxu0 0
          %2060 = vmatpush2.bf16.msra.mxu0 0
          %2061 = vmatprep.subr.bf16.mxu0 0
          %2062 = vmatpush2.bf16.msra.mxu0 0
          %2063 = vmatprep.subr.bf16.mxu0 0
          %2064 = vmatpush2.bf16.msra.mxu0 0
          %2065 = vmatprep.subr.bf16.mxu0 0
          %2066 = vmatpush2.bf16.msra.mxu0 0
          %2067 = vmatprep.subr.bf16.mxu0 0
          %2068 = vmatpush2.bf16.msra.mxu0 0
          %2069 = vmatprep.mubr.bf16.mxu0 0
          %2070 = vmatmul.mubr.bf16.gmra.mxu0 %v2031
          %v2071 = vpop.f32.mrf.mxu0
          %v2072 = vadd.f32 0.0, %v2071
          %v2073 = vpop.f32.mrf.mxu0
          %v2074 = vpop.f32.mrf.mxu0
          %v2075 = vpop.f32.mrf.mxu0
          %2076 = vdwg.mxu0
          %v2078 = vsel %vm1557, %v2023, 0
          %v2081 = vsel %vm2033, %v1550, 0
          %2083 = vmatprep.subr.bf16.mxu0 0
          %2084 = vmatpush1.bf16.msra.mxu0 0
          %2085 = vmatprep.subr.bf16.mxu0 0
          %2086 = vmatpush1.bf16.msra.mxu0 0
          %2087 = vmatprep.subr.bf16.mxu0 0
          %2088 = vmatpush1.bf16.msra.mxu0 0
          %2089 = vmatprep.subr.bf16.mxu0 0
          %2090 = vmatpush1.bf16.msra.mxu0 0
          %2091 = vmatprep.subr.bf16.mxu0 0
          %2092 = vmatpush1.bf16.msra.mxu0 0
          %2093 = vmatprep.subr.bf16.mxu0 0
          %2094 = vmatpush1.bf16.msra.mxu0 0
          %2095 = vmatprep.subr.bf16.mxu0 0
          %2096 = vmatpush1.bf16.msra.mxu0 0
          %2097 = vmatprep.subr.bf16.mxu0 0
          %2098 = vmatpush1.bf16.msra.mxu0 %v2081
          %2099 = vmatprep.subr.bf16.mxu0 0
          %2100 = vmatpush2.bf16.msra.mxu0 0
          %2101 = vmatprep.subr.bf16.mxu0 0
          %2102 = vmatpush2.bf16.msra.mxu0 0
          %2103 = vmatprep.subr.bf16.mxu0 0
          %2104 = vmatpush2.bf16.msra.mxu0 0
          %2105 = vmatprep.subr.bf16.mxu0 0
          %2106 = vmatpush2.bf16.msra.mxu0 0
          %2107 = vmatprep.subr.bf16.mxu0 0
          %2108 = vmatpush2.bf16.msra.mxu0 0
          %2109 = vmatprep.subr.bf16.mxu0 0
          %2110 = vmatpush2.bf16.msra.mxu0 0
          %2111 = vmatprep.subr.bf16.mxu0 0
          %2112 = vmatpush2.bf16.msra.mxu0 0
          %2113 = vmatprep.subr.bf16.mxu0 0
          %2114 = vmatpush2.bf16.msra.mxu0 0
          %2115 = vmatprep.mubr.bf16.mxu0 0
          %2116 = vmatmul.mubr.bf16.gmra.mxu0 %v2078
          %v2117 = vpop.f32.mrf.mxu0
          %v2118 = vadd.f32 0.0, %v2117
          %v2119 = vpop.f32.mrf.mxu0
          %v2120 = vpop.f32.mrf.mxu0
          %v2121 = vpop.f32.mrf.mxu0
          %2122 = vdwg.mxu0
          %v2124 = vsel %vm1557, %v2024, 0
          %v2127 = vsel %vm2033, %v1551, 0
          %2129 = vmatprep.subr.bf16.mxu0 0
          %2130 = vmatpush1.bf16.msra.mxu0 0
          %2131 = vmatprep.subr.bf16.mxu0 0
          %2132 = vmatpush1.bf16.msra.mxu0 0
          %2133 = vmatprep.subr.bf16.mxu0 0
          %2134 = vmatpush1.bf16.msra.mxu0 0
          %2135 = vmatprep.subr.bf16.mxu0 0
          %2136 = vmatpush1.bf16.msra.mxu0 0
          %2137 = vmatprep.subr.bf16.mxu0 0
          %2138 = vmatpush1.bf16.msra.mxu0 0
          %2139 = vmatprep.subr.bf16.mxu0 0
          %2140 = vmatpush1.bf16.msra.mxu0 0
          %2141 = vmatprep.subr.bf16.mxu0 0
          %2142 = vmatpush1.bf16.msra.mxu0 0
          %2143 = vmatprep.subr.bf16.mxu0 0
          %2144 = vmatpush1.bf16.msra.mxu0 %v2127
          %2145 = vmatprep.subr.bf16.mxu0 0
          %2146 = vmatpush2.bf16.msra.mxu0 0
          %2147 = vmatprep.subr.bf16.mxu0 0
          %2148 = vmatpush2.bf16.msra.mxu0 0
          %2149 = vmatprep.subr.bf16.mxu0 0
          %2150 = vmatpush2.bf16.msra.mxu0 0
          %2151 = vmatprep.subr.bf16.mxu0 0
          %2152 = vmatpush2.bf16.msra.mxu0 0
          %2153 = vmatprep.subr.bf16.mxu0 0
          %2154 = vmatpush2.bf16.msra.mxu0 0
          %2155 = vmatprep.subr.bf16.mxu0 0
          %2156 = vmatpush2.bf16.msra.mxu0 0
          %2157 = vmatprep.subr.bf16.mxu0 0
          %2158 = vmatpush2.bf16.msra.mxu0 0
          %2159 = vmatprep.subr.bf16.mxu0 0
          %2160 = vmatpush2.bf16.msra.mxu0 0
          %2161 = vmatprep.mubr.bf16.mxu0 0
          %2162 = vmatmul.mubr.bf16.gmra.mxu0 %v2124
          %v2163 = vpop.f32.mrf.mxu0
          %v2164 = vadd.f32 0.0, %v2163
          %v2165 = vpop.f32.mrf.mxu0
          %v2166 = vpop.f32.mrf.mxu0
          %v2167 = vpop.f32.mrf.mxu0
          %2168 = vdwg.mxu0
          %v2170 = vsel %vm1557, %v2025, 0
          %v2173 = vsel %vm2033, %v1552, 0
          %2175 = vmatprep.subr.bf16.mxu0 0
          %2176 = vmatpush1.bf16.msra.mxu0 0
          %2177 = vmatprep.subr.bf16.mxu0 0
          %2178 = vmatpush1.bf16.msra.mxu0 0
          %2179 = vmatprep.subr.bf16.mxu0 0
          %2180 = vmatpush1.bf16.msra.mxu0 0
          %2181 = vmatprep.subr.bf16.mxu0 0
          %2182 = vmatpush1.bf16.msra.mxu0 0
          %2183 = vmatprep.subr.bf16.mxu0 0
          %2184 = vmatpush1.bf16.msra.mxu0 0
          %2185 = vmatprep.subr.bf16.mxu0 0
          %2186 = vmatpush1.bf16.msra.mxu0 0
          %2187 = vmatprep.subr.bf16.mxu0 0
          %2188 = vmatpush1.bf16.msra.mxu0 0
          %2189 = vmatprep.subr.bf16.mxu0 0
          %2190 = vmatpush1.bf16.msra.mxu0 %v2173
          %2191 = vmatprep.subr.bf16.mxu0 0
          %2192 = vmatpush2.bf16.msra.mxu0 0
          %2193 = vmatprep.subr.bf16.mxu0 0
          %2194 = vmatpush2.bf16.msra.mxu0 0
          %2195 = vmatprep.subr.bf16.mxu0 0
          %2196 = vmatpush2.bf16.msra.mxu0 0
          %2197 = vmatprep.subr.bf16.mxu0 0
          %2198 = vmatpush2.bf16.msra.mxu0 0
          %2199 = vmatprep.subr.bf16.mxu0 0
          %2200 = vmatpush2.bf16.msra.mxu0 0
          %2201 = vmatprep.subr.bf16.mxu0 0
          %2202 = vmatpush2.bf16.msra.mxu0 0
          %2203 = vmatprep.subr.bf16.mxu0 0
          %2204 = vmatpush2.bf16.msra.mxu0 0
          %2205 = vmatprep.subr.bf16.mxu0 0
          %2206 = vmatpush2.bf16.msra.mxu0 0
          %2207 = vmatprep.mubr.bf16.mxu0 0
          %2208 = vmatmul.mubr.bf16.gmra.mxu0 %v2170
          %v2209 = vpop.f32.mrf.mxu0
          %v2210 = vadd.f32 0.0, %v2209
          %v2211 = vpop.f32.mrf.mxu0
          %v2212 = vpop.f32.mrf.mxu0
          %v2213 = vpop.f32.mrf.mxu0
          %2214 = vdwg.mxu0
          %v2216 = vsel %vm1557, %v2026, 0
          %v2219 = vsel %vm2033, %v1553, 0
          %2221 = vmatprep.subr.bf16.mxu0 0
          %2222 = vmatpush1.bf16.msra.mxu0 0
          %2223 = vmatprep.subr.bf16.mxu0 0
          %2224 = vmatpush1.bf16.msra.mxu0 0
          %2225 = vmatprep.subr.bf16.mxu0 0
          %2226 = vmatpush1.bf16.msra.mxu0 0
          %2227 = vmatprep.subr.bf16.mxu0 0
          %2228 = vmatpush1.bf16.msra.mxu0 0
          %2229 = vmatprep.subr.bf16.mxu0 0
          %2230 = vmatpush1.bf16.msra.mxu0 0
          %2231 = vmatprep.subr.bf16.mxu0 0
          %2232 = vmatpush1.bf16.msra.mxu0 0
          %2233 = vmatprep.subr.bf16.mxu0 0
          %2234 = vmatpush1.bf16.msra.mxu0 0
          %2235 = vmatprep.subr.bf16.mxu0 0
          %2236 = vmatpush1.bf16.msra.mxu0 %v2219
          %2237 = vmatprep.subr.bf16.mxu0 0
          %2238 = vmatpush2.bf16.msra.mxu0 0
          %2239 = vmatprep.subr.bf16.mxu0 0
          %2240 = vmatpush2.bf16.msra.mxu0 0
          %2241 = vmatprep.subr.bf16.mxu0 0
          %2242 = vmatpush2.bf16.msra.mxu0 0
          %2243 = vmatprep.subr.bf16.mxu0 0
          %2244 = vmatpush2.bf16.msra.mxu0 0
          %2245 = vmatprep.subr.bf16.mxu0 0
          %2246 = vmatpush2.bf16.msra.mxu0 0
          %2247 = vmatprep.subr.bf16.mxu0 0
          %2248 = vmatpush2.bf16.msra.mxu0 0
          %2249 = vmatprep.subr.bf16.mxu0 0
          %2250 = vmatpush2.bf16.msra.mxu0 0
          %2251 = vmatprep.subr.bf16.mxu0 0
          %2252 = vmatpush2.bf16.msra.mxu0 0
          %2253 = vmatprep.mubr.bf16.mxu0 0
          %2254 = vmatmul.mubr.bf16.gmra.mxu0 %v2216
          %v2255 = vpop.f32.mrf.mxu0
          %v2256 = vadd.f32 0.0, %v2255
          %v2257 = vpop.f32.mrf.mxu0
          %v2258 = vpop.f32.mrf.mxu0
          %v2259 = vpop.f32.mrf.mxu0
          %2260 = vdwg.mxu0
          %v2262 = vsel %vm1557, %v2027, 0
          %v2265 = vsel %vm2033, %v1554, 0
          %2267 = vmatprep.subr.bf16.mxu0 0
          %2268 = vmatpush1.bf16.msra.mxu0 0
          %2269 = vmatprep.subr.bf16.mxu0 0
          %2270 = vmatpush1.bf16.msra.mxu0 0
          %2271 = vmatprep.subr.bf16.mxu0 0
          %2272 = vmatpush1.bf16.msra.mxu0 0
          %2273 = vmatprep.subr.bf16.mxu0 0
          %2274 = vmatpush1.bf16.msra.mxu0 0
          %2275 = vmatprep.subr.bf16.mxu0 0
          %2276 = vmatpush1.bf16.msra.mxu0 0
          %2277 = vmatprep.subr.bf16.mxu0 0
          %2278 = vmatpush1.bf16.msra.mxu0 0
          %2279 = vmatprep.subr.bf16.mxu0 0
          %2280 = vmatpush1.bf16.msra.mxu0 0
          %2281 = vmatprep.subr.bf16.mxu0 0
          %2282 = vmatpush1.bf16.msra.mxu0 %v2265
          %2283 = vmatprep.subr.bf16.mxu0 0
          %2284 = vmatpush2.bf16.msra.mxu0 0
          %2285 = vmatprep.subr.bf16.mxu0 0
          %2286 = vmatpush2.bf16.msra.mxu0 0
          %2287 = vmatprep.subr.bf16.mxu0 0
          %2288 = vmatpush2.bf16.msra.mxu0 0
          %2289 = vmatprep.subr.bf16.mxu0 0
          %2290 = vmatpush2.bf16.msra.mxu0 0
          %2291 = vmatprep.subr.bf16.mxu0 0
          %2292 = vmatpush2.bf16.msra.mxu0 0
          %2293 = vmatprep.subr.bf16.mxu0 0
          %2294 = vmatpush2.bf16.msra.mxu0 0
          %2295 = vmatprep.subr.bf16.mxu0 0
          %2296 = vmatpush2.bf16.msra.mxu0 0
          %2297 = vmatprep.subr.bf16.mxu0 0
          %2298 = vmatpush2.bf16.msra.mxu0 0
          %2299 = vmatprep.mubr.bf16.mxu0 0
          %2300 = vmatmul.mubr.bf16.gmra.mxu0 %v2262
          %v2301 = vpop.f32.mrf.mxu0
          %v2302 = vadd.f32 0.0, %v2301
          %v2303 = vpop.f32.mrf.mxu0
          %v2304 = vpop.f32.mrf.mxu0
          %v2305 = vpop.f32.mrf.mxu0
          %2306 = vdwg.mxu0
          %v2308 = vsel %vm1557, %v2028, 0
          %v2311 = vsel %vm2033, %v1555, 0
          %2313 = vmatprep.subr.bf16.mxu0 0
          %2314 = vmatpush1.bf16.msra.mxu0 0
          %2315 = vmatprep.subr.bf16.mxu0 0
          %2316 = vmatpush1.bf16.msra.mxu0 0
          %2317 = vmatprep.subr.bf16.mxu0 0
          %2318 = vmatpush1.bf16.msra.mxu0 0
          %2319 = vmatprep.subr.bf16.mxu0 0
          %2320 = vmatpush1.bf16.msra.mxu0 0
          %2321 = vmatprep.subr.bf16.mxu0 0
          %2322 = vmatpush1.bf16.msra.mxu0 0
          %2323 = vmatprep.subr.bf16.mxu0 0
          %2324 = vmatpush1.bf16.msra.mxu0 0
          %2325 = vmatprep.subr.bf16.mxu0 0
          %2326 = vmatpush1.bf16.msra.mxu0 0
          %2327 = vmatprep.subr.bf16.mxu0 0
          %2328 = vmatpush1.bf16.msra.mxu0 %v2311
          %2329 = vmatprep.subr.bf16.mxu0 0
          %2330 = vmatpush2.bf16.msra.mxu0 0
          %2331 = vmatprep.subr.bf16.mxu0 0
          %2332 = vmatpush2.bf16.msra.mxu0 0
          %2333 = vmatprep.subr.bf16.mxu0 0
          %2334 = vmatpush2.bf16.msra.mxu0 0
          %2335 = vmatprep.subr.bf16.mxu0 0
          %2336 = vmatpush2.bf16.msra.mxu0 0
          %2337 = vmatprep.subr.bf16.mxu0 0
          %2338 = vmatpush2.bf16.msra.mxu0 0
          %2339 = vmatprep.subr.bf16.mxu0 0
          %2340 = vmatpush2.bf16.msra.mxu0 0
          %2341 = vmatprep.subr.bf16.mxu0 0
          %2342 = vmatpush2.bf16.msra.mxu0 0
          %2343 = vmatprep.subr.bf16.mxu0 0
          %2344 = vmatpush2.bf16.msra.mxu0 0
          %2345 = vmatprep.mubr.bf16.mxu0 0
          %2346 = vmatmul.mubr.bf16.gmra.mxu0 %v2308
          %v2347 = vpop.f32.mrf.mxu0
          %v2348 = vadd.f32 0.0, %v2347
          %v2349 = vpop.f32.mrf.mxu0
          %v2350 = vpop.f32.mrf.mxu0
          %v2351 = vpop.f32.mrf.mxu0
          %2352 = vdwg.mxu0
          %v2354 = vsel %vm1557, %v2029, 0
          %v2357 = vsel %vm2033, %v1556, 0
          %2359 = vmatprep.subr.bf16.mxu0 0
          %2360 = vmatpush1.bf16.msra.mxu0 0
          %2361 = vmatprep.subr.bf16.mxu0 0
          %2362 = vmatpush1.bf16.msra.mxu0 0
          %2363 = vmatprep.subr.bf16.mxu0 0
          %2364 = vmatpush1.bf16.msra.mxu0 0
          %2365 = vmatprep.subr.bf16.mxu0 0
          %2366 = vmatpush1.bf16.msra.mxu0 0
          %2367 = vmatprep.subr.bf16.mxu0 0
          %2368 = vmatpush1.bf16.msra.mxu0 0
          %2369 = vmatprep.subr.bf16.mxu0 0
          %2370 = vmatpush1.bf16.msra.mxu0 0
          %2371 = vmatprep.subr.bf16.mxu0 0
          %2372 = vmatpush1.bf16.msra.mxu0 0
          %2373 = vmatprep.subr.bf16.mxu0 0
          %2374 = vmatpush1.bf16.msra.mxu0 %v2357
          %2375 = vmatprep.subr.bf16.mxu0 0
          %2376 = vmatpush2.bf16.msra.mxu0 0
          %2377 = vmatprep.subr.bf16.mxu0 0
          %2378 = vmatpush2.bf16.msra.mxu0 0
          %2379 = vmatprep.subr.bf16.mxu0 0
          %2380 = vmatpush2.bf16.msra.mxu0 0
          %2381 = vmatprep.subr.bf16.mxu0 0
          %2382 = vmatpush2.bf16.msra.mxu0 0
          %2383 = vmatprep.subr.bf16.mxu0 0
          %2384 = vmatpush2.bf16.msra.mxu0 0
          %2385 = vmatprep.subr.bf16.mxu0 0
          %2386 = vmatpush2.bf16.msra.mxu0 0
          %2387 = vmatprep.subr.bf16.mxu0 0
          %2388 = vmatpush2.bf16.msra.mxu0 0
          %2389 = vmatprep.subr.bf16.mxu0 0
          %2390 = vmatpush2.bf16.msra.mxu0 0
          %2391 = vmatprep.mubr.bf16.mxu0 0
          %2392 = vmatmul.mubr.bf16.gmra.mxu0 %v2354
          %v2393 = vpop.f32.mrf.mxu0
          %v2394 = vadd.f32 0.0, %v2393
          %v2395 = vpop.f32.mrf.mxu0
          %v2396 = vpop.f32.mrf.mxu0
          %v2397 = vpop.f32.mrf.mxu0
          %2398 = vdwg.mxu0
          %v2399 = vpack.c.bf16 %v2118, %v2072
          %v2400 = vpack.c.bf16 %v2210, %v2164
          %v2401 = vpack.c.bf16 %v2302, %v2256
          %v2402 = vpack.c.bf16 %v2394, %v2348
          %2404 = vrot.lane.b32.xlu0 %v1533, 120
          %v2405 = vpop.permute.xlu0 %2404
          %2407 = vrot.lane.b32.xlu0 %v1541, 120
          %v2408 = vpop.permute.xlu0 %2407
          %v2410 = vsel %vm1557, %v2405, 0
          %v2413 = vsel %vm1557, %v2408, 0
          %2415 = vmatprep.subr.bf16.mxu0 0
          %2416 = vmatpush1.bf16.xpose.msra.mxu0 0
          %2417 = vmatprep.subr.bf16.mxu0 0
          %2418 = vmatpush1.bf16.xpose.msra.mxu0 0
          %2419 = vmatprep.subr.bf16.mxu0 0
          %2420 = vmatpush1.bf16.xpose.msra.mxu0 0
          %2421 = vmatprep.subr.bf16.mxu0 0
          %2422 = vmatpush1.bf16.xpose.msra.mxu0 0
          %2423 = vmatprep.subr.bf16.mxu0 0
          %2424 = vmatpush1.bf16.xpose.msra.mxu0 0
          %2425 = vmatprep.subr.bf16.mxu0 0
          %2426 = vmatpush1.bf16.xpose.msra.mxu0 0
          %2427 = vmatprep.subr.bf16.mxu0 0
          %2428 = vmatpush1.bf16.xpose.msra.mxu0 0
          %2429 = vmatprep.subr.bf16.mxu0 0
          %2430 = vmatpush1.bf16.xpose.msra.mxu0 %v2413
          %2431 = vmatprep.subr.bf16.mxu0 0
          %2432 = vmatpush2.bf16.xpose.msra.mxu0 0
          %2433 = vmatprep.subr.bf16.mxu0 0
          %2434 = vmatpush2.bf16.xpose.msra.mxu0 0
          %2435 = vmatprep.subr.bf16.mxu0 0
          %2436 = vmatpush2.bf16.xpose.msra.mxu0 0
          %2437 = vmatprep.subr.bf16.mxu0 0
          %2438 = vmatpush2.bf16.xpose.msra.mxu0 0
          %2439 = vmatprep.subr.bf16.mxu0 0
          %2440 = vmatpush2.bf16.xpose.msra.mxu0 0
          %2441 = vmatprep.subr.bf16.mxu0 0
          %2442 = vmatpush2.bf16.xpose.msra.mxu0 0
          %2443 = vmatprep.subr.bf16.mxu0 0
          %2444 = vmatpush2.bf16.xpose.msra.mxu0 0
          %2445 = vmatprep.subr.bf16.mxu0 0
          %2446 = vmatpush2.bf16.xpose.msra.mxu0 0
          %2447 = vmatprep.mubr.bf16.mxu0 0
          %2448 = vmatmul.mubr.bf16.gmra.mxu0 %v2410
          %v2449 = vpop.f32.mrf.mxu0
          %v2450 = vadd.f32 0.0, %v2449
          %v2451 = vpop.f32.mrf.mxu0
          %v2452 = vpop.f32.mrf.mxu0
          %v2453 = vpop.f32.mrf.mxu0
          %2454 = vdwg.mxu0
          %2456 = vrot.lane.b32.xlu0 %v1534, 120
          %v2457 = vpop.permute.xlu0 %2456
          %2459 = vrot.lane.b32.xlu0 %v1542, 120
          %v2460 = vpop.permute.xlu0 %2459
          %v2462 = vsel %vm1557, %v2457, 0
          %v2465 = vsel %vm1557, %v2460, 0
          %2467 = vmatprep.subr.bf16.mxu0 0
          %2468 = vmatpush1.bf16.xpose.msra.mxu0 0
          %2469 = vmatprep.subr.bf16.mxu0 0
          %2470 = vmatpush1.bf16.xpose.msra.mxu0 0
          %2471 = vmatprep.subr.bf16.mxu0 0
          %2472 = vmatpush1.bf16.xpose.msra.mxu0 0
          %2473 = vmatprep.subr.bf16.mxu0 0
          %2474 = vmatpush1.bf16.xpose.msra.mxu0 0
          %2475 = vmatprep.subr.bf16.mxu0 0
          %2476 = vmatpush1.bf16.xpose.msra.mxu0 0
          %2477 = vmatprep.subr.bf16.mxu0 0
          %2478 = vmatpush1.bf16.xpose.msra.mxu0 0
          %2479 = vmatprep.subr.bf16.mxu0 0
          %2480 = vmatpush1.bf16.xpose.msra.mxu0 0
          %2481 = vmatprep.subr.bf16.mxu0 0
          %2482 = vmatpush1.bf16.xpose.msra.mxu0 %v2465
          %2483 = vmatprep.subr.bf16.mxu0 0
          %2484 = vmatpush2.bf16.xpose.msra.mxu0 0
          %2485 = vmatprep.subr.bf16.mxu0 0
          %2486 = vmatpush2.bf16.xpose.msra.mxu0 0
          %2487 = vmatprep.subr.bf16.mxu0 0
          %2488 = vmatpush2.bf16.xpose.msra.mxu0 0
          %2489 = vmatprep.subr.bf16.mxu0 0
          %2490 = vmatpush2.bf16.xpose.msra.mxu0 0
          %2491 = vmatprep.subr.bf16.mxu0 0
          %2492 = vmatpush2.bf16.xpose.msra.mxu0 0
          %2493 = vmatprep.subr.bf16.mxu0 0
          %2494 = vmatpush2.bf16.xpose.msra.mxu0 0
          %2495 = vmatprep.subr.bf16.mxu0 0
          %2496 = vmatpush2.bf16.xpose.msra.mxu0 0
          %2497 = vmatprep.subr.bf16.mxu0 0
          %2498 = vmatpush2.bf16.xpose.msra.mxu0 0
          %2499 = vmatprep.mubr.bf16.mxu0 0
          %2500 = vmatmul.mubr.bf16.gmra.mxu0 %v2462
          %v2501 = vpop.f32.mrf.mxu0
          %v2502 = vadd.f32 0.0, %v2501
          %v2503 = vpop.f32.mrf.mxu0
          %v2504 = vpop.f32.mrf.mxu0
          %v2505 = vpop.f32.mrf.mxu0
          %2506 = vdwg.mxu0
          %2508 = vrot.lane.b32.xlu0 %v1535, 120
          %v2509 = vpop.permute.xlu0 %2508
          %2511 = vrot.lane.b32.xlu0 %v1543, 120
          %v2512 = vpop.permute.xlu0 %2511
          %v2514 = vsel %vm1557, %v2509, 0
          %v2517 = vsel %vm1557, %v2512, 0
          %2519 = vmatprep.subr.bf16.mxu0 0
          %2520 = vmatpush1.bf16.xpose.msra.mxu0 0
          %2521 = vmatprep.subr.bf16.mxu0 0
          %2522 = vmatpush1.bf16.xpose.msra.mxu0 0
          %2523 = vmatprep.subr.bf16.mxu0 0
          %2524 = vmatpush1.bf16.xpose.msra.mxu0 0
          %2525 = vmatprep.subr.bf16.mxu0 0
          %2526 = vmatpush1.bf16.xpose.msra.mxu0 0
          %2527 = vmatprep.subr.bf16.mxu0 0
          %2528 = vmatpush1.bf16.xpose.msra.mxu0 0
          %2529 = vmatprep.subr.bf16.mxu0 0
          %2530 = vmatpush1.bf16.xpose.msra.mxu0 0
          %2531 = vmatprep.subr.bf16.mxu0 0
          %2532 = vmatpush1.bf16.xpose.msra.mxu0 0
          %2533 = vmatprep.subr.bf16.mxu0 0
          %2534 = vmatpush1.bf16.xpose.msra.mxu0 %v2517
          %2535 = vmatprep.subr.bf16.mxu0 0
          %2536 = vmatpush2.bf16.xpose.msra.mxu0 0
          %2537 = vmatprep.subr.bf16.mxu0 0
          %2538 = vmatpush2.bf16.xpose.msra.mxu0 0
          %2539 = vmatprep.subr.bf16.mxu0 0
          %2540 = vmatpush2.bf16.xpose.msra.mxu0 0
          %2541 = vmatprep.subr.bf16.mxu0 0
          %2542 = vmatpush2.bf16.xpose.msra.mxu0 0
          %2543 = vmatprep.subr.bf16.mxu0 0
          %2544 = vmatpush2.bf16.xpose.msra.mxu0 0
          %2545 = vmatprep.subr.bf16.mxu0 0
          %2546 = vmatpush2.bf16.xpose.msra.mxu0 0
          %2547 = vmatprep.subr.bf16.mxu0 0
          %2548 = vmatpush2.bf16.xpose.msra.mxu0 0
          %2549 = vmatprep.subr.bf16.mxu0 0
          %2550 = vmatpush2.bf16.xpose.msra.mxu0 0
          %2551 = vmatprep.mubr.bf16.mxu0 0
          %2552 = vmatmul.mubr.bf16.gmra.mxu0 %v2514
          %v2553 = vpop.f32.mrf.mxu0
          %v2554 = vadd.f32 0.0, %v2553
          %v2555 = vpop.f32.mrf.mxu0
          %v2556 = vpop.f32.mrf.mxu0
          %v2557 = vpop.f32.mrf.mxu0
          %2558 = vdwg.mxu0
          %2560 = vrot.lane.b32.xlu0 %v1536, 120
          %v2561 = vpop.permute.xlu0 %2560
          %2563 = vrot.lane.b32.xlu0 %v1544, 120
          %v2564 = vpop.permute.xlu0 %2563
          %v2566 = vsel %vm1557, %v2561, 0
          %v2569 = vsel %vm1557, %v2564, 0
          %2571 = vmatprep.subr.bf16.mxu0 0
          %2572 = vmatpush1.bf16.xpose.msra.mxu0 0
          %2573 = vmatprep.subr.bf16.mxu0 0
          %2574 = vmatpush1.bf16.xpose.msra.mxu0 0
          %2575 = vmatprep.subr.bf16.mxu0 0
          %2576 = vmatpush1.bf16.xpose.msra.mxu0 0
          %2577 = vmatprep.subr.bf16.mxu0 0
          %2578 = vmatpush1.bf16.xpose.msra.mxu0 0
          %2579 = vmatprep.subr.bf16.mxu0 0
          %2580 = vmatpush1.bf16.xpose.msra.mxu0 0
          %2581 = vmatprep.subr.bf16.mxu0 0
          %2582 = vmatpush1.bf16.xpose.msra.mxu0 0
          %2583 = vmatprep.subr.bf16.mxu0 0
          %2584 = vmatpush1.bf16.xpose.msra.mxu0 0
          %2585 = vmatprep.subr.bf16.mxu0 0
          %2586 = vmatpush1.bf16.xpose.msra.mxu0 %v2569
          %2587 = vmatprep.subr.bf16.mxu0 0
          %2588 = vmatpush2.bf16.xpose.msra.mxu0 0
          %2589 = vmatprep.subr.bf16.mxu0 0
          %2590 = vmatpush2.bf16.xpose.msra.mxu0 0
          %2591 = vmatprep.subr.bf16.mxu0 0
          %2592 = vmatpush2.bf16.xpose.msra.mxu0 0
          %2593 = vmatprep.subr.bf16.mxu0 0
          %2594 = vmatpush2.bf16.xpose.msra.mxu0 0
          %2595 = vmatprep.subr.bf16.mxu0 0
          %2596 = vmatpush2.bf16.xpose.msra.mxu0 0
          %2597 = vmatprep.subr.bf16.mxu0 0
          %2598 = vmatpush2.bf16.xpose.msra.mxu0 0
          %2599 = vmatprep.subr.bf16.mxu0 0
          %2600 = vmatpush2.bf16.xpose.msra.mxu0 0
          %2601 = vmatprep.subr.bf16.mxu0 0
          %2602 = vmatpush2.bf16.xpose.msra.mxu0 0
          %2603 = vmatprep.mubr.bf16.mxu0 0
          %2604 = vmatmul.mubr.bf16.gmra.mxu0 %v2566
          %v2605 = vpop.f32.mrf.mxu0
          %v2606 = vadd.f32 0.0, %v2605
          %v2607 = vpop.f32.mrf.mxu0
          %v2608 = vpop.f32.mrf.mxu0
          %v2609 = vpop.f32.mrf.mxu0
          %2610 = vdwg.mxu0
          %2612 = vrot.lane.b32.xlu0 %v1537, 120
          %v2613 = vpop.permute.xlu0 %2612
          %2615 = vrot.lane.b32.xlu0 %v1545, 120
          %v2616 = vpop.permute.xlu0 %2615
          %v2618 = vsel %vm1557, %v2613, 0
          %v2621 = vsel %vm1557, %v2616, 0
          %2623 = vmatprep.subr.bf16.mxu0 0
          %2624 = vmatpush1.bf16.xpose.msra.mxu0 0
          %2625 = vmatprep.subr.bf16.mxu0 0
          %2626 = vmatpush1.bf16.xpose.msra.mxu0 0
          %2627 = vmatprep.subr.bf16.mxu0 0
          %2628 = vmatpush1.bf16.xpose.msra.mxu0 0
          %2629 = vmatprep.subr.bf16.mxu0 0
          %2630 = vmatpush1.bf16.xpose.msra.mxu0 0
          %2631 = vmatprep.subr.bf16.mxu0 0
          %2632 = vmatpush1.bf16.xpose.msra.mxu0 0
          %2633 = vmatprep.subr.bf16.mxu0 0
          %2634 = vmatpush1.bf16.xpose.msra.mxu0 0
          %2635 = vmatprep.subr.bf16.mxu0 0
          %2636 = vmatpush1.bf16.xpose.msra.mxu0 0
          %2637 = vmatprep.subr.bf16.mxu0 0
          %2638 = vmatpush1.bf16.xpose.msra.mxu0 %v2621
          %2639 = vmatprep.subr.bf16.mxu0 0
          %2640 = vmatpush2.bf16.xpose.msra.mxu0 0
          %2641 = vmatprep.subr.bf16.mxu0 0
          %2642 = vmatpush2.bf16.xpose.msra.mxu0 0
          %2643 = vmatprep.subr.bf16.mxu0 0
          %2644 = vmatpush2.bf16.xpose.msra.mxu0 0
          %2645 = vmatprep.subr.bf16.mxu0 0
          %2646 = vmatpush2.bf16.xpose.msra.mxu0 0
          %2647 = vmatprep.subr.bf16.mxu0 0
          %2648 = vmatpush2.bf16.xpose.msra.mxu0 0
          %2649 = vmatprep.subr.bf16.mxu0 0
          %2650 = vmatpush2.bf16.xpose.msra.mxu0 0
          %2651 = vmatprep.subr.bf16.mxu0 0
          %2652 = vmatpush2.bf16.xpose.msra.mxu0 0
          %2653 = vmatprep.subr.bf16.mxu0 0
          %2654 = vmatpush2.bf16.xpose.msra.mxu0 0
          %2655 = vmatprep.mubr.bf16.mxu0 0
          %2656 = vmatmul.mubr.bf16.gmra.mxu0 %v2618
          %v2657 = vpop.f32.mrf.mxu0
          %v2658 = vadd.f32 0.0, %v2657
          %v2659 = vpop.f32.mrf.mxu0
          %v2660 = vpop.f32.mrf.mxu0
          %v2661 = vpop.f32.mrf.mxu0
          %2662 = vdwg.mxu0
          %2664 = vrot.lane.b32.xlu0 %v1538, 120
          %v2665 = vpop.permute.xlu0 %2664
          %2667 = vrot.lane.b32.xlu0 %v1546, 120
          %v2668 = vpop.permute.xlu0 %2667
          %v2670 = vsel %vm1557, %v2665, 0
          %v2673 = vsel %vm1557, %v2668, 0
          %2675 = vmatprep.subr.bf16.mxu0 0
          %2676 = vmatpush1.bf16.xpose.msra.mxu0 0
          %2677 = vmatprep.subr.bf16.mxu0 0
          %2678 = vmatpush1.bf16.xpose.msra.mxu0 0
          %2679 = vmatprep.subr.bf16.mxu0 0
          %2680 = vmatpush1.bf16.xpose.msra.mxu0 0
          %2681 = vmatprep.subr.bf16.mxu0 0
          %2682 = vmatpush1.bf16.xpose.msra.mxu0 0
          %2683 = vmatprep.subr.bf16.mxu0 0
          %2684 = vmatpush1.bf16.xpose.msra.mxu0 0
          %2685 = vmatprep.subr.bf16.mxu0 0
          %2686 = vmatpush1.bf16.xpose.msra.mxu0 0
          %2687 = vmatprep.subr.bf16.mxu0 0
          %2688 = vmatpush1.bf16.xpose.msra.mxu0 0
          %2689 = vmatprep.subr.bf16.mxu0 0
          %2690 = vmatpush1.bf16.xpose.msra.mxu0 %v2673
          %2691 = vmatprep.subr.bf16.mxu0 0
          %2692 = vmatpush2.bf16.xpose.msra.mxu0 0
          %2693 = vmatprep.subr.bf16.mxu0 0
          %2694 = vmatpush2.bf16.xpose.msra.mxu0 0
          %2695 = vmatprep.subr.bf16.mxu0 0
          %2696 = vmatpush2.bf16.xpose.msra.mxu0 0
          %2697 = vmatprep.subr.bf16.mxu0 0
          %2698 = vmatpush2.bf16.xpose.msra.mxu0 0
          %2699 = vmatprep.subr.bf16.mxu0 0
          %2700 = vmatpush2.bf16.xpose.msra.mxu0 0
          %2701 = vmatprep.subr.bf16.mxu0 0
          %2702 = vmatpush2.bf16.xpose.msra.mxu0 0
          %2703 = vmatprep.subr.bf16.mxu0 0
          %2704 = vmatpush2.bf16.xpose.msra.mxu0 0
          %2705 = vmatprep.subr.bf16.mxu0 0
          %2706 = vmatpush2.bf16.xpose.msra.mxu0 0
          %2707 = vmatprep.mubr.bf16.mxu0 0
          %2708 = vmatmul.mubr.bf16.gmra.mxu0 %v2670
          %v2709 = vpop.f32.mrf.mxu0
          %v2710 = vadd.f32 0.0, %v2709
          %v2711 = vpop.f32.mrf.mxu0
          %v2712 = vpop.f32.mrf.mxu0
          %v2713 = vpop.f32.mrf.mxu0
          %2714 = vdwg.mxu0
          %2716 = vrot.lane.b32.xlu0 %v1539, 120
          %v2717 = vpop.permute.xlu0 %2716
          %2719 = vrot.lane.b32.xlu0 %v1547, 120
          %v2720 = vpop.permute.xlu0 %2719
          %v2722 = vsel %vm1557, %v2717, 0
          %v2725 = vsel %vm1557, %v2720, 0
          %2727 = vmatprep.subr.bf16.mxu0 0
          %2728 = vmatpush1.bf16.xpose.msra.mxu0 0
          %2729 = vmatprep.subr.bf16.mxu0 0
          %2730 = vmatpush1.bf16.xpose.msra.mxu0 0
          %2731 = vmatprep.subr.bf16.mxu0 0
          %2732 = vmatpush1.bf16.xpose.msra.mxu0 0
          %2733 = vmatprep.subr.bf16.mxu0 0
          %2734 = vmatpush1.bf16.xpose.msra.mxu0 0
          %2735 = vmatprep.subr.bf16.mxu0 0
          %2736 = vmatpush1.bf16.xpose.msra.mxu0 0
          %2737 = vmatprep.subr.bf16.mxu0 0
          %2738 = vmatpush1.bf16.xpose.msra.mxu0 0
          %2739 = vmatprep.subr.bf16.mxu0 0
          %2740 = vmatpush1.bf16.xpose.msra.mxu0 0
          %2741 = vmatprep.subr.bf16.mxu0 0
          %2742 = vmatpush1.bf16.xpose.msra.mxu0 %v2725
          %2743 = vmatprep.subr.bf16.mxu0 0
          %2744 = vmatpush2.bf16.xpose.msra.mxu0 0
          %2745 = vmatprep.subr.bf16.mxu0 0
          %2746 = vmatpush2.bf16.xpose.msra.mxu0 0
          %2747 = vmatprep.subr.bf16.mxu0 0
          %2748 = vmatpush2.bf16.xpose.msra.mxu0 0
          %2749 = vmatprep.subr.bf16.mxu0 0
          %2750 = vmatpush2.bf16.xpose.msra.mxu0 0
          %2751 = vmatprep.subr.bf16.mxu0 0
          %2752 = vmatpush2.bf16.xpose.msra.mxu0 0
          %2753 = vmatprep.subr.bf16.mxu0 0
          %2754 = vmatpush2.bf16.xpose.msra.mxu0 0
          %2755 = vmatprep.subr.bf16.mxu0 0
          %2756 = vmatpush2.bf16.xpose.msra.mxu0 0
          %2757 = vmatprep.subr.bf16.mxu0 0
          %2758 = vmatpush2.bf16.xpose.msra.mxu0 0
          %2759 = vmatprep.mubr.bf16.mxu0 0
          %2760 = vmatmul.mubr.bf16.gmra.mxu0 %v2722
          %v2761 = vpop.f32.mrf.mxu0
          %v2762 = vadd.f32 0.0, %v2761
          %v2763 = vpop.f32.mrf.mxu0
          %v2764 = vpop.f32.mrf.mxu0
          %v2765 = vpop.f32.mrf.mxu0
          %2766 = vdwg.mxu0
          %2768 = vrot.lane.b32.xlu0 %v1540, 120
          %v2769 = vpop.permute.xlu0 %2768
          %2771 = vrot.lane.b32.xlu0 %v1548, 120
          %v2772 = vpop.permute.xlu0 %2771
          %v2774 = vsel %vm1557, %v2769, 0
          %v2777 = vsel %vm1557, %v2772, 0
          %2779 = vmatprep.subr.bf16.mxu0 0
          %2780 = vmatpush1.bf16.xpose.msra.mxu0 0
          %2781 = vmatprep.subr.bf16.mxu0 0
          %2782 = vmatpush1.bf16.xpose.msra.mxu0 0
          %2783 = vmatprep.subr.bf16.mxu0 0
          %2784 = vmatpush1.bf16.xpose.msra.mxu0 0
          %2785 = vmatprep.subr.bf16.mxu0 0
          %2786 = vmatpush1.bf16.xpose.msra.mxu0 0
          %2787 = vmatprep.subr.bf16.mxu0 0
          %2788 = vmatpush1.bf16.xpose.msra.mxu0 0
          %2789 = vmatprep.subr.bf16.mxu0 0
          %2790 = vmatpush1.bf16.xpose.msra.mxu0 0
          %2791 = vmatprep.subr.bf16.mxu0 0
          %2792 = vmatpush1.bf16.xpose.msra.mxu0 0
          %2793 = vmatprep.subr.bf16.mxu0 0
          %2794 = vmatpush1.bf16.xpose.msra.mxu0 %v2777
          %2795 = vmatprep.subr.bf16.mxu0 0
          %2796 = vmatpush2.bf16.xpose.msra.mxu0 0
          %2797 = vmatprep.subr.bf16.mxu0 0
          %2798 = vmatpush2.bf16.xpose.msra.mxu0 0
          %2799 = vmatprep.subr.bf16.mxu0 0
          %2800 = vmatpush2.bf16.xpose.msra.mxu0 0
          %2801 = vmatprep.subr.bf16.mxu0 0
          %2802 = vmatpush2.bf16.xpose.msra.mxu0 0
          %2803 = vmatprep.subr.bf16.mxu0 0
          %2804 = vmatpush2.bf16.xpose.msra.mxu0 0
          %2805 = vmatprep.subr.bf16.mxu0 0
          %2806 = vmatpush2.bf16.xpose.msra.mxu0 0
          %2807 = vmatprep.subr.bf16.mxu0 0
          %2808 = vmatpush2.bf16.xpose.msra.mxu0 0
          %2809 = vmatprep.subr.bf16.mxu0 0
          %2810 = vmatpush2.bf16.xpose.msra.mxu0 0
          %2811 = vmatprep.mubr.bf16.mxu0 0
          %2812 = vmatmul.mubr.bf16.gmra.mxu0 %v2774
          %v2813 = vpop.f32.mrf.mxu0
          %v2814 = vadd.f32 0.0, %v2813
          %v2815 = vpop.f32.mrf.mxu0
          %v2816 = vpop.f32.mrf.mxu0
          %v2817 = vpop.f32.mrf.mxu0
          %2818 = vdwg.mxu0
          %v2819 = vmul.f32 %v2450, 0.35355338
          %v2820 = vmul.f32 %v2502, 0.35355338
          %v2821 = vmul.f32 %v2554, 0.35355338
          %v2822 = vmul.f32 %v2606, 0.35355338
          %v2823 = vmul.f32 %v2658, 0.35355338
          %v2824 = vmul.f32 %v2710, 0.35355338
          %v2825 = vmul.f32 %v2762, 0.35355338
          %v2826 = vmul.f32 %v2814, 0.35355338
          %v2827 = vsel %vm1557, %v2819, -inf
          %2828 = vmax.xlane.f32.xlu0 %v2827
          %v2829 = vpop.xlane.xlu0 %2828
          %v2830 = vsel %vm1557, %v2820, -inf
          %2831 = vmax.xlane.f32.xlu0 %v2830
          %v2832 = vpop.xlane.xlu0 %2831
          %v2833 = vsel %vm1557, %v2821, -inf
          %2834 = vmax.xlane.f32.xlu0 %v2833
          %v2835 = vpop.xlane.xlu0 %2834
          %v2836 = vsel %vm1557, %v2822, -inf
          %2837 = vmax.xlane.f32.xlu0 %v2836
          %v2838 = vpop.xlane.xlu0 %2837
          %v2839 = vsel %vm1557, %v2823, -inf
          %2840 = vmax.xlane.f32.xlu0 %v2839
          %v2841 = vpop.xlane.xlu0 %2840
          %v2842 = vsel %vm1557, %v2824, -inf
          %2843 = vmax.xlane.f32.xlu0 %v2842
          %v2844 = vpop.xlane.xlu0 %2843
          %v2845 = vsel %vm1557, %v2825, -inf
          %2846 = vmax.xlane.f32.xlu0 %v2845
          %v2847 = vpop.xlane.xlu0 %2846
          %v2848 = vsel %vm1557, %v2826, -inf
          %2849 = vmax.xlane.f32.xlu0 %v2848
          %v2850 = vpop.xlane.xlu0 %2849
          %v2851 = vsub.f32 %v2819, %v2829
          %v2852 = vsub.f32 %v2820, %v2832
          %v2853 = vsub.f32 %v2821, %v2835
          %v2854 = vsub.f32 %v2822, %v2838
          %v2855 = vsub.f32 %v2823, %v2841
          %v2856 = vsub.f32 %v2824, %v2844
          %v2857 = vsub.f32 %v2825, %v2847
          %v2858 = vsub.f32 %v2826, %v2850
          %v2859 = vmul.f32 %v2851, 1.442695
          %v2860 = vpow.pop %v2859
          %v2861 = vmul.f32 %v2852, 1.442695
          %v2862 = vpow.pop %v2861
          %v2863 = vmul.f32 %v2853, 1.442695
          %v2864 = vpow.pop %v2863
          %v2865 = vmul.f32 %v2854, 1.442695
          %v2866 = vpow.pop %v2865
          %v2867 = vmul.f32 %v2855, 1.442695
          %v2868 = vpow.pop %v2867
          %v2869 = vmul.f32 %v2856, 1.442695
          %v2870 = vpow.pop %v2869
          %v2871 = vmul.f32 %v2857, 1.442695
          %v2872 = vpow.pop %v2871
          %v2873 = vmul.f32 %v2858, 1.442695
          %v2874 = vpow.pop %v2873
          %v2875 = vsel %vm1557, %v2860, 0.0
          %2876 = vadd.xlane.f32.xlu0 %v2875
          %v2877 = vpop.xlane.xlu0 %2876
          %v2878 = vsel %vm1557, %v2862, 0.0
          %2879 = vadd.xlane.f32.xlu0 %v2878
          %v2880 = vpop.xlane.xlu0 %2879
          %v2881 = vsel %vm1557, %v2864, 0.0
          %2882 = vadd.xlane.f32.xlu0 %v2881
          %v2883 = vpop.xlane.xlu0 %2882
          %v2884 = vsel %vm1557, %v2866, 0.0
          %2885 = vadd.xlane.f32.xlu0 %v2884
          %v2886 = vpop.xlane.xlu0 %2885
          %v2887 = vsel %vm1557, %v2868, 0.0
          %2888 = vadd.xlane.f32.xlu0 %v2887
          %v2889 = vpop.xlane.xlu0 %2888
          %v2890 = vsel %vm1557, %v2870, 0.0
          %2891 = vadd.xlane.f32.xlu0 %v2890
          %v2892 = vpop.xlane.xlu0 %2891
          %v2893 = vsel %vm1557, %v2872, 0.0
          %2894 = vadd.xlane.f32.xlu0 %v2893
          %v2895 = vpop.xlane.xlu0 %2894
          %v2896 = vsel %vm1557, %v2874, 0.0
          %2897 = vadd.xlane.f32.xlu0 %v2896
          %v2898 = vpop.xlane.xlu0 %2897
          %v2899 = vrcp.pop %v2877
          %v2900 = vrcp.pop %v2880
          %v2901 = vrcp.pop %v2883
          %v2902 = vrcp.pop %v2886
          %v2903 = vrcp.pop %v2889
          %v2904 = vrcp.pop %v2892
          %v2905 = vrcp.pop %v2895
          %v2906 = vrcp.pop %v2898
          %v2907 = vmul.f32 %v2860, %v2899
          %v2908 = vmul.f32 %v2862, %v2900
          %v2909 = vmul.f32 %v2864, %v2901
          %v2910 = vmul.f32 %v2866, %v2902
          %v2911 = vmul.f32 %v2868, %v2903
          %v2912 = vmul.f32 %v2870, %v2904
          %v2913 = vmul.f32 %v2872, %v2905
          %v2914 = vmul.f32 %v2874, %v2906
          %v2915 = vpack.c.bf16 %v2907, %v2907
          %v2916 = vpack.c.bf16 %v2908, %v2908
          %v2917 = vpack.c.bf16 %v2909, %v2909
          %v2918 = vpack.c.bf16 %v2910, %v2910
          %v2919 = vpack.c.bf16 %v2911, %v2911
          %v2920 = vpack.c.bf16 %v2912, %v2912
          %v2921 = vpack.c.bf16 %v2913, %v2913
          %v2922 = vpack.c.bf16 %v2914, %v2914
          %2924 = vrot.lane.b32.xlu0 %v1549, 120
          %v2925 = vpop.permute.xlu0 %2924
          %v2927 = vsel %vm1557, %v2915, 0
          %v2930 = vsel %vm2033, %v2925, 0
          %2932 = vmatprep.subr.bf16.mxu0 0
          %2933 = vmatpush1.bf16.msra.mxu0 0
          %2934 = vmatprep.subr.bf16.mxu0 0
          %2935 = vmatpush1.bf16.msra.mxu0 0
          %2936 = vmatprep.subr.bf16.mxu0 0
          %2937 = vmatpush1.bf16.msra.mxu0 0
          %2938 = vmatprep.subr.bf16.mxu0 0
          %2939 = vmatpush1.bf16.msra.mxu0 0
          %2940 = vmatprep.subr.bf16.mxu0 0
          %2941 = vmatpush1.bf16.msra.mxu0 0
          %2942 = vmatprep.subr.bf16.mxu0 0
          %2943 = vmatpush1.bf16.msra.mxu0 0
          %2944 = vmatprep.subr.bf16.mxu0 0
          %2945 = vmatpush1.bf16.msra.mxu0 0
          %2946 = vmatprep.subr.bf16.mxu0 0
          %2947 = vmatpush1.bf16.msra.mxu0 %v2930
          %2948 = vmatprep.subr.bf16.mxu0 0
          %2949 = vmatpush2.bf16.msra.mxu0 0
          %2950 = vmatprep.subr.bf16.mxu0 0
          %2951 = vmatpush2.bf16.msra.mxu0 0
          %2952 = vmatprep.subr.bf16.mxu0 0
          %2953 = vmatpush2.bf16.msra.mxu0 0
          %2954 = vmatprep.subr.bf16.mxu0 0
          %2955 = vmatpush2.bf16.msra.mxu0 0
          %2956 = vmatprep.subr.bf16.mxu0 0
          %2957 = vmatpush2.bf16.msra.mxu0 0
          %2958 = vmatprep.subr.bf16.mxu0 0
          %2959 = vmatpush2.bf16.msra.mxu0 0
          %2960 = vmatprep.subr.bf16.mxu0 0
          %2961 = vmatpush2.bf16.msra.mxu0 0
          %2962 = vmatprep.subr.bf16.mxu0 0
          %2963 = vmatpush2.bf16.msra.mxu0 0
          %2964 = vmatprep.mubr.bf16.mxu0 0
          %2965 = vmatmul.mubr.bf16.gmra.mxu0 %v2927
          %v2966 = vpop.f32.mrf.mxu0
          %v2967 = vadd.f32 0.0, %v2966
          %v2968 = vpop.f32.mrf.mxu0
          %v2969 = vpop.f32.mrf.mxu0
          %v2970 = vpop.f32.mrf.mxu0
          %2971 = vdwg.mxu0
          %2973 = vrot.lane.b32.xlu0 %v1550, 120
          %v2974 = vpop.permute.xlu0 %2973
          %v2976 = vsel %vm1557, %v2916, 0
          %v2979 = vsel %vm2033, %v2974, 0
          %2981 = vmatprep.subr.bf16.mxu0 0
          %2982 = vmatpush1.bf16.msra.mxu0 0
          %2983 = vmatprep.subr.bf16.mxu0 0
          %2984 = vmatpush1.bf16.msra.mxu0 0
          %2985 = vmatprep.subr.bf16.mxu0 0
          %2986 = vmatpush1.bf16.msra.mxu0 0
          %2987 = vmatprep.subr.bf16.mxu0 0
          %2988 = vmatpush1.bf16.msra.mxu0 0
          %2989 = vmatprep.subr.bf16.mxu0 0
          %2990 = vmatpush1.bf16.msra.mxu0 0
          %2991 = vmatprep.subr.bf16.mxu0 0
          %2992 = vmatpush1.bf16.msra.mxu0 0
          %2993 = vmatprep.subr.bf16.mxu0 0
          %2994 = vmatpush1.bf16.msra.mxu0 0
          %2995 = vmatprep.subr.bf16.mxu0 0
          %2996 = vmatpush1.bf16.msra.mxu0 %v2979
          %2997 = vmatprep.subr.bf16.mxu0 0
          %2998 = vmatpush2.bf16.msra.mxu0 0
          %2999 = vmatprep.subr.bf16.mxu0 0
          %3000 = vmatpush2.bf16.msra.mxu0 0
          %3001 = vmatprep.subr.bf16.mxu0 0
          %3002 = vmatpush2.bf16.msra.mxu0 0
          %3003 = vmatprep.subr.bf16.mxu0 0
          %3004 = vmatpush2.bf16.msra.mxu0 0
          %3005 = vmatprep.subr.bf16.mxu0 0
          %3006 = vmatpush2.bf16.msra.mxu0 0
          %3007 = vmatprep.subr.bf16.mxu0 0
          %3008 = vmatpush2.bf16.msra.mxu0 0
          %3009 = vmatprep.subr.bf16.mxu0 0
          %3010 = vmatpush2.bf16.msra.mxu0 0
          %3011 = vmatprep.subr.bf16.mxu0 0
          %3012 = vmatpush2.bf16.msra.mxu0 0
          %3013 = vmatprep.mubr.bf16.mxu0 0
          %3014 = vmatmul.mubr.bf16.gmra.mxu0 %v2976
          %v3015 = vpop.f32.mrf.mxu0
          %v3016 = vadd.f32 0.0, %v3015
          %v3017 = vpop.f32.mrf.mxu0
          %v3018 = vpop.f32.mrf.mxu0
          %v3019 = vpop.f32.mrf.mxu0
          %3020 = vdwg.mxu0
          %3022 = vrot.lane.b32.xlu0 %v1551, 120
          %v3023 = vpop.permute.xlu0 %3022
          %v3025 = vsel %vm1557, %v2917, 0
          %v3028 = vsel %vm2033, %v3023, 0
          %3030 = vmatprep.subr.bf16.mxu0 0
          %3031 = vmatpush1.bf16.msra.mxu0 0
          %3032 = vmatprep.subr.bf16.mxu0 0
          %3033 = vmatpush1.bf16.msra.mxu0 0
          %3034 = vmatprep.subr.bf16.mxu0 0
          %3035 = vmatpush1.bf16.msra.mxu0 0
          %3036 = vmatprep.subr.bf16.mxu0 0
          %3037 = vmatpush1.bf16.msra.mxu0 0
          %3038 = vmatprep.subr.bf16.mxu0 0
          %3039 = vmatpush1.bf16.msra.mxu0 0
          %3040 = vmatprep.subr.bf16.mxu0 0
          %3041 = vmatpush1.bf16.msra.mxu0 0
          %3042 = vmatprep.subr.bf16.mxu0 0
          %3043 = vmatpush1.bf16.msra.mxu0 0
          %3044 = vmatprep.subr.bf16.mxu0 0
          %3045 = vmatpush1.bf16.msra.mxu0 %v3028
          %3046 = vmatprep.subr.bf16.mxu0 0
          %3047 = vmatpush2.bf16.msra.mxu0 0
          %3048 = vmatprep.subr.bf16.mxu0 0
          %3049 = vmatpush2.bf16.msra.mxu0 0
          %3050 = vmatprep.subr.bf16.mxu0 0
          %3051 = vmatpush2.bf16.msra.mxu0 0
          %3052 = vmatprep.subr.bf16.mxu0 0
          %3053 = vmatpush2.bf16.msra.mxu0 0
          %3054 = vmatprep.subr.bf16.mxu0 0
          %3055 = vmatpush2.bf16.msra.mxu0 0
          %3056 = vmatprep.subr.bf16.mxu0 0
          %3057 = vmatpush2.bf16.msra.mxu0 0
          %3058 = vmatprep.subr.bf16.mxu0 0
          %3059 = vmatpush2.bf16.msra.mxu0 0
          %3060 = vmatprep.subr.bf16.mxu0 0
          %3061 = vmatpush2.bf16.msra.mxu0 0
          %3062 = vmatprep.mubr.bf16.mxu0 0
          %3063 = vmatmul.mubr.bf16.gmra.mxu0 %v3025
          %v3064 = vpop.f32.mrf.mxu0
          %v3065 = vadd.f32 0.0, %v3064
          %v3066 = vpop.f32.mrf.mxu0
          %v3067 = vpop.f32.mrf.mxu0
          %v3068 = vpop.f32.mrf.mxu0
          %3069 = vdwg.mxu0
          %3071 = vrot.lane.b32.xlu0 %v1552, 120
          %v3072 = vpop.permute.xlu0 %3071
          %v3074 = vsel %vm1557, %v2918, 0
          %v3077 = vsel %vm2033, %v3072, 0
          %3079 = vmatprep.subr.bf16.mxu0 0
          %3080 = vmatpush1.bf16.msra.mxu0 0
          %3081 = vmatprep.subr.bf16.mxu0 0
          %3082 = vmatpush1.bf16.msra.mxu0 0
          %3083 = vmatprep.subr.bf16.mxu0 0
          %3084 = vmatpush1.bf16.msra.mxu0 0
          %3085 = vmatprep.subr.bf16.mxu0 0
          %3086 = vmatpush1.bf16.msra.mxu0 0
          %3087 = vmatprep.subr.bf16.mxu0 0
          %3088 = vmatpush1.bf16.msra.mxu0 0
          %3089 = vmatprep.subr.bf16.mxu0 0
          %3090 = vmatpush1.bf16.msra.mxu0 0
          %3091 = vmatprep.subr.bf16.mxu0 0
          %3092 = vmatpush1.bf16.msra.mxu0 0
          %3093 = vmatprep.subr.bf16.mxu0 0
          %3094 = vmatpush1.bf16.msra.mxu0 %v3077
          %3095 = vmatprep.subr.bf16.mxu0 0
          %3096 = vmatpush2.bf16.msra.mxu0 0
          %3097 = vmatprep.subr.bf16.mxu0 0
          %3098 = vmatpush2.bf16.msra.mxu0 0
          %3099 = vmatprep.subr.bf16.mxu0 0
          %3100 = vmatpush2.bf16.msra.mxu0 0
          %3101 = vmatprep.subr.bf16.mxu0 0
          %3102 = vmatpush2.bf16.msra.mxu0 0
          %3103 = vmatprep.subr.bf16.mxu0 0
          %3104 = vmatpush2.bf16.msra.mxu0 0
          %3105 = vmatprep.subr.bf16.mxu0 0
          %3106 = vmatpush2.bf16.msra.mxu0 0
          %3107 = vmatprep.subr.bf16.mxu0 0
          %3108 = vmatpush2.bf16.msra.mxu0 0
          %3109 = vmatprep.subr.bf16.mxu0 0
          %3110 = vmatpush2.bf16.msra.mxu0 0
          %3111 = vmatprep.mubr.bf16.mxu0 0
          %3112 = vmatmul.mubr.bf16.gmra.mxu0 %v3074
          %v3113 = vpop.f32.mrf.mxu0
          %v3114 = vadd.f32 0.0, %v3113
          %v3115 = vpop.f32.mrf.mxu0
          %v3116 = vpop.f32.mrf.mxu0
          %v3117 = vpop.f32.mrf.mxu0
          %3118 = vdwg.mxu0
          %3120 = vrot.lane.b32.xlu0 %v1553, 120
          %v3121 = vpop.permute.xlu0 %3120
          %v3123 = vsel %vm1557, %v2919, 0
          %v3126 = vsel %vm2033, %v3121, 0
          %3128 = vmatprep.subr.bf16.mxu0 0
          %3129 = vmatpush1.bf16.msra.mxu0 0
          %3130 = vmatprep.subr.bf16.mxu0 0
          %3131 = vmatpush1.bf16.msra.mxu0 0
          %3132 = vmatprep.subr.bf16.mxu0 0
          %3133 = vmatpush1.bf16.msra.mxu0 0
          %3134 = vmatprep.subr.bf16.mxu0 0
          %3135 = vmatpush1.bf16.msra.mxu0 0
          %3136 = vmatprep.subr.bf16.mxu0 0
          %3137 = vmatpush1.bf16.msra.mxu0 0
          %3138 = vmatprep.subr.bf16.mxu0 0
          %3139 = vmatpush1.bf16.msra.mxu0 0
          %3140 = vmatprep.subr.bf16.mxu0 0
          %3141 = vmatpush1.bf16.msra.mxu0 0
          %3142 = vmatprep.subr.bf16.mxu0 0
          %3143 = vmatpush1.bf16.msra.mxu0 %v3126
          %3144 = vmatprep.subr.bf16.mxu0 0
          %3145 = vmatpush2.bf16.msra.mxu0 0
          %3146 = vmatprep.subr.bf16.mxu0 0
          %3147 = vmatpush2.bf16.msra.mxu0 0
          %3148 = vmatprep.subr.bf16.mxu0 0
          %3149 = vmatpush2.bf16.msra.mxu0 0
          %3150 = vmatprep.subr.bf16.mxu0 0
          %3151 = vmatpush2.bf16.msra.mxu0 0
          %3152 = vmatprep.subr.bf16.mxu0 0
          %3153 = vmatpush2.bf16.msra.mxu0 0
          %3154 = vmatprep.subr.bf16.mxu0 0
          %3155 = vmatpush2.bf16.msra.mxu0 0
          %3156 = vmatprep.subr.bf16.mxu0 0
          %3157 = vmatpush2.bf16.msra.mxu0 0
          %3158 = vmatprep.subr.bf16.mxu0 0
          %3159 = vmatpush2.bf16.msra.mxu0 0
          %3160 = vmatprep.mubr.bf16.mxu0 0
          %3161 = vmatmul.mubr.bf16.gmra.mxu0 %v3123
          %v3162 = vpop.f32.mrf.mxu0
          %v3163 = vadd.f32 0.0, %v3162
          %v3164 = vpop.f32.mrf.mxu0
          %v3165 = vpop.f32.mrf.mxu0
          %v3166 = vpop.f32.mrf.mxu0
          %3167 = vdwg.mxu0
          %3169 = vrot.lane.b32.xlu0 %v1554, 120
          %v3170 = vpop.permute.xlu0 %3169
          %v3172 = vsel %vm1557, %v2920, 0
          %v3175 = vsel %vm2033, %v3170, 0
          %3177 = vmatprep.subr.bf16.mxu0 0
          %3178 = vmatpush1.bf16.msra.mxu0 0
          %3179 = vmatprep.subr.bf16.mxu0 0
          %3180 = vmatpush1.bf16.msra.mxu0 0
          %3181 = vmatprep.subr.bf16.mxu0 0
          %3182 = vmatpush1.bf16.msra.mxu0 0
          %3183 = vmatprep.subr.bf16.mxu0 0
          %3184 = vmatpush1.bf16.msra.mxu0 0
          %3185 = vmatprep.subr.bf16.mxu0 0
          %3186 = vmatpush1.bf16.msra.mxu0 0
          %3187 = vmatprep.subr.bf16.mxu0 0
          %3188 = vmatpush1.bf16.msra.mxu0 0
          %3189 = vmatprep.subr.bf16.mxu0 0
          %3190 = vmatpush1.bf16.msra.mxu0 0
          %3191 = vmatprep.subr.bf16.mxu0 0
          %3192 = vmatpush1.bf16.msra.mxu0 %v3175
          %3193 = vmatprep.subr.bf16.mxu0 0
          %3194 = vmatpush2.bf16.msra.mxu0 0
          %3195 = vmatprep.subr.bf16.mxu0 0
          %3196 = vmatpush2.bf16.msra.mxu0 0
          %3197 = vmatprep.subr.bf16.mxu0 0
          %3198 = vmatpush2.bf16.msra.mxu0 0
          %3199 = vmatprep.subr.bf16.mxu0 0
          %3200 = vmatpush2.bf16.msra.mxu0 0
          %3201 = vmatprep.subr.bf16.mxu0 0
          %3202 = vmatpush2.bf16.msra.mxu0 0
          %3203 = vmatprep.subr.bf16.mxu0 0
          %3204 = vmatpush2.bf16.msra.mxu0 0
          %3205 = vmatprep.subr.bf16.mxu0 0
          %3206 = vmatpush2.bf16.msra.mxu0 0
          %3207 = vmatprep.subr.bf16.mxu0 0
          %3208 = vmatpush2.bf16.msra.mxu0 0
          %3209 = vmatprep.mubr.bf16.mxu0 0
          %3210 = vmatmul.mubr.bf16.gmra.mxu0 %v3172
          %v3211 = vpop.f32.mrf.mxu0
          %v3212 = vadd.f32 0.0, %v3211
          %v3213 = vpop.f32.mrf.mxu0
          %v3214 = vpop.f32.mrf.mxu0
          %v3215 = vpop.f32.mrf.mxu0
          %3216 = vdwg.mxu0
          %3218 = vrot.lane.b32.xlu0 %v1555, 120
          %v3219 = vpop.permute.xlu0 %3218
          %v3221 = vsel %vm1557, %v2921, 0
          %v3224 = vsel %vm2033, %v3219, 0
          %3226 = vmatprep.subr.bf16.mxu0 0
          %3227 = vmatpush1.bf16.msra.mxu0 0
          %3228 = vmatprep.subr.bf16.mxu0 0
          %3229 = vmatpush1.bf16.msra.mxu0 0
          %3230 = vmatprep.subr.bf16.mxu0 0
          %3231 = vmatpush1.bf16.msra.mxu0 0
          %3232 = vmatprep.subr.bf16.mxu0 0
          %3233 = vmatpush1.bf16.msra.mxu0 0
          %3234 = vmatprep.subr.bf16.mxu0 0
          %3235 = vmatpush1.bf16.msra.mxu0 0
          %3236 = vmatprep.subr.bf16.mxu0 0
          %3237 = vmatpush1.bf16.msra.mxu0 0
          %3238 = vmatprep.subr.bf16.mxu0 0
          %3239 = vmatpush1.bf16.msra.mxu0 0
          %3240 = vmatprep.subr.bf16.mxu0 0
          %3241 = vmatpush1.bf16.msra.mxu0 %v3224
          %3242 = vmatprep.subr.bf16.mxu0 0
          %3243 = vmatpush2.bf16.msra.mxu0 0
          %3244 = vmatprep.subr.bf16.mxu0 0
          %3245 = vmatpush2.bf16.msra.mxu0 0
          %3246 = vmatprep.subr.bf16.mxu0 0
          %3247 = vmatpush2.bf16.msra.mxu0 0
          %3248 = vmatprep.subr.bf16.mxu0 0
          %3249 = vmatpush2.bf16.msra.mxu0 0
          %3250 = vmatprep.subr.bf16.mxu0 0
          %3251 = vmatpush2.bf16.msra.mxu0 0
          %3252 = vmatprep.subr.bf16.mxu0 0
          %3253 = vmatpush2.bf16.msra.mxu0 0
          %3254 = vmatprep.subr.bf16.mxu0 0
          %3255 = vmatpush2.bf16.msra.mxu0 0
          %3256 = vmatprep.subr.bf16.mxu0 0
          %3257 = vmatpush2.bf16.msra.mxu0 0
          %3258 = vmatprep.mubr.bf16.mxu0 0
          %3259 = vmatmul.mubr.bf16.gmra.mxu0 %v3221
          %v3260 = vpop.f32.mrf.mxu0
          %v3261 = vadd.f32 0.0, %v3260
          %v3262 = vpop.f32.mrf.mxu0
          %v3263 = vpop.f32.mrf.mxu0
          %v3264 = vpop.f32.mrf.mxu0
          %3265 = vdwg.mxu0
          %3267 = vrot.lane.b32.xlu0 %v1556, 120
          %v3268 = vpop.permute.xlu0 %3267
          %v3270 = vsel %vm1557, %v2922, 0
          %v3273 = vsel %vm2033, %v3268, 0
          %3275 = vmatprep.subr.bf16.mxu0 0
          %3276 = vmatpush1.bf16.msra.mxu0 0
          %3277 = vmatprep.subr.bf16.mxu0 0
          %3278 = vmatpush1.bf16.msra.mxu0 0
          %3279 = vmatprep.subr.bf16.mxu0 0
          %3280 = vmatpush1.bf16.msra.mxu0 0
          %3281 = vmatprep.subr.bf16.mxu0 0
          %3282 = vmatpush1.bf16.msra.mxu0 0
          %3283 = vmatprep.subr.bf16.mxu0 0
          %3284 = vmatpush1.bf16.msra.mxu0 0
          %3285 = vmatprep.subr.bf16.mxu0 0
          %3286 = vmatpush1.bf16.msra.mxu0 0
          %3287 = vmatprep.subr.bf16.mxu0 0
          %3288 = vmatpush1.bf16.msra.mxu0 0
          %3289 = vmatprep.subr.bf16.mxu0 0
          %3290 = vmatpush1.bf16.msra.mxu0 %v3273
          %3291 = vmatprep.subr.bf16.mxu0 0
          %3292 = vmatpush2.bf16.msra.mxu0 0
          %3293 = vmatprep.subr.bf16.mxu0 0
          %3294 = vmatpush2.bf16.msra.mxu0 0
          %3295 = vmatprep.subr.bf16.mxu0 0
          %3296 = vmatpush2.bf16.msra.mxu0 0
          %3297 = vmatprep.subr.bf16.mxu0 0
          %3298 = vmatpush2.bf16.msra.mxu0 0
          %3299 = vmatprep.subr.bf16.mxu0 0
          %3300 = vmatpush2.bf16.msra.mxu0 0
          %3301 = vmatprep.subr.bf16.mxu0 0
          %3302 = vmatpush2.bf16.msra.mxu0 0
          %3303 = vmatprep.subr.bf16.mxu0 0
          %3304 = vmatpush2.bf16.msra.mxu0 0
          %3305 = vmatprep.subr.bf16.mxu0 0
          %3306 = vmatpush2.bf16.msra.mxu0 0
          %3307 = vmatprep.mubr.bf16.mxu0 0
          %3308 = vmatmul.mubr.bf16.gmra.mxu0 %v3270
          %v3309 = vpop.f32.mrf.mxu0
          %v3310 = vadd.f32 0.0, %v3309
          %v3311 = vpop.f32.mrf.mxu0
          %v3312 = vpop.f32.mrf.mxu0
          %v3313 = vpop.f32.mrf.mxu0
          %3314 = vdwg.mxu0
          %v3315 = vpack.c.bf16 %v3016, %v2967
          %v3316 = vpack.c.bf16 %v3114, %v3065
          %v3317 = vpack.c.bf16 %v3212, %v3163
          %v3318 = vpack.c.bf16 %v3310, %v3261
          %v3320 = vrot.slane %v899, 4
          %v3322 = vsel %vm1557, %v3315, 0
          %v3325 = vsel %vm1557, %v3316, 0
          %v3328 = vsel %vm1557, %v3317, 0
          %v3331 = vsel %vm1557, %v3318, 0
          %v3334 = vsel %vm2033, %v3320, 0
          %3336 = vmatprep.subr.bf16.mxu0 0
          %3337 = vmatpush1.bf16.msra.mxu0 0
          %3338 = vmatprep.subr.bf16.mxu0 0
          %3339 = vmatpush1.bf16.msra.mxu0 0
          %3340 = vmatprep.subr.bf16.mxu0 0
          %3341 = vmatpush1.bf16.msra.mxu0 0
          %3342 = vmatprep.subr.bf16.mxu0 0
          %3343 = vmatpush1.bf16.msra.mxu0 0
          %3344 = vmatprep.subr.bf16.mxu0 0
          %3345 = vmatpush1.bf16.msra.mxu0 0
          %3346 = vmatprep.subr.bf16.mxu0 0
          %3347 = vmatpush1.bf16.msra.mxu0 0
          %3348 = vmatprep.subr.bf16.mxu0 0
          %3349 = vmatpush1.bf16.msra.mxu0 0
          %3350 = vmatprep.subr.bf16.mxu0 0
          %3351 = vmatpush1.bf16.msra.mxu0 %v3334
          %3352 = vmatprep.subr.bf16.mxu0 0
          %3353 = vmatpush2.bf16.msra.mxu0 0
          %3354 = vmatprep.subr.bf16.mxu0 0
          %3355 = vmatpush2.bf16.msra.mxu0 0
          %3356 = vmatprep.subr.bf16.mxu0 0
          %3357 = vmatpush2.bf16.msra.mxu0 0
          %3358 = vmatprep.subr.bf16.mxu0 0
          %3359 = vmatpush2.bf16.msra.mxu0 0
          %3360 = vmatprep.subr.bf16.mxu0 0
          %3361 = vmatpush2.bf16.msra.mxu0 0
          %3362 = vmatprep.subr.bf16.mxu0 0
          %3363 = vmatpush2.bf16.msra.mxu0 0
          %3364 = vmatprep.subr.bf16.mxu0 0
          %3365 = vmatpush2.bf16.msra.mxu0 0
          %3366 = vmatprep.subr.bf16.mxu0 0
          %3367 = vmatpush2.bf16.msra.mxu0 0
          %3368 = vmatprep.mubr.bf16.mxu0 0
          %3369 = vmatmul.mubr.bf16.gmra.mxu0 %v3322
          %v3370 = vpop.f32.mrf.mxu0
          %v3371 = vadd.f32 0.0, %v3370
          %v3372 = vpop.f32.mrf.mxu0
          %v3373 = vpop.f32.mrf.mxu0
          %v3374 = vadd.f32 0.0, %v3373
          %v3375 = vpop.f32.mrf.mxu0
          %3376 = vmatprep.mubr.bf16.mxu0 0
          %3377 = vmatmul.mubr.bf16.gmra.mxu0 %v3325
          %v3378 = vpop.f32.mrf.mxu0
          %v3379 = vadd.f32 0.0, %v3378
          %v3380 = vpop.f32.mrf.mxu0
          %v3381 = vpop.f32.mrf.mxu0
          %v3382 = vadd.f32 0.0, %v3381
          %v3383 = vpop.f32.mrf.mxu0
          %3384 = vmatprep.mubr.bf16.mxu0 0
          %3385 = vmatmul.mubr.bf16.gmra.mxu0 %v3328
          %v3386 = vpop.f32.mrf.mxu0
          %v3387 = vadd.f32 0.0, %v3386
          %v3388 = vpop.f32.mrf.mxu0
          %v3389 = vpop.f32.mrf.mxu0
          %v3390 = vadd.f32 0.0, %v3389
          %v3391 = vpop.f32.mrf.mxu0
          %3392 = vmatprep.mubr.bf16.mxu0 0
          %3393 = vmatmul.mubr.bf16.gmra.mxu0 %v3331
          %v3394 = vpop.f32.mrf.mxu0
          %v3395 = vadd.f32 0.0, %v3394
          %v3396 = vpop.f32.mrf.mxu0
          %v3397 = vpop.f32.mrf.mxu0
          %v3398 = vadd.f32 0.0, %v3397
          %v3399 = vpop.f32.mrf.mxu0
          %3400 = vdwg.mxu0
          %v3402 = vsel %vm1557, %v2399, 0
          %v3405 = vsel %vm1557, %v2400, 0
          %v3408 = vsel %vm1557, %v2401, 0
          %v3411 = vsel %vm1557, %v2402, 0
          %v3414 = vsel %vm2033, %v899, 0
          %3416 = vmatprep.subr.bf16.mxu0 0
          %3417 = vmatpush1.bf16.msra.mxu0 0
          %3418 = vmatprep.subr.bf16.mxu0 0
          %3419 = vmatpush1.bf16.msra.mxu0 0
          %3420 = vmatprep.subr.bf16.mxu0 0
          %3421 = vmatpush1.bf16.msra.mxu0 0
          %3422 = vmatprep.subr.bf16.mxu0 0
          %3423 = vmatpush1.bf16.msra.mxu0 0
          %3424 = vmatprep.subr.bf16.mxu0 0
          %3425 = vmatpush1.bf16.msra.mxu0 0
          %3426 = vmatprep.subr.bf16.mxu0 0
          %3427 = vmatpush1.bf16.msra.mxu0 0
          %3428 = vmatprep.subr.bf16.mxu0 0
          %3429 = vmatpush1.bf16.msra.mxu0 0
          %3430 = vmatprep.subr.bf16.mxu0 0
          %3431 = vmatpush1.bf16.msra.mxu0 %v3414
          %3432 = vmatprep.subr.bf16.mxu0 0
          %3433 = vmatpush2.bf16.msra.mxu0 0
          %3434 = vmatprep.subr.bf16.mxu0 0
          %3435 = vmatpush2.bf16.msra.mxu0 0
          %3436 = vmatprep.subr.bf16.mxu0 0
          %3437 = vmatpush2.bf16.msra.mxu0 0
          %3438 = vmatprep.subr.bf16.mxu0 0
          %3439 = vmatpush2.bf16.msra.mxu0 0
          %3440 = vmatprep.subr.bf16.mxu0 0
          %3441 = vmatpush2.bf16.msra.mxu0 0
          %3442 = vmatprep.subr.bf16.mxu0 0
          %3443 = vmatpush2.bf16.msra.mxu0 0
          %3444 = vmatprep.subr.bf16.mxu0 0
          %3445 = vmatpush2.bf16.msra.mxu0 0
          %3446 = vmatprep.subr.bf16.mxu0 0
          %3447 = vmatpush2.bf16.msra.mxu0 0
          %3448 = vmatprep.mubr.bf16.mxu0 0
          %3449 = vmatmul.mubr.bf16.gmra.mxu0 %v3402
          %v3450 = vpop.f32.mrf.mxu0
          %v3451 = vadd.f32 %v3371, %v3450
          %v3452 = vpop.f32.mrf.mxu0
          %v3453 = vpop.f32.mrf.mxu0
          %v3454 = vadd.f32 %v3374, %v3453
          %v3455 = vpop.f32.mrf.mxu0
          %3456 = vmatprep.mubr.bf16.mxu0 0
          %3457 = vmatmul.mubr.bf16.gmra.mxu0 %v3405
          %v3458 = vpop.f32.mrf.mxu0
          %v3459 = vadd.f32 %v3379, %v3458
          %v3460 = vpop.f32.mrf.mxu0
          %v3461 = vpop.f32.mrf.mxu0
          %v3462 = vadd.f32 %v3382, %v3461
          %v3463 = vpop.f32.mrf.mxu0
          %3464 = vmatprep.mubr.bf16.mxu0 0
          %3465 = vmatmul.mubr.bf16.gmra.mxu0 %v3408
          %v3466 = vpop.f32.mrf.mxu0
          %v3467 = vadd.f32 %v3387, %v3466
          %v3468 = vpop.f32.mrf.mxu0
          %v3469 = vpop.f32.mrf.mxu0
          %v3470 = vadd.f32 %v3390, %v3469
          %v3471 = vpop.f32.mrf.mxu0
          %3472 = vmatprep.mubr.bf16.mxu0 0
          %3473 = vmatmul.mubr.bf16.gmra.mxu0 %v3411
          %v3474 = vpop.f32.mrf.mxu0
          %v3475 = vadd.f32 %v3395, %v3474
          %v3476 = vpop.f32.mrf.mxu0
          %v3477 = vpop.f32.mrf.mxu0
          %v3478 = vadd.f32 %v3398, %v3477
          %v3479 = vpop.f32.mrf.mxu0
          %3480 = vdwg.mxu0
          %3481 = vrot.lane.b32.xlu0 %v1533, 112
          %v3482 = vpop.permute.xlu0 %3481
          %3483 = vrot.lane.b32.xlu0 %v1541, 112
          %v3484 = vpop.permute.xlu0 %3483
          %v3486 = vsel %vm1557, %v3482, 0
          %v3489 = vsel %vm1557, %v3484, 0
          %3491 = vmatprep.subr.bf16.mxu0 0
          %3492 = vmatpush1.bf16.xpose.msra.mxu0 0
          %3493 = vmatprep.subr.bf16.mxu0 0
          %3494 = vmatpush1.bf16.xpose.msra.mxu0 0
          %3495 = vmatprep.subr.bf16.mxu0 0
          %3496 = vmatpush1.bf16.xpose.msra.mxu0 0
          %3497 = vmatprep.subr.bf16.mxu0 0
          %3498 = vmatpush1.bf16.xpose.msra.mxu0 0
          %3499 = vmatprep.subr.bf16.mxu0 0
          %3500 = vmatpush1.bf16.xpose.msra.mxu0 0
          %3501 = vmatprep.subr.bf16.mxu0 0
          %3502 = vmatpush1.bf16.xpose.msra.mxu0 0
          %3503 = vmatprep.subr.bf16.mxu0 0
          %3504 = vmatpush1.bf16.xpose.msra.mxu0 0
          %3505 = vmatprep.subr.bf16.mxu0 0
          %3506 = vmatpush1.bf16.xpose.msra.mxu0 %v3489
          %3507 = vmatprep.subr.bf16.mxu0 0
          %3508 = vmatpush2.bf16.xpose.msra.mxu0 0
          %3509 = vmatprep.subr.bf16.mxu0 0
          %3510 = vmatpush2.bf16.xpose.msra.mxu0 0
          %3511 = vmatprep.subr.bf16.mxu0 0
          %3512 = vmatpush2.bf16.xpose.msra.mxu0 0
          %3513 = vmatprep.subr.bf16.mxu0 0
          %3514 = vmatpush2.bf16.xpose.msra.mxu0 0
          %3515 = vmatprep.subr.bf16.mxu0 0
          %3516 = vmatpush2.bf16.xpose.msra.mxu0 0
          %3517 = vmatprep.subr.bf16.mxu0 0
          %3518 = vmatpush2.bf16.xpose.msra.mxu0 0
          %3519 = vmatprep.subr.bf16.mxu0 0
          %3520 = vmatpush2.bf16.xpose.msra.mxu0 0
          %3521 = vmatprep.subr.bf16.mxu0 0
          %3522 = vmatpush2.bf16.xpose.msra.mxu0 0
          %3523 = vmatprep.mubr.bf16.mxu0 0
          %3524 = vmatmul.mubr.bf16.gmra.mxu0 %v3486
          %v3525 = vpop.f32.mrf.mxu0
          %v3526 = vadd.f32 0.0, %v3525
          %v3527 = vpop.f32.mrf.mxu0
          %v3528 = vpop.f32.mrf.mxu0
          %v3529 = vpop.f32.mrf.mxu0
          %3530 = vdwg.mxu0
          %3531 = vrot.lane.b32.xlu0 %v1534, 112
          %v3532 = vpop.permute.xlu0 %3531
          %3533 = vrot.lane.b32.xlu0 %v1542, 112
          %v3534 = vpop.permute.xlu0 %3533
          %v3536 = vsel %vm1557, %v3532, 0
          %v3539 = vsel %vm1557, %v3534, 0
          %3541 = vmatprep.subr.bf16.mxu0 0
          %3542 = vmatpush1.bf16.xpose.msra.mxu0 0
          %3543 = vmatprep.subr.bf16.mxu0 0
          %3544 = vmatpush1.bf16.xpose.msra.mxu0 0
          %3545 = vmatprep.subr.bf16.mxu0 0
          %3546 = vmatpush1.bf16.xpose.msra.mxu0 0
          %3547 = vmatprep.subr.bf16.mxu0 0
          %3548 = vmatpush1.bf16.xpose.msra.mxu0 0
          %3549 = vmatprep.subr.bf16.mxu0 0
          %3550 = vmatpush1.bf16.xpose.msra.mxu0 0
          %3551 = vmatprep.subr.bf16.mxu0 0
          %3552 = vmatpush1.bf16.xpose.msra.mxu0 0
          %3553 = vmatprep.subr.bf16.mxu0 0
          %3554 = vmatpush1.bf16.xpose.msra.mxu0 0
          %3555 = vmatprep.subr.bf16.mxu0 0
          %3556 = vmatpush1.bf16.xpose.msra.mxu0 %v3539
          %3557 = vmatprep.subr.bf16.mxu0 0
          %3558 = vmatpush2.bf16.xpose.msra.mxu0 0
          %3559 = vmatprep.subr.bf16.mxu0 0
          %3560 = vmatpush2.bf16.xpose.msra.mxu0 0
          %3561 = vmatprep.subr.bf16.mxu0 0
          %3562 = vmatpush2.bf16.xpose.msra.mxu0 0
          %3563 = vmatprep.subr.bf16.mxu0 0
          %3564 = vmatpush2.bf16.xpose.msra.mxu0 0
          %3565 = vmatprep.subr.bf16.mxu0 0
          %3566 = vmatpush2.bf16.xpose.msra.mxu0 0
          %3567 = vmatprep.subr.bf16.mxu0 0
          %3568 = vmatpush2.bf16.xpose.msra.mxu0 0
          %3569 = vmatprep.subr.bf16.mxu0 0
          %3570 = vmatpush2.bf16.xpose.msra.mxu0 0
          %3571 = vmatprep.subr.bf16.mxu0 0
          %3572 = vmatpush2.bf16.xpose.msra.mxu0 0
          %3573 = vmatprep.mubr.bf16.mxu0 0
          %3574 = vmatmul.mubr.bf16.gmra.mxu0 %v3536
          %v3575 = vpop.f32.mrf.mxu0
          %v3576 = vadd.f32 0.0, %v3575
          %v3577 = vpop.f32.mrf.mxu0
          %v3578 = vpop.f32.mrf.mxu0
          %v3579 = vpop.f32.mrf.mxu0
          %3580 = vdwg.mxu0
          %3581 = vrot.lane.b32.xlu0 %v1535, 112
          %v3582 = vpop.permute.xlu0 %3581
          %3583 = vrot.lane.b32.xlu0 %v1543, 112
          %v3584 = vpop.permute.xlu0 %3583
          %v3586 = vsel %vm1557, %v3582, 0
          %v3589 = vsel %vm1557, %v3584, 0
          %3591 = vmatprep.subr.bf16.mxu0 0
          %3592 = vmatpush1.bf16.xpose.msra.mxu0 0
          %3593 = vmatprep.subr.bf16.mxu0 0
          %3594 = vmatpush1.bf16.xpose.msra.mxu0 0
          %3595 = vmatprep.subr.bf16.mxu0 0
          %3596 = vmatpush1.bf16.xpose.msra.mxu0 0
          %3597 = vmatprep.subr.bf16.mxu0 0
          %3598 = vmatpush1.bf16.xpose.msra.mxu0 0
          %3599 = vmatprep.subr.bf16.mxu0 0
          %3600 = vmatpush1.bf16.xpose.msra.mxu0 0
          %3601 = vmatprep.subr.bf16.mxu0 0
          %3602 = vmatpush1.bf16.xpose.msra.mxu0 0
          %3603 = vmatprep.subr.bf16.mxu0 0
          %3604 = vmatpush1.bf16.xpose.msra.mxu0 0
          %3605 = vmatprep.subr.bf16.mxu0 0
          %3606 = vmatpush1.bf16.xpose.msra.mxu0 %v3589
          %3607 = vmatprep.subr.bf16.mxu0 0
          %3608 = vmatpush2.bf16.xpose.msra.mxu0 0
          %3609 = vmatprep.subr.bf16.mxu0 0
          %3610 = vmatpush2.bf16.xpose.msra.mxu0 0
          %3611 = vmatprep.subr.bf16.mxu0 0
          %3612 = vmatpush2.bf16.xpose.msra.mxu0 0
          %3613 = vmatprep.subr.bf16.mxu0 0
          %3614 = vmatpush2.bf16.xpose.msra.mxu0 0
          %3615 = vmatprep.subr.bf16.mxu0 0
          %3616 = vmatpush2.bf16.xpose.msra.mxu0 0
          %3617 = vmatprep.subr.bf16.mxu0 0
          %3618 = vmatpush2.bf16.xpose.msra.mxu0 0
          %3619 = vmatprep.subr.bf16.mxu0 0
          %3620 = vmatpush2.bf16.xpose.msra.mxu0 0
          %3621 = vmatprep.subr.bf16.mxu0 0
          %3622 = vmatpush2.bf16.xpose.msra.mxu0 0
          %3623 = vmatprep.mubr.bf16.mxu0 0
          %3624 = vmatmul.mubr.bf16.gmra.mxu0 %v3586
          %v3625 = vpop.f32.mrf.mxu0
          %v3626 = vadd.f32 0.0, %v3625
          %v3627 = vpop.f32.mrf.mxu0
          %v3628 = vpop.f32.mrf.mxu0
          %v3629 = vpop.f32.mrf.mxu0
          %3630 = vdwg.mxu0
          %3631 = vrot.lane.b32.xlu0 %v1536, 112
          %v3632 = vpop.permute.xlu0 %3631
          %3633 = vrot.lane.b32.xlu0 %v1544, 112
          %v3634 = vpop.permute.xlu0 %3633
          %v3636 = vsel %vm1557, %v3632, 0
          %v3639 = vsel %vm1557, %v3634, 0
          %3641 = vmatprep.subr.bf16.mxu0 0
          %3642 = vmatpush1.bf16.xpose.msra.mxu0 0
          %3643 = vmatprep.subr.bf16.mxu0 0
          %3644 = vmatpush1.bf16.xpose.msra.mxu0 0
          %3645 = vmatprep.subr.bf16.mxu0 0
          %3646 = vmatpush1.bf16.xpose.msra.mxu0 0
          %3647 = vmatprep.subr.bf16.mxu0 0
          %3648 = vmatpush1.bf16.xpose.msra.mxu0 0
          %3649 = vmatprep.subr.bf16.mxu0 0
          %3650 = vmatpush1.bf16.xpose.msra.mxu0 0
          %3651 = vmatprep.subr.bf16.mxu0 0
          %3652 = vmatpush1.bf16.xpose.msra.mxu0 0
          %3653 = vmatprep.subr.bf16.mxu0 0
          %3654 = vmatpush1.bf16.xpose.msra.mxu0 0
          %3655 = vmatprep.subr.bf16.mxu0 0
          %3656 = vmatpush1.bf16.xpose.msra.mxu0 %v3639
          %3657 = vmatprep.subr.bf16.mxu0 0
          %3658 = vmatpush2.bf16.xpose.msra.mxu0 0
          %3659 = vmatprep.subr.bf16.mxu0 0
          %3660 = vmatpush2.bf16.xpose.msra.mxu0 0
          %3661 = vmatprep.subr.bf16.mxu0 0
          %3662 = vmatpush2.bf16.xpose.msra.mxu0 0
          %3663 = vmatprep.subr.bf16.mxu0 0
          %3664 = vmatpush2.bf16.xpose.msra.mxu0 0
          %3665 = vmatprep.subr.bf16.mxu0 0
          %3666 = vmatpush2.bf16.xpose.msra.mxu0 0
          %3667 = vmatprep.subr.bf16.mxu0 0
          %3668 = vmatpush2.bf16.xpose.msra.mxu0 0
          %3669 = vmatprep.subr.bf16.mxu0 0
          %3670 = vmatpush2.bf16.xpose.msra.mxu0 0
          %3671 = vmatprep.subr.bf16.mxu0 0
          %3672 = vmatpush2.bf16.xpose.msra.mxu0 0
          %3673 = vmatprep.mubr.bf16.mxu0 0
          %3674 = vmatmul.mubr.bf16.gmra.mxu0 %v3636
          %v3675 = vpop.f32.mrf.mxu0
          %v3676 = vadd.f32 0.0, %v3675
          %v3677 = vpop.f32.mrf.mxu0
          %v3678 = vpop.f32.mrf.mxu0
          %v3679 = vpop.f32.mrf.mxu0
          %3680 = vdwg.mxu0
          %3681 = vrot.lane.b32.xlu0 %v1537, 112
          %v3682 = vpop.permute.xlu0 %3681
          %3683 = vrot.lane.b32.xlu0 %v1545, 112
          %v3684 = vpop.permute.xlu0 %3683
          %v3686 = vsel %vm1557, %v3682, 0
          %v3689 = vsel %vm1557, %v3684, 0
          %3691 = vmatprep.subr.bf16.mxu0 0
          %3692 = vmatpush1.bf16.xpose.msra.mxu0 0
          %3693 = vmatprep.subr.bf16.mxu0 0
          %3694 = vmatpush1.bf16.xpose.msra.mxu0 0
          %3695 = vmatprep.subr.bf16.mxu0 0
          %3696 = vmatpush1.bf16.xpose.msra.mxu0 0
          %3697 = vmatprep.subr.bf16.mxu0 0
          %3698 = vmatpush1.bf16.xpose.msra.mxu0 0
          %3699 = vmatprep.subr.bf16.mxu0 0
          %3700 = vmatpush1.bf16.xpose.msra.mxu0 0
          %3701 = vmatprep.subr.bf16.mxu0 0
          %3702 = vmatpush1.bf16.xpose.msra.mxu0 0
          %3703 = vmatprep.subr.bf16.mxu0 0
          %3704 = vmatpush1.bf16.xpose.msra.mxu0 0
          %3705 = vmatprep.subr.bf16.mxu0 0
          %3706 = vmatpush1.bf16.xpose.msra.mxu0 %v3689
          %3707 = vmatprep.subr.bf16.mxu0 0
          %3708 = vmatpush2.bf16.xpose.msra.mxu0 0
          %3709 = vmatprep.subr.bf16.mxu0 0
          %3710 = vmatpush2.bf16.xpose.msra.mxu0 0
          %3711 = vmatprep.subr.bf16.mxu0 0
          %3712 = vmatpush2.bf16.xpose.msra.mxu0 0
          %3713 = vmatprep.subr.bf16.mxu0 0
          %3714 = vmatpush2.bf16.xpose.msra.mxu0 0
          %3715 = vmatprep.subr.bf16.mxu0 0
          %3716 = vmatpush2.bf16.xpose.msra.mxu0 0
          %3717 = vmatprep.subr.bf16.mxu0 0
          %3718 = vmatpush2.bf16.xpose.msra.mxu0 0
          %3719 = vmatprep.subr.bf16.mxu0 0
          %3720 = vmatpush2.bf16.xpose.msra.mxu0 0
          %3721 = vmatprep.subr.bf16.mxu0 0
          %3722 = vmatpush2.bf16.xpose.msra.mxu0 0
          %3723 = vmatprep.mubr.bf16.mxu0 0
          %3724 = vmatmul.mubr.bf16.gmra.mxu0 %v3686
          %v3725 = vpop.f32.mrf.mxu0
          %v3726 = vadd.f32 0.0, %v3725
          %v3727 = vpop.f32.mrf.mxu0
          %v3728 = vpop.f32.mrf.mxu0
          %v3729 = vpop.f32.mrf.mxu0
          %3730 = vdwg.mxu0
          %3731 = vrot.lane.b32.xlu0 %v1538, 112
          %v3732 = vpop.permute.xlu0 %3731
          %3733 = vrot.lane.b32.xlu0 %v1546, 112
          %v3734 = vpop.permute.xlu0 %3733
          %v3736 = vsel %vm1557, %v3732, 0
          %v3739 = vsel %vm1557, %v3734, 0
          %3741 = vmatprep.subr.bf16.mxu0 0
          %3742 = vmatpush1.bf16.xpose.msra.mxu0 0
          %3743 = vmatprep.subr.bf16.mxu0 0
          %3744 = vmatpush1.bf16.xpose.msra.mxu0 0
          %3745 = vmatprep.subr.bf16.mxu0 0
          %3746 = vmatpush1.bf16.xpose.msra.mxu0 0
          %3747 = vmatprep.subr.bf16.mxu0 0
          %3748 = vmatpush1.bf16.xpose.msra.mxu0 0
          %3749 = vmatprep.subr.bf16.mxu0 0
          %3750 = vmatpush1.bf16.xpose.msra.mxu0 0
          %3751 = vmatprep.subr.bf16.mxu0 0
          %3752 = vmatpush1.bf16.xpose.msra.mxu0 0
          %3753 = vmatprep.subr.bf16.mxu0 0
          %3754 = vmatpush1.bf16.xpose.msra.mxu0 0
          %3755 = vmatprep.subr.bf16.mxu0 0
          %3756 = vmatpush1.bf16.xpose.msra.mxu0 %v3739
          %3757 = vmatprep.subr.bf16.mxu0 0
          %3758 = vmatpush2.bf16.xpose.msra.mxu0 0
          %3759 = vmatprep.subr.bf16.mxu0 0
          %3760 = vmatpush2.bf16.xpose.msra.mxu0 0
          %3761 = vmatprep.subr.bf16.mxu0 0
          %3762 = vmatpush2.bf16.xpose.msra.mxu0 0
          %3763 = vmatprep.subr.bf16.mxu0 0
          %3764 = vmatpush2.bf16.xpose.msra.mxu0 0
          %3765 = vmatprep.subr.bf16.mxu0 0
          %3766 = vmatpush2.bf16.xpose.msra.mxu0 0
          %3767 = vmatprep.subr.bf16.mxu0 0
          %3768 = vmatpush2.bf16.xpose.msra.mxu0 0
          %3769 = vmatprep.subr.bf16.mxu0 0
          %3770 = vmatpush2.bf16.xpose.msra.mxu0 0
          %3771 = vmatprep.subr.bf16.mxu0 0
          %3772 = vmatpush2.bf16.xpose.msra.mxu0 0
          %3773 = vmatprep.mubr.bf16.mxu0 0
          %3774 = vmatmul.mubr.bf16.gmra.mxu0 %v3736
          %v3775 = vpop.f32.mrf.mxu0
          %v3776 = vadd.f32 0.0, %v3775
          %v3777 = vpop.f32.mrf.mxu0
          %v3778 = vpop.f32.mrf.mxu0
          %v3779 = vpop.f32.mrf.mxu0
          %3780 = vdwg.mxu0
          %3781 = vrot.lane.b32.xlu0 %v1539, 112
          %v3782 = vpop.permute.xlu0 %3781
          %3783 = vrot.lane.b32.xlu0 %v1547, 112
          %v3784 = vpop.permute.xlu0 %3783
          %v3786 = vsel %vm1557, %v3782, 0
          %v3789 = vsel %vm1557, %v3784, 0
          %3791 = vmatprep.subr.bf16.mxu0 0
          %3792 = vmatpush1.bf16.xpose.msra.mxu0 0
          %3793 = vmatprep.subr.bf16.mxu0 0
          %3794 = vmatpush1.bf16.xpose.msra.mxu0 0
          %3795 = vmatprep.subr.bf16.mxu0 0
          %3796 = vmatpush1.bf16.xpose.msra.mxu0 0
          %3797 = vmatprep.subr.bf16.mxu0 0
          %3798 = vmatpush1.bf16.xpose.msra.mxu0 0
          %3799 = vmatprep.subr.bf16.mxu0 0
          %3800 = vmatpush1.bf16.xpose.msra.mxu0 0
          %3801 = vmatprep.subr.bf16.mxu0 0
          %3802 = vmatpush1.bf16.xpose.msra.mxu0 0
          %3803 = vmatprep.subr.bf16.mxu0 0
          %3804 = vmatpush1.bf16.xpose.msra.mxu0 0
          %3805 = vmatprep.subr.bf16.mxu0 0
          %3806 = vmatpush1.bf16.xpose.msra.mxu0 %v3789
          %3807 = vmatprep.subr.bf16.mxu0 0
          %3808 = vmatpush2.bf16.xpose.msra.mxu0 0
          %3809 = vmatprep.subr.bf16.mxu0 0
          %3810 = vmatpush2.bf16.xpose.msra.mxu0 0
          %3811 = vmatprep.subr.bf16.mxu0 0
          %3812 = vmatpush2.bf16.xpose.msra.mxu0 0
          %3813 = vmatprep.subr.bf16.mxu0 0
          %3814 = vmatpush2.bf16.xpose.msra.mxu0 0
          %3815 = vmatprep.subr.bf16.mxu0 0
          %3816 = vmatpush2.bf16.xpose.msra.mxu0 0
          %3817 = vmatprep.subr.bf16.mxu0 0
          %3818 = vmatpush2.bf16.xpose.msra.mxu0 0
          %3819 = vmatprep.subr.bf16.mxu0 0
          %3820 = vmatpush2.bf16.xpose.msra.mxu0 0
          %3821 = vmatprep.subr.bf16.mxu0 0
          %3822 = vmatpush2.bf16.xpose.msra.mxu0 0
          %3823 = vmatprep.mubr.bf16.mxu0 0
          %3824 = vmatmul.mubr.bf16.gmra.mxu0 %v3786
          %v3825 = vpop.f32.mrf.mxu0
          %v3826 = vadd.f32 0.0, %v3825
          %v3827 = vpop.f32.mrf.mxu0
          %v3828 = vpop.f32.mrf.mxu0
          %v3829 = vpop.f32.mrf.mxu0
          %3830 = vdwg.mxu0
          %3831 = vrot.lane.b32.xlu0 %v1540, 112
          %v3832 = vpop.permute.xlu0 %3831
          %3833 = vrot.lane.b32.xlu0 %v1548, 112
          %v3834 = vpop.permute.xlu0 %3833
          %v3836 = vsel %vm1557, %v3832, 0
          %v3839 = vsel %vm1557, %v3834, 0
          %3841 = vmatprep.subr.bf16.mxu0 0
          %3842 = vmatpush1.bf16.xpose.msra.mxu0 0
          %3843 = vmatprep.subr.bf16.mxu0 0
          %3844 = vmatpush1.bf16.xpose.msra.mxu0 0
          %3845 = vmatprep.subr.bf16.mxu0 0
          %3846 = vmatpush1.bf16.xpose.msra.mxu0 0
          %3847 = vmatprep.subr.bf16.mxu0 0
          %3848 = vmatpush1.bf16.xpose.msra.mxu0 0
          %3849 = vmatprep.subr.bf16.mxu0 0
          %3850 = vmatpush1.bf16.xpose.msra.mxu0 0
          %3851 = vmatprep.subr.bf16.mxu0 0
          %3852 = vmatpush1.bf16.xpose.msra.mxu0 0
          %3853 = vmatprep.subr.bf16.mxu0 0
          %3854 = vmatpush1.bf16.xpose.msra.mxu0 0
          %3855 = vmatprep.subr.bf16.mxu0 0
          %3856 = vmatpush1.bf16.xpose.msra.mxu0 %v3839
          %3857 = vmatprep.subr.bf16.mxu0 0
          %3858 = vmatpush2.bf16.xpose.msra.mxu0 0
          %3859 = vmatprep.subr.bf16.mxu0 0
          %3860 = vmatpush2.bf16.xpose.msra.mxu0 0
          %3861 = vmatprep.subr.bf16.mxu0 0
          %3862 = vmatpush2.bf16.xpose.msra.mxu0 0
          %3863 = vmatprep.subr.bf16.mxu0 0
          %3864 = vmatpush2.bf16.xpose.msra.mxu0 0
          %3865 = vmatprep.subr.bf16.mxu0 0
          %3866 = vmatpush2.bf16.xpose.msra.mxu0 0
          %3867 = vmatprep.subr.bf16.mxu0 0
          %3868 = vmatpush2.bf16.xpose.msra.mxu0 0
          %3869 = vmatprep.subr.bf16.mxu0 0
          %3870 = vmatpush2.bf16.xpose.msra.mxu0 0
          %3871 = vmatprep.subr.bf16.mxu0 0
          %3872 = vmatpush2.bf16.xpose.msra.mxu0 0
          %3873 = vmatprep.mubr.bf16.mxu0 0
          %3874 = vmatmul.mubr.bf16.gmra.mxu0 %v3836
          %v3875 = vpop.f32.mrf.mxu0
          %v3876 = vadd.f32 0.0, %v3875
          %v3877 = vpop.f32.mrf.mxu0
          %v3878 = vpop.f32.mrf.mxu0
          %v3879 = vpop.f32.mrf.mxu0
          %3880 = vdwg.mxu0
          %v3881 = vmul.f32 %v3526, 0.35355338
          %v3882 = vmul.f32 %v3576, 0.35355338
          %v3883 = vmul.f32 %v3626, 0.35355338
          %v3884 = vmul.f32 %v3676, 0.35355338
          %v3885 = vmul.f32 %v3726, 0.35355338
          %v3886 = vmul.f32 %v3776, 0.35355338
          %v3887 = vmul.f32 %v3826, 0.35355338
          %v3888 = vmul.f32 %v3876, 0.35355338
          %v3889 = vsel %vm1557, %v3881, -inf
          %3890 = vmax.xlane.f32.xlu0 %v3889
          %v3891 = vpop.xlane.xlu0 %3890
          %v3892 = vsel %vm1557, %v3882, -inf
          %3893 = vmax.xlane.f32.xlu0 %v3892
          %v3894 = vpop.xlane.xlu0 %3893
          %v3895 = vsel %vm1557, %v3883, -inf
          %3896 = vmax.xlane.f32.xlu0 %v3895
          %v3897 = vpop.xlane.xlu0 %3896
          %v3898 = vsel %vm1557, %v3884, -inf
          %3899 = vmax.xlane.f32.xlu0 %v3898
          %v3900 = vpop.xlane.xlu0 %3899
          %v3901 = vsel %vm1557, %v3885, -inf
          %3902 = vmax.xlane.f32.xlu0 %v3901
          %v3903 = vpop.xlane.xlu0 %3902
          %v3904 = vsel %vm1557, %v3886, -inf
          %3905 = vmax.xlane.f32.xlu0 %v3904
          %v3906 = vpop.xlane.xlu0 %3905
          %v3907 = vsel %vm1557, %v3887, -inf
          %3908 = vmax.xlane.f32.xlu0 %v3907
          %v3909 = vpop.xlane.xlu0 %3908
          %v3910 = vsel %vm1557, %v3888, -inf
          %3911 = vmax.xlane.f32.xlu0 %v3910
          %v3912 = vpop.xlane.xlu0 %3911
          %v3913 = vsub.f32 %v3881, %v3891
          %v3914 = vsub.f32 %v3882, %v3894
          %v3915 = vsub.f32 %v3883, %v3897
          %v3916 = vsub.f32 %v3884, %v3900
          %v3917 = vsub.f32 %v3885, %v3903
          %v3918 = vsub.f32 %v3886, %v3906
          %v3919 = vsub.f32 %v3887, %v3909
          %v3920 = vsub.f32 %v3888, %v3912
          %v3921 = vmul.f32 %v3913, 1.442695
          %v3922 = vpow.pop %v3921
          %v3923 = vmul.f32 %v3914, 1.442695
          %v3924 = vpow.pop %v3923
          %v3925 = vmul.f32 %v3915, 1.442695
          %v3926 = vpow.pop %v3925
          %v3927 = vmul.f32 %v3916, 1.442695
          %v3928 = vpow.pop %v3927
          %v3929 = vmul.f32 %v3917, 1.442695
          %v3930 = vpow.pop %v3929
          %v3931 = vmul.f32 %v3918, 1.442695
          %v3932 = vpow.pop %v3931
          %v3933 = vmul.f32 %v3919, 1.442695
          %v3934 = vpow.pop %v3933
          %v3935 = vmul.f32 %v3920, 1.442695
          %v3936 = vpow.pop %v3935
          %v3937 = vsel %vm1557, %v3922, 0.0
          %3938 = vadd.xlane.f32.xlu0 %v3937
          %v3939 = vpop.xlane.xlu0 %3938
          %v3940 = vsel %vm1557, %v3924, 0.0
          %3941 = vadd.xlane.f32.xlu0 %v3940
          %v3942 = vpop.xlane.xlu0 %3941
          %v3943 = vsel %vm1557, %v3926, 0.0
          %3944 = vadd.xlane.f32.xlu0 %v3943
          %v3945 = vpop.xlane.xlu0 %3944
          %v3946 = vsel %vm1557, %v3928, 0.0
          %3947 = vadd.xlane.f32.xlu0 %v3946
          %v3948 = vpop.xlane.xlu0 %3947
          %v3949 = vsel %vm1557, %v3930, 0.0
          %3950 = vadd.xlane.f32.xlu0 %v3949
          %v3951 = vpop.xlane.xlu0 %3950
          %v3952 = vsel %vm1557, %v3932, 0.0
          %3953 = vadd.xlane.f32.xlu0 %v3952
          %v3954 = vpop.xlane.xlu0 %3953
          %v3955 = vsel %vm1557, %v3934, 0.0
          %3956 = vadd.xlane.f32.xlu0 %v3955
          %v3957 = vpop.xlane.xlu0 %3956
          %v3958 = vsel %vm1557, %v3936, 0.0
          %3959 = vadd.xlane.f32.xlu0 %v3958
          %v3960 = vpop.xlane.xlu0 %3959
          %v3961 = vrcp.pop %v3939
          %v3962 = vrcp.pop %v3942
          %v3963 = vrcp.pop %v3945
          %v3964 = vrcp.pop %v3948
          %v3965 = vrcp.pop %v3951
          %v3966 = vrcp.pop %v3954
          %v3967 = vrcp.pop %v3957
          %v3968 = vrcp.pop %v3960
          %v3969 = vmul.f32 %v3922, %v3961
          %v3970 = vmul.f32 %v3924, %v3962
          %v3971 = vmul.f32 %v3926, %v3963
          %v3972 = vmul.f32 %v3928, %v3964
          %v3973 = vmul.f32 %v3930, %v3965
          %v3974 = vmul.f32 %v3932, %v3966
          %v3975 = vmul.f32 %v3934, %v3967
          %v3976 = vmul.f32 %v3936, %v3968
          %v3977 = vpack.c.bf16 %v3969, %v3969
          %v3978 = vpack.c.bf16 %v3970, %v3970
          %v3979 = vpack.c.bf16 %v3971, %v3971
          %v3980 = vpack.c.bf16 %v3972, %v3972
          %v3981 = vpack.c.bf16 %v3973, %v3973
          %v3982 = vpack.c.bf16 %v3974, %v3974
          %v3983 = vpack.c.bf16 %v3975, %v3975
          %v3984 = vpack.c.bf16 %v3976, %v3976
          %3985 = vrot.lane.b32.xlu0 %v1549, 112
          %v3986 = vpop.permute.xlu0 %3985
          %v3988 = vsel %vm1557, %v3977, 0
          %v3991 = vsel %vm2033, %v3986, 0
          %3993 = vmatprep.subr.bf16.mxu0 0
          %3994 = vmatpush1.bf16.msra.mxu0 0
          %3995 = vmatprep.subr.bf16.mxu0 0
          %3996 = vmatpush1.bf16.msra.mxu0 0
          %3997 = vmatprep.subr.bf16.mxu0 0
          %3998 = vmatpush1.bf16.msra.mxu0 0
          %3999 = vmatprep.subr.bf16.mxu0 0
          %4000 = vmatpush1.bf16.msra.mxu0 0
          %4001 = vmatprep.subr.bf16.mxu0 0
          %4002 = vmatpush1.bf16.msra.mxu0 0
          %4003 = vmatprep.subr.bf16.mxu0 0
          %4004 = vmatpush1.bf16.msra.mxu0 0
          %4005 = vmatprep.subr.bf16.mxu0 0
          %4006 = vmatpush1.bf16.msra.mxu0 0
          %4007 = vmatprep.subr.bf16.mxu0 0
          %4008 = vmatpush1.bf16.msra.mxu0 %v3991
          %4009 = vmatprep.subr.bf16.mxu0 0
          %4010 = vmatpush2.bf16.msra.mxu0 0
          %4011 = vmatprep.subr.bf16.mxu0 0
          %4012 = vmatpush2.bf16.msra.mxu0 0
          %4013 = vmatprep.subr.bf16.mxu0 0
          %4014 = vmatpush2.bf16.msra.mxu0 0
          %4015 = vmatprep.subr.bf16.mxu0 0
          %4016 = vmatpush2.bf16.msra.mxu0 0
          %4017 = vmatprep.subr.bf16.mxu0 0
          %4018 = vmatpush2.bf16.msra.mxu0 0
          %4019 = vmatprep.subr.bf16.mxu0 0
          %4020 = vmatpush2.bf16.msra.mxu0 0
          %4021 = vmatprep.subr.bf16.mxu0 0
          %4022 = vmatpush2.bf16.msra.mxu0 0
          %4023 = vmatprep.subr.bf16.mxu0 0
          %4024 = vmatpush2.bf16.msra.mxu0 0
          %4025 = vmatprep.mubr.bf16.mxu0 0
          %4026 = vmatmul.mubr.bf16.gmra.mxu0 %v3988
          %v4027 = vpop.f32.mrf.mxu0
          %v4028 = vadd.f32 0.0, %v4027
          %v4029 = vpop.f32.mrf.mxu0
          %v4030 = vpop.f32.mrf.mxu0
          %v4031 = vpop.f32.mrf.mxu0
          %4032 = vdwg.mxu0
          %4033 = vrot.lane.b32.xlu0 %v1550, 112
          %v4034 = vpop.permute.xlu0 %4033
          %v4036 = vsel %vm1557, %v3978, 0
          %v4039 = vsel %vm2033, %v4034, 0
          %4041 = vmatprep.subr.bf16.mxu0 0
          %4042 = vmatpush1.bf16.msra.mxu0 0
          %4043 = vmatprep.subr.bf16.mxu0 0
          %4044 = vmatpush1.bf16.msra.mxu0 0
          %4045 = vmatprep.subr.bf16.mxu0 0
          %4046 = vmatpush1.bf16.msra.mxu0 0
          %4047 = vmatprep.subr.bf16.mxu0 0
          %4048 = vmatpush1.bf16.msra.mxu0 0
          %4049 = vmatprep.subr.bf16.mxu0 0
          %4050 = vmatpush1.bf16.msra.mxu0 0
          %4051 = vmatprep.subr.bf16.mxu0 0
          %4052 = vmatpush1.bf16.msra.mxu0 0
          %4053 = vmatprep.subr.bf16.mxu0 0
          %4054 = vmatpush1.bf16.msra.mxu0 0
          %4055 = vmatprep.subr.bf16.mxu0 0
          %4056 = vmatpush1.bf16.msra.mxu0 %v4039
          %4057 = vmatprep.subr.bf16.mxu0 0
          %4058 = vmatpush2.bf16.msra.mxu0 0
          %4059 = vmatprep.subr.bf16.mxu0 0
          %4060 = vmatpush2.bf16.msra.mxu0 0
          %4061 = vmatprep.subr.bf16.mxu0 0
          %4062 = vmatpush2.bf16.msra.mxu0 0
          %4063 = vmatprep.subr.bf16.mxu0 0
          %4064 = vmatpush2.bf16.msra.mxu0 0
          %4065 = vmatprep.subr.bf16.mxu0 0
          %4066 = vmatpush2.bf16.msra.mxu0 0
          %4067 = vmatprep.subr.bf16.mxu0 0
          %4068 = vmatpush2.bf16.msra.mxu0 0
          %4069 = vmatprep.subr.bf16.mxu0 0
          %4070 = vmatpush2.bf16.msra.mxu0 0
          %4071 = vmatprep.subr.bf16.mxu0 0
          %4072 = vmatpush2.bf16.msra.mxu0 0
          %4073 = vmatprep.mubr.bf16.mxu0 0
          %4074 = vmatmul.mubr.bf16.gmra.mxu0 %v4036
          %v4075 = vpop.f32.mrf.mxu0
          %v4076 = vadd.f32 0.0, %v4075
          %v4077 = vpop.f32.mrf.mxu0
          %v4078 = vpop.f32.mrf.mxu0
          %v4079 = vpop.f32.mrf.mxu0
          %4080 = vdwg.mxu0
          %4081 = vrot.lane.b32.xlu0 %v1551, 112
          %v4082 = vpop.permute.xlu0 %4081
          %v4084 = vsel %vm1557, %v3979, 0
          %v4087 = vsel %vm2033, %v4082, 0
          %4089 = vmatprep.subr.bf16.mxu0 0
          %4090 = vmatpush1.bf16.msra.mxu0 0
          %4091 = vmatprep.subr.bf16.mxu0 0
          %4092 = vmatpush1.bf16.msra.mxu0 0
          %4093 = vmatprep.subr.bf16.mxu0 0
          %4094 = vmatpush1.bf16.msra.mxu0 0
          %4095 = vmatprep.subr.bf16.mxu0 0
          %4096 = vmatpush1.bf16.msra.mxu0 0
          %4097 = vmatprep.subr.bf16.mxu0 0
          %4098 = vmatpush1.bf16.msra.mxu0 0
          %4099 = vmatprep.subr.bf16.mxu0 0
          %4100 = vmatpush1.bf16.msra.mxu0 0
          %4101 = vmatprep.subr.bf16.mxu0 0
          %4102 = vmatpush1.bf16.msra.mxu0 0
          %4103 = vmatprep.subr.bf16.mxu0 0
          %4104 = vmatpush1.bf16.msra.mxu0 %v4087
          %4105 = vmatprep.subr.bf16.mxu0 0
          %4106 = vmatpush2.bf16.msra.mxu0 0
          %4107 = vmatprep.subr.bf16.mxu0 0
          %4108 = vmatpush2.bf16.msra.mxu0 0
          %4109 = vmatprep.subr.bf16.mxu0 0
          %4110 = vmatpush2.bf16.msra.mxu0 0
          %4111 = vmatprep.subr.bf16.mxu0 0
          %4112 = vmatpush2.bf16.msra.mxu0 0
          %4113 = vmatprep.subr.bf16.mxu0 0
          %4114 = vmatpush2.bf16.msra.mxu0 0
          %4115 = vmatprep.subr.bf16.mxu0 0
          %4116 = vmatpush2.bf16.msra.mxu0 0
          %4117 = vmatprep.subr.bf16.mxu0 0
          %4118 = vmatpush2.bf16.msra.mxu0 0
          %4119 = vmatprep.subr.bf16.mxu0 0
          %4120 = vmatpush2.bf16.msra.mxu0 0
          %4121 = vmatprep.mubr.bf16.mxu0 0
          %4122 = vmatmul.mubr.bf16.gmra.mxu0 %v4084
          %v4123 = vpop.f32.mrf.mxu0
          %v4124 = vadd.f32 0.0, %v4123
          %v4125 = vpop.f32.mrf.mxu0
          %v4126 = vpop.f32.mrf.mxu0
          %v4127 = vpop.f32.mrf.mxu0
          %4128 = vdwg.mxu0
          %4129 = vrot.lane.b32.xlu0 %v1552, 112
          %v4130 = vpop.permute.xlu0 %4129
          %v4132 = vsel %vm1557, %v3980, 0
          %v4135 = vsel %vm2033, %v4130, 0
          %4137 = vmatprep.subr.bf16.mxu0 0
          %4138 = vmatpush1.bf16.msra.mxu0 0
          %4139 = vmatprep.subr.bf16.mxu0 0
          %4140 = vmatpush1.bf16.msra.mxu0 0
          %4141 = vmatprep.subr.bf16.mxu0 0
          %4142 = vmatpush1.bf16.msra.mxu0 0
          %4143 = vmatprep.subr.bf16.mxu0 0
          %4144 = vmatpush1.bf16.msra.mxu0 0
          %4145 = vmatprep.subr.bf16.mxu0 0
          %4146 = vmatpush1.bf16.msra.mxu0 0
          %4147 = vmatprep.subr.bf16.mxu0 0
          %4148 = vmatpush1.bf16.msra.mxu0 0
          %4149 = vmatprep.subr.bf16.mxu0 0
          %4150 = vmatpush1.bf16.msra.mxu0 0
          %4151 = vmatprep.subr.bf16.mxu0 0
          %4152 = vmatpush1.bf16.msra.mxu0 %v4135
          %4153 = vmatprep.subr.bf16.mxu0 0
          %4154 = vmatpush2.bf16.msra.mxu0 0
          %4155 = vmatprep.subr.bf16.mxu0 0
          %4156 = vmatpush2.bf16.msra.mxu0 0
          %4157 = vmatprep.subr.bf16.mxu0 0
          %4158 = vmatpush2.bf16.msra.mxu0 0
          %4159 = vmatprep.subr.bf16.mxu0 0
          %4160 = vmatpush2.bf16.msra.mxu0 0
          %4161 = vmatprep.subr.bf16.mxu0 0
          %4162 = vmatpush2.bf16.msra.mxu0 0
          %4163 = vmatprep.subr.bf16.mxu0 0
          %4164 = vmatpush2.bf16.msra.mxu0 0
          %4165 = vmatprep.subr.bf16.mxu0 0
          %4166 = vmatpush2.bf16.msra.mxu0 0
          %4167 = vmatprep.subr.bf16.mxu0 0
          %4168 = vmatpush2.bf16.msra.mxu0 0
          %4169 = vmatprep.mubr.bf16.mxu0 0
          %4170 = vmatmul.mubr.bf16.gmra.mxu0 %v4132
          %v4171 = vpop.f32.mrf.mxu0
          %v4172 = vadd.f32 0.0, %v4171
          %v4173 = vpop.f32.mrf.mxu0
          %v4174 = vpop.f32.mrf.mxu0
          %v4175 = vpop.f32.mrf.mxu0
          %4176 = vdwg.mxu0
          %4177 = vrot.lane.b32.xlu0 %v1553, 112
          %v4178 = vpop.permute.xlu0 %4177
          %v4180 = vsel %vm1557, %v3981, 0
          %v4183 = vsel %vm2033, %v4178, 0
          %4185 = vmatprep.subr.bf16.mxu0 0
          %4186 = vmatpush1.bf16.msra.mxu0 0
          %4187 = vmatprep.subr.bf16.mxu0 0
          %4188 = vmatpush1.bf16.msra.mxu0 0
          %4189 = vmatprep.subr.bf16.mxu0 0
          %4190 = vmatpush1.bf16.msra.mxu0 0
          %4191 = vmatprep.subr.bf16.mxu0 0
          %4192 = vmatpush1.bf16.msra.mxu0 0
          %4193 = vmatprep.subr.bf16.mxu0 0
          %4194 = vmatpush1.bf16.msra.mxu0 0
          %4195 = vmatprep.subr.bf16.mxu0 0
          %4196 = vmatpush1.bf16.msra.mxu0 0
          %4197 = vmatprep.subr.bf16.mxu0 0
          %4198 = vmatpush1.bf16.msra.mxu0 0
          %4199 = vmatprep.subr.bf16.mxu0 0
          %4200 = vmatpush1.bf16.msra.mxu0 %v4183
          %4201 = vmatprep.subr.bf16.mxu0 0
          %4202 = vmatpush2.bf16.msra.mxu0 0
          %4203 = vmatprep.subr.bf16.mxu0 0
          %4204 = vmatpush2.bf16.msra.mxu0 0
          %4205 = vmatprep.subr.bf16.mxu0 0
          %4206 = vmatpush2.bf16.msra.mxu0 0
          %4207 = vmatprep.subr.bf16.mxu0 0
          %4208 = vmatpush2.bf16.msra.mxu0 0
          %4209 = vmatprep.subr.bf16.mxu0 0
          %4210 = vmatpush2.bf16.msra.mxu0 0
          %4211 = vmatprep.subr.bf16.mxu0 0
          %4212 = vmatpush2.bf16.msra.mxu0 0
          %4213 = vmatprep.subr.bf16.mxu0 0
          %4214 = vmatpush2.bf16.msra.mxu0 0
          %4215 = vmatprep.subr.bf16.mxu0 0
          %4216 = vmatpush2.bf16.msra.mxu0 0
          %4217 = vmatprep.mubr.bf16.mxu0 0
          %4218 = vmatmul.mubr.bf16.gmra.mxu0 %v4180
          %v4219 = vpop.f32.mrf.mxu0
          %v4220 = vadd.f32 0.0, %v4219
          %v4221 = vpop.f32.mrf.mxu0
          %v4222 = vpop.f32.mrf.mxu0
          %v4223 = vpop.f32.mrf.mxu0
          %4224 = vdwg.mxu0
          %4225 = vrot.lane.b32.xlu0 %v1554, 112
          %v4226 = vpop.permute.xlu0 %4225
          %v4228 = vsel %vm1557, %v3982, 0
          %v4231 = vsel %vm2033, %v4226, 0
          %4233 = vmatprep.subr.bf16.mxu0 0
          %4234 = vmatpush1.bf16.msra.mxu0 0
          %4235 = vmatprep.subr.bf16.mxu0 0
          %4236 = vmatpush1.bf16.msra.mxu0 0
          %4237 = vmatprep.subr.bf16.mxu0 0
          %4238 = vmatpush1.bf16.msra.mxu0 0
          %4239 = vmatprep.subr.bf16.mxu0 0
          %4240 = vmatpush1.bf16.msra.mxu0 0
          %4241 = vmatprep.subr.bf16.mxu0 0
          %4242 = vmatpush1.bf16.msra.mxu0 0
          %4243 = vmatprep.subr.bf16.mxu0 0
          %4244 = vmatpush1.bf16.msra.mxu0 0
          %4245 = vmatprep.subr.bf16.mxu0 0
          %4246 = vmatpush1.bf16.msra.mxu0 0
          %4247 = vmatprep.subr.bf16.mxu0 0
          %4248 = vmatpush1.bf16.msra.mxu0 %v4231
          %4249 = vmatprep.subr.bf16.mxu0 0
          %4250 = vmatpush2.bf16.msra.mxu0 0
          %4251 = vmatprep.subr.bf16.mxu0 0
          %4252 = vmatpush2.bf16.msra.mxu0 0
          %4253 = vmatprep.subr.bf16.mxu0 0
          %4254 = vmatpush2.bf16.msra.mxu0 0
          %4255 = vmatprep.subr.bf16.mxu0 0
          %4256 = vmatpush2.bf16.msra.mxu0 0
          %4257 = vmatprep.subr.bf16.mxu0 0
          %4258 = vmatpush2.bf16.msra.mxu0 0
          %4259 = vmatprep.subr.bf16.mxu0 0
          %4260 = vmatpush2.bf16.msra.mxu0 0
          %4261 = vmatprep.subr.bf16.mxu0 0
          %4262 = vmatpush2.bf16.msra.mxu0 0
          %4263 = vmatprep.subr.bf16.mxu0 0
          %4264 = vmatpush2.bf16.msra.mxu0 0
          %4265 = vmatprep.mubr.bf16.mxu0 0
          %4266 = vmatmul.mubr.bf16.gmra.mxu0 %v4228
          %v4267 = vpop.f32.mrf.mxu0
          %v4268 = vadd.f32 0.0, %v4267
          %v4269 = vpop.f32.mrf.mxu0
          %v4270 = vpop.f32.mrf.mxu0
          %v4271 = vpop.f32.mrf.mxu0
          %4272 = vdwg.mxu0
          %4273 = vrot.lane.b32.xlu0 %v1555, 112
          %v4274 = vpop.permute.xlu0 %4273
          %v4276 = vsel %vm1557, %v3983, 0
          %v4279 = vsel %vm2033, %v4274, 0
          %4281 = vmatprep.subr.bf16.mxu0 0
          %4282 = vmatpush1.bf16.msra.mxu0 0
          %4283 = vmatprep.subr.bf16.mxu0 0
          %4284 = vmatpush1.bf16.msra.mxu0 0
          %4285 = vmatprep.subr.bf16.mxu0 0
          %4286 = vmatpush1.bf16.msra.mxu0 0
          %4287 = vmatprep.subr.bf16.mxu0 0
          %4288 = vmatpush1.bf16.msra.mxu0 0
          %4289 = vmatprep.subr.bf16.mxu0 0
          %4290 = vmatpush1.bf16.msra.mxu0 0
          %4291 = vmatprep.subr.bf16.mxu0 0
          %4292 = vmatpush1.bf16.msra.mxu0 0
          %4293 = vmatprep.subr.bf16.mxu0 0
          %4294 = vmatpush1.bf16.msra.mxu0 0
          %4295 = vmatprep.subr.bf16.mxu0 0
          %4296 = vmatpush1.bf16.msra.mxu0 %v4279
          %4297 = vmatprep.subr.bf16.mxu0 0
          %4298 = vmatpush2.bf16.msra.mxu0 0
          %4299 = vmatprep.subr.bf16.mxu0 0
          %4300 = vmatpush2.bf16.msra.mxu0 0
          %4301 = vmatprep.subr.bf16.mxu0 0
          %4302 = vmatpush2.bf16.msra.mxu0 0
          %4303 = vmatprep.subr.bf16.mxu0 0
          %4304 = vmatpush2.bf16.msra.mxu0 0
          %4305 = vmatprep.subr.bf16.mxu0 0
          %4306 = vmatpush2.bf16.msra.mxu0 0
          %4307 = vmatprep.subr.bf16.mxu0 0
          %4308 = vmatpush2.bf16.msra.mxu0 0
          %4309 = vmatprep.subr.bf16.mxu0 0
          %4310 = vmatpush2.bf16.msra.mxu0 0
          %4311 = vmatprep.subr.bf16.mxu0 0
          %4312 = vmatpush2.bf16.msra.mxu0 0
          %4313 = vmatprep.mubr.bf16.mxu0 0
          %4314 = vmatmul.mubr.bf16.gmra.mxu0 %v4276
          %v4315 = vpop.f32.mrf.mxu0
          %v4316 = vadd.f32 0.0, %v4315
          %v4317 = vpop.f32.mrf.mxu0
          %v4318 = vpop.f32.mrf.mxu0
          %v4319 = vpop.f32.mrf.mxu0
          %4320 = vdwg.mxu0
          %4321 = vrot.lane.b32.xlu0 %v1556, 112
          %v4322 = vpop.permute.xlu0 %4321
          %v4324 = vsel %vm1557, %v3984, 0
          %v4327 = vsel %vm2033, %v4322, 0
          %4329 = vmatprep.subr.bf16.mxu0 0
          %4330 = vmatpush1.bf16.msra.mxu0 0
          %4331 = vmatprep.subr.bf16.mxu0 0
          %4332 = vmatpush1.bf16.msra.mxu0 0
          %4333 = vmatprep.subr.bf16.mxu0 0
          %4334 = vmatpush1.bf16.msra.mxu0 0
          %4335 = vmatprep.subr.bf16.mxu0 0
          %4336 = vmatpush1.bf16.msra.mxu0 0
          %4337 = vmatprep.subr.bf16.mxu0 0
          %4338 = vmatpush1.bf16.msra.mxu0 0
          %4339 = vmatprep.subr.bf16.mxu0 0
          %4340 = vmatpush1.bf16.msra.mxu0 0
          %4341 = vmatprep.subr.bf16.mxu0 0
          %4342 = vmatpush1.bf16.msra.mxu0 0
          %4343 = vmatprep.subr.bf16.mxu0 0
          %4344 = vmatpush1.bf16.msra.mxu0 %v4327
          %4345 = vmatprep.subr.bf16.mxu0 0
          %4346 = vmatpush2.bf16.msra.mxu0 0
          %4347 = vmatprep.subr.bf16.mxu0 0
          %4348 = vmatpush2.bf16.msra.mxu0 0
          %4349 = vmatprep.subr.bf16.mxu0 0
          %4350 = vmatpush2.bf16.msra.mxu0 0
          %4351 = vmatprep.subr.bf16.mxu0 0
          %4352 = vmatpush2.bf16.msra.mxu0 0
          %4353 = vmatprep.subr.bf16.mxu0 0
          %4354 = vmatpush2.bf16.msra.mxu0 0
          %4355 = vmatprep.subr.bf16.mxu0 0
          %4356 = vmatpush2.bf16.msra.mxu0 0
          %4357 = vmatprep.subr.bf16.mxu0 0
          %4358 = vmatpush2.bf16.msra.mxu0 0
          %4359 = vmatprep.subr.bf16.mxu0 0
          %4360 = vmatpush2.bf16.msra.mxu0 0
          %4361 = vmatprep.mubr.bf16.mxu0 0
          %4362 = vmatmul.mubr.bf16.gmra.mxu0 %v4324
          %v4363 = vpop.f32.mrf.mxu0
          %v4364 = vadd.f32 0.0, %v4363
          %v4365 = vpop.f32.mrf.mxu0
          %v4366 = vpop.f32.mrf.mxu0
          %v4367 = vpop.f32.mrf.mxu0
          %4368 = vdwg.mxu0
          %v4369 = vpack.c.bf16 %v4076, %v4028
          %v4370 = vpack.c.bf16 %v4172, %v4124
          %v4371 = vpack.c.bf16 %v4268, %v4220
          %v4372 = vpack.c.bf16 %v4364, %v4316
          %v4374 = vsel %vm1557, %v4369, 0
          %v4377 = vsel %vm1557, %v4370, 0
          %v4380 = vsel %vm1557, %v4371, 0
          %v4383 = vsel %vm1557, %v4372, 0
          %v4386 = vsel %vm2033, %v900, 0
          %4388 = vmatprep.subr.bf16.mxu0 0
          %4389 = vmatpush1.bf16.msra.mxu0 0
          %4390 = vmatprep.subr.bf16.mxu0 0
          %4391 = vmatpush1.bf16.msra.mxu0 0
          %4392 = vmatprep.subr.bf16.mxu0 0
          %4393 = vmatpush1.bf16.msra.mxu0 0
          %4394 = vmatprep.subr.bf16.mxu0 0
          %4395 = vmatpush1.bf16.msra.mxu0 0
          %4396 = vmatprep.subr.bf16.mxu0 0
          %4397 = vmatpush1.bf16.msra.mxu0 0
          %4398 = vmatprep.subr.bf16.mxu0 0
          %4399 = vmatpush1.bf16.msra.mxu0 0
          %4400 = vmatprep.subr.bf16.mxu0 0
          %4401 = vmatpush1.bf16.msra.mxu0 0
          %4402 = vmatprep.subr.bf16.mxu0 0
          %4403 = vmatpush1.bf16.msra.mxu0 %v4386
          %4404 = vmatprep.subr.bf16.mxu0 0
          %4405 = vmatpush2.bf16.msra.mxu0 0
          %4406 = vmatprep.subr.bf16.mxu0 0
          %4407 = vmatpush2.bf16.msra.mxu0 0
          %4408 = vmatprep.subr.bf16.mxu0 0
          %4409 = vmatpush2.bf16.msra.mxu0 0
          %4410 = vmatprep.subr.bf16.mxu0 0
          %4411 = vmatpush2.bf16.msra.mxu0 0
          %4412 = vmatprep.subr.bf16.mxu0 0
          %4413 = vmatpush2.bf16.msra.mxu0 0
          %4414 = vmatprep.subr.bf16.mxu0 0
          %4415 = vmatpush2.bf16.msra.mxu0 0
          %4416 = vmatprep.subr.bf16.mxu0 0
          %4417 = vmatpush2.bf16.msra.mxu0 0
          %4418 = vmatprep.subr.bf16.mxu0 0
          %4419 = vmatpush2.bf16.msra.mxu0 0
          %4420 = vmatprep.mubr.bf16.mxu0 0
          %4421 = vmatmul.mubr.bf16.gmra.mxu0 %v4374
          %v4422 = vpop.f32.mrf.mxu0
          %v4423 = vadd.f32 0.0, %v4422
          %v4424 = vpop.f32.mrf.mxu0
          %v4425 = vpop.f32.mrf.mxu0
          %v4426 = vadd.f32 0.0, %v4425
          %v4427 = vpop.f32.mrf.mxu0
          %4428 = vmatprep.mubr.bf16.mxu0 0
          %4429 = vmatmul.mubr.bf16.gmra.mxu0 %v4377
          %v4430 = vpop.f32.mrf.mxu0
          %v4431 = vadd.f32 0.0, %v4430
          %v4432 = vpop.f32.mrf.mxu0
          %v4433 = vpop.f32.mrf.mxu0
          %v4434 = vadd.f32 0.0, %v4433
          %v4435 = vpop.f32.mrf.mxu0
          %4436 = vmatprep.mubr.bf16.mxu0 0
          %4437 = vmatmul.mubr.bf16.gmra.mxu0 %v4380
          %v4438 = vpop.f32.mrf.mxu0
          %v4439 = vadd.f32 0.0, %v4438
          %v4440 = vpop.f32.mrf.mxu0
          %v4441 = vpop.f32.mrf.mxu0
          %v4442 = vadd.f32 0.0, %v4441
          %v4443 = vpop.f32.mrf.mxu0
          %4444 = vmatprep.mubr.bf16.mxu0 0
          %4445 = vmatmul.mubr.bf16.gmra.mxu0 %v4383
          %v4446 = vpop.f32.mrf.mxu0
          %v4447 = vadd.f32 0.0, %v4446
          %v4448 = vpop.f32.mrf.mxu0
          %v4449 = vpop.f32.mrf.mxu0
          %v4450 = vadd.f32 0.0, %v4449
          %v4451 = vpop.f32.mrf.mxu0
          %4452 = vdwg.mxu0
          %v4453 = vadd.f32 %v3451, %v4423
          %v4454 = vadd.f32 %v3454, %v4426
          %v4455 = vadd.f32 %v3459, %v4431
          %v4456 = vadd.f32 %v3462, %v4434
          %v4457 = vadd.f32 %v3467, %v4439
          %v4458 = vadd.f32 %v3470, %v4442
          %v4459 = vadd.f32 %v3475, %v4447
          %v4460 = vadd.f32 %v3478, %v4450
          %4461 = vrot.lane.b32.xlu0 %v1533, 104
          %v4462 = vpop.permute.xlu0 %4461
          %4463 = vrot.lane.b32.xlu0 %v1541, 104
          %v4464 = vpop.permute.xlu0 %4463
          %v4466 = vsel %vm1557, %v4462, 0
          %v4469 = vsel %vm1557, %v4464, 0
          %4471 = vmatprep.subr.bf16.mxu0 0
          %4472 = vmatpush1.bf16.xpose.msra.mxu0 0
          %4473 = vmatprep.subr.bf16.mxu0 0
          %4474 = vmatpush1.bf16.xpose.msra.mxu0 0
          %4475 = vmatprep.subr.bf16.mxu0 0
          %4476 = vmatpush1.bf16.xpose.msra.mxu0 0
          %4477 = vmatprep.subr.bf16.mxu0 0
          %4478 = vmatpush1.bf16.xpose.msra.mxu0 0
          %4479 = vmatprep.subr.bf16.mxu0 0
          %4480 = vmatpush1.bf16.xpose.msra.mxu0 0
          %4481 = vmatprep.subr.bf16.mxu0 0
          %4482 = vmatpush1.bf16.xpose.msra.mxu0 0
          %4483 = vmatprep.subr.bf16.mxu0 0
          %4484 = vmatpush1.bf16.xpose.msra.mxu0 0
          %4485 = vmatprep.subr.bf16.mxu0 0
          %4486 = vmatpush1.bf16.xpose.msra.mxu0 %v4469
          %4487 = vmatprep.subr.bf16.mxu0 0
          %4488 = vmatpush2.bf16.xpose.msra.mxu0 0
          %4489 = vmatprep.subr.bf16.mxu0 0
          %4490 = vmatpush2.bf16.xpose.msra.mxu0 0
          %4491 = vmatprep.subr.bf16.mxu0 0
          %4492 = vmatpush2.bf16.xpose.msra.mxu0 0
          %4493 = vmatprep.subr.bf16.mxu0 0
          %4494 = vmatpush2.bf16.xpose.msra.mxu0 0
          %4495 = vmatprep.subr.bf16.mxu0 0
          %4496 = vmatpush2.bf16.xpose.msra.mxu0 0
          %4497 = vmatprep.subr.bf16.mxu0 0
          %4498 = vmatpush2.bf16.xpose.msra.mxu0 0
          %4499 = vmatprep.subr.bf16.mxu0 0
          %4500 = vmatpush2.bf16.xpose.msra.mxu0 0
          %4501 = vmatprep.subr.bf16.mxu0 0
          %4502 = vmatpush2.bf16.xpose.msra.mxu0 0
          %4503 = vmatprep.mubr.bf16.mxu0 0
          %4504 = vmatmul.mubr.bf16.gmra.mxu0 %v4466
          %v4505 = vpop.f32.mrf.mxu0
          %v4506 = vadd.f32 0.0, %v4505
          %v4507 = vpop.f32.mrf.mxu0
          %v4508 = vpop.f32.mrf.mxu0
          %v4509 = vpop.f32.mrf.mxu0
          %4510 = vdwg.mxu0
          %4511 = vrot.lane.b32.xlu0 %v1534, 104
          %v4512 = vpop.permute.xlu0 %4511
          %4513 = vrot.lane.b32.xlu0 %v1542, 104
          %v4514 = vpop.permute.xlu0 %4513
          %v4516 = vsel %vm1557, %v4512, 0
          %v4519 = vsel %vm1557, %v4514, 0
          %4521 = vmatprep.subr.bf16.mxu0 0
          %4522 = vmatpush1.bf16.xpose.msra.mxu0 0
          %4523 = vmatprep.subr.bf16.mxu0 0
          %4524 = vmatpush1.bf16.xpose.msra.mxu0 0
          %4525 = vmatprep.subr.bf16.mxu0 0
          %4526 = vmatpush1.bf16.xpose.msra.mxu0 0
          %4527 = vmatprep.subr.bf16.mxu0 0
          %4528 = vmatpush1.bf16.xpose.msra.mxu0 0
          %4529 = vmatprep.subr.bf16.mxu0 0
          %4530 = vmatpush1.bf16.xpose.msra.mxu0 0
          %4531 = vmatprep.subr.bf16.mxu0 0
          %4532 = vmatpush1.bf16.xpose.msra.mxu0 0
          %4533 = vmatprep.subr.bf16.mxu0 0
          %4534 = vmatpush1.bf16.xpose.msra.mxu0 0
          %4535 = vmatprep.subr.bf16.mxu0 0
          %4536 = vmatpush1.bf16.xpose.msra.mxu0 %v4519
          %4537 = vmatprep.subr.bf16.mxu0 0
          %4538 = vmatpush2.bf16.xpose.msra.mxu0 0
          %4539 = vmatprep.subr.bf16.mxu0 0
          %4540 = vmatpush2.bf16.xpose.msra.mxu0 0
          %4541 = vmatprep.subr.bf16.mxu0 0
          %4542 = vmatpush2.bf16.xpose.msra.mxu0 0
          %4543 = vmatprep.subr.bf16.mxu0 0
          %4544 = vmatpush2.bf16.xpose.msra.mxu0 0
          %4545 = vmatprep.subr.bf16.mxu0 0
          %4546 = vmatpush2.bf16.xpose.msra.mxu0 0
          %4547 = vmatprep.subr.bf16.mxu0 0
          %4548 = vmatpush2.bf16.xpose.msra.mxu0 0
          %4549 = vmatprep.subr.bf16.mxu0 0
          %4550 = vmatpush2.bf16.xpose.msra.mxu0 0
          %4551 = vmatprep.subr.bf16.mxu0 0
          %4552 = vmatpush2.bf16.xpose.msra.mxu0 0
          %4553 = vmatprep.mubr.bf16.mxu0 0
          %4554 = vmatmul.mubr.bf16.gmra.mxu0 %v4516
          %v4555 = vpop.f32.mrf.mxu0
          %v4556 = vadd.f32 0.0, %v4555
          %v4557 = vpop.f32.mrf.mxu0
          %v4558 = vpop.f32.mrf.mxu0
          %v4559 = vpop.f32.mrf.mxu0
          %4560 = vdwg.mxu0
          %4561 = vrot.lane.b32.xlu0 %v1535, 104
          %v4562 = vpop.permute.xlu0 %4561
          %4563 = vrot.lane.b32.xlu0 %v1543, 104
          %v4564 = vpop.permute.xlu0 %4563
          %v4566 = vsel %vm1557, %v4562, 0
          %v4569 = vsel %vm1557, %v4564, 0
          %4571 = vmatprep.subr.bf16.mxu0 0
          %4572 = vmatpush1.bf16.xpose.msra.mxu0 0
          %4573 = vmatprep.subr.bf16.mxu0 0
          %4574 = vmatpush1.bf16.xpose.msra.mxu0 0
          %4575 = vmatprep.subr.bf16.mxu0 0
          %4576 = vmatpush1.bf16.xpose.msra.mxu0 0
          %4577 = vmatprep.subr.bf16.mxu0 0
          %4578 = vmatpush1.bf16.xpose.msra.mxu0 0
          %4579 = vmatprep.subr.bf16.mxu0 0
          %4580 = vmatpush1.bf16.xpose.msra.mxu0 0
          %4581 = vmatprep.subr.bf16.mxu0 0
          %4582 = vmatpush1.bf16.xpose.msra.mxu0 0
          %4583 = vmatprep.subr.bf16.mxu0 0
          %4584 = vmatpush1.bf16.xpose.msra.mxu0 0
          %4585 = vmatprep.subr.bf16.mxu0 0
          %4586 = vmatpush1.bf16.xpose.msra.mxu0 %v4569
          %4587 = vmatprep.subr.bf16.mxu0 0
          %4588 = vmatpush2.bf16.xpose.msra.mxu0 0
          %4589 = vmatprep.subr.bf16.mxu0 0
          %4590 = vmatpush2.bf16.xpose.msra.mxu0 0
          %4591 = vmatprep.subr.bf16.mxu0 0
          %4592 = vmatpush2.bf16.xpose.msra.mxu0 0
          %4593 = vmatprep.subr.bf16.mxu0 0
          %4594 = vmatpush2.bf16.xpose.msra.mxu0 0
          %4595 = vmatprep.subr.bf16.mxu0 0
          %4596 = vmatpush2.bf16.xpose.msra.mxu0 0
          %4597 = vmatprep.subr.bf16.mxu0 0
          %4598 = vmatpush2.bf16.xpose.msra.mxu0 0
          %4599 = vmatprep.subr.bf16.mxu0 0
          %4600 = vmatpush2.bf16.xpose.msra.mxu0 0
          %4601 = vmatprep.subr.bf16.mxu0 0
          %4602 = vmatpush2.bf16.xpose.msra.mxu0 0
          %4603 = vmatprep.mubr.bf16.mxu0 0
          %4604 = vmatmul.mubr.bf16.gmra.mxu0 %v4566
          %v4605 = vpop.f32.mrf.mxu0
          %v4606 = vadd.f32 0.0, %v4605
          %v4607 = vpop.f32.mrf.mxu0
          %v4608 = vpop.f32.mrf.mxu0
          %v4609 = vpop.f32.mrf.mxu0
          %4610 = vdwg.mxu0
          %4611 = vrot.lane.b32.xlu0 %v1536, 104
          %v4612 = vpop.permute.xlu0 %4611
          %4613 = vrot.lane.b32.xlu0 %v1544, 104
          %v4614 = vpop.permute.xlu0 %4613
          %v4616 = vsel %vm1557, %v4612, 0
          %v4619 = vsel %vm1557, %v4614, 0
          %4621 = vmatprep.subr.bf16.mxu0 0
          %4622 = vmatpush1.bf16.xpose.msra.mxu0 0
          %4623 = vmatprep.subr.bf16.mxu0 0
          %4624 = vmatpush1.bf16.xpose.msra.mxu0 0
          %4625 = vmatprep.subr.bf16.mxu0 0
          %4626 = vmatpush1.bf16.xpose.msra.mxu0 0
          %4627 = vmatprep.subr.bf16.mxu0 0
          %4628 = vmatpush1.bf16.xpose.msra.mxu0 0
          %4629 = vmatprep.subr.bf16.mxu0 0
          %4630 = vmatpush1.bf16.xpose.msra.mxu0 0
          %4631 = vmatprep.subr.bf16.mxu0 0
          %4632 = vmatpush1.bf16.xpose.msra.mxu0 0
          %4633 = vmatprep.subr.bf16.mxu0 0
          %4634 = vmatpush1.bf16.xpose.msra.mxu0 0
          %4635 = vmatprep.subr.bf16.mxu0 0
          %4636 = vmatpush1.bf16.xpose.msra.mxu0 %v4619
          %4637 = vmatprep.subr.bf16.mxu0 0
          %4638 = vmatpush2.bf16.xpose.msra.mxu0 0
          %4639 = vmatprep.subr.bf16.mxu0 0
          %4640 = vmatpush2.bf16.xpose.msra.mxu0 0
          %4641 = vmatprep.subr.bf16.mxu0 0
          %4642 = vmatpush2.bf16.xpose.msra.mxu0 0
          %4643 = vmatprep.subr.bf16.mxu0 0
          %4644 = vmatpush2.bf16.xpose.msra.mxu0 0
          %4645 = vmatprep.subr.bf16.mxu0 0
          %4646 = vmatpush2.bf16.xpose.msra.mxu0 0
          %4647 = vmatprep.subr.bf16.mxu0 0
          %4648 = vmatpush2.bf16.xpose.msra.mxu0 0
          %4649 = vmatprep.subr.bf16.mxu0 0
          %4650 = vmatpush2.bf16.xpose.msra.mxu0 0
          %4651 = vmatprep.subr.bf16.mxu0 0
          %4652 = vmatpush2.bf16.xpose.msra.mxu0 0
          %4653 = vmatprep.mubr.bf16.mxu0 0
          %4654 = vmatmul.mubr.bf16.gmra.mxu0 %v4616
          %v4655 = vpop.f32.mrf.mxu0
          %v4656 = vadd.f32 0.0, %v4655
          %v4657 = vpop.f32.mrf.mxu0
          %v4658 = vpop.f32.mrf.mxu0
          %v4659 = vpop.f32.mrf.mxu0
          %4660 = vdwg.mxu0
          %4661 = vrot.lane.b32.xlu0 %v1537, 104
          %v4662 = vpop.permute.xlu0 %4661
          %4663 = vrot.lane.b32.xlu0 %v1545, 104
          %v4664 = vpop.permute.xlu0 %4663
          %v4666 = vsel %vm1557, %v4662, 0
          %v4669 = vsel %vm1557, %v4664, 0
          %4671 = vmatprep.subr.bf16.mxu0 0
          %4672 = vmatpush1.bf16.xpose.msra.mxu0 0
          %4673 = vmatprep.subr.bf16.mxu0 0
          %4674 = vmatpush1.bf16.xpose.msra.mxu0 0
          %4675 = vmatprep.subr.bf16.mxu0 0
          %4676 = vmatpush1.bf16.xpose.msra.mxu0 0
          %4677 = vmatprep.subr.bf16.mxu0 0
          %4678 = vmatpush1.bf16.xpose.msra.mxu0 0
          %4679 = vmatprep.subr.bf16.mxu0 0
          %4680 = vmatpush1.bf16.xpose.msra.mxu0 0
          %4681 = vmatprep.subr.bf16.mxu0 0
          %4682 = vmatpush1.bf16.xpose.msra.mxu0 0
          %4683 = vmatprep.subr.bf16.mxu0 0
          %4684 = vmatpush1.bf16.xpose.msra.mxu0 0
          %4685 = vmatprep.subr.bf16.mxu0 0
          %4686 = vmatpush1.bf16.xpose.msra.mxu0 %v4669
          %4687 = vmatprep.subr.bf16.mxu0 0
          %4688 = vmatpush2.bf16.xpose.msra.mxu0 0
          %4689 = vmatprep.subr.bf16.mxu0 0
          %4690 = vmatpush2.bf16.xpose.msra.mxu0 0
          %4691 = vmatprep.subr.bf16.mxu0 0
          %4692 = vmatpush2.bf16.xpose.msra.mxu0 0
          %4693 = vmatprep.subr.bf16.mxu0 0
          %4694 = vmatpush2.bf16.xpose.msra.mxu0 0
          %4695 = vmatprep.subr.bf16.mxu0 0
          %4696 = vmatpush2.bf16.xpose.msra.mxu0 0
          %4697 = vmatprep.subr.bf16.mxu0 0
          %4698 = vmatpush2.bf16.xpose.msra.mxu0 0
          %4699 = vmatprep.subr.bf16.mxu0 0
          %4700 = vmatpush2.bf16.xpose.msra.mxu0 0
          %4701 = vmatprep.subr.bf16.mxu0 0
          %4702 = vmatpush2.bf16.xpose.msra.mxu0 0
          %4703 = vmatprep.mubr.bf16.mxu0 0
          %4704 = vmatmul.mubr.bf16.gmra.mxu0 %v4666
          %v4705 = vpop.f32.mrf.mxu0
          %v4706 = vadd.f32 0.0, %v4705
          %v4707 = vpop.f32.mrf.mxu0
          %v4708 = vpop.f32.mrf.mxu0
          %v4709 = vpop.f32.mrf.mxu0
          %4710 = vdwg.mxu0
          %4711 = vrot.lane.b32.xlu0 %v1538, 104
          %v4712 = vpop.permute.xlu0 %4711
          %4713 = vrot.lane.b32.xlu0 %v1546, 104
          %v4714 = vpop.permute.xlu0 %4713
          %v4716 = vsel %vm1557, %v4712, 0
          %v4719 = vsel %vm1557, %v4714, 0
          %4721 = vmatprep.subr.bf16.mxu0 0
          %4722 = vmatpush1.bf16.xpose.msra.mxu0 0
          %4723 = vmatprep.subr.bf16.mxu0 0
          %4724 = vmatpush1.bf16.xpose.msra.mxu0 0
          %4725 = vmatprep.subr.bf16.mxu0 0
          %4726 = vmatpush1.bf16.xpose.msra.mxu0 0
          %4727 = vmatprep.subr.bf16.mxu0 0
          %4728 = vmatpush1.bf16.xpose.msra.mxu0 0
          %4729 = vmatprep.subr.bf16.mxu0 0
          %4730 = vmatpush1.bf16.xpose.msra.mxu0 0
          %4731 = vmatprep.subr.bf16.mxu0 0
          %4732 = vmatpush1.bf16.xpose.msra.mxu0 0
          %4733 = vmatprep.subr.bf16.mxu0 0
          %4734 = vmatpush1.bf16.xpose.msra.mxu0 0
          %4735 = vmatprep.subr.bf16.mxu0 0
          %4736 = vmatpush1.bf16.xpose.msra.mxu0 %v4719
          %4737 = vmatprep.subr.bf16.mxu0 0
          %4738 = vmatpush2.bf16.xpose.msra.mxu0 0
          %4739 = vmatprep.subr.bf16.mxu0 0
          %4740 = vmatpush2.bf16.xpose.msra.mxu0 0
          %4741 = vmatprep.subr.bf16.mxu0 0
          %4742 = vmatpush2.bf16.xpose.msra.mxu0 0
          %4743 = vmatprep.subr.bf16.mxu0 0
          %4744 = vmatpush2.bf16.xpose.msra.mxu0 0
          %4745 = vmatprep.subr.bf16.mxu0 0
          %4746 = vmatpush2.bf16.xpose.msra.mxu0 0
          %4747 = vmatprep.subr.bf16.mxu0 0
          %4748 = vmatpush2.bf16.xpose.msra.mxu0 0
          %4749 = vmatprep.subr.bf16.mxu0 0
          %4750 = vmatpush2.bf16.xpose.msra.mxu0 0
          %4751 = vmatprep.subr.bf16.mxu0 0
          %4752 = vmatpush2.bf16.xpose.msra.mxu0 0
          %4753 = vmatprep.mubr.bf16.mxu0 0
          %4754 = vmatmul.mubr.bf16.gmra.mxu0 %v4716
          %v4755 = vpop.f32.mrf.mxu0
          %v4756 = vadd.f32 0.0, %v4755
          %v4757 = vpop.f32.mrf.mxu0
          %v4758 = vpop.f32.mrf.mxu0
          %v4759 = vpop.f32.mrf.mxu0
          %4760 = vdwg.mxu0
          %4761 = vrot.lane.b32.xlu0 %v1539, 104
          %v4762 = vpop.permute.xlu0 %4761
          %4763 = vrot.lane.b32.xlu0 %v1547, 104
          %v4764 = vpop.permute.xlu0 %4763
          %v4766 = vsel %vm1557, %v4762, 0
          %v4769 = vsel %vm1557, %v4764, 0
          %4771 = vmatprep.subr.bf16.mxu0 0
          %4772 = vmatpush1.bf16.xpose.msra.mxu0 0
          %4773 = vmatprep.subr.bf16.mxu0 0
          %4774 = vmatpush1.bf16.xpose.msra.mxu0 0
          %4775 = vmatprep.subr.bf16.mxu0 0
          %4776 = vmatpush1.bf16.xpose.msra.mxu0 0
          %4777 = vmatprep.subr.bf16.mxu0 0
          %4778 = vmatpush1.bf16.xpose.msra.mxu0 0
          %4779 = vmatprep.subr.bf16.mxu0 0
          %4780 = vmatpush1.bf16.xpose.msra.mxu0 0
          %4781 = vmatprep.subr.bf16.mxu0 0
          %4782 = vmatpush1.bf16.xpose.msra.mxu0 0
          %4783 = vmatprep.subr.bf16.mxu0 0
          %4784 = vmatpush1.bf16.xpose.msra.mxu0 0
          %4785 = vmatprep.subr.bf16.mxu0 0
          %4786 = vmatpush1.bf16.xpose.msra.mxu0 %v4769
          %4787 = vmatprep.subr.bf16.mxu0 0
          %4788 = vmatpush2.bf16.xpose.msra.mxu0 0
          %4789 = vmatprep.subr.bf16.mxu0 0
          %4790 = vmatpush2.bf16.xpose.msra.mxu0 0
          %4791 = vmatprep.subr.bf16.mxu0 0
          %4792 = vmatpush2.bf16.xpose.msra.mxu0 0
          %4793 = vmatprep.subr.bf16.mxu0 0
          %4794 = vmatpush2.bf16.xpose.msra.mxu0 0
          %4795 = vmatprep.subr.bf16.mxu0 0
          %4796 = vmatpush2.bf16.xpose.msra.mxu0 0
          %4797 = vmatprep.subr.bf16.mxu0 0
          %4798 = vmatpush2.bf16.xpose.msra.mxu0 0
          %4799 = vmatprep.subr.bf16.mxu0 0
          %4800 = vmatpush2.bf16.xpose.msra.mxu0 0
          %4801 = vmatprep.subr.bf16.mxu0 0
          %4802 = vmatpush2.bf16.xpose.msra.mxu0 0
          %4803 = vmatprep.mubr.bf16.mxu0 0
          %4804 = vmatmul.mubr.bf16.gmra.mxu0 %v4766
          %v4805 = vpop.f32.mrf.mxu0
          %v4806 = vadd.f32 0.0, %v4805
          %v4807 = vpop.f32.mrf.mxu0
          %v4808 = vpop.f32.mrf.mxu0
          %v4809 = vpop.f32.mrf.mxu0
          %4810 = vdwg.mxu0
          %4811 = vrot.lane.b32.xlu0 %v1540, 104
          %v4812 = vpop.permute.xlu0 %4811
          %4813 = vrot.lane.b32.xlu0 %v1548, 104
          %v4814 = vpop.permute.xlu0 %4813
          %v4816 = vsel %vm1557, %v4812, 0
          %v4819 = vsel %vm1557, %v4814, 0
          %4821 = vmatprep.subr.bf16.mxu0 0
          %4822 = vmatpush1.bf16.xpose.msra.mxu0 0
          %4823 = vmatprep.subr.bf16.mxu0 0
          %4824 = vmatpush1.bf16.xpose.msra.mxu0 0
          %4825 = vmatprep.subr.bf16.mxu0 0
          %4826 = vmatpush1.bf16.xpose.msra.mxu0 0
          %4827 = vmatprep.subr.bf16.mxu0 0
          %4828 = vmatpush1.bf16.xpose.msra.mxu0 0
          %4829 = vmatprep.subr.bf16.mxu0 0
          %4830 = vmatpush1.bf16.xpose.msra.mxu0 0
          %4831 = vmatprep.subr.bf16.mxu0 0
          %4832 = vmatpush1.bf16.xpose.msra.mxu0 0
          %4833 = vmatprep.subr.bf16.mxu0 0
          %4834 = vmatpush1.bf16.xpose.msra.mxu0 0
          %4835 = vmatprep.subr.bf16.mxu0 0
          %4836 = vmatpush1.bf16.xpose.msra.mxu0 %v4819
          %4837 = vmatprep.subr.bf16.mxu0 0
          %4838 = vmatpush2.bf16.xpose.msra.mxu0 0
          %4839 = vmatprep.subr.bf16.mxu0 0
          %4840 = vmatpush2.bf16.xpose.msra.mxu0 0
          %4841 = vmatprep.subr.bf16.mxu0 0
          %4842 = vmatpush2.bf16.xpose.msra.mxu0 0
          %4843 = vmatprep.subr.bf16.mxu0 0
          %4844 = vmatpush2.bf16.xpose.msra.mxu0 0
          %4845 = vmatprep.subr.bf16.mxu0 0
          %4846 = vmatpush2.bf16.xpose.msra.mxu0 0
          %4847 = vmatprep.subr.bf16.mxu0 0
          %4848 = vmatpush2.bf16.xpose.msra.mxu0 0
          %4849 = vmatprep.subr.bf16.mxu0 0
          %4850 = vmatpush2.bf16.xpose.msra.mxu0 0
          %4851 = vmatprep.subr.bf16.mxu0 0
          %4852 = vmatpush2.bf16.xpose.msra.mxu0 0
          %4853 = vmatprep.mubr.bf16.mxu0 0
          %4854 = vmatmul.mubr.bf16.gmra.mxu0 %v4816
          %v4855 = vpop.f32.mrf.mxu0
          %v4856 = vadd.f32 0.0, %v4855
          %v4857 = vpop.f32.mrf.mxu0
          %v4858 = vpop.f32.mrf.mxu0
          %v4859 = vpop.f32.mrf.mxu0
          %4860 = vdwg.mxu0
          %v4861 = vmul.f32 %v4506, 0.35355338
          %v4862 = vmul.f32 %v4556, 0.35355338
          %v4863 = vmul.f32 %v4606, 0.35355338
          %v4864 = vmul.f32 %v4656, 0.35355338
          %v4865 = vmul.f32 %v4706, 0.35355338
          %v4866 = vmul.f32 %v4756, 0.35355338
          %v4867 = vmul.f32 %v4806, 0.35355338
          %v4868 = vmul.f32 %v4856, 0.35355338
          %v4869 = vsel %vm1557, %v4861, -inf
          %4870 = vmax.xlane.f32.xlu0 %v4869
          %v4871 = vpop.xlane.xlu0 %4870
          %v4872 = vsel %vm1557, %v4862, -inf
          %4873 = vmax.xlane.f32.xlu0 %v4872
          %v4874 = vpop.xlane.xlu0 %4873
          %v4875 = vsel %vm1557, %v4863, -inf
          %4876 = vmax.xlane.f32.xlu0 %v4875
          %v4877 = vpop.xlane.xlu0 %4876
          %v4878 = vsel %vm1557, %v4864, -inf
          %4879 = vmax.xlane.f32.xlu0 %v4878
          %v4880 = vpop.xlane.xlu0 %4879
          %v4881 = vsel %vm1557, %v4865, -inf
          %4882 = vmax.xlane.f32.xlu0 %v4881
          %v4883 = vpop.xlane.xlu0 %4882
          %v4884 = vsel %vm1557, %v4866, -inf
          %4885 = vmax.xlane.f32.xlu0 %v4884
          %v4886 = vpop.xlane.xlu0 %4885
          %v4887 = vsel %vm1557, %v4867, -inf
          %4888 = vmax.xlane.f32.xlu0 %v4887
          %v4889 = vpop.xlane.xlu0 %4888
          %v4890 = vsel %vm1557, %v4868, -inf
          %4891 = vmax.xlane.f32.xlu0 %v4890
          %v4892 = vpop.xlane.xlu0 %4891
          %v4893 = vsub.f32 %v4861, %v4871
          %v4894 = vsub.f32 %v4862, %v4874
          %v4895 = vsub.f32 %v4863, %v4877
          %v4896 = vsub.f32 %v4864, %v4880
          %v4897 = vsub.f32 %v4865, %v4883
          %v4898 = vsub.f32 %v4866, %v4886
          %v4899 = vsub.f32 %v4867, %v4889
          %v4900 = vsub.f32 %v4868, %v4892
          %v4901 = vmul.f32 %v4893, 1.442695
          %v4902 = vpow.pop %v4901
          %v4903 = vmul.f32 %v4894, 1.442695
          %v4904 = vpow.pop %v4903
          %v4905 = vmul.f32 %v4895, 1.442695
          %v4906 = vpow.pop %v4905
          %v4907 = vmul.f32 %v4896, 1.442695
          %v4908 = vpow.pop %v4907
          %v4909 = vmul.f32 %v4897, 1.442695
          %v4910 = vpow.pop %v4909
          %v4911 = vmul.f32 %v4898, 1.442695
          %v4912 = vpow.pop %v4911
          %v4913 = vmul.f32 %v4899, 1.442695
          %v4914 = vpow.pop %v4913
          %v4915 = vmul.f32 %v4900, 1.442695
          %v4916 = vpow.pop %v4915
          %v4917 = vsel %vm1557, %v4902, 0.0
          %4918 = vadd.xlane.f32.xlu0 %v4917
          %v4919 = vpop.xlane.xlu0 %4918
          %v4920 = vsel %vm1557, %v4904, 0.0
          %4921 = vadd.xlane.f32.xlu0 %v4920
          %v4922 = vpop.xlane.xlu0 %4921
          %v4923 = vsel %vm1557, %v4906, 0.0
          %4924 = vadd.xlane.f32.xlu0 %v4923
          %v4925 = vpop.xlane.xlu0 %4924
          %v4926 = vsel %vm1557, %v4908, 0.0
          %4927 = vadd.xlane.f32.xlu0 %v4926
          %v4928 = vpop.xlane.xlu0 %4927
          %v4929 = vsel %vm1557, %v4910, 0.0
          %4930 = vadd.xlane.f32.xlu0 %v4929
          %v4931 = vpop.xlane.xlu0 %4930
          %v4932 = vsel %vm1557, %v4912, 0.0
          %4933 = vadd.xlane.f32.xlu0 %v4932
          %v4934 = vpop.xlane.xlu0 %4933
          %v4935 = vsel %vm1557, %v4914, 0.0
          %4936 = vadd.xlane.f32.xlu0 %v4935
          %v4937 = vpop.xlane.xlu0 %4936
          %v4938 = vsel %vm1557, %v4916, 0.0
          %4939 = vadd.xlane.f32.xlu0 %v4938
          %v4940 = vpop.xlane.xlu0 %4939
          %v4941 = vrcp.pop %v4919
          %v4942 = vrcp.pop %v4922
          %v4943 = vrcp.pop %v4925
          %v4944 = vrcp.pop %v4928
          %v4945 = vrcp.pop %v4931
          %v4946 = vrcp.pop %v4934
          %v4947 = vrcp.pop %v4937
          %v4948 = vrcp.pop %v4940
          %v4949 = vmul.f32 %v4902, %v4941
          %v4950 = vmul.f32 %v4904, %v4942
          %v4951 = vmul.f32 %v4906, %v4943
          %v4952 = vmul.f32 %v4908, %v4944
          %v4953 = vmul.f32 %v4910, %v4945
          %v4954 = vmul.f32 %v4912, %v4946
          %v4955 = vmul.f32 %v4914, %v4947
          %v4956 = vmul.f32 %v4916, %v4948
          %v4957 = vpack.c.bf16 %v4949, %v4949
          %v4958 = vpack.c.bf16 %v4950, %v4950
          %v4959 = vpack.c.bf16 %v4951, %v4951
          %v4960 = vpack.c.bf16 %v4952, %v4952
          %v4961 = vpack.c.bf16 %v4953, %v4953
          %v4962 = vpack.c.bf16 %v4954, %v4954
          %v4963 = vpack.c.bf16 %v4955, %v4955
          %v4964 = vpack.c.bf16 %v4956, %v4956
          %4965 = vrot.lane.b32.xlu0 %v1549, 104
          %v4966 = vpop.permute.xlu0 %4965
          %v4968 = vsel %vm1557, %v4957, 0
          %v4971 = vsel %vm2033, %v4966, 0
          %4973 = vmatprep.subr.bf16.mxu0 0
          %4974 = vmatpush1.bf16.msra.mxu0 0
          %4975 = vmatprep.subr.bf16.mxu0 0
          %4976 = vmatpush1.bf16.msra.mxu0 0
          %4977 = vmatprep.subr.bf16.mxu0 0
          %4978 = vmatpush1.bf16.msra.mxu0 0
          %4979 = vmatprep.subr.bf16.mxu0 0
          %4980 = vmatpush1.bf16.msra.mxu0 0
          %4981 = vmatprep.subr.bf16.mxu0 0
          %4982 = vmatpush1.bf16.msra.mxu0 0
          %4983 = vmatprep.subr.bf16.mxu0 0
          %4984 = vmatpush1.bf16.msra.mxu0 0
          %4985 = vmatprep.subr.bf16.mxu0 0
          %4986 = vmatpush1.bf16.msra.mxu0 0
          %4987 = vmatprep.subr.bf16.mxu0 0
          %4988 = vmatpush1.bf16.msra.mxu0 %v4971
          %4989 = vmatprep.subr.bf16.mxu0 0
          %4990 = vmatpush2.bf16.msra.mxu0 0
          %4991 = vmatprep.subr.bf16.mxu0 0
          %4992 = vmatpush2.bf16.msra.mxu0 0
          %4993 = vmatprep.subr.bf16.mxu0 0
          %4994 = vmatpush2.bf16.msra.mxu0 0
          %4995 = vmatprep.subr.bf16.mxu0 0
          %4996 = vmatpush2.bf16.msra.mxu0 0
          %4997 = vmatprep.subr.bf16.mxu0 0
          %4998 = vmatpush2.bf16.msra.mxu0 0
          %4999 = vmatprep.subr.bf16.mxu0 0
          %5000 = vmatpush2.bf16.msra.mxu0 0
          %5001 = vmatprep.subr.bf16.mxu0 0
          %5002 = vmatpush2.bf16.msra.mxu0 0
          %5003 = vmatprep.subr.bf16.mxu0 0
          %5004 = vmatpush2.bf16.msra.mxu0 0
          %5005 = vmatprep.mubr.bf16.mxu0 0
          %5006 = vmatmul.mubr.bf16.gmra.mxu0 %v4968
          %v5007 = vpop.f32.mrf.mxu0
          %v5008 = vadd.f32 0.0, %v5007
          %v5009 = vpop.f32.mrf.mxu0
          %v5010 = vpop.f32.mrf.mxu0
          %v5011 = vpop.f32.mrf.mxu0
          %5012 = vdwg.mxu0
          %5013 = vrot.lane.b32.xlu0 %v1550, 104
          %v5014 = vpop.permute.xlu0 %5013
          %v5016 = vsel %vm1557, %v4958, 0
          %v5019 = vsel %vm2033, %v5014, 0
          %5021 = vmatprep.subr.bf16.mxu0 0
          %5022 = vmatpush1.bf16.msra.mxu0 0
          %5023 = vmatprep.subr.bf16.mxu0 0
          %5024 = vmatpush1.bf16.msra.mxu0 0
          %5025 = vmatprep.subr.bf16.mxu0 0
          %5026 = vmatpush1.bf16.msra.mxu0 0
          %5027 = vmatprep.subr.bf16.mxu0 0
          %5028 = vmatpush1.bf16.msra.mxu0 0
          %5029 = vmatprep.subr.bf16.mxu0 0
          %5030 = vmatpush1.bf16.msra.mxu0 0
          %5031 = vmatprep.subr.bf16.mxu0 0
          %5032 = vmatpush1.bf16.msra.mxu0 0
          %5033 = vmatprep.subr.bf16.mxu0 0
          %5034 = vmatpush1.bf16.msra.mxu0 0
          %5035 = vmatprep.subr.bf16.mxu0 0
          %5036 = vmatpush1.bf16.msra.mxu0 %v5019
          %5037 = vmatprep.subr.bf16.mxu0 0
          %5038 = vmatpush2.bf16.msra.mxu0 0
          %5039 = vmatprep.subr.bf16.mxu0 0
          %5040 = vmatpush2.bf16.msra.mxu0 0
          %5041 = vmatprep.subr.bf16.mxu0 0
          %5042 = vmatpush2.bf16.msra.mxu0 0
          %5043 = vmatprep.subr.bf16.mxu0 0
          %5044 = vmatpush2.bf16.msra.mxu0 0
          %5045 = vmatprep.subr.bf16.mxu0 0
          %5046 = vmatpush2.bf16.msra.mxu0 0
          %5047 = vmatprep.subr.bf16.mxu0 0
          %5048 = vmatpush2.bf16.msra.mxu0 0
          %5049 = vmatprep.subr.bf16.mxu0 0
          %5050 = vmatpush2.bf16.msra.mxu0 0
          %5051 = vmatprep.subr.bf16.mxu0 0
          %5052 = vmatpush2.bf16.msra.mxu0 0
          %5053 = vmatprep.mubr.bf16.mxu0 0
          %5054 = vmatmul.mubr.bf16.gmra.mxu0 %v5016
          %v5055 = vpop.f32.mrf.mxu0
          %v5056 = vadd.f32 0.0, %v5055
          %v5057 = vpop.f32.mrf.mxu0
          %v5058 = vpop.f32.mrf.mxu0
          %v5059 = vpop.f32.mrf.mxu0
          %5060 = vdwg.mxu0
          %5061 = vrot.lane.b32.xlu0 %v1551, 104
          %v5062 = vpop.permute.xlu0 %5061
          %v5064 = vsel %vm1557, %v4959, 0
          %v5067 = vsel %vm2033, %v5062, 0
          %5069 = vmatprep.subr.bf16.mxu0 0
          %5070 = vmatpush1.bf16.msra.mxu0 0
          %5071 = vmatprep.subr.bf16.mxu0 0
          %5072 = vmatpush1.bf16.msra.mxu0 0
          %5073 = vmatprep.subr.bf16.mxu0 0
          %5074 = vmatpush1.bf16.msra.mxu0 0
          %5075 = vmatprep.subr.bf16.mxu0 0
          %5076 = vmatpush1.bf16.msra.mxu0 0
          %5077 = vmatprep.subr.bf16.mxu0 0
          %5078 = vmatpush1.bf16.msra.mxu0 0
          %5079 = vmatprep.subr.bf16.mxu0 0
          %5080 = vmatpush1.bf16.msra.mxu0 0
          %5081 = vmatprep.subr.bf16.mxu0 0
          %5082 = vmatpush1.bf16.msra.mxu0 0
          %5083 = vmatprep.subr.bf16.mxu0 0
          %5084 = vmatpush1.bf16.msra.mxu0 %v5067
          %5085 = vmatprep.subr.bf16.mxu0 0
          %5086 = vmatpush2.bf16.msra.mxu0 0
          %5087 = vmatprep.subr.bf16.mxu0 0
          %5088 = vmatpush2.bf16.msra.mxu0 0
          %5089 = vmatprep.subr.bf16.mxu0 0
          %5090 = vmatpush2.bf16.msra.mxu0 0
          %5091 = vmatprep.subr.bf16.mxu0 0
          %5092 = vmatpush2.bf16.msra.mxu0 0
          %5093 = vmatprep.subr.bf16.mxu0 0
          %5094 = vmatpush2.bf16.msra.mxu0 0
          %5095 = vmatprep.subr.bf16.mxu0 0
          %5096 = vmatpush2.bf16.msra.mxu0 0
          %5097 = vmatprep.subr.bf16.mxu0 0
          %5098 = vmatpush2.bf16.msra.mxu0 0
          %5099 = vmatprep.subr.bf16.mxu0 0
          %5100 = vmatpush2.bf16.msra.mxu0 0
          %5101 = vmatprep.mubr.bf16.mxu0 0
          %5102 = vmatmul.mubr.bf16.gmra.mxu0 %v5064
          %v5103 = vpop.f32.mrf.mxu0
          %v5104 = vadd.f32 0.0, %v5103
          %v5105 = vpop.f32.mrf.mxu0
          %v5106 = vpop.f32.mrf.mxu0
          %v5107 = vpop.f32.mrf.mxu0
          %5108 = vdwg.mxu0
          %5109 = vrot.lane.b32.xlu0 %v1552, 104
          %v5110 = vpop.permute.xlu0 %5109
          %v5112 = vsel %vm1557, %v4960, 0
          %v5115 = vsel %vm2033, %v5110, 0
          %5117 = vmatprep.subr.bf16.mxu0 0
          %5118 = vmatpush1.bf16.msra.mxu0 0
          %5119 = vmatprep.subr.bf16.mxu0 0
          %5120 = vmatpush1.bf16.msra.mxu0 0
          %5121 = vmatprep.subr.bf16.mxu0 0
          %5122 = vmatpush1.bf16.msra.mxu0 0
          %5123 = vmatprep.subr.bf16.mxu0 0
          %5124 = vmatpush1.bf16.msra.mxu0 0
          %5125 = vmatprep.subr.bf16.mxu0 0
          %5126 = vmatpush1.bf16.msra.mxu0 0
          %5127 = vmatprep.subr.bf16.mxu0 0
          %5128 = vmatpush1.bf16.msra.mxu0 0
          %5129 = vmatprep.subr.bf16.mxu0 0
          %5130 = vmatpush1.bf16.msra.mxu0 0
          %5131 = vmatprep.subr.bf16.mxu0 0
          %5132 = vmatpush1.bf16.msra.mxu0 %v5115
          %5133 = vmatprep.subr.bf16.mxu0 0
          %5134 = vmatpush2.bf16.msra.mxu0 0
          %5135 = vmatprep.subr.bf16.mxu0 0
          %5136 = vmatpush2.bf16.msra.mxu0 0
          %5137 = vmatprep.subr.bf16.mxu0 0
          %5138 = vmatpush2.bf16.msra.mxu0 0
          %5139 = vmatprep.subr.bf16.mxu0 0
          %5140 = vmatpush2.bf16.msra.mxu0 0
          %5141 = vmatprep.subr.bf16.mxu0 0
          %5142 = vmatpush2.bf16.msra.mxu0 0
          %5143 = vmatprep.subr.bf16.mxu0 0
          %5144 = vmatpush2.bf16.msra.mxu0 0
          %5145 = vmatprep.subr.bf16.mxu0 0
          %5146 = vmatpush2.bf16.msra.mxu0 0
          %5147 = vmatprep.subr.bf16.mxu0 0
          %5148 = vmatpush2.bf16.msra.mxu0 0
          %5149 = vmatprep.mubr.bf16.mxu0 0
          %5150 = vmatmul.mubr.bf16.gmra.mxu0 %v5112
          %v5151 = vpop.f32.mrf.mxu0
          %v5152 = vadd.f32 0.0, %v5151
          %v5153 = vpop.f32.mrf.mxu0
          %v5154 = vpop.f32.mrf.mxu0
          %v5155 = vpop.f32.mrf.mxu0
          %5156 = vdwg.mxu0
          %5157 = vrot.lane.b32.xlu0 %v1553, 104
          %v5158 = vpop.permute.xlu0 %5157
          %v5160 = vsel %vm1557, %v4961, 0
          %v5163 = vsel %vm2033, %v5158, 0
          %5165 = vmatprep.subr.bf16.mxu0 0
          %5166 = vmatpush1.bf16.msra.mxu0 0
          %5167 = vmatprep.subr.bf16.mxu0 0
          %5168 = vmatpush1.bf16.msra.mxu0 0
          %5169 = vmatprep.subr.bf16.mxu0 0
          %5170 = vmatpush1.bf16.msra.mxu0 0
          %5171 = vmatprep.subr.bf16.mxu0 0
          %5172 = vmatpush1.bf16.msra.mxu0 0
          %5173 = vmatprep.subr.bf16.mxu0 0
          %5174 = vmatpush1.bf16.msra.mxu0 0
          %5175 = vmatprep.subr.bf16.mxu0 0
          %5176 = vmatpush1.bf16.msra.mxu0 0
          %5177 = vmatprep.subr.bf16.mxu0 0
          %5178 = vmatpush1.bf16.msra.mxu0 0
          %5179 = vmatprep.subr.bf16.mxu0 0
          %5180 = vmatpush1.bf16.msra.mxu0 %v5163
          %5181 = vmatprep.subr.bf16.mxu0 0
          %5182 = vmatpush2.bf16.msra.mxu0 0
          %5183 = vmatprep.subr.bf16.mxu0 0
          %5184 = vmatpush2.bf16.msra.mxu0 0
          %5185 = vmatprep.subr.bf16.mxu0 0
          %5186 = vmatpush2.bf16.msra.mxu0 0
          %5187 = vmatprep.subr.bf16.mxu0 0
          %5188 = vmatpush2.bf16.msra.mxu0 0
          %5189 = vmatprep.subr.bf16.mxu0 0
          %5190 = vmatpush2.bf16.msra.mxu0 0
          %5191 = vmatprep.subr.bf16.mxu0 0
          %5192 = vmatpush2.bf16.msra.mxu0 0
          %5193 = vmatprep.subr.bf16.mxu0 0
          %5194 = vmatpush2.bf16.msra.mxu0 0
          %5195 = vmatprep.subr.bf16.mxu0 0
          %5196 = vmatpush2.bf16.msra.mxu0 0
          %5197 = vmatprep.mubr.bf16.mxu0 0
          %5198 = vmatmul.mubr.bf16.gmra.mxu0 %v5160
          %v5199 = vpop.f32.mrf.mxu0
          %v5200 = vadd.f32 0.0, %v5199
          %v5201 = vpop.f32.mrf.mxu0
          %v5202 = vpop.f32.mrf.mxu0
          %v5203 = vpop.f32.mrf.mxu0
          %5204 = vdwg.mxu0
          %5205 = vrot.lane.b32.xlu0 %v1554, 104
          %v5206 = vpop.permute.xlu0 %5205
          %v5208 = vsel %vm1557, %v4962, 0
          %v5211 = vsel %vm2033, %v5206, 0
          %5213 = vmatprep.subr.bf16.mxu0 0
          %5214 = vmatpush1.bf16.msra.mxu0 0
          %5215 = vmatprep.subr.bf16.mxu0 0
          %5216 = vmatpush1.bf16.msra.mxu0 0
          %5217 = vmatprep.subr.bf16.mxu0 0
          %5218 = vmatpush1.bf16.msra.mxu0 0
          %5219 = vmatprep.subr.bf16.mxu0 0
          %5220 = vmatpush1.bf16.msra.mxu0 0
          %5221 = vmatprep.subr.bf16.mxu0 0
          %5222 = vmatpush1.bf16.msra.mxu0 0
          %5223 = vmatprep.subr.bf16.mxu0 0
          %5224 = vmatpush1.bf16.msra.mxu0 0
          %5225 = vmatprep.subr.bf16.mxu0 0
          %5226 = vmatpush1.bf16.msra.mxu0 0
          %5227 = vmatprep.subr.bf16.mxu0 0
          %5228 = vmatpush1.bf16.msra.mxu0 %v5211
          %5229 = vmatprep.subr.bf16.mxu0 0
          %5230 = vmatpush2.bf16.msra.mxu0 0
          %5231 = vmatprep.subr.bf16.mxu0 0
          %5232 = vmatpush2.bf16.msra.mxu0 0
          %5233 = vmatprep.subr.bf16.mxu0 0
          %5234 = vmatpush2.bf16.msra.mxu0 0
          %5235 = vmatprep.subr.bf16.mxu0 0
          %5236 = vmatpush2.bf16.msra.mxu0 0
          %5237 = vmatprep.subr.bf16.mxu0 0
          %5238 = vmatpush2.bf16.msra.mxu0 0
          %5239 = vmatprep.subr.bf16.mxu0 0
          %5240 = vmatpush2.bf16.msra.mxu0 0
          %5241 = vmatprep.subr.bf16.mxu0 0
          %5242 = vmatpush2.bf16.msra.mxu0 0
          %5243 = vmatprep.subr.bf16.mxu0 0
          %5244 = vmatpush2.bf16.msra.mxu0 0
          %5245 = vmatprep.mubr.bf16.mxu0 0
          %5246 = vmatmul.mubr.bf16.gmra.mxu0 %v5208
          %v5247 = vpop.f32.mrf.mxu0
          %v5248 = vadd.f32 0.0, %v5247
          %v5249 = vpop.f32.mrf.mxu0
          %v5250 = vpop.f32.mrf.mxu0
          %v5251 = vpop.f32.mrf.mxu0
          %5252 = vdwg.mxu0
          %5253 = vrot.lane.b32.xlu0 %v1555, 104
          %v5254 = vpop.permute.xlu0 %5253
          %v5256 = vsel %vm1557, %v4963, 0
          %v5259 = vsel %vm2033, %v5254, 0
          %5261 = vmatprep.subr.bf16.mxu0 0
          %5262 = vmatpush1.bf16.msra.mxu0 0
          %5263 = vmatprep.subr.bf16.mxu0 0
          %5264 = vmatpush1.bf16.msra.mxu0 0
          %5265 = vmatprep.subr.bf16.mxu0 0
          %5266 = vmatpush1.bf16.msra.mxu0 0
          %5267 = vmatprep.subr.bf16.mxu0 0
          %5268 = vmatpush1.bf16.msra.mxu0 0
          %5269 = vmatprep.subr.bf16.mxu0 0
          %5270 = vmatpush1.bf16.msra.mxu0 0
          %5271 = vmatprep.subr.bf16.mxu0 0
          %5272 = vmatpush1.bf16.msra.mxu0 0
          %5273 = vmatprep.subr.bf16.mxu0 0
          %5274 = vmatpush1.bf16.msra.mxu0 0
          %5275 = vmatprep.subr.bf16.mxu0 0
          %5276 = vmatpush1.bf16.msra.mxu0 %v5259
          %5277 = vmatprep.subr.bf16.mxu0 0
          %5278 = vmatpush2.bf16.msra.mxu0 0
          %5279 = vmatprep.subr.bf16.mxu0 0
          %5280 = vmatpush2.bf16.msra.mxu0 0
          %5281 = vmatprep.subr.bf16.mxu0 0
          %5282 = vmatpush2.bf16.msra.mxu0 0
          %5283 = vmatprep.subr.bf16.mxu0 0
          %5284 = vmatpush2.bf16.msra.mxu0 0
          %5285 = vmatprep.subr.bf16.mxu0 0
          %5286 = vmatpush2.bf16.msra.mxu0 0
          %5287 = vmatprep.subr.bf16.mxu0 0
          %5288 = vmatpush2.bf16.msra.mxu0 0
          %5289 = vmatprep.subr.bf16.mxu0 0
          %5290 = vmatpush2.bf16.msra.mxu0 0
          %5291 = vmatprep.subr.bf16.mxu0 0
          %5292 = vmatpush2.bf16.msra.mxu0 0
          %5293 = vmatprep.mubr.bf16.mxu0 0
          %5294 = vmatmul.mubr.bf16.gmra.mxu0 %v5256
          %v5295 = vpop.f32.mrf.mxu0
          %v5296 = vadd.f32 0.0, %v5295
          %v5297 = vpop.f32.mrf.mxu0
          %v5298 = vpop.f32.mrf.mxu0
          %v5299 = vpop.f32.mrf.mxu0
          %5300 = vdwg.mxu0
          %5301 = vrot.lane.b32.xlu0 %v1556, 104
          %v5302 = vpop.permute.xlu0 %5301
          %v5304 = vsel %vm1557, %v4964, 0
          %v5307 = vsel %vm2033, %v5302, 0
          %5309 = vmatprep.subr.bf16.mxu0 0
          %5310 = vmatpush1.bf16.msra.mxu0 0
          %5311 = vmatprep.subr.bf16.mxu0 0
          %5312 = vmatpush1.bf16.msra.mxu0 0
          %5313 = vmatprep.subr.bf16.mxu0 0
          %5314 = vmatpush1.bf16.msra.mxu0 0
          %5315 = vmatprep.subr.bf16.mxu0 0
          %5316 = vmatpush1.bf16.msra.mxu0 0
          %5317 = vmatprep.subr.bf16.mxu0 0
          %5318 = vmatpush1.bf16.msra.mxu0 0
          %5319 = vmatprep.subr.bf16.mxu0 0
          %5320 = vmatpush1.bf16.msra.mxu0 0
          %5321 = vmatprep.subr.bf16.mxu0 0
          %5322 = vmatpush1.bf16.msra.mxu0 0
          %5323 = vmatprep.subr.bf16.mxu0 0
          %5324 = vmatpush1.bf16.msra.mxu0 %v5307
          %5325 = vmatprep.subr.bf16.mxu0 0
          %5326 = vmatpush2.bf16.msra.mxu0 0
          %5327 = vmatprep.subr.bf16.mxu0 0
          %5328 = vmatpush2.bf16.msra.mxu0 0
          %5329 = vmatprep.subr.bf16.mxu0 0
          %5330 = vmatpush2.bf16.msra.mxu0 0
          %5331 = vmatprep.subr.bf16.mxu0 0
          %5332 = vmatpush2.bf16.msra.mxu0 0
          %5333 = vmatprep.subr.bf16.mxu0 0
          %5334 = vmatpush2.bf16.msra.mxu0 0
          %5335 = vmatprep.subr.bf16.mxu0 0
          %5336 = vmatpush2.bf16.msra.mxu0 0
          %5337 = vmatprep.subr.bf16.mxu0 0
          %5338 = vmatpush2.bf16.msra.mxu0 0
          %5339 = vmatprep.subr.bf16.mxu0 0
          %5340 = vmatpush2.bf16.msra.mxu0 0
          %5341 = vmatprep.mubr.bf16.mxu0 0
          %5342 = vmatmul.mubr.bf16.gmra.mxu0 %v5304
          %v5343 = vpop.f32.mrf.mxu0
          %v5344 = vadd.f32 0.0, %v5343
          %v5345 = vpop.f32.mrf.mxu0
          %v5346 = vpop.f32.mrf.mxu0
          %v5347 = vpop.f32.mrf.mxu0
          %5348 = vdwg.mxu0
          %v5349 = vpack.c.bf16 %v5056, %v5008
          %v5350 = vpack.c.bf16 %v5152, %v5104
          %v5351 = vpack.c.bf16 %v5248, %v5200
          %v5352 = vpack.c.bf16 %v5344, %v5296
          %v5354 = vrot.slane %v900, 4
          %v5356 = vsel %vm1557, %v5349, 0
          %v5359 = vsel %vm1557, %v5350, 0
          %v5362 = vsel %vm1557, %v5351, 0
          %v5365 = vsel %vm1557, %v5352, 0
          %v5368 = vsel %vm2033, %v5354, 0
          %5370 = vmatprep.subr.bf16.mxu0 0
          %5371 = vmatpush1.bf16.msra.mxu0 0
          %5372 = vmatprep.subr.bf16.mxu0 0
          %5373 = vmatpush1.bf16.msra.mxu0 0
          %5374 = vmatprep.subr.bf16.mxu0 0
          %5375 = vmatpush1.bf16.msra.mxu0 0
          %5376 = vmatprep.subr.bf16.mxu0 0
          %5377 = vmatpush1.bf16.msra.mxu0 0
          %5378 = vmatprep.subr.bf16.mxu0 0
          %5379 = vmatpush1.bf16.msra.mxu0 0
          %5380 = vmatprep.subr.bf16.mxu0 0
          %5381 = vmatpush1.bf16.msra.mxu0 0
          %5382 = vmatprep.subr.bf16.mxu0 0
          %5383 = vmatpush1.bf16.msra.mxu0 0
          %5384 = vmatprep.subr.bf16.mxu0 0
          %5385 = vmatpush1.bf16.msra.mxu0 %v5368
          %5386 = vmatprep.subr.bf16.mxu0 0
          %5387 = vmatpush2.bf16.msra.mxu0 0
          %5388 = vmatprep.subr.bf16.mxu0 0
          %5389 = vmatpush2.bf16.msra.mxu0 0
          %5390 = vmatprep.subr.bf16.mxu0 0
          %5391 = vmatpush2.bf16.msra.mxu0 0
          %5392 = vmatprep.subr.bf16.mxu0 0
          %5393 = vmatpush2.bf16.msra.mxu0 0
          %5394 = vmatprep.subr.bf16.mxu0 0
          %5395 = vmatpush2.bf16.msra.mxu0 0
          %5396 = vmatprep.subr.bf16.mxu0 0
          %5397 = vmatpush2.bf16.msra.mxu0 0
          %5398 = vmatprep.subr.bf16.mxu0 0
          %5399 = vmatpush2.bf16.msra.mxu0 0
          %5400 = vmatprep.subr.bf16.mxu0 0
          %5401 = vmatpush2.bf16.msra.mxu0 0
          %5402 = vmatprep.mubr.bf16.mxu0 0
          %5403 = vmatmul.mubr.bf16.gmra.mxu0 %v5356
          %v5404 = vpop.f32.mrf.mxu0
          %v5405 = vadd.f32 0.0, %v5404
          %v5406 = vpop.f32.mrf.mxu0
          %v5407 = vpop.f32.mrf.mxu0
          %v5408 = vadd.f32 0.0, %v5407
          %v5409 = vpop.f32.mrf.mxu0
          %5410 = vmatprep.mubr.bf16.mxu0 0
          %5411 = vmatmul.mubr.bf16.gmra.mxu0 %v5359
          %v5412 = vpop.f32.mrf.mxu0
          %v5413 = vadd.f32 0.0, %v5412
          %v5414 = vpop.f32.mrf.mxu0
          %v5415 = vpop.f32.mrf.mxu0
          %v5416 = vadd.f32 0.0, %v5415
          %v5417 = vpop.f32.mrf.mxu0
          %5418 = vmatprep.mubr.bf16.mxu0 0
          %5419 = vmatmul.mubr.bf16.gmra.mxu0 %v5362
          %v5420 = vpop.f32.mrf.mxu0
          %v5421 = vadd.f32 0.0, %v5420
          %v5422 = vpop.f32.mrf.mxu0
          %v5423 = vpop.f32.mrf.mxu0
          %v5424 = vadd.f32 0.0, %v5423
          %v5425 = vpop.f32.mrf.mxu0
          %5426 = vmatprep.mubr.bf16.mxu0 0
          %5427 = vmatmul.mubr.bf16.gmra.mxu0 %v5365
          %v5428 = vpop.f32.mrf.mxu0
          %v5429 = vadd.f32 0.0, %v5428
          %v5430 = vpop.f32.mrf.mxu0
          %v5431 = vpop.f32.mrf.mxu0
          %v5432 = vadd.f32 0.0, %v5431
          %v5433 = vpop.f32.mrf.mxu0
          %5434 = vdwg.mxu0
          %v5435 = vadd.f32 %v4453, %v5405
          %v5436 = vadd.f32 %v4454, %v5408
          %v5437 = vadd.f32 %v4455, %v5413
          %v5438 = vadd.f32 %v4456, %v5416
          %v5439 = vadd.f32 %v4457, %v5421
          %v5440 = vadd.f32 %v4458, %v5424
          %v5441 = vadd.f32 %v4459, %v5429
          %v5442 = vadd.f32 %v4460, %v5432
          %v5444 = vlaneseq
          %v5445 = vshrl.u32 %v5444, 7
          %v5446 = vsub.s32 0, %v5445
          %v5447 = vrot.slane %v901, %v5446
          %v5449 = vadd.f32 %v5435, %v5447
          %v5450 = vadd.f32 %v5436, %v5447
          %v5451 = vadd.f32 %v5437, %v5447
          %v5452 = vadd.f32 %v5438, %v5447
          %v5453 = vadd.f32 %v5439, %v5447
          %v5454 = vadd.f32 %v5440, %v5447
          %v5455 = vadd.f32 %v5441, %v5447
          %v5456 = vadd.f32 %v5442, %v5447
          %v5457 = vadd.f32 %v987, %v5449
          %v5458 = vadd.f32 %v988, %v5450
          %v5459 = vadd.f32 %v989, %v5451
          %v5460 = vadd.f32 %v990, %v5452
          %v5461 = vadd.f32 %v991, %v5453
          %v5462 = vadd.f32 %v992, %v5454
          %v5463 = vadd.f32 %v993, %v5455
          %v5464 = vadd.f32 %v994, %v5456
          %v5465 = vsel %vm1009, %v5457, 0.0
          %5466 = vadd.xlane.f32.xlu0 %v5465
          %v5467 = vpop.xlane.xlu0 %5466
          %v5468 = vsel %vm1009, %v5458, 0.0
          %5469 = vadd.xlane.f32.xlu0 %v5468
          %v5470 = vpop.xlane.xlu0 %5469
          %v5471 = vsel %vm1009, %v5459, 0.0
          %5472 = vadd.xlane.f32.xlu0 %v5471
          %v5473 = vpop.xlane.xlu0 %5472
          %v5474 = vsel %vm1009, %v5460, 0.0
          %5475 = vadd.xlane.f32.xlu0 %v5474
          %v5476 = vpop.xlane.xlu0 %5475
          %v5477 = vsel %vm1009, %v5461, 0.0
          %5478 = vadd.xlane.f32.xlu0 %v5477
          %v5479 = vpop.xlane.xlu0 %5478
          %v5480 = vsel %vm1009, %v5462, 0.0
          %5481 = vadd.xlane.f32.xlu0 %v5480
          %v5482 = vpop.xlane.xlu0 %5481
          %v5483 = vsel %vm1009, %v5463, 0.0
          %5484 = vadd.xlane.f32.xlu0 %v5483
          %v5485 = vpop.xlane.xlu0 %5484
          %v5486 = vsel %vm1009, %v5464, 0.0
          %5487 = vadd.xlane.f32.xlu0 %v5486
          %v5488 = vpop.xlane.xlu0 %5487
          %v5489 = vrcp.pop 32.0
          %v5490 = vmul.f32 %v5467, %v5489
          %v5491 = vmul.f32 %v5470, %v5489
          %v5492 = vmul.f32 %v5473, %v5489
          %v5493 = vmul.f32 %v5476, %v5489
          %v5494 = vmul.f32 %v5479, %v5489
          %v5495 = vmul.f32 %v5482, %v5489
          %v5496 = vmul.f32 %v5485, %v5489
          %v5497 = vmul.f32 %v5488, %v5489
          %v5498 = vsub.f32 %v5457, %v5490
          %v5499 = vsub.f32 %v5458, %v5491
          %v5500 = vsub.f32 %v5459, %v5492
          %v5501 = vsub.f32 %v5460, %v5493
          %v5502 = vsub.f32 %v5461, %v5494
          %v5503 = vsub.f32 %v5462, %v5495
          %v5504 = vsub.f32 %v5463, %v5496
          %v5505 = vsub.f32 %v5464, %v5497
          %v5506 = vmul.f32 %v5498, %v5498
          %v5507 = vmul.f32 %v5499, %v5499
          %v5508 = vmul.f32 %v5500, %v5500
          %v5509 = vmul.f32 %v5501, %v5501
          %v5510 = vmul.f32 %v5502, %v5502
          %v5511 = vmul.f32 %v5503, %v5503
          %v5512 = vmul.f32 %v5504, %v5504
          %v5513 = vmul.f32 %v5505, %v5505
          %v5514 = vsel %vm1009, %v5506, 0.0
          %5515 = vadd.xlane.f32.xlu0 %v5514
          %v5516 = vpop.xlane.xlu0 %5515
          %v5517 = vsel %vm1009, %v5507, 0.0
          %5518 = vadd.xlane.f32.xlu0 %v5517
          %v5519 = vpop.xlane.xlu0 %5518
          %v5520 = vsel %vm1009, %v5508, 0.0
          %5521 = vadd.xlane.f32.xlu0 %v5520
          %v5522 = vpop.xlane.xlu0 %5521
          %v5523 = vsel %vm1009, %v5509, 0.0
          %5524 = vadd.xlane.f32.xlu0 %v5523
          %v5525 = vpop.xlane.xlu0 %5524
          %v5526 = vsel %vm1009, %v5510, 0.0
          %5527 = vadd.xlane.f32.xlu0 %v5526
          %v5528 = vpop.xlane.xlu0 %5527
          %v5529 = vsel %vm1009, %v5511, 0.0
          %5530 = vadd.xlane.f32.xlu0 %v5529
          %v5531 = vpop.xlane.xlu0 %5530
          %v5532 = vsel %vm1009, %v5512, 0.0
          %5533 = vadd.xlane.f32.xlu0 %v5532
          %v5534 = vpop.xlane.xlu0 %5533
          %v5535 = vsel %vm1009, %v5513, 0.0
          %5536 = vadd.xlane.f32.xlu0 %v5535
          %v5537 = vpop.xlane.xlu0 %5536
          %v5538 = vmul.f32 %v5516, %v5489
          %v5539 = vmul.f32 %v5519, %v5489
          %v5540 = vmul.f32 %v5522, %v5489
          %v5541 = vmul.f32 %v5525, %v5489
          %v5542 = vmul.f32 %v5528, %v5489
          %v5543 = vmul.f32 %v5531, %v5489
          %v5544 = vmul.f32 %v5534, %v5489
          %v5545 = vmul.f32 %v5537, %v5489
          %v5546 = vadd.f32 %v5538, 1e-06
          %v5547 = vadd.f32 %v5539, 1e-06
          %v5548 = vadd.f32 %v5540, 1e-06
          %v5549 = vadd.f32 %v5541, 1e-06
          %v5550 = vadd.f32 %v5542, 1e-06
          %v5551 = vadd.f32 %v5543, 1e-06
          %v5552 = vadd.f32 %v5544, 1e-06
          %v5553 = vadd.f32 %v5545, 1e-06
          %v5554 = vrsqrt.pop %v5546
          %v5555 = vrsqrt.pop %v5547
          %v5556 = vrsqrt.pop %v5548
          %v5557 = vrsqrt.pop %v5549
          %v5558 = vrsqrt.pop %v5550
          %v5559 = vrsqrt.pop %v5551
          %v5560 = vrsqrt.pop %v5552
          %v5561 = vrsqrt.pop %v5553
          %v5562 = vmul.f32 %v5498, %v5554
          %v5563 = vmul.f32 %v5499, %v5555
          %v5564 = vmul.f32 %v5500, %v5556
          %v5565 = vmul.f32 %v5501, %v5557
          %v5566 = vmul.f32 %v5502, %v5558
          %v5567 = vmul.f32 %v5503, %v5559
          %v5568 = vmul.f32 %v5504, %v5560
          %v5569 = vmul.f32 %v5505, %v5561
          %v5571 = vlaneseq
          %v5572 = vshrl.u32 %v5571, 7
          %v5573 = vsub.s32 0, %v5572
          %v5574 = vrot.slane %v934, %v5573
          %v5576 = vmul.f32 %v5562, %v5574
          %v5577 = vmul.f32 %v5563, %v5574
          %v5578 = vmul.f32 %v5564, %v5574
          %v5579 = vmul.f32 %v5565, %v5574
          %v5580 = vmul.f32 %v5566, %v5574
          %v5581 = vmul.f32 %v5567, %v5574
          %v5582 = vmul.f32 %v5568, %v5574
          %v5583 = vmul.f32 %v5569, %v5574
          %v5585 = vlaneseq
          %v5586 = vshrl.u32 %v5585, 7
          %v5587 = vsub.s32 0, %v5586
          %v5588 = vrot.slane %v935, %v5587
          %v5590 = vadd.f32 %v5576, %v5588
          %v5591 = vadd.f32 %v5577, %v5588
          %v5592 = vadd.f32 %v5578, %v5588
          %v5593 = vadd.f32 %v5579, %v5588
          %v5594 = vadd.f32 %v5580, %v5588
          %v5595 = vadd.f32 %v5581, %v5588
          %v5596 = vadd.f32 %v5582, %v5588
          %v5597 = vadd.f32 %v5583, %v5588
          %v5598 = vpack.c.bf16 %v5591, %v5590
          %v5599 = vpack.c.bf16 %v5593, %v5592
          %v5600 = vpack.c.bf16 %v5595, %v5594
          %v5601 = vpack.c.bf16 %v5597, %v5596
          %v5603 = vlaneseq
          %v5604 = vshrl.u32 %v5603, 7
          %v5605 = vsub.s32 0, %v5604
          %v5606 = vrot.slane %v908, %v5605
          %v5609 = vsel %vm1009, %v5598, 0
          %v5612 = vsel %vm1009, %v5599, 0
          %v5615 = vsel %vm1009, %v5600, 0
          %v5618 = vsel %vm1009, %v5601, 0
          %5620 = vmatprep.subr.bf16.mxu0 0
          %5621 = vmatpush1.bf16.msra.mxu0 0
          %5622 = vmatprep.subr.bf16.mxu0 0
          %5623 = vmatpush1.bf16.msra.mxu0 0
          %5624 = vmatprep.subr.bf16.mxu0 0
          %5625 = vmatpush1.bf16.msra.mxu0 0
          %5626 = vmatprep.subr.bf16.mxu0 0
          %5627 = vmatpush1.bf16.msra.mxu0 0
          %5628 = vmatprep.subr.bf16.mxu0 0
          %5629 = vmatpush1.bf16.msra.mxu0 0
          %5630 = vmatprep.subr.bf16.mxu0 0
          %5631 = vmatpush1.bf16.msra.mxu0 0
          %5632 = vmatprep.subr.bf16.mxu0 0
          %5633 = vmatpush1.bf16.msra.mxu0 %v907
          %5634 = vmatprep.subr.bf16.mxu0 0
          %5635 = vmatpush1.bf16.msra.mxu0 %v906
          %5636 = vmatprep.subr.bf16.mxu0 0
          %5637 = vmatpush2.bf16.msra.mxu0 0
          %5638 = vmatprep.subr.bf16.mxu0 0
          %5639 = vmatpush2.bf16.msra.mxu0 0
          %5640 = vmatprep.subr.bf16.mxu0 0
          %5641 = vmatpush2.bf16.msra.mxu0 0
          %5642 = vmatprep.subr.bf16.mxu0 0
          %5643 = vmatpush2.bf16.msra.mxu0 0
          %5644 = vmatprep.subr.bf16.mxu0 0
          %5645 = vmatpush2.bf16.msra.mxu0 0
          %5646 = vmatprep.subr.bf16.mxu0 0
          %5647 = vmatpush2.bf16.msra.mxu0 0
          %5648 = vmatprep.subr.bf16.mxu0 0
          %5649 = vmatpush2.bf16.msra.mxu0 0
          %5650 = vmatprep.subr.bf16.mxu0 0
          %5651 = vmatpush2.bf16.msra.mxu0 0
          %5652 = vmatprep.mubr.bf16.mxu0 0
          %5653 = vmatmul.mubr.bf16.gmra.mxu0 %v5609
          %v5654 = vpop.f32.mrf.mxu0
          %v5655 = vadd.f32 %v5606, %v5654
          %v5656 = vpop.f32.mrf.mxu0
          %v5657 = vpop.f32.mrf.mxu0
          %v5658 = vadd.f32 %v5606, %v5657
          %v5659 = vpop.f32.mrf.mxu0
          %5660 = vmatprep.mubr.bf16.mxu0 0
          %5661 = vmatmul.mubr.bf16.gmra.mxu0 %v5612
          %v5662 = vpop.f32.mrf.mxu0
          %v5663 = vadd.f32 %v5606, %v5662
          %v5664 = vpop.f32.mrf.mxu0
          %v5665 = vpop.f32.mrf.mxu0
          %v5666 = vadd.f32 %v5606, %v5665
          %v5667 = vpop.f32.mrf.mxu0
          %5668 = vmatprep.mubr.bf16.mxu0 0
          %5669 = vmatmul.mubr.bf16.gmra.mxu0 %v5615
          %v5670 = vpop.f32.mrf.mxu0
          %v5671 = vadd.f32 %v5606, %v5670
          %v5672 = vpop.f32.mrf.mxu0
          %v5673 = vpop.f32.mrf.mxu0
          %v5674 = vadd.f32 %v5606, %v5673
          %v5675 = vpop.f32.mrf.mxu0
          %5676 = vmatprep.mubr.bf16.mxu0 0
          %5677 = vmatmul.mubr.bf16.gmra.mxu0 %v5618
          %v5678 = vpop.f32.mrf.mxu0
          %v5679 = vadd.f32 %v5606, %v5678
          %v5680 = vpop.f32.mrf.mxu0
          %v5681 = vpop.f32.mrf.mxu0
          %v5682 = vadd.f32 %v5606, %v5681
          %v5683 = vpop.f32.mrf.mxu0
          %5684 = vdwg.mxu0
          %v5685 = vmax.f32 %v5655, 0.0
          %v5686 = vmax.f32 %v5658, 0.0
          %v5687 = vmax.f32 %v5663, 0.0
          %v5688 = vmax.f32 %v5666, 0.0
          %v5689 = vmax.f32 %v5671, 0.0
          %v5690 = vmax.f32 %v5674, 0.0
          %v5691 = vmax.f32 %v5679, 0.0
          %v5692 = vmax.f32 %v5682, 0.0
          %v5693 = vpack.c.bf16 %v5686, %v5685
          %v5694 = vpack.c.bf16 %v5688, %v5687
          %v5695 = vpack.c.bf16 %v5690, %v5689
          %v5696 = vpack.c.bf16 %v5692, %v5691
          %v5698 = vlaneseq
          %v5699 = vshrl.u32 %v5698, 7
          %v5700 = vsub.s32 0, %v5699
          %v5701 = vrot.slane %v933, %v5700
          %5703 = vmatprep.subr.bf16.mxu0 0
          %5704 = vmatpush1.bf16.msra.mxu0 %v932
          %5705 = vmatprep.subr.bf16.mxu0 0
          %5706 = vmatpush1.bf16.msra.mxu0 %v931
          %5707 = vmatprep.subr.bf16.mxu0 0
          %5708 = vmatpush1.bf16.msra.mxu0 %v930
          %5709 = vmatprep.subr.bf16.mxu0 0
          %5710 = vmatpush1.bf16.msra.mxu0 %v929
          %5711 = vmatprep.subr.bf16.mxu0 0
          %5712 = vmatpush1.bf16.msra.mxu0 %v928
          %5713 = vmatprep.subr.bf16.mxu0 0
          %5714 = vmatpush1.bf16.msra.mxu0 %v927
          %5715 = vmatprep.subr.bf16.mxu0 0
          %5716 = vmatpush1.bf16.msra.mxu0 %v926
          %5717 = vmatprep.subr.bf16.mxu0 0
          %5718 = vmatpush1.bf16.msra.mxu0 %v925
          %5719 = vmatprep.subr.bf16.mxu0 0
          %5720 = vmatpush2.bf16.msra.mxu0 0
          %5721 = vmatprep.subr.bf16.mxu0 0
          %5722 = vmatpush2.bf16.msra.mxu0 0
          %5723 = vmatprep.subr.bf16.mxu0 0
          %5724 = vmatpush2.bf16.msra.mxu0 0
          %5725 = vmatprep.subr.bf16.mxu0 0
          %5726 = vmatpush2.bf16.msra.mxu0 0
          %5727 = vmatprep.subr.bf16.mxu0 0
          %5728 = vmatpush2.bf16.msra.mxu0 0
          %5729 = vmatprep.subr.bf16.mxu0 0
          %5730 = vmatpush2.bf16.msra.mxu0 0
          %5731 = vmatprep.subr.bf16.mxu0 0
          %5732 = vmatpush2.bf16.msra.mxu0 0
          %5733 = vmatprep.subr.bf16.mxu0 0
          %5734 = vmatpush2.bf16.msra.mxu0 0
          %5735 = vmatprep.mubr.bf16.mxu0 0
          %5736 = vmatmul.mubr.bf16.gmra.mxu0 %v5693
          %v5737 = vpop.f32.mrf.mxu0
          %v5738 = vadd.f32 %v5701, %v5737
          %v5739 = vpop.f32.mrf.mxu0
          %v5740 = vpop.f32.mrf.mxu0
          %v5741 = vadd.f32 %v5701, %v5740
          %v5742 = vpop.f32.mrf.mxu0
          %5743 = vmatprep.mubr.bf16.mxu0 0
          %5744 = vmatmul.mubr.bf16.gmra.mxu0 %v5694
          %v5745 = vpop.f32.mrf.mxu0
          %v5746 = vadd.f32 %v5701, %v5745
          %v5747 = vpop.f32.mrf.mxu0
          %v5748 = vpop.f32.mrf.mxu0
          %v5749 = vadd.f32 %v5701, %v5748
          %v5750 = vpop.f32.mrf.mxu0
          %5751 = vmatprep.mubr.bf16.mxu0 0
          %5752 = vmatmul.mubr.bf16.gmra.mxu0 %v5695
          %v5753 = vpop.f32.mrf.mxu0
          %v5754 = vadd.f32 %v5701, %v5753
          %v5755 = vpop.f32.mrf.mxu0
          %v5756 = vpop.f32.mrf.mxu0
          %v5757 = vadd.f32 %v5701, %v5756
          %v5758 = vpop.f32.mrf.mxu0
          %5759 = vmatprep.mubr.bf16.mxu0 0
          %5760 = vmatmul.mubr.bf16.gmra.mxu0 %v5696
          %v5761 = vpop.f32.mrf.mxu0
          %v5762 = vadd.f32 %v5701, %v5761
          %v5763 = vpop.f32.mrf.mxu0
          %v5764 = vpop.f32.mrf.mxu0
          %v5765 = vadd.f32 %v5701, %v5764
          %v5766 = vpop.f32.mrf.mxu0
          %5767 = vdwg.mxu0
          %v5768 = vadd.f32 %v5590, %v5738
          %v5769 = vadd.f32 %v5591, %v5741
          %v5770 = vadd.f32 %v5592, %v5746
          %v5771 = vadd.f32 %v5593, %v5749
          %v5772 = vadd.f32 %v5594, %v5754
          %v5773 = vadd.f32 %v5595, %v5757
          %v5774 = vadd.f32 %v5596, %v5762
          %v5775 = vadd.f32 %v5597, %v5765
          %v5776 = vsel %vm1009, %v5768, 0.0
          %5777 = vadd.xlane.f32.xlu0 %v5776
          %v5778 = vpop.xlane.xlu0 %5777
          %v5779 = vsel %vm1009, %v5769, 0.0
          %5780 = vadd.xlane.f32.xlu0 %v5779
          %v5781 = vpop.xlane.xlu0 %5780
          %v5782 = vsel %vm1009, %v5770, 0.0
          %5783 = vadd.xlane.f32.xlu0 %v5782
          %v5784 = vpop.xlane.xlu0 %5783
          %v5785 = vsel %vm1009, %v5771, 0.0
          %5786 = vadd.xlane.f32.xlu0 %v5785
          %v5787 = vpop.xlane.xlu0 %5786
          %v5788 = vsel %vm1009, %v5772, 0.0
          %5789 = vadd.xlane.f32.xlu0 %v5788
          %v5790 = vpop.xlane.xlu0 %5789
          %v5791 = vsel %vm1009, %v5773, 0.0
          %5792 = vadd.xlane.f32.xlu0 %v5791
          %v5793 = vpop.xlane.xlu0 %5792
          %v5794 = vsel %vm1009, %v5774, 0.0
          %5795 = vadd.xlane.f32.xlu0 %v5794
          %v5796 = vpop.xlane.xlu0 %5795
          %v5797 = vsel %vm1009, %v5775, 0.0
          %5798 = vadd.xlane.f32.xlu0 %v5797
          %v5799 = vpop.xlane.xlu0 %5798
          %v5800 = vmul.f32 %v5778, %v5489
          %v5801 = vmul.f32 %v5781, %v5489
          %v5802 = vmul.f32 %v5784, %v5489
          %v5803 = vmul.f32 %v5787, %v5489
          %v5804 = vmul.f32 %v5790, %v5489
          %v5805 = vmul.f32 %v5793, %v5489
          %v5806 = vmul.f32 %v5796, %v5489
          %v5807 = vmul.f32 %v5799, %v5489
          %v5808 = vsub.f32 %v5768, %v5800
          %v5809 = vsub.f32 %v5769, %v5801
          %v5810 = vsub.f32 %v5770, %v5802
          %v5811 = vsub.f32 %v5771, %v5803
          %v5812 = vsub.f32 %v5772, %v5804
          %v5813 = vsub.f32 %v5773, %v5805
          %v5814 = vsub.f32 %v5774, %v5806
          %v5815 = vsub.f32 %v5775, %v5807
          %v5816 = vmul.f32 %v5808, %v5808
          %v5817 = vmul.f32 %v5809, %v5809
          %v5818 = vmul.f32 %v5810, %v5810
          %v5819 = vmul.f32 %v5811, %v5811
          %v5820 = vmul.f32 %v5812, %v5812
          %v5821 = vmul.f32 %v5813, %v5813
          %v5822 = vmul.f32 %v5814, %v5814
          %v5823 = vmul.f32 %v5815, %v5815
          %v5824 = vsel %vm1009, %v5816, 0.0
          %5825 = vadd.xlane.f32.xlu0 %v5824
          %v5826 = vpop.xlane.xlu0 %5825
          %v5827 = vsel %vm1009, %v5817, 0.0
          %5828 = vadd.xlane.f32.xlu0 %v5827
          %v5829 = vpop.xlane.xlu0 %5828
          %v5830 = vsel %vm1009, %v5818, 0.0
          %5831 = vadd.xlane.f32.xlu0 %v5830
          %v5832 = vpop.xlane.xlu0 %5831
          %v5833 = vsel %vm1009, %v5819, 0.0
          %5834 = vadd.xlane.f32.xlu0 %v5833
          %v5835 = vpop.xlane.xlu0 %5834
          %v5836 = vsel %vm1009, %v5820, 0.0
          %5837 = vadd.xlane.f32.xlu0 %v5836
          %v5838 = vpop.xlane.xlu0 %5837
          %v5839 = vsel %vm1009, %v5821, 0.0
          %5840 = vadd.xlane.f32.xlu0 %v5839
          %v5841 = vpop.xlane.xlu0 %5840
          %v5842 = vsel %vm1009, %v5822, 0.0
          %5843 = vadd.xlane.f32.xlu0 %v5842
          %v5844 = vpop.xlane.xlu0 %5843
          %v5845 = vsel %vm1009, %v5823, 0.0
          %5846 = vadd.xlane.f32.xlu0 %v5845
          %v5847 = vpop.xlane.xlu0 %5846
          %v5848 = vmul.f32 %v5826, %v5489
          %v5849 = vmul.f32 %v5829, %v5489
          %v5850 = vmul.f32 %v5832, %v5489
          %v5851 = vmul.f32 %v5835, %v5489
          %v5852 = vmul.f32 %v5838, %v5489
          %v5853 = vmul.f32 %v5841, %v5489
          %v5854 = vmul.f32 %v5844, %v5489
          %v5855 = vmul.f32 %v5847, %v5489
          %v5856 = vadd.f32 %v5848, 1e-06
          %v5857 = vadd.f32 %v5849, 1e-06
          %v5858 = vadd.f32 %v5850, 1e-06
          %v5859 = vadd.f32 %v5851, 1e-06
          %v5860 = vadd.f32 %v5852, 1e-06
          %v5861 = vadd.f32 %v5853, 1e-06
          %v5862 = vadd.f32 %v5854, 1e-06
          %v5863 = vadd.f32 %v5855, 1e-06
          %v5864 = vrsqrt.pop %v5856
          %v5865 = vrsqrt.pop %v5857
          %v5866 = vrsqrt.pop %v5858
          %v5867 = vrsqrt.pop %v5859
          %v5868 = vrsqrt.pop %v5860
          %v5869 = vrsqrt.pop %v5861
          %v5870 = vrsqrt.pop %v5862
          %v5871 = vrsqrt.pop %v5863
          %v5872 = vmul.f32 %v5808, %v5864
          %v5873 = vmul.f32 %v5809, %v5865
          %v5874 = vmul.f32 %v5810, %v5866
          %v5875 = vmul.f32 %v5811, %v5867
          %v5876 = vmul.f32 %v5812, %v5868
          %v5877 = vmul.f32 %v5813, %v5869
          %v5878 = vmul.f32 %v5814, %v5870
          %v5879 = vmul.f32 %v5815, %v5871
          %v5881 = vlaneseq
          %v5882 = vshrl.u32 %v5881, 7
          %v5883 = vsub.s32 0, %v5882
          %v5884 = vrot.slane %v936, %v5883
          %v5886 = vmul.f32 %v5872, %v5884
          %v5887 = vmul.f32 %v5873, %v5884
          %v5888 = vmul.f32 %v5874, %v5884
          %v5889 = vmul.f32 %v5875, %v5884
          %v5890 = vmul.f32 %v5876, %v5884
          %v5891 = vmul.f32 %v5877, %v5884
          %v5892 = vmul.f32 %v5878, %v5884
          %v5893 = vmul.f32 %v5879, %v5884
          %v5895 = vlaneseq
          %v5896 = vshrl.u32 %v5895, 7
          %v5897 = vsub.s32 0, %v5896
          %v5898 = vrot.slane %v937, %v5897
          %v5900 = vadd.f32 %v5886, %v5898
          %v5901 = vadd.f32 %v5887, %v5898
          %v5902 = vadd.f32 %v5888, %v5898
          %v5903 = vadd.f32 %v5889, %v5898
          %v5904 = vadd.f32 %v5890, %v5898
          %v5905 = vadd.f32 %v5891, %v5898
          %v5906 = vadd.f32 %v5892, %v5898
          %v5907 = vadd.f32 %v5893, %v5898
          %5909 = vset.pattern.permute.xlu0 0
          %5910 = vperm.xlu0 %5909, %v1288
          %v5911 = vpop.permute.xlu0 %5910
          %5914 = vset.pattern.permute.xlu0 0
          %5915 = vperm.xlu0 %5914, %v1289
          %v5916 = vpop.permute.xlu0 %5915
          %5919 = vset.pattern.permute.xlu0 0
          %5920 = vperm.xlu0 %5919, %v1290
          %v5921 = vpop.permute.xlu0 %5920
          %5924 = vset.pattern.permute.xlu0 0
          %5925 = vperm.xlu0 %5924, %v1291
          %v5926 = vpop.permute.xlu0 %5925
          %5929 = vset.pattern.permute.xlu0 0
          %5930 = vperm.xlu0 %5929, %v1292
          %v5931 = vpop.permute.xlu0 %5930
          %5934 = vset.pattern.permute.xlu0 0
          %5935 = vperm.xlu0 %5934, %v1293
          %v5936 = vpop.permute.xlu0 %5935
          %5939 = vset.pattern.permute.xlu0 0
          %5940 = vperm.xlu0 %5939, %v1294
          %v5941 = vpop.permute.xlu0 %5940
          %5944 = vset.pattern.permute.xlu0 0
          %5945 = vperm.xlu0 %5944, %v1295
          %v5946 = vpop.permute.xlu0 %5945
          %v5948 = vmul.f32 %v5900, %v5911
          %v5949 = vmul.f32 %v5901, %v5916
          %v5950 = vmul.f32 %v5902, %v5921
          %v5951 = vmul.f32 %v5903, %v5926
          %v5952 = vmul.f32 %v5904, %v5931
          %v5953 = vmul.f32 %v5905, %v5936
          %v5954 = vmul.f32 %v5906, %v5941
          %v5955 = vmul.f32 %v5907, %v5946
          %v5956 = vsub.f32 1.0, %v1288
          %v5957 = vsub.f32 1.0, %v1289
          %v5958 = vsub.f32 1.0, %v1290
          %v5959 = vsub.f32 1.0, %v1291
          %v5960 = vsub.f32 1.0, %v1292
          %v5961 = vsub.f32 1.0, %v1293
          %v5962 = vsub.f32 1.0, %v1294
          %v5963 = vsub.f32 1.0, %v1295
          %5965 = vset.pattern.permute.xlu0 0
          %5966 = vperm.xlu0 %5965, %v5956
          %v5967 = vpop.permute.xlu0 %5966
          %5970 = vset.pattern.permute.xlu0 0
          %5971 = vperm.xlu0 %5970, %v5957
          %v5972 = vpop.permute.xlu0 %5971
          %5975 = vset.pattern.permute.xlu0 0
          %5976 = vperm.xlu0 %5975, %v5958
          %v5977 = vpop.permute.xlu0 %5976
          %5980 = vset.pattern.permute.xlu0 0
          %5981 = vperm.xlu0 %5980, %v5959
          %v5982 = vpop.permute.xlu0 %5981
          %5985 = vset.pattern.permute.xlu0 0
          %5986 = vperm.xlu0 %5985, %v5960
          %v5987 = vpop.permute.xlu0 %5986
          %5990 = vset.pattern.permute.xlu0 0
          %5991 = vperm.xlu0 %5990, %v5961
          %v5992 = vpop.permute.xlu0 %5991
          %5995 = vset.pattern.permute.xlu0 0
          %5996 = vperm.xlu0 %5995, %v5962
          %v5997 = vpop.permute.xlu0 %5996
          %6000 = vset.pattern.permute.xlu0 0
          %6001 = vperm.xlu0 %6000, %v5963
          %v6002 = vpop.permute.xlu0 %6001
          %v6004 = vmul.f32 %v976, %v5967
          %v6005 = vmul.f32 %v977, %v5972
          %v6006 = vmul.f32 %v978, %v5977
          %v6007 = vmul.f32 %v979, %v5982
          %v6008 = vmul.f32 %v980, %v5987
          %v6009 = vmul.f32 %v981, %v5992
          %v6010 = vmul.f32 %v982, %v5997
          %v6011 = vmul.f32 %v983, %v6002
          %v6012 = vadd.f32 %v5948, %v6004
          %v6013 = vadd.f32 %v5949, %v6005
          %v6014 = vadd.f32 %v5950, %v6006
          %v6015 = vadd.f32 %v5951, %v6007
          %v6016 = vadd.f32 %v5952, %v6008
          %v6017 = vadd.f32 %v5953, %v6009
          %v6018 = vadd.f32 %v5954, %v6010
          %v6019 = vadd.f32 %v5955, %v6011
        $region133: #{tpu_custom_call.1} parent=103 // loop_footer
          %s943 = sadd.s32 1, %s939
        $region134: #{tpu_custom_call.1} parent=103 // loop_footer_branch
          %938 = sbr.rel target = $region130
        $region135: #{tpu_custom_call.1} parent=103 // loop_exit
          _
        %vm6020 = vcmask 261120
        %6021 = vst.msk [vmem:[%s820] sm:$0xff] %vm6020, %v976
        %6022 = vst.msk [vmem:[%s820 + $0x8] sm:$0xff] %vm6020, %v977
        %6023 = vst.msk [vmem:[%s820 + $0x10] sm:$0xff] %vm6020, %v978
        %6024 = vst.msk [vmem:[%s820 + $0x18] sm:$0xff] %vm6020, %v979
        %6025 = vst.msk [vmem:[%s820 + $0x20] sm:$0xff] %vm6020, %v980
        %6026 = vst.msk [vmem:[%s820 + $0x28] sm:$0xff] %vm6020, %v981
        %6027 = vst.msk [vmem:[%s820 + $0x30] sm:$0xff] %vm6020, %v982
        %6028 = vst.msk [vmem:[%s820 + $0x38] sm:$0xff] %vm6020, %v983
        %vm6029 = vcmask 7168
        %6030 = vst.msk [vmem:[%s847] sm:$0xff] %vm6029, %v960
        %6031 = vst.msk [vmem:[%s847 + $0x8] sm:$0xff] %vm6029, %v961
        %6032 = vst.msk [vmem:[%s847 + $0x10] sm:$0xff] %vm6029, %v962
        %6033 = vst.msk [vmem:[%s847 + $0x18] sm:$0xff] %vm6029, %v963
        %6034 = vst.msk [vmem:[%s847 + $0x20] sm:$0xff] %vm6029, %v964
        %6035 = vst.msk [vmem:[%s847 + $0x28] sm:$0xff] %vm6029, %v965
        %6036 = vst.msk [vmem:[%s847 + $0x30] sm:$0xff] %vm6029, %v966
        %6037 = vst.msk [vmem:[%s847 + $0x38] sm:$0xff] %vm6029, %v967
        %6038 = vst.msk [vmem:[%s853] sm:$0xff] %vm6029, %v968
        %6039 = vst.msk [vmem:[%s853 + $0x8] sm:$0xff] %vm6029, %v969
        %6040 = vst.msk [vmem:[%s853 + $0x10] sm:$0xff] %vm6029, %v970
        %6041 = vst.msk [vmem:[%s853 + $0x18] sm:$0xff] %vm6029, %v971
        %6042 = vst.msk [vmem:[%s853 + $0x20] sm:$0xff] %vm6029, %v972
        %6043 = vst.msk [vmem:[%s853 + $0x28] sm:$0xff] %vm6029, %v973
        %6044 = vst.msk [vmem:[%s853 + $0x30] sm:$0xff] %vm6029, %v974
        %6045 = vst.msk [vmem:[%s853 + $0x38] sm:$0xff] %vm6029, %v975
        %s6046 = sand.u32 %s505, 1
        %s6047 = scalar_lea.sflag [#allocation5], %s6046
        %s6048 = sand.u32 %s505, 1
        %s6049 = smul.addr %s6048, 64
        %s6050 = scalar_lea.vmem [#allocation14], %s6049
        %s6051 = smul.u32 8, %s46
        %p6052 = scmp.lt.s32.totalorder %s6051, 15
        %s6053 = scalar_select %p6052, %s6051, 15
        %s6054 = smul.addr %s6053, 8
        %s6055 = scalar_lea.vmem %s22, %s6054
        %s6056 = smul.u32 8, %s46
        %p6057 = scmp.lt.s32.totalorder %s6056, 15
        %s6058 = scalar_select %p6057, %s6056, 15
        %s6059 = smul.addr %s6058, 8
        %s6060 = scalar_lea.vmem %s23, %s6059
        // Predicated region
        $region136: #{tpu_custom_call.1} parent=103 // pred_check
          %p6061 = pneg %p515
        $region137: #{tpu_custom_call.1} parent=103 // pred_check_branch
          %6063 = sbr.rel (%p6061) target = $region139
        $region138: #{tpu_custom_call.1} parent=103 // pred_region
          %s6064 = smul.u32 8, %s46
          %s6066 = ssub.s32 1024, 1024
          %6067 = vsyncadd %s6047, %s6066
          %s6068 = smul.addr %s6064, 128
          %s6069 = scalar_lea.hbm %s21, %s6068
          %s6070 = sshll.u32 %s6050, 4
          %s6071 = int_to_ptr.vmem [resolvable:$true] %s6070
          %6076 = dma.vmem_to_hbm [thread:$0]  %s6071, 1024, %s6069, %s6047, 128, 128, 8
        $region139: #{tpu_custom_call.1} parent=103 // pred_fallthru
          _
        // Predicated region
        $region140: #{tpu_custom_call.1} parent=103 // pred_check
          %p6077 = pneg %p541
        $region141: #{tpu_custom_call.1} parent=103 // pred_check_branch
          %6079 = sbr.rel (%p6077) target = $region143
        $region142: #{tpu_custom_call.1} parent=103 // pred_region
          %s6080 = smul.u32 8, %s46
        $region143: #{tpu_custom_call.1} parent=103 // pred_fallthru
          _
        // Predicated region
        $region144: #{tpu_custom_call.1} parent=103 // pred_check
          %p6081 = pneg %p567
        $region145: #{tpu_custom_call.1} parent=103 // pred_check_branch
          %6083 = sbr.rel (%p6081) target = $region147
        $region146: #{tpu_custom_call.1} parent=103 // pred_region
          %s6084 = smul.u32 8, %s46
        $region147: #{tpu_custom_call.1} parent=103 // pred_fallthru
          _
      $region104: #{tpu_custom_call.1} parent=5 // pred_fallthru
        _
      %p6085 = scmp.le.s32.totalorder 2, %s41
      // Predicated region
      $region148: #{tpu_custom_call.1} parent=5 // pred_check
        %p6086 = pneg %p6085
      $region149: #{tpu_custom_call.1} parent=5 // pred_check_branch
        %6088 = sbr.rel (%p6086) target = $region151
      $region150: #{tpu_custom_call.1} parent=5 // pred_region
        %s6089 = ssub.s32 %s41, 2
        // Predicated region
        $region152: #{tpu_custom_call.1} parent=150 // pred_check
          %p6090 = pneg %p521
        $region153: #{tpu_custom_call.1} parent=150 // pred_check_branch
          %6092 = sbr.rel (%p6090) target = $region155
        $region154: #{tpu_custom_call.1} parent=150 // pred_region
          %s6093 = sand.u32 %s506, 1
          %s6094 = scalar_lea.sflag [#allocation5], %s6093
          %s6095 = sand.u32 %s506, 1
          %s6096 = smul.addr %s6095, 64
          %s6097 = scalar_lea.vmem [#allocation14], %s6096
          %6098 = dma.done %s6094, 1024
        $region155: #{tpu_custom_call.1} parent=150 // pred_fallthru
          _
        // Predicated region
        $region156: #{tpu_custom_call.1} parent=150 // pred_check
          %p6099 = pneg %p547
        $region157: #{tpu_custom_call.1} parent=150 // pred_check_branch
          %6101 = sbr.rel (%p6099) target = $region159
        $region158: #{tpu_custom_call.1} parent=150 // pred_region
          %s6102 = smul.u32 8, %s47
          %p6103 = scmp.lt.s32.totalorder %s6102, 15
          %s6104 = scalar_select %p6103, %s6102, 15
          %s6105 = smul.addr %s6104, 8
          %s6106 = scalar_lea.vmem %s22, %s6105
        $region159: #{tpu_custom_call.1} parent=150 // pred_fallthru
          _
        // Predicated region
        $region160: #{tpu_custom_call.1} parent=150 // pred_check
          %p6107 = pneg %p573
        $region161: #{tpu_custom_call.1} parent=150 // pred_check_branch
          %6109 = sbr.rel (%p6107) target = $region163
        $region162: #{tpu_custom_call.1} parent=150 // pred_region
          %s6110 = smul.u32 8, %s47
          %p6111 = scmp.lt.s32.totalorder %s6110, 15
          %s6112 = scalar_select %p6111, %s6110, 15
          %s6113 = smul.addr %s6112, 8
          %s6114 = scalar_lea.vmem %s23, %s6113
        $region163: #{tpu_custom_call.1} parent=150 // pred_fallthru
          _
      $region151: #{tpu_custom_call.1} parent=5 // pred_fallthru
        _
    $region6: #{tpu_custom_call.1} parent=1 // loop_footer
      %s45 = sadd.s32 1, %s41
    $region7: #{tpu_custom_call.1} parent=1 // loop_footer_branch
      %40 = sbr.rel target = $region3
    $region8: #{tpu_custom_call.1} parent=1 // loop_exit
      _
    %6115 = vsyncpa [#allocation4], 1
    %s6116 = scalar_lea.sflag [#allocation4], 1
    %6117 = vsyncpa %s6116, 1
    %6118 = vsyncpa [#allocation7], 1
    %6119 = vsyncpa [#allocation10], 1
    %6120 = vsyncpa [#allocation13], 1
    %6121 = vsyncpa [#allocation5], 1
    %s6122 = scalar_lea.sflag [#allocation5], 1
    %6123 = vsyncpa %s6122, 1

</llo_original>
